<compile_context>
chip_gen: v5e
topology: v5e:2x2
jax: 0.10.0
libtpu: 0.0.40
codegen_flags: <defaults>
</compile_context>

<pallas_src>
import jax
import jax.numpy as jnp
from jax import lax
from jax.experimental import pallas as pl
from jax.experimental.pallas import tpu as pltpu

NEG_SLOPE = 0.01      # nn.LeakyReLU default negative_slope
OUT_PAD = 128         # lane-dense padded head output; real logits = first 10 cols


def _leaky_relu_f32(x):
    # keep elementwise in f32 (v5e VPU has no native bf16 path)
    return jnp.where(x > 0, x, NEG_SLOPE * x)


def _row_argmax(z):
    # first-occurrence argmax along last axis -> (rows, 1) int32 (XLU lane reduce)
    n = z.shape[1]
    col = lax.broadcasted_iota(jnp.int32, z.shape, 1)
    mx = jnp.max(z, axis=1, keepdims=True)
    return jnp.min(jnp.where(z == mx, col, n), axis=1, keepdims=True).astype(jnp.int32)


# ---------------------------------------------------------------------------
# Fused forward kernel (encoder x2 + embedding gather + head, one launch)
# ---------------------------------------------------------------------------
def _fused_forward_kernel(xx_ref, koff_ref,
                          enc_w1_ref, enc_b1_ref, enc_w2_ref, enc_b2_ref,
                          emb_ref,
                          w1a_ref, w1b_ref, w1c_ref, b1_ref,
                          w2_ref, b2_ref,
                          out_ref, z_ref, ind_ref):
    B = out_ref.shape[0]

    # ---- encoder: x and x_next stacked into one (2B, inp) batch ------------
    xx = xx_ref[...].astype(jnp.bfloat16)
    h = jnp.dot(xx, enc_w1_ref[...], preferred_element_type=jnp.float32)
    h = _leaky_relu_f32(h + enc_b1_ref[...])
    z = jnp.dot(h.astype(jnp.bfloat16), enc_w2_ref[...],
                preferred_element_type=jnp.float32) + enc_b2_ref[...]       # (2B, 512) f32

    # store latent + indices once as (2B, ...); wrapper splits into z1/z2
    z_ref[...] = z
    ind_ref[...] = _row_argmax(z)

    z1 = z[:B, :]
    z2 = z[B:, :]

    # ---- offset embedding gather: one-hot matmul over the (padded) table ---
    k = koff_ref[...]                                                        # (B, 1) int32
    n_rows = emb_ref.shape[0]
    row_ids = lax.broadcasted_iota(jnp.int32, (B, n_rows), 1)
    onehot = (row_ids == k).astype(jnp.bfloat16)
    emb = jnp.dot(onehot, emb_ref[...], preferred_element_type=jnp.float32)  # (B, 512)

    # ---- head: cat([z1, z2, emb], 1) @ W1 + b1 as a split-K matmul ----------
    h2 = (jnp.dot(z1.astype(jnp.bfloat16), w1a_ref[...], preferred_element_type=jnp.float32)
          + jnp.dot(z2.astype(jnp.bfloat16), w1b_ref[...], preferred_element_type=jnp.float32)
          + jnp.dot(emb.astype(jnp.bfloat16), w1c_ref[...], preferred_element_type=jnp.float32)
          + b1_ref[...])
    h2 = _leaky_relu_f32(h2)
    out = jnp.dot(h2.astype(jnp.bfloat16), w2_ref[...],
                  preferred_element_type=jnp.float32) + b2_ref[...]          # (B, 128)
    out_ref[...] = out


# ---------------------------------------------------------------------------
# Wrapper: single pallas_call, everything VMEM-resident (weights ~4.6 MB bf16)
# ---------------------------------------------------------------------------
def classifier_forward(params, x, x_next, k_offset):
    B = x.shape[0]
    xx = jnp.concatenate([x, x_next], axis=0)                 # (2B, inp)
    koff = k_offset.astype(jnp.int32).reshape(B, 1)

    inputs = (xx, koff,
              params["enc_w1"], params["enc_b1"], params["enc_w2"], params["enc_b2"],
              params["offset_emb"],
              params["out_w1a"], params["out_w1b"], params["out_w1c"], params["out_b1"],
              params["out_w2"], params["out_b2"])

    out_shapes = (
        jax.ShapeDtypeStruct((B, OUT_PAD), jnp.float32),      # padded head logits
        jax.ShapeDtypeStruct((2 * B, 512), jnp.float32),      # [z1; z2]
        jax.ShapeDtypeStruct((2 * B, 1), jnp.int32),          # [ind_1; ind_2]
    )

    def full_spec(shape):
        return pl.BlockSpec(shape, lambda i: (0,) * len(shape))

    out_pad, z, ind = pl.pallas_call(
        _fused_forward_kernel,
        out_shape=out_shapes,
        grid=(1,),
        in_specs=[full_spec(a.shape) for a in inputs],
        out_specs=tuple(full_spec(s.shape) for s in out_shapes),
        compiler_params=pltpu.CompilerParams(
            dimension_semantics=("arbitrary",),
            vmem_limit_bytes=32 << 20),                       # safe on v5e/v6e/v7x
    )(*inputs)

    out = out_pad[:, :10]                                     # drop lane padding
    z1, z2 = z[:B, :], z[B:, :]
    ind_1, ind_2 = ind[:B, 0], ind[B:, 0]
    # el_1 + el_2 + ae_loss; stand-in encoder returns 0 embedding loss
    loss = jnp.zeros((), jnp.float32)
    return out, loss, ind_1, ind_2, z1, z2


# ---------------------------------------------------------------------------
# Parameter construction (weights bf16, biases f32, padded where needed)
# ---------------------------------------------------------------------------
def init_params(key, inp_size, maxk):
    ks = jax.random.split(key, 11)

    def w(k, shape, dtype=jnp.bfloat16, scale=0.02):
        return (scale * jax.random.normal(k, shape, dtype=jnp.float32)).astype(dtype)

    # nn.Embedding(maxk + 5, 512) -- rows padded to a sublane multiple; padded
    # rows are never selected (k_offset < maxk + 5).
    n_rows = maxk + 5
    n_rows_pad = ((n_rows + 7) // 8) * 8
    emb = w(ks[4], (n_rows, 512))
    emb = jnp.pad(emb, ((0, n_rows_pad - n_rows), (0, 0)))

    # Final Linear(1024, 10) padded to 128 lane-dense output columns.
    w2 = jnp.pad(w(ks[9], (1024, 10)), ((0, 0), (0, OUT_PAD - 10)))
    b2 = jnp.pad(w(ks[10], (1, 10), dtype=jnp.float32), ((0, 0), (0, OUT_PAD - 10)))

    return {
        # Encoder stand-in (inp_size -> 1024 -> 512), weights pre-transposed (in, out)
        "enc_w1": w(ks[0], (inp_size, 1024)),
        "enc_b1": w(ks[1], (1, 1024), dtype=jnp.float32),
        "enc_w2": w(ks[2], (1024, 512)),
        "enc_b2": w(ks[3], (1, 512), dtype=jnp.float32),
        "offset_emb": emb,                                    # (n_rows_pad, 512) bf16
        # self.out = Linear(512*3, 1024) -> LeakyReLU -> Linear(1024, 10)
        # W1 stored as three (512, 1024) row blocks (split-K concat).
        "out_w1a": w(ks[5], (512, 1024)),
        "out_w1b": w(ks[6], (512, 1024)),
        "out_w1c": w(ks[7], (512, 1024)),
        "out_b1": w(ks[8], (1, 1024), dtype=jnp.float32),
        "out_w2": w2,                                         # (1024, 128) bf16
        "out_b2": b2,                                         # (1, 128) f32
    }


if __name__ == "__main__":
    B = 2
    INP_SIZE = 128
    MAXK = 8

    key = jax.random.PRNGKey(0)
    k_params, k_x, k_xn, k_off = jax.random.split(key, 4)

    params = init_params(k_params, INP_SIZE, MAXK)
    x = jax.random.normal(k_x, (B, INP_SIZE), dtype=jnp.float32)
    x_next = jax.random.normal(k_xn, (B, INP_SIZE), dtype=jnp.float32)
    k_offset = jax.random.randint(k_off, (B,), 0, MAXK + 5)

    out, loss, ind_1, ind_2, z1, z2 = classifier_forward(params, x, x_next, k_offset)
    jax.block_until_ready((out, loss, ind_1, ind_2, z1, z2))

    assert out.shape == (B, 10)
    assert z1.shape == (B, 512) and z2.shape == (B, 512)
    assert ind_1.shape == (B,) and ind_2.shape == (B,)
    print("KERNEL_OK")
</pallas_src>

<mosaic_0001>
module attributes {stable_mosaic.version = 11 : i64} {
  func.func @_fused_forward_kernel(%arg0: i32, %arg1: memref<4x128xf32, #tpu.memory_space<vmem>>, %arg2: memref<2x1xi32, #tpu.memory_space<vmem>>, %arg3: memref<128x1024xbf16, #tpu.memory_space<vmem>>, %arg4: memref<1x1024xf32, #tpu.memory_space<vmem>>, %arg5: memref<1024x512xbf16, #tpu.memory_space<vmem>>, %arg6: memref<1x512xf32, #tpu.memory_space<vmem>>, %arg7: memref<16x512xbf16, #tpu.memory_space<vmem>>, %arg8: memref<512x1024xbf16, #tpu.memory_space<vmem>>, %arg9: memref<512x1024xbf16, #tpu.memory_space<vmem>>, %arg10: memref<512x1024xbf16, #tpu.memory_space<vmem>>, %arg11: memref<1x1024xf32, #tpu.memory_space<vmem>>, %arg12: memref<1024x128xbf16, #tpu.memory_space<vmem>>, %arg13: memref<1x128xf32, #tpu.memory_space<vmem>>, %arg14: memref<2x128xf32, #tpu.memory_space<vmem>>, %arg15: memref<4x512xf32, #tpu.memory_space<vmem>>, %arg16: memref<4x1xi32, #tpu.memory_space<vmem>>) attributes {dimension_semantics = [#tpu.dimension_semantics<arbitrary>], iteration_bounds = array<i64: 1>, scalar_prefetch = 0 : i64, scratch_operands = 0 : i64, tpu.core_type = #tpu.core_type<tc>, window_params = [{pipeline_mode = #tpu.pipeline_mode<synchronous>, transform_indices = @transform_0, window_bounds = array<i64: 4, 128>}, {pipeline_mode = #tpu.pipeline_mode<synchronous>, transform_indices = @transform_1, window_bounds = array<i64: 2, 1>}, {pipeline_mode = #tpu.pipeline_mode<synchronous>, transform_indices = @transform_2, window_bounds = array<i64: 128, 1024>}, {pipeline_mode = #tpu.pipeline_mode<synchronous>, transform_indices = @transform_3, window_bounds = array<i64: 1, 1024>}, {pipeline_mode = #tpu.pipeline_mode<synchronous>, transform_indices = @transform_4, window_bounds = array<i64: 1024, 512>}, {pipeline_mode = #tpu.pipeline_mode<synchronous>, transform_indices = @transform_5, window_bounds = array<i64: 1, 512>}, {pipeline_mode = #tpu.pipeline_mode<synchronous>, transform_indices = @transform_6, window_bounds = array<i64: 16, 512>}, {pipeline_mode = #tpu.pipeline_mode<synchronous>, transform_indices = @transform_7, window_bounds = array<i64: 512, 1024>}, {pipeline_mode = #tpu.pipeline_mode<synchronous>, transform_indices = @transform_8, window_bounds = array<i64: 512, 1024>}, {pipeline_mode = #tpu.pipeline_mode<synchronous>, transform_indices = @transform_9, window_bounds = array<i64: 512, 1024>}, {pipeline_mode = #tpu.pipeline_mode<synchronous>, transform_indices = @transform_10, window_bounds = array<i64: 1, 1024>}, {pipeline_mode = #tpu.pipeline_mode<synchronous>, transform_indices = @transform_11, window_bounds = array<i64: 1024, 128>}, {pipeline_mode = #tpu.pipeline_mode<synchronous>, transform_indices = @transform_12, window_bounds = array<i64: 1, 128>}, {pipeline_mode = #tpu.pipeline_mode<synchronous>, transform_indices = @transform_13, window_bounds = array<i64: 2, 128>}, {pipeline_mode = #tpu.pipeline_mode<synchronous>, transform_indices = @transform_14, window_bounds = array<i64: 4, 512>}, {pipeline_mode = #tpu.pipeline_mode<synchronous>, transform_indices = @transform_15, window_bounds = array<i64: 4, 1>}]} {
    %c0 = arith.constant 0 : index
    %c0_0 = arith.constant 0 : index
    %0 = vector.load %arg1[%c0, %c0_0] : memref<4x128xf32, #tpu.memory_space<vmem>>, vector<4x128xf32>
    %1 = arith.truncf %0 : vector<4x128xf32> to vector<4x128xbf16>
    %c0_1 = arith.constant 0 : index
    %c0_2 = arith.constant 0 : index
    %2 = vector.load %arg3[%c0_1, %c0_2] : memref<128x1024xbf16, #tpu.memory_space<vmem>>, vector<128x1024xbf16>
    %cst = arith.constant dense<0.000000e+00> : vector<4x1024xf32>
    %3 = tpu.matmul %1, %2, %cst {dimension_numbers = #tpu.dot_dimension_numbers<[1], [0], [0], [1], [0, 0, 1, 1], [], []>} : vector<4x128xbf16>, vector<128x1024xbf16>, vector<4x1024xf32> -> vector<4x1024xf32>
    %c0_3 = arith.constant 0 : index
    %c0_4 = arith.constant 0 : index
    %4 = vector.load %arg4[%c0_3, %c0_4] : memref<1x1024xf32, #tpu.memory_space<vmem>>, vector<1x1024xf32>
    %5 = vector.broadcast %4 : vector<1x1024xf32> to vector<4x1024xf32>
    %6 = arith.addf %3, %5 : vector<4x1024xf32>
    %cst_5 = arith.constant 0.000000e+00 : f32
    %7 = vector.broadcast %cst_5 : f32 to vector<4x1024xf32>
    %8 = arith.cmpf ogt, %6, %7 : vector<4x1024xf32>
    %cst_6 = arith.constant 0.00999999977 : f32
    %9 = vector.broadcast %cst_6 : f32 to vector<4x1024xf32>
    %10 = arith.mulf %9, %6 : vector<4x1024xf32>
    %11 = arith.select %8, %6, %10 : vector<4x1024xi1>, vector<4x1024xf32>
    %12 = arith.truncf %11 : vector<4x1024xf32> to vector<4x1024xbf16>
    %c0_7 = arith.constant 0 : index
    %c0_8 = arith.constant 0 : index
    %13 = vector.load %arg5[%c0_7, %c0_8] : memref<1024x512xbf16, #tpu.memory_space<vmem>>, vector<1024x512xbf16>
    %cst_9 = arith.constant dense<0.000000e+00> : vector<4x512xf32>
    %14 = tpu.matmul %12, %13, %cst_9 {dimension_numbers = #tpu.dot_dimension_numbers<[1], [0], [0], [1], [0, 0, 1, 1], [], []>} : vector<4x1024xbf16>, vector<1024x512xbf16>, vector<4x512xf32> -> vector<4x512xf32>
    %c0_10 = arith.constant 0 : index
    %c0_11 = arith.constant 0 : index
    %15 = vector.load %arg6[%c0_10, %c0_11] : memref<1x512xf32, #tpu.memory_space<vmem>>, vector<1x512xf32>
    %16 = vector.broadcast %15 : vector<1x512xf32> to vector<4x512xf32>
    %17 = arith.addf %14, %16 : vector<4x512xf32>
    %c0_12 = arith.constant 0 : index
    %c0_13 = arith.constant 0 : index
    %18 = vector.load %arg15[%c0_12, %c0_13] : memref<4x512xf32, #tpu.memory_space<vmem>>, vector<4x512xf32>
    tpu.vector_store %arg15[%c0_12, %c0_13], %17 {strides = array<i32>} : memref<4x512xf32, #tpu.memory_space<vmem>>, vector<4x512xf32>,
    %19 = tpu.iota {dimensions = array<i32: 1>} : vector<4x512xi32>
    %cst_14 = arith.constant dense<0xFF800000> : vector<4xf32>
    %20 = vector.multi_reduction <maximumf>, %17, %cst_14 [1] : vector<4x512xf32> to vector<4xf32>
    %21 = vector.shape_cast %20 : vector<4xf32> to vector<4x1xf32>
    %22 = vector.broadcast %21 : vector<4x1xf32> to vector<4x512xf32>
    %23 = arith.cmpf oeq, %17, %22 : vector<4x512xf32>
    %c512_i32 = arith.constant 512 : i32
    %24 = vector.broadcast %c512_i32 : i32 to vector<4x512xi32>
    %25 = arith.select %23, %19, %24 : vector<4x512xi1>, vector<4x512xi32>
    %cst_15 = arith.constant dense<2147483647> : vector<4xi32>
    %26 = vector.multi_reduction <minsi>, %25, %cst_15 [1] : vector<4x512xi32> to vector<4xi32>
    %27 = vector.shape_cast %26 : vector<4xi32> to vector<4x1xi32>
    %c0_16 = arith.constant 0 : index
    %c0_17 = arith.constant 0 : index
    %28 = vector.load %arg16[%c0_16, %c0_17] : memref<4x1xi32, #tpu.memory_space<vmem>>, vector<4x1xi32>
    tpu.vector_store %arg16[%c0_16, %c0_17], %27 {strides = array<i32>} : memref<4x1xi32, #tpu.memory_space<vmem>>, vector<4x1xi32>,
    %29 = vector.extract_strided_slice %17 {offsets = [0, 0], sizes = [2, 512], strides = [1, 1]} : vector<4x512xf32> to vector<2x512xf32>
    %30 = vector.extract_strided_slice %17 {offsets = [2, 0], sizes = [2, 512], strides = [1, 1]} : vector<4x512xf32> to vector<2x512xf32>
    %c0_18 = arith.constant 0 : index
    %c0_19 = arith.constant 0 : index
    %31 = vector.load %arg2[%c0_18, %c0_19] : memref<2x1xi32, #tpu.memory_space<vmem>>, vector<2x1xi32>
    %32 = tpu.iota {dimensions = array<i32: 1>} : vector<2x16xi32>
    %33 = vector.broadcast %31 : vector<2x1xi32> to vector<2x16xi32>
    %34 = arith.cmpi eq, %32, %33 : vector<2x16xi32>
    %35 = arith.extui %34 : vector<2x16xi1> to vector<2x16xi32>
    %36 = arith.sitofp %35 : vector<2x16xi32> to vector<2x16xf32>
    %37 = arith.truncf %36 : vector<2x16xf32> to vector<2x16xbf16>
    %c0_20 = arith.constant 0 : index
    %c0_21 = arith.constant 0 : index
    %38 = vector.load %arg7[%c0_20, %c0_21] : memref<16x512xbf16, #tpu.memory_space<vmem>>, vector<16x512xbf16>
    %cst_22 = arith.constant dense<0.000000e+00> : vector<2x512xf32>
    %39 = tpu.matmul %37, %38, %cst_22 {dimension_numbers = #tpu.dot_dimension_numbers<[1], [0], [0], [1], [0, 0, 1, 1], [], []>} : vector<2x16xbf16>, vector<16x512xbf16>, vector<2x512xf32> -> vector<2x512xf32>
    %40 = arith.truncf %29 : vector<2x512xf32> to vector<2x512xbf16>
    %c0_23 = arith.constant 0 : index
    %c0_24 = arith.constant 0 : index
    %41 = vector.load %arg8[%c0_23, %c0_24] : memref<512x1024xbf16, #tpu.memory_space<vmem>>, vector<512x1024xbf16>
    %cst_25 = arith.constant dense<0.000000e+00> : vector<2x1024xf32>
    %42 = tpu.matmul %40, %41, %cst_25 {dimension_numbers = #tpu.dot_dimension_numbers<[1], [0], [0], [1], [0, 0, 1, 1], [], []>} : vector<2x512xbf16>, vector<512x1024xbf16>, vector<2x1024xf32> -> vector<2x1024xf32>
    %43 = arith.truncf %30 : vector<2x512xf32> to vector<2x512xbf16>
    %c0_26 = arith.constant 0 : index
    %c0_27 = arith.constant 0 : index
    %44 = vector.load %arg9[%c0_26, %c0_27] : memref<512x1024xbf16, #tpu.memory_space<vmem>>, vector<512x1024xbf16>
    %cst_28 = arith.constant dense<0.000000e+00> : vector<2x1024xf32>
    %45 = tpu.matmul %43, %44, %cst_28 {dimension_numbers = #tpu.dot_dimension_numbers<[1], [0], [0], [1], [0, 0, 1, 1], [], []>} : vector<2x512xbf16>, vector<512x1024xbf16>, vector<2x1024xf32> -> vector<2x1024xf32>
    %46 = arith.addf %42, %45 : vector<2x1024xf32>
    %47 = arith.truncf %39 : vector<2x512xf32> to vector<2x512xbf16>
    %c0_29 = arith.constant 0 : index
    %c0_30 = arith.constant 0 : index
    %48 = vector.load %arg10[%c0_29, %c0_30] : memref<512x1024xbf16, #tpu.memory_space<vmem>>, vector<512x1024xbf16>
    %cst_31 = arith.constant dense<0.000000e+00> : vector<2x1024xf32>
    %49 = tpu.matmul %47, %48, %cst_31 {dimension_numbers = #tpu.dot_dimension_numbers<[1], [0], [0], [1], [0, 0, 1, 1], [], []>} : vector<2x512xbf16>, vector<512x1024xbf16>, vector<2x1024xf32> -> vector<2x1024xf32>
    %50 = arith.addf %46, %49 : vector<2x1024xf32>
    %c0_32 = arith.constant 0 : index
    %c0_33 = arith.constant 0 : index
    %51 = vector.load %arg11[%c0_32, %c0_33] : memref<1x1024xf32, #tpu.memory_space<vmem>>, vector<1x1024xf32>
    %52 = vector.broadcast %51 : vector<1x1024xf32> to vector<2x1024xf32>
    %53 = arith.addf %50, %52 : vector<2x1024xf32>
    %cst_34 = arith.constant 0.000000e+00 : f32
    %54 = vector.broadcast %cst_34 : f32 to vector<2x1024xf32>
    %55 = arith.cmpf ogt, %53, %54 : vector<2x1024xf32>
    %cst_35 = arith.constant 0.00999999977 : f32
    %56 = vector.broadcast %cst_35 : f32 to vector<2x1024xf32>
    %57 = arith.mulf %56, %53 : vector<2x1024xf32>
    %58 = arith.select %55, %53, %57 : vector<2x1024xi1>, vector<2x1024xf32>
    %59 = arith.truncf %58 : vector<2x1024xf32> to vector<2x1024xbf16>
    %c0_36 = arith.constant 0 : index
    %c0_37 = arith.constant 0 : index
    %60 = vector.load %arg12[%c0_36, %c0_37] : memref<1024x128xbf16, #tpu.memory_space<vmem>>, vector<1024x128xbf16>
    %cst_38 = arith.constant dense<0.000000e+00> : vector<2x128xf32>
    %61 = tpu.matmul %59, %60, %cst_38 {dimension_numbers = #tpu.dot_dimension_numbers<[1], [0], [0], [1], [0, 0, 1, 1], [], []>} : vector<2x1024xbf16>, vector<1024x128xbf16>, vector<2x128xf32> -> vector<2x128xf32>
    %c0_39 = arith.constant 0 : index
    %c0_40 = arith.constant 0 : index
    %62 = vector.load %arg13[%c0_39, %c0_40] : memref<1x128xf32, #tpu.memory_space<vmem>>, vector<1x128xf32>
    %63 = vector.broadcast %62 : vector<1x128xf32> to vector<2x128xf32>
    %64 = arith.addf %61, %63 : vector<2x128xf32>
    %c0_41 = arith.constant 0 : index
    %c0_42 = arith.constant 0 : index
    %65 = vector.load %arg14[%c0_41, %c0_42] : memref<2x128xf32, #tpu.memory_space<vmem>>, vector<2x128xf32>
    tpu.vector_store %arg14[%c0_41, %c0_42], %64 {strides = array<i32>} : memref<2x128xf32, #tpu.memory_space<vmem>>, vector<2x128xf32>,
    return
  }
  func.func @transform_0(%arg0: i32) -> (i32, i32) {
    %c0_i32 = arith.constant 0 : i32
    %c0_i32_0 = arith.constant 0 : i32
    %c0_i32_1 = arith.constant 0 : i32
    return %c0_i32, %c0_i32_0 : i32, i32
  }
  func.func @transform_1(%arg0: i32) -> (i32, i32) {
    %c0_i32 = arith.constant 0 : i32
    %c0_i32_0 = arith.constant 0 : i32
    %c0_i32_1 = arith.constant 0 : i32
    return %c0_i32, %c0_i32_0 : i32, i32
  }
  func.func @transform_2(%arg0: i32) -> (i32, i32) {
    %c0_i32 = arith.constant 0 : i32
    %c0_i32_0 = arith.constant 0 : i32
    %c0_i32_1 = arith.constant 0 : i32
    return %c0_i32, %c0_i32_0 : i32, i32
  }
  func.func @transform_3(%arg0: i32) -> (i32, i32) {
    %c0_i32 = arith.constant 0 : i32
    %c0_i32_0 = arith.constant 0 : i32
    %c0_i32_1 = arith.constant 0 : i32
    return %c0_i32, %c0_i32_0 : i32, i32
  }
  func.func @transform_4(%arg0: i32) -> (i32, i32) {
    %c0_i32 = arith.constant 0 : i32
    %c0_i32_0 = arith.constant 0 : i32
    %c0_i32_1 = arith.constant 0 : i32
    return %c0_i32, %c0_i32_0 : i32, i32
  }
  func.func @transform_5(%arg0: i32) -> (i32, i32) {
    %c0_i32 = arith.constant 0 : i32
    %c0_i32_0 = arith.constant 0 : i32
    %c0_i32_1 = arith.constant 0 : i32
    return %c0_i32, %c0_i32_0 : i32, i32
  }
  func.func @transform_6(%arg0: i32) -> (i32, i32) {
    %c0_i32 = arith.constant 0 : i32
    %c0_i32_0 = arith.constant 0 : i32
    %c0_i32_1 = arith.constant 0 : i32
    return %c0_i32, %c0_i32_0 : i32, i32
  }
  func.func @transform_7(%arg0: i32) -> (i32, i32) {
    %c0_i32 = arith.constant 0 : i32
    %c0_i32_0 = arith.constant 0 : i32
    %c0_i32_1 = arith.constant 0 : i32
    return %c0_i32, %c0_i32_0 : i32, i32
  }
  func.func @transform_8(%arg0: i32) -> (i32, i32) {
    %c0_i32 = arith.constant 0 : i32
    %c0_i32_0 = arith.constant 0 : i32
    %c0_i32_1 = arith.constant 0 : i32
    return %c0_i32, %c0_i32_0 : i32, i32
  }
  func.func @transform_9(%arg0: i32) -> (i32, i32) {
    %c0_i32 = arith.constant 0 : i32
    %c0_i32_0 = arith.constant 0 : i32
    %c0_i32_1 = arith.constant 0 : i32
    return %c0_i32, %c0_i32_0 : i32, i32
  }
  func.func @transform_10(%arg0: i32) -> (i32, i32) {
    %c0_i32 = arith.constant 0 : i32
    %c0_i32_0 = arith.constant 0 : i32
    %c0_i32_1 = arith.constant 0 : i32
    return %c0_i32, %c0_i32_0 : i32, i32
  }
  func.func @transform_11(%arg0: i32) -> (i32, i32) {
    %c0_i32 = arith.constant 0 : i32
    %c0_i32_0 = arith.constant 0 : i32
    %c0_i32_1 = arith.constant 0 : i32
    return %c0_i32, %c0_i32_0 : i32, i32
  }
  func.func @transform_12(%arg0: i32) -> (i32, i32) {
    %c0_i32 = arith.constant 0 : i32
    %c0_i32_0 = arith.constant 0 : i32
    %c0_i32_1 = arith.constant 0 : i32
    return %c0_i32, %c0_i32_0 : i32, i32
  }
  func.func @transform_13(%arg0: i32) -> (i32, i32) {
    %c0_i32 = arith.constant 0 : i32
    %c0_i32_0 = arith.constant 0 : i32
    %c0_i32_1 = arith.constant 0 : i32
    return %c0_i32, %c0_i32_0 : i32, i32
  }
  func.func @transform_14(%arg0: i32) -> (i32, i32) {
    %c0_i32 = arith.constant 0 : i32
    %c0_i32_0 = arith.constant 0 : i32
    %c0_i32_1 = arith.constant 0 : i32
    return %c0_i32, %c0_i32_0 : i32, i32
  }
  func.func @transform_15(%arg0: i32) -> (i32, i32) {
    %c0_i32 = arith.constant 0 : i32
    %c0_i32_0 = arith.constant 0 : i32
    %c0_i32_1 = arith.constant 0 : i32
    return %c0_i32, %c0_i32_0 : i32, i32
  }
}

</mosaic_0001>

<llo_original>
// kernel: tpu_custom_call.1
$region0: #{tpu_custom_call.1}
  #allocation0 [shape = 'u32[]', space=smem, size = 0x4, offset = 0x4, fixed_abs, tag = 'smem constant byte address 0x4 - core index']
  #allocation1 [shape = 'u32[72,128]{1,0:T(1,128)}', space=vmem, size = 0x9000, scoped, tag = 'internal scratch']
  %s0 = inlined_call_operand.hbm [shape: f32[4,128], index: 0, kind: input, shape index: {}]
  %s1 = inlined_call_operand.vmem [shape: s32[2,1], index: 1, kind: input, shape index: {}]
  %s2 = inlined_call_operand.hbm [shape: bf16[128,1024], index: 2, kind: input, shape index: {}]
  %s3 = inlined_call_operand.hbm [shape: f32[1,1024], index: 3, kind: input, shape index: {}]
  %s4 = inlined_call_operand.hbm [shape: bf16[1024,512], index: 4, kind: input, shape index: {}]
  %s5 = inlined_call_operand.vmem [shape: f32[1,512], index: 5, kind: input, shape index: {}]
  %s6 = inlined_call_operand.hbm [shape: bf16[16,512], index: 6, kind: input, shape index: {}]
  %s7 = inlined_call_operand.hbm [shape: bf16[512,1024], index: 7, kind: input, shape index: {}]
  %s8 = inlined_call_operand.hbm [shape: bf16[512,1024], index: 8, kind: input, shape index: {}]
  %s9 = inlined_call_operand.hbm [shape: bf16[512,1024], index: 9, kind: input, shape index: {}]
  %s10 = inlined_call_operand.vmem [shape: f32[1,1024], index: 10, kind: input, shape index: {}]
  %s11 = inlined_call_operand.hbm [shape: bf16[1024,128], index: 11, kind: input, shape index: {}]
  %s12 = inlined_call_operand.vmem [shape: f32[1,128], index: 12, kind: input, shape index: {}]
  %s13 = inlined_call_operand.hbm [shape: f32[2,128], index: 13, kind: output, shape index: {0}]
  %s14 = inlined_call_operand.hbm [shape: f32[4,512], index: 14, kind: output, shape index: {1}]
  %s15 = inlined_call_operand.vmem [shape: s32[4,1], index: 15, kind: output, shape index: {2}]
  %16 = xla_tuple %s13, %s14, %s15
  %s17 = sld [smem:[#allocation0]]
  $region114: #{tpu_custom_call.1} parent=0
    _
  %s19 = ssub.s32 1, %s17
  %s20 = scalar_select 0, %s19, %s17
  $region1: #{tpu_custom_call.1} parent=0
    #allocation2 [shape = 'u8[2048]{0}', space=vmem, size = 0x800, scoped, tag = 'input window, operand 0, single buffered']
    #allocation3 [shape = 's32[1]{0}', space=sflag, size = 0x4, scoped, tag = 'scoped memory for tpu_custom_call.1']
    #allocation4 [shape = 's32[1]{0}', space=sflag, size = 0x4, scoped, tag = 'scoped memory for tpu_custom_call.1']
    #allocation5 [shape = 'u8[262144]{0}', space=vmem, size = 0x40000, scoped, tag = 'input window, operand 2, single buffered']
    #allocation6 [shape = 's32[1]{0}', space=sflag, size = 0x4, scoped, tag = 'scoped memory for tpu_custom_call.1']
    #allocation7 [shape = 'u8[4096]{0}', space=vmem, size = 0x1000, scoped, tag = 'input window, operand 3, single buffered']
    #allocation8 [shape = 'u8[1048576]{0}', space=vmem, size = 0x100000, scoped, tag = 'input window, operand 4, single buffered']
    #allocation9 [shape = 's32[1]{0}', space=sflag, size = 0x4, scoped, tag = 'scoped memory for tpu_custom_call.1']
    #allocation10 [shape = 'u8[16384]{0}', space=vmem, size = 0x4000, scoped, tag = 'input window, operand 6, single buffered']
    #allocation11 [shape = 'u8[1048576]{0}', space=vmem, size = 0x100000, scoped, tag = 'input window, operand 7, single buffered']
    #allocation12 [shape = 's32[1]{0}', space=sflag, size = 0x4, scoped, tag = 'scoped memory for tpu_custom_call.1']
    #allocation13 [shape = 'u8[1048576]{0}', space=vmem, size = 0x100000, scoped, tag = 'input window, operand 8, single buffered']
    #allocation14 [shape = 'u8[1048576]{0}', space=vmem, size = 0x100000, scoped, tag = 'input window, operand 9, single buffered']
    #allocation15 [shape = 's32[1]{0}', space=sflag, size = 0x4, scoped, tag = 'scoped memory for tpu_custom_call.1']
    #allocation16 [shape = 'u8[262144]{0}', space=vmem, size = 0x40000, scoped, tag = 'input window, operand 11, single buffered']
    #allocation17 [shape = 'u8[1024]{0}', space=vmem, size = 0x400, scoped, tag = 'output window, operand 0, single buffered']
    #allocation18 [shape = 'u8[8192]{0}', space=vmem, size = 0x2000, scoped, tag = 'output window, operand 1, single buffered']
    #allocation19 [shape = 's32[1]{0}', space=sflag, size = 0x4, scoped, tag = 'scoped memory for tpu_custom_call.1']
    %21 = vsyncpa [#allocation3], 0
    %22 = vsyncpa [#allocation6], 0
    %23 = vsyncpa [#allocation9], 0
    %24 = vsyncpa [#allocation12], 0
    %25 = vsyncpa [#allocation15], 0
    %26 = vsyncpa [#allocation4], 0
    %27 = vsyncpa [#allocation19], 0
    // Predicated region
    $region2: #{tpu_custom_call.1} parent=1 // pred_check
      _
    $region3: #{tpu_custom_call.1} parent=1 // pred_check_branch
      %29 = sbr.rel (0) target = $region5
    $region4: #{tpu_custom_call.1} parent=1 // pred_region
      %31 = vsyncadd [#allocation3], 0
      %s33 = sshll.u32 %s0, 4
      %s34 = int_to_ptr.hbm [resolvable:$true] %s33
      %s35 = sshll.u32 [#allocation2], 4
      %s36 = int_to_ptr.vmem [resolvable:$true] %s35
      %38 = dma.hbm_to_vmem [thread:$0]  %s34, 64, %s36, [#allocation3]
    $region5: #{tpu_custom_call.1} parent=1 // pred_fallthru
      _
    // Predicated region
    $region6: #{tpu_custom_call.1} parent=1 // pred_check
      _
    $region7: #{tpu_custom_call.1} parent=1 // pred_check_branch
      %40 = sbr.rel (0) target = $region9
    $region8: #{tpu_custom_call.1} parent=1 // pred_region
      _
    $region9: #{tpu_custom_call.1} parent=1 // pred_fallthru
      _
    // Predicated region
    $region10: #{tpu_custom_call.1} parent=1 // pred_check
      _
    $region11: #{tpu_custom_call.1} parent=1 // pred_check_branch
      %42 = sbr.rel (0) target = $region13
    $region12: #{tpu_custom_call.1} parent=1 // pred_region
      %44 = vsyncadd [#allocation6], 0
      %s45 = sshll.u32 %s2, 4
      %s46 = int_to_ptr.hbm [resolvable:$true] %s45
      %s47 = sshll.u32 [#allocation5], 4
      %s48 = int_to_ptr.vmem [resolvable:$true] %s47
      %53 = dma.hbm_to_vmem [thread:$0]  %s46, 8192, %s48, [#allocation6], 512, 512, 32
    $region13: #{tpu_custom_call.1} parent=1 // pred_fallthru
      _
    // Predicated region
    $region14: #{tpu_custom_call.1} parent=1 // pred_check
      _
    $region15: #{tpu_custom_call.1} parent=1 // pred_check_branch
      %55 = sbr.rel (0) target = $region17
    $region16: #{tpu_custom_call.1} parent=1 // pred_region
      %57 = vsyncadd [#allocation6], 0
      %s59 = sshll.u32 %s3, 4
      %s60 = int_to_ptr.hbm [resolvable:$true] %s59
      %s61 = sshll.u32 [#allocation7], 4
      %s62 = int_to_ptr.vmem [resolvable:$true] %s61
      %64 = dma.hbm_to_vmem [thread:$0]  %s60, 128, %s62, [#allocation6]
    $region17: #{tpu_custom_call.1} parent=1 // pred_fallthru
      _
    // Predicated region
    $region18: #{tpu_custom_call.1} parent=1 // pred_check
      _
    $region19: #{tpu_custom_call.1} parent=1 // pred_check_branch
      %66 = sbr.rel (0) target = $region21
    $region20: #{tpu_custom_call.1} parent=1 // pred_region
      %68 = vsyncadd [#allocation9], 0
      %s69 = sshll.u32 %s4, 4
      %s70 = int_to_ptr.hbm [resolvable:$true] %s69
      %s71 = sshll.u32 [#allocation8], 4
      %s72 = int_to_ptr.vmem [resolvable:$true] %s71
      %77 = dma.hbm_to_vmem [thread:$0]  %s70, 32768, %s72, [#allocation9], 256, 256, 16
    $region21: #{tpu_custom_call.1} parent=1 // pred_fallthru
      _
    // Predicated region
    $region22: #{tpu_custom_call.1} parent=1 // pred_check
      _
    $region23: #{tpu_custom_call.1} parent=1 // pred_check_branch
      %79 = sbr.rel (0) target = $region25
    $region24: #{tpu_custom_call.1} parent=1 // pred_region
      _
    $region25: #{tpu_custom_call.1} parent=1 // pred_fallthru
      _
    // Predicated region
    $region26: #{tpu_custom_call.1} parent=1 // pred_check
      _
    $region27: #{tpu_custom_call.1} parent=1 // pred_check_branch
      %81 = sbr.rel (0) target = $region29
    $region28: #{tpu_custom_call.1} parent=1 // pred_region
      %83 = vsyncadd [#allocation9], 0
      %s84 = sshll.u32 %s6, 4
      %s85 = int_to_ptr.hbm [resolvable:$true] %s84
      %s86 = sshll.u32 [#allocation10], 4
      %s87 = int_to_ptr.vmem [resolvable:$true] %s86
      %92 = dma.hbm_to_vmem [thread:$0]  %s85, 512, %s87, [#allocation9], 256, 256, 16
    $region29: #{tpu_custom_call.1} parent=1 // pred_fallthru
      _
    // Predicated region
    $region30: #{tpu_custom_call.1} parent=1 // pred_check
      _
    $region31: #{tpu_custom_call.1} parent=1 // pred_check_branch
      %94 = sbr.rel (0) target = $region33
    $region32: #{tpu_custom_call.1} parent=1 // pred_region
      %96 = vsyncadd [#allocation12], 0
      %s97 = sshll.u32 %s7, 4
      %s98 = int_to_ptr.hbm [resolvable:$true] %s97
      %s99 = sshll.u32 [#allocation11], 4
      %s100 = int_to_ptr.vmem [resolvable:$true] %s99
      %105 = dma.hbm_to_vmem [thread:$0]  %s98, 32768, %s100, [#allocation12], 512, 512, 32
    $region33: #{tpu_custom_call.1} parent=1 // pred_fallthru
      _
    // Predicated region
    $region34: #{tpu_custom_call.1} parent=1 // pred_check
      _
    $region35: #{tpu_custom_call.1} parent=1 // pred_check_branch
      %107 = sbr.rel (0) target = $region37
    $region36: #{tpu_custom_call.1} parent=1 // pred_region
      %109 = vsyncadd [#allocation12], 0
      %s110 = sshll.u32 %s8, 4
      %s111 = int_to_ptr.hbm [resolvable:$true] %s110
      %s112 = sshll.u32 [#allocation13], 4
      %s113 = int_to_ptr.vmem [resolvable:$true] %s112
      %118 = dma.hbm_to_vmem [thread:$0]  %s111, 32768, %s113, [#allocation12], 512, 512, 32
    $region37: #{tpu_custom_call.1} parent=1 // pred_fallthru
      _
    // Predicated region
    $region38: #{tpu_custom_call.1} parent=1 // pred_check
      _
    $region39: #{tpu_custom_call.1} parent=1 // pred_check_branch
      %120 = sbr.rel (0) target = $region41
    $region40: #{tpu_custom_call.1} parent=1 // pred_region
      %122 = vsyncadd [#allocation15], 0
      %s123 = sshll.u32 %s9, 4
      %s124 = int_to_ptr.hbm [resolvable:$true] %s123
      %s125 = sshll.u32 [#allocation14], 4
      %s126 = int_to_ptr.vmem [resolvable:$true] %s125
      %131 = dma.hbm_to_vmem [thread:$0]  %s124, 32768, %s126, [#allocation15], 512, 512, 32
    $region41: #{tpu_custom_call.1} parent=1 // pred_fallthru
      _
    // Predicated region
    $region42: #{tpu_custom_call.1} parent=1 // pred_check
      _
    $region43: #{tpu_custom_call.1} parent=1 // pred_check_branch
      %133 = sbr.rel (0) target = $region45
    $region44: #{tpu_custom_call.1} parent=1 // pred_region
      _
    $region45: #{tpu_custom_call.1} parent=1 // pred_fallthru
      _
    // Predicated region
    $region46: #{tpu_custom_call.1} parent=1 // pred_check
      _
    $region47: #{tpu_custom_call.1} parent=1 // pred_check_branch
      %135 = sbr.rel (0) target = $region49
    $region48: #{tpu_custom_call.1} parent=1 // pred_region
      %137 = vsyncadd [#allocation15], 0
      %s138 = sshll.u32 %s11, 4
      %s139 = int_to_ptr.hbm [resolvable:$true] %s138
      %s140 = sshll.u32 [#allocation16], 4
      %s141 = int_to_ptr.vmem [resolvable:$true] %s140
      %146 = dma.hbm_to_vmem [thread:$0]  %s139, 8192, %s141, [#allocation15], 64, 64, 4
    $region49: #{tpu_custom_call.1} parent=1 // pred_fallthru
      _
    // Predicated region
    $region50: #{tpu_custom_call.1} parent=1 // pred_check
      _
    $region51: #{tpu_custom_call.1} parent=1 // pred_check_branch
      %148 = sbr.rel (0) target = $region53
    $region52: #{tpu_custom_call.1} parent=1 // pred_region
      _
    $region53: #{tpu_custom_call.1} parent=1 // pred_fallthru
      _
    // Predicated region
    $region54: #{tpu_custom_call.1} parent=1 // pred_check
      _
    $region55: #{tpu_custom_call.1} parent=1 // pred_check_branch
      %150 = sbr.rel (0) target = $region57
    $region56: #{tpu_custom_call.1} parent=1 // pred_region
      %152 = dma.done [#allocation3], 64
    $region57: #{tpu_custom_call.1} parent=1 // pred_fallthru
      _
    // Predicated region
    $region58: #{tpu_custom_call.1} parent=1 // pred_check
      _
    $region59: #{tpu_custom_call.1} parent=1 // pred_check_branch
      %154 = sbr.rel (0) target = $region61
    $region60: #{tpu_custom_call.1} parent=1 // pred_region
      %156 = dma.done [#allocation6], 8192
    $region61: #{tpu_custom_call.1} parent=1 // pred_fallthru
      _
    // Predicated region
    $region62: #{tpu_custom_call.1} parent=1 // pred_check
      _
    $region63: #{tpu_custom_call.1} parent=1 // pred_check_branch
      %158 = sbr.rel (0) target = $region65
    $region64: #{tpu_custom_call.1} parent=1 // pred_region
      %160 = dma.done [#allocation6], 128
    $region65: #{tpu_custom_call.1} parent=1 // pred_fallthru
      _
    // Predicated region
    $region66: #{tpu_custom_call.1} parent=1 // pred_check
      _
    $region67: #{tpu_custom_call.1} parent=1 // pred_check_branch
      %162 = sbr.rel (0) target = $region69
    $region68: #{tpu_custom_call.1} parent=1 // pred_region
      %164 = dma.done [#allocation9], 32768
    $region69: #{tpu_custom_call.1} parent=1 // pred_fallthru
      _
    // Predicated region
    $region70: #{tpu_custom_call.1} parent=1 // pred_check
      _
    $region71: #{tpu_custom_call.1} parent=1 // pred_check_branch
      %166 = sbr.rel (0) target = $region73
    $region72: #{tpu_custom_call.1} parent=1 // pred_region
      %168 = dma.done [#allocation9], 512
    $region73: #{tpu_custom_call.1} parent=1 // pred_fallthru
      _
    // Predicated region
    $region74: #{tpu_custom_call.1} parent=1 // pred_check
      _
    $region75: #{tpu_custom_call.1} parent=1 // pred_check_branch
      %170 = sbr.rel (0) target = $region77
    $region76: #{tpu_custom_call.1} parent=1 // pred_region
      %172 = dma.done [#allocation12], 32768
    $region77: #{tpu_custom_call.1} parent=1 // pred_fallthru
      _
    // Predicated region
    $region78: #{tpu_custom_call.1} parent=1 // pred_check
      _
    $region79: #{tpu_custom_call.1} parent=1 // pred_check_branch
      %174 = sbr.rel (0) target = $region81
    $region80: #{tpu_custom_call.1} parent=1 // pred_region
      %176 = dma.done [#allocation12], 32768
    $region81: #{tpu_custom_call.1} parent=1 // pred_fallthru
      _
    // Predicated region
    $region82: #{tpu_custom_call.1} parent=1 // pred_check
      _
    $region83: #{tpu_custom_call.1} parent=1 // pred_check_branch
      %178 = sbr.rel (0) target = $region85
    $region84: #{tpu_custom_call.1} parent=1 // pred_region
      %180 = dma.done [#allocation15], 32768
    $region85: #{tpu_custom_call.1} parent=1 // pred_fallthru
      _
    // Predicated region
    $region86: #{tpu_custom_call.1} parent=1 // pred_check
      _
    $region87: #{tpu_custom_call.1} parent=1 // pred_check_branch
      %182 = sbr.rel (0) target = $region89
    $region88: #{tpu_custom_call.1} parent=1 // pred_region
      %184 = dma.done [#allocation15], 8192
    $region89: #{tpu_custom_call.1} parent=1 // pred_fallthru
      _
    %v186 = vld [vmem:[#allocation2] sm:$0xf]
    %v187 = vpack.c.bf16 %v186, %v186
    %v188 = vld [vmem:[#allocation5] sm:$0xff]
    %v189 = vld [vmem:[#allocation5 + $0x8] sm:$0xff]
    %v190 = vld [vmem:[#allocation5 + $0x10] sm:$0xff]
    %v191 = vld [vmem:[#allocation5 + $0x18] sm:$0xff]
    %v192 = vld [vmem:[#allocation5 + $0x20] sm:$0xff]
    %v193 = vld [vmem:[#allocation5 + $0x28] sm:$0xff]
    %v194 = vld [vmem:[#allocation5 + $0x30] sm:$0xff]
    %v195 = vld [vmem:[#allocation5 + $0x38] sm:$0xff]
    %v196 = vld [vmem:[#allocation5 + $0x40] sm:$0xff]
    %v197 = vld [vmem:[#allocation5 + $0x48] sm:$0xff]
    %v198 = vld [vmem:[#allocation5 + $0x50] sm:$0xff]
    %v199 = vld [vmem:[#allocation5 + $0x58] sm:$0xff]
    %v200 = vld [vmem:[#allocation5 + $0x60] sm:$0xff]
    %v201 = vld [vmem:[#allocation5 + $0x68] sm:$0xff]
    %v202 = vld [vmem:[#allocation5 + $0x70] sm:$0xff]
    %v203 = vld [vmem:[#allocation5 + $0x78] sm:$0xff]
    %v204 = vld [vmem:[#allocation5 + $0x80] sm:$0xff]
    %v205 = vld [vmem:[#allocation5 + $0x88] sm:$0xff]
    %v206 = vld [vmem:[#allocation5 + $0x90] sm:$0xff]
    %v207 = vld [vmem:[#allocation5 + $0x98] sm:$0xff]
    %v208 = vld [vmem:[#allocation5 + $0xa0] sm:$0xff]
    %v209 = vld [vmem:[#allocation5 + $0xa8] sm:$0xff]
    %v210 = vld [vmem:[#allocation5 + $0xb0] sm:$0xff]
    %v211 = vld [vmem:[#allocation5 + $0xb8] sm:$0xff]
    %v212 = vld [vmem:[#allocation5 + $0xc0] sm:$0xff]
    %v213 = vld [vmem:[#allocation5 + $0xc8] sm:$0xff]
    %v214 = vld [vmem:[#allocation5 + $0xd0] sm:$0xff]
    %v215 = vld [vmem:[#allocation5 + $0xd8] sm:$0xff]
    %v216 = vld [vmem:[#allocation5 + $0xe0] sm:$0xff]
    %v217 = vld [vmem:[#allocation5 + $0xe8] sm:$0xff]
    %v218 = vld [vmem:[#allocation5 + $0xf0] sm:$0xff]
    %v219 = vld [vmem:[#allocation5 + $0xf8] sm:$0xff]
    %v220 = vld [vmem:[#allocation5 + $0x100] sm:$0xff]
    %v221 = vld [vmem:[#allocation5 + $0x108] sm:$0xff]
    %v222 = vld [vmem:[#allocation5 + $0x110] sm:$0xff]
    %v223 = vld [vmem:[#allocation5 + $0x118] sm:$0xff]
    %v224 = vld [vmem:[#allocation5 + $0x120] sm:$0xff]
    %v225 = vld [vmem:[#allocation5 + $0x128] sm:$0xff]
    %v226 = vld [vmem:[#allocation5 + $0x130] sm:$0xff]
    %v227 = vld [vmem:[#allocation5 + $0x138] sm:$0xff]
    %v228 = vld [vmem:[#allocation5 + $0x140] sm:$0xff]
    %v229 = vld [vmem:[#allocation5 + $0x148] sm:$0xff]
    %v230 = vld [vmem:[#allocation5 + $0x150] sm:$0xff]
    %v231 = vld [vmem:[#allocation5 + $0x158] sm:$0xff]
    %v232 = vld [vmem:[#allocation5 + $0x160] sm:$0xff]
    %v233 = vld [vmem:[#allocation5 + $0x168] sm:$0xff]
    %v234 = vld [vmem:[#allocation5 + $0x170] sm:$0xff]
    %v235 = vld [vmem:[#allocation5 + $0x178] sm:$0xff]
    %v236 = vld [vmem:[#allocation5 + $0x180] sm:$0xff]
    %v237 = vld [vmem:[#allocation5 + $0x188] sm:$0xff]
    %v238 = vld [vmem:[#allocation5 + $0x190] sm:$0xff]
    %v239 = vld [vmem:[#allocation5 + $0x198] sm:$0xff]
    %v240 = vld [vmem:[#allocation5 + $0x1a0] sm:$0xff]
    %v241 = vld [vmem:[#allocation5 + $0x1a8] sm:$0xff]
    %v242 = vld [vmem:[#allocation5 + $0x1b0] sm:$0xff]
    %v243 = vld [vmem:[#allocation5 + $0x1b8] sm:$0xff]
    %v244 = vld [vmem:[#allocation5 + $0x1c0] sm:$0xff]
    %v245 = vld [vmem:[#allocation5 + $0x1c8] sm:$0xff]
    %v246 = vld [vmem:[#allocation5 + $0x1d0] sm:$0xff]
    %v247 = vld [vmem:[#allocation5 + $0x1d8] sm:$0xff]
    %v248 = vld [vmem:[#allocation5 + $0x1e0] sm:$0xff]
    %v249 = vld [vmem:[#allocation5 + $0x1e8] sm:$0xff]
    %v250 = vld [vmem:[#allocation5 + $0x1f0] sm:$0xff]
    %v251 = vld [vmem:[#allocation5 + $0x1f8] sm:$0xff]
    %v252 = vld [vmem:[#allocation7] sm:$0xff]
    %v254 = vperm.slane %v252, 0
    %v255 = vperm.slane %v252, 1
    %v256 = vperm.slane %v252, 2
    %v257 = vperm.slane %v252, 3
    %v258 = vperm.slane %v252, 4
    %v259 = vperm.slane %v252, 5
    %v260 = vperm.slane %v252, 6
    %v261 = vperm.slane %v252, 7
    %v334 = vunpack.c.l.b16 %v188
    %v335 = vunpack.c.h.b16 %v188
    %v336 = vunpack.c.l.b16 %v189
    %v337 = vunpack.c.h.b16 %v189
    %v338 = vunpack.c.l.b16 %v190
    %v339 = vunpack.c.h.b16 %v190
    %v340 = vunpack.c.l.b16 %v191
    %v341 = vunpack.c.h.b16 %v191
    %v342 = vunpack.c.l.b16 %v192
    %v343 = vunpack.c.h.b16 %v192
    %v344 = vunpack.c.l.b16 %v193
    %v345 = vunpack.c.h.b16 %v193
    %v346 = vunpack.c.l.b16 %v194
    %v347 = vunpack.c.h.b16 %v194
    %v348 = vunpack.c.l.b16 %v195
    %v349 = vunpack.c.h.b16 %v195
    %v350 = vunpack.c.l.b16 %v196
    %v351 = vunpack.c.h.b16 %v196
    %v352 = vunpack.c.l.b16 %v197
    %v353 = vunpack.c.h.b16 %v197
    %v354 = vunpack.c.l.b16 %v198
    %v355 = vunpack.c.h.b16 %v198
    %v356 = vunpack.c.l.b16 %v199
    %v357 = vunpack.c.h.b16 %v199
    %v358 = vunpack.c.l.b16 %v200
    %v359 = vunpack.c.h.b16 %v200
    %v360 = vunpack.c.l.b16 %v201
    %v361 = vunpack.c.h.b16 %v201
    %v362 = vunpack.c.l.b16 %v202
    %v363 = vunpack.c.h.b16 %v202
    %v364 = vunpack.c.l.b16 %v203
    %v365 = vunpack.c.h.b16 %v203
    %v366 = vunpack.c.l.b16 %v204
    %v367 = vunpack.c.h.b16 %v204
    %v368 = vunpack.c.l.b16 %v205
    %v369 = vunpack.c.h.b16 %v205
    %v370 = vunpack.c.l.b16 %v206
    %v371 = vunpack.c.h.b16 %v206
    %v372 = vunpack.c.l.b16 %v207
    %v373 = vunpack.c.h.b16 %v207
    %v374 = vunpack.c.l.b16 %v208
    %v375 = vunpack.c.h.b16 %v208
    %v376 = vunpack.c.l.b16 %v209
    %v377 = vunpack.c.h.b16 %v209
    %v378 = vunpack.c.l.b16 %v210
    %v379 = vunpack.c.h.b16 %v210
    %v380 = vunpack.c.l.b16 %v211
    %v381 = vunpack.c.h.b16 %v211
    %v382 = vunpack.c.l.b16 %v212
    %v383 = vunpack.c.h.b16 %v212
    %v384 = vunpack.c.l.b16 %v213
    %v385 = vunpack.c.h.b16 %v213
    %v386 = vunpack.c.l.b16 %v214
    %v387 = vunpack.c.h.b16 %v214
    %v388 = vunpack.c.l.b16 %v215
    %v389 = vunpack.c.h.b16 %v215
    %v390 = vunpack.c.l.b16 %v216
    %v391 = vunpack.c.h.b16 %v216
    %v392 = vunpack.c.l.b16 %v217
    %v393 = vunpack.c.h.b16 %v217
    %v394 = vunpack.c.l.b16 %v218
    %v395 = vunpack.c.h.b16 %v218
    %v396 = vunpack.c.l.b16 %v219
    %v397 = vunpack.c.h.b16 %v219
    %v398 = vunpack.c.l.b16 %v220
    %v399 = vunpack.c.h.b16 %v220
    %v400 = vunpack.c.l.b16 %v221
    %v401 = vunpack.c.h.b16 %v221
    %v402 = vunpack.c.l.b16 %v222
    %v403 = vunpack.c.h.b16 %v222
    %v404 = vunpack.c.l.b16 %v223
    %v405 = vunpack.c.h.b16 %v223
    %v406 = vunpack.c.l.b16 %v224
    %v407 = vunpack.c.h.b16 %v224
    %v408 = vunpack.c.l.b16 %v225
    %v409 = vunpack.c.h.b16 %v225
    %v410 = vunpack.c.l.b16 %v226
    %v411 = vunpack.c.h.b16 %v226
    %v412 = vunpack.c.l.b16 %v227
    %v413 = vunpack.c.h.b16 %v227
    %v414 = vunpack.c.l.b16 %v228
    %v415 = vunpack.c.h.b16 %v228
    %v416 = vunpack.c.l.b16 %v229
    %v417 = vunpack.c.h.b16 %v229
    %v418 = vunpack.c.l.b16 %v230
    %v419 = vunpack.c.h.b16 %v230
    %v420 = vunpack.c.l.b16 %v231
    %v421 = vunpack.c.h.b16 %v231
    %v422 = vunpack.c.l.b16 %v232
    %v423 = vunpack.c.h.b16 %v232
    %v424 = vunpack.c.l.b16 %v233
    %v425 = vunpack.c.h.b16 %v233
    %v426 = vunpack.c.l.b16 %v234
    %v427 = vunpack.c.h.b16 %v234
    %v428 = vunpack.c.l.b16 %v235
    %v429 = vunpack.c.h.b16 %v235
    %v430 = vunpack.c.l.b16 %v236
    %v431 = vunpack.c.h.b16 %v236
    %v432 = vunpack.c.l.b16 %v237
    %v433 = vunpack.c.h.b16 %v237
    %v434 = vunpack.c.l.b16 %v238
    %v435 = vunpack.c.h.b16 %v238
    %v436 = vunpack.c.l.b16 %v239
    %v437 = vunpack.c.h.b16 %v239
    %v438 = vunpack.c.l.b16 %v240
    %v439 = vunpack.c.h.b16 %v240
    %v440 = vunpack.c.l.b16 %v241
    %v441 = vunpack.c.h.b16 %v241
    %v442 = vunpack.c.l.b16 %v242
    %v443 = vunpack.c.h.b16 %v242
    %v444 = vunpack.c.l.b16 %v243
    %v445 = vunpack.c.h.b16 %v243
    %v446 = vunpack.c.l.b16 %v244
    %v447 = vunpack.c.h.b16 %v244
    %v448 = vunpack.c.l.b16 %v245
    %v449 = vunpack.c.h.b16 %v245
    %v450 = vunpack.c.l.b16 %v246
    %v451 = vunpack.c.h.b16 %v246
    %v452 = vunpack.c.l.b16 %v247
    %v453 = vunpack.c.h.b16 %v247
    %v454 = vunpack.c.l.b16 %v248
    %v455 = vunpack.c.h.b16 %v248
    %v456 = vunpack.c.l.b16 %v249
    %v457 = vunpack.c.h.b16 %v249
    %v458 = vunpack.c.l.b16 %v250
    %v459 = vunpack.c.h.b16 %v250
    %v460 = vunpack.c.l.b16 %v251
    %v461 = vunpack.c.h.b16 %v251
    %v462 = vpack.c.b16 %v342, %v334
    %v463 = vpack.c.b16 %v343, %v335
    %v464 = vpack.c.b16 %v344, %v336
    %v465 = vpack.c.b16 %v345, %v337
    %v466 = vpack.c.b16 %v346, %v338
    %v467 = vpack.c.b16 %v347, %v339
    %v468 = vpack.c.b16 %v348, %v340
    %v469 = vpack.c.b16 %v349, %v341
    %v470 = vpack.c.b16 %v358, %v350
    %v471 = vpack.c.b16 %v359, %v351
    %v472 = vpack.c.b16 %v360, %v352
    %v473 = vpack.c.b16 %v361, %v353
    %v474 = vpack.c.b16 %v362, %v354
    %v475 = vpack.c.b16 %v363, %v355
    %v476 = vpack.c.b16 %v364, %v356
    %v477 = vpack.c.b16 %v365, %v357
    %v478 = vpack.c.b16 %v374, %v366
    %v479 = vpack.c.b16 %v375, %v367
    %v480 = vpack.c.b16 %v376, %v368
    %v481 = vpack.c.b16 %v377, %v369
    %v482 = vpack.c.b16 %v378, %v370
    %v483 = vpack.c.b16 %v379, %v371
    %v484 = vpack.c.b16 %v380, %v372
    %v485 = vpack.c.b16 %v381, %v373
    %v486 = vpack.c.b16 %v390, %v382
    %v487 = vpack.c.b16 %v391, %v383
    %v488 = vpack.c.b16 %v392, %v384
    %v489 = vpack.c.b16 %v393, %v385
    %v490 = vpack.c.b16 %v394, %v386
    %v491 = vpack.c.b16 %v395, %v387
    %v492 = vpack.c.b16 %v396, %v388
    %v493 = vpack.c.b16 %v397, %v389
    %v494 = vpack.c.b16 %v406, %v398
    %v495 = vpack.c.b16 %v407, %v399
    %v496 = vpack.c.b16 %v408, %v400
    %v497 = vpack.c.b16 %v409, %v401
    %v498 = vpack.c.b16 %v410, %v402
    %v499 = vpack.c.b16 %v411, %v403
    %v500 = vpack.c.b16 %v412, %v404
    %v501 = vpack.c.b16 %v413, %v405
    %v502 = vpack.c.b16 %v422, %v414
    %v503 = vpack.c.b16 %v423, %v415
    %v504 = vpack.c.b16 %v424, %v416
    %v505 = vpack.c.b16 %v425, %v417
    %v506 = vpack.c.b16 %v426, %v418
    %v507 = vpack.c.b16 %v427, %v419
    %v508 = vpack.c.b16 %v428, %v420
    %v509 = vpack.c.b16 %v429, %v421
    %v510 = vpack.c.b16 %v438, %v430
    %v511 = vpack.c.b16 %v439, %v431
    %v512 = vpack.c.b16 %v440, %v432
    %v513 = vpack.c.b16 %v441, %v433
    %v514 = vpack.c.b16 %v442, %v434
    %v515 = vpack.c.b16 %v443, %v435
    %v516 = vpack.c.b16 %v444, %v436
    %v517 = vpack.c.b16 %v445, %v437
    %v518 = vpack.c.b16 %v454, %v446
    %v519 = vpack.c.b16 %v455, %v447
    %v520 = vpack.c.b16 %v456, %v448
    %v521 = vpack.c.b16 %v457, %v449
    %v522 = vpack.c.b16 %v458, %v450
    %v523 = vpack.c.b16 %v459, %v451
    %v524 = vpack.c.b16 %v460, %v452
    %v525 = vpack.c.b16 %v461, %v453
    %590 = vmatpush.bf16.msra.mxu0 %v518
    %591 = vmatpush.bf16.msra.mxu0 %v510
    %592 = vmatpush.bf16.msra.mxu0 %v502
    %593 = vmatpush.bf16.msra.mxu0 %v494
    %594 = vmatpush.bf16.msra.mxu0 %v486
    %595 = vmatpush.bf16.msra.mxu0 %v478
    %596 = vmatpush.bf16.msra.mxu0 %v470
    %597 = vmatpush.bf16.msra.mxu0 %v462
    %598 = vmatmul.bf16.gmra.mxu0 %v187
    %v599 = vpop.f32.mrf.mxu0
    %v600 = vadd.f32 %v254, %v599
    %v601 = vpop.f32.mrf.mxu0
    %602 = vdwg.mxu0
    %603 = vmatpush.bf16.msra.mxu0 %v519
    %604 = vmatpush.bf16.msra.mxu0 %v511
    %605 = vmatpush.bf16.msra.mxu0 %v503
    %606 = vmatpush.bf16.msra.mxu0 %v495
    %607 = vmatpush.bf16.msra.mxu0 %v487
    %608 = vmatpush.bf16.msra.mxu0 %v479
    %609 = vmatpush.bf16.msra.mxu0 %v471
    %610 = vmatpush.bf16.msra.mxu0 %v463
    %611 = vmatmul.bf16.gmra.mxu0 %v187
    %v612 = vpop.f32.mrf.mxu0
    %v613 = vadd.f32 %v255, %v612
    %v614 = vpop.f32.mrf.mxu0
    %615 = vdwg.mxu0
    %616 = vmatpush.bf16.msra.mxu0 %v520
    %617 = vmatpush.bf16.msra.mxu0 %v512
    %618 = vmatpush.bf16.msra.mxu0 %v504
    %619 = vmatpush.bf16.msra.mxu0 %v496
    %620 = vmatpush.bf16.msra.mxu0 %v488
    %621 = vmatpush.bf16.msra.mxu0 %v480
    %622 = vmatpush.bf16.msra.mxu0 %v472
    %623 = vmatpush.bf16.msra.mxu0 %v464
    %624 = vmatmul.bf16.gmra.mxu0 %v187
    %v625 = vpop.f32.mrf.mxu0
    %v626 = vadd.f32 %v256, %v625
    %v627 = vpop.f32.mrf.mxu0
    %628 = vdwg.mxu0
    %629 = vmatpush.bf16.msra.mxu0 %v521
    %630 = vmatpush.bf16.msra.mxu0 %v513
    %631 = vmatpush.bf16.msra.mxu0 %v505
    %632 = vmatpush.bf16.msra.mxu0 %v497
    %633 = vmatpush.bf16.msra.mxu0 %v489
    %634 = vmatpush.bf16.msra.mxu0 %v481
    %635 = vmatpush.bf16.msra.mxu0 %v473
    %636 = vmatpush.bf16.msra.mxu0 %v465
    %637 = vmatmul.bf16.gmra.mxu0 %v187
    %v638 = vpop.f32.mrf.mxu0
    %v639 = vadd.f32 %v257, %v638
    %v640 = vpop.f32.mrf.mxu0
    %641 = vdwg.mxu0
    %642 = vmatpush.bf16.msra.mxu0 %v522
    %643 = vmatpush.bf16.msra.mxu0 %v514
    %644 = vmatpush.bf16.msra.mxu0 %v506
    %645 = vmatpush.bf16.msra.mxu0 %v498
    %646 = vmatpush.bf16.msra.mxu0 %v490
    %647 = vmatpush.bf16.msra.mxu0 %v482
    %648 = vmatpush.bf16.msra.mxu0 %v474
    %649 = vmatpush.bf16.msra.mxu0 %v466
    %650 = vmatmul.bf16.gmra.mxu0 %v187
    %v651 = vpop.f32.mrf.mxu0
    %v652 = vadd.f32 %v258, %v651
    %v653 = vpop.f32.mrf.mxu0
    %654 = vdwg.mxu0
    %655 = vmatpush.bf16.msra.mxu0 %v523
    %656 = vmatpush.bf16.msra.mxu0 %v515
    %657 = vmatpush.bf16.msra.mxu0 %v507
    %658 = vmatpush.bf16.msra.mxu0 %v499
    %659 = vmatpush.bf16.msra.mxu0 %v491
    %660 = vmatpush.bf16.msra.mxu0 %v483
    %661 = vmatpush.bf16.msra.mxu0 %v475
    %662 = vmatpush.bf16.msra.mxu0 %v467
    %663 = vmatmul.bf16.gmra.mxu0 %v187
    %v664 = vpop.f32.mrf.mxu0
    %v665 = vadd.f32 %v259, %v664
    %v666 = vpop.f32.mrf.mxu0
    %667 = vdwg.mxu0
    %668 = vmatpush.bf16.msra.mxu0 %v524
    %669 = vmatpush.bf16.msra.mxu0 %v516
    %670 = vmatpush.bf16.msra.mxu0 %v508
    %671 = vmatpush.bf16.msra.mxu0 %v500
    %672 = vmatpush.bf16.msra.mxu0 %v492
    %673 = vmatpush.bf16.msra.mxu0 %v484
    %674 = vmatpush.bf16.msra.mxu0 %v476
    %675 = vmatpush.bf16.msra.mxu0 %v468
    %676 = vmatmul.bf16.gmra.mxu0 %v187
    %v677 = vpop.f32.mrf.mxu0
    %v678 = vadd.f32 %v260, %v677
    %v679 = vpop.f32.mrf.mxu0
    %680 = vdwg.mxu0
    %681 = vmatpush.bf16.msra.mxu0 %v525
    %682 = vmatpush.bf16.msra.mxu0 %v517
    %683 = vmatpush.bf16.msra.mxu0 %v509
    %684 = vmatpush.bf16.msra.mxu0 %v501
    %685 = vmatpush.bf16.msra.mxu0 %v493
    %686 = vmatpush.bf16.msra.mxu0 %v485
    %687 = vmatpush.bf16.msra.mxu0 %v477
    %688 = vmatpush.bf16.msra.mxu0 %v469
    %689 = vmatmul.bf16.gmra.mxu0 %v187
    %v690 = vpop.f32.mrf.mxu0
    %v691 = vadd.f32 %v261, %v690
    %v692 = vpop.f32.mrf.mxu0
    %693 = vdwg.mxu0
    %vm694 = vcmp.gt.f32.partialorder %v600, 0.0
    %vm695 = vcmp.gt.f32.partialorder %v613, 0.0
    %vm696 = vcmp.gt.f32.partialorder %v626, 0.0
    %vm697 = vcmp.gt.f32.partialorder %v639, 0.0
    %vm698 = vcmp.gt.f32.partialorder %v652, 0.0
    %vm699 = vcmp.gt.f32.partialorder %v665, 0.0
    %vm700 = vcmp.gt.f32.partialorder %v678, 0.0
    %vm701 = vcmp.gt.f32.partialorder %v691, 0.0
    %v702 = vmul.f32 %v600, 0.01
    %v703 = vmul.f32 %v613, 0.01
    %v704 = vmul.f32 %v626, 0.01
    %v705 = vmul.f32 %v639, 0.01
    %v706 = vmul.f32 %v652, 0.01
    %v707 = vmul.f32 %v665, 0.01
    %v708 = vmul.f32 %v678, 0.01
    %v709 = vmul.f32 %v691, 0.01
    %v710 = vsel %vm694, %v600, %v702
    %v711 = vsel %vm695, %v613, %v703
    %v712 = vsel %vm696, %v626, %v704
    %v713 = vsel %vm697, %v639, %v705
    %v714 = vsel %vm698, %v652, %v706
    %v715 = vsel %vm699, %v665, %v707
    %v716 = vsel %vm700, %v678, %v708
    %v717 = vsel %vm701, %v691, %v709
    %v718 = vpack.c.bf16 %v710, %v710
    %v719 = vpack.c.bf16 %v711, %v711
    %v720 = vpack.c.bf16 %v712, %v712
    %v721 = vpack.c.bf16 %v713, %v713
    %v722 = vpack.c.bf16 %v714, %v714
    %v723 = vpack.c.bf16 %v715, %v715
    %v724 = vpack.c.bf16 %v716, %v716
    %v725 = vpack.c.bf16 %v717, %v717
    %v726 = vld [vmem:[#allocation8] sm:$0xff]
    %v727 = vld [vmem:[#allocation8 + $0x8] sm:$0xff]
    %v728 = vld [vmem:[#allocation8 + $0x10] sm:$0xff]
    %v729 = vld [vmem:[#allocation8 + $0x18] sm:$0xff]
    %v730 = vld [vmem:[#allocation8 + $0x20] sm:$0xff]
    %v731 = vld [vmem:[#allocation8 + $0x28] sm:$0xff]
    %v732 = vld [vmem:[#allocation8 + $0x30] sm:$0xff]
    %v733 = vld [vmem:[#allocation8 + $0x38] sm:$0xff]
    %v734 = vld [vmem:[#allocation8 + $0x40] sm:$0xff]
    %v735 = vld [vmem:[#allocation8 + $0x48] sm:$0xff]
    %v736 = vld [vmem:[#allocation8 + $0x50] sm:$0xff]
    %v737 = vld [vmem:[#allocation8 + $0x58] sm:$0xff]
    %v738 = vld [vmem:[#allocation8 + $0x60] sm:$0xff]
    %v739 = vld [vmem:[#allocation8 + $0x68] sm:$0xff]
    %v740 = vld [vmem:[#allocation8 + $0x70] sm:$0xff]
    %v741 = vld [vmem:[#allocation8 + $0x78] sm:$0xff]
    %v742 = vld [vmem:[#allocation8 + $0x80] sm:$0xff]
    %v743 = vld [vmem:[#allocation8 + $0x88] sm:$0xff]
    %v744 = vld [vmem:[#allocation8 + $0x90] sm:$0xff]
    %v745 = vld [vmem:[#allocation8 + $0x98] sm:$0xff]
    %v746 = vld [vmem:[#allocation8 + $0xa0] sm:$0xff]
    %v747 = vld [vmem:[#allocation8 + $0xa8] sm:$0xff]
    %v748 = vld [vmem:[#allocation8 + $0xb0] sm:$0xff]
    %v749 = vld [vmem:[#allocation8 + $0xb8] sm:$0xff]
    %v750 = vld [vmem:[#allocation8 + $0xc0] sm:$0xff]
    %v751 = vld [vmem:[#allocation8 + $0xc8] sm:$0xff]
    %v752 = vld [vmem:[#allocation8 + $0xd0] sm:$0xff]
    %v753 = vld [vmem:[#allocation8 + $0xd8] sm:$0xff]
    %v754 = vld [vmem:[#allocation8 + $0xe0] sm:$0xff]
    %v755 = vld [vmem:[#allocation8 + $0xe8] sm:$0xff]
    %v756 = vld [vmem:[#allocation8 + $0xf0] sm:$0xff]
    %v757 = vld [vmem:[#allocation8 + $0xf8] sm:$0xff]
    %v758 = vld [vmem:[#allocation8 + $0x100] sm:$0xff]
    %v759 = vld [vmem:[#allocation8 + $0x108] sm:$0xff]
    %v760 = vld [vmem:[#allocation8 + $0x110] sm:$0xff]
    %v761 = vld [vmem:[#allocation8 + $0x118] sm:$0xff]
    %v762 = vld [vmem:[#allocation8 + $0x120] sm:$0xff]
    %v763 = vld [vmem:[#allocation8 + $0x128] sm:$0xff]
    %v764 = vld [vmem:[#allocation8 + $0x130] sm:$0xff]
    %v765 = vld [vmem:[#allocation8 + $0x138] sm:$0xff]
    %v766 = vld [vmem:[#allocation8 + $0x140] sm:$0xff]
    %v767 = vld [vmem:[#allocation8 + $0x148] sm:$0xff]
    %v768 = vld [vmem:[#allocation8 + $0x150] sm:$0xff]
    %v769 = vld [vmem:[#allocation8 + $0x158] sm:$0xff]
    %v770 = vld [vmem:[#allocation8 + $0x160] sm:$0xff]
    %v771 = vld [vmem:[#allocation8 + $0x168] sm:$0xff]
    %v772 = vld [vmem:[#allocation8 + $0x170] sm:$0xff]
    %v773 = vld [vmem:[#allocation8 + $0x178] sm:$0xff]
    %v774 = vld [vmem:[#allocation8 + $0x180] sm:$0xff]
    %v775 = vld [vmem:[#allocation8 + $0x188] sm:$0xff]
    %v776 = vld [vmem:[#allocation8 + $0x190] sm:$0xff]
    %v777 = vld [vmem:[#allocation8 + $0x198] sm:$0xff]
    %v778 = vld [vmem:[#allocation8 + $0x1a0] sm:$0xff]
    %v779 = vld [vmem:[#allocation8 + $0x1a8] sm:$0xff]
    %v780 = vld [vmem:[#allocation8 + $0x1b0] sm:$0xff]
    %v781 = vld [vmem:[#allocation8 + $0x1b8] sm:$0xff]
    %v782 = vld [vmem:[#allocation8 + $0x1c0] sm:$0xff]
    %v783 = vld [vmem:[#allocation8 + $0x1c8] sm:$0xff]
    %v784 = vld [vmem:[#allocation8 + $0x1d0] sm:$0xff]
    %v785 = vld [vmem:[#allocation8 + $0x1d8] sm:$0xff]
    %v786 = vld [vmem:[#allocation8 + $0x1e0] sm:$0xff]
    %v787 = vld [vmem:[#allocation8 + $0x1e8] sm:$0xff]
    %v788 = vld [vmem:[#allocation8 + $0x1f0] sm:$0xff]
    %v789 = vld [vmem:[#allocation8 + $0x1f8] sm:$0xff]
    %v790 = vld [vmem:[#allocation8 + $0x200] sm:$0xff]
    %v791 = vld [vmem:[#allocation8 + $0x208] sm:$0xff]
    %v792 = vld [vmem:[#allocation8 + $0x210] sm:$0xff]
    %v793 = vld [vmem:[#allocation8 + $0x218] sm:$0xff]
    %v794 = vld [vmem:[#allocation8 + $0x220] sm:$0xff]
    %v795 = vld [vmem:[#allocation8 + $0x228] sm:$0xff]
    %v796 = vld [vmem:[#allocation8 + $0x230] sm:$0xff]
    %v797 = vld [vmem:[#allocation8 + $0x238] sm:$0xff]
    %v798 = vld [vmem:[#allocation8 + $0x240] sm:$0xff]
    %v799 = vld [vmem:[#allocation8 + $0x248] sm:$0xff]
    %v800 = vld [vmem:[#allocation8 + $0x250] sm:$0xff]
    %v801 = vld [vmem:[#allocation8 + $0x258] sm:$0xff]
    %v802 = vld [vmem:[#allocation8 + $0x260] sm:$0xff]
    %v803 = vld [vmem:[#allocation8 + $0x268] sm:$0xff]
    %v804 = vld [vmem:[#allocation8 + $0x270] sm:$0xff]
    %v805 = vld [vmem:[#allocation8 + $0x278] sm:$0xff]
    %v806 = vld [vmem:[#allocation8 + $0x280] sm:$0xff]
    %v807 = vld [vmem:[#allocation8 + $0x288] sm:$0xff]
    %v808 = vld [vmem:[#allocation8 + $0x290] sm:$0xff]
    %v809 = vld [vmem:[#allocation8 + $0x298] sm:$0xff]
    %v810 = vld [vmem:[#allocation8 + $0x2a0] sm:$0xff]
    %v811 = vld [vmem:[#allocation8 + $0x2a8] sm:$0xff]
    %v812 = vld [vmem:[#allocation8 + $0x2b0] sm:$0xff]
    %v813 = vld [vmem:[#allocation8 + $0x2b8] sm:$0xff]
    %v814 = vld [vmem:[#allocation8 + $0x2c0] sm:$0xff]
    %v815 = vld [vmem:[#allocation8 + $0x2c8] sm:$0xff]
    %v816 = vld [vmem:[#allocation8 + $0x2d0] sm:$0xff]
    %v817 = vld [vmem:[#allocation8 + $0x2d8] sm:$0xff]
    %v818 = vld [vmem:[#allocation8 + $0x2e0] sm:$0xff]
    %v819 = vld [vmem:[#allocation8 + $0x2e8] sm:$0xff]
    %v820 = vld [vmem:[#allocation8 + $0x2f0] sm:$0xff]
    %v821 = vld [vmem:[#allocation8 + $0x2f8] sm:$0xff]
    %v822 = vld [vmem:[#allocation8 + $0x300] sm:$0xff]
    %v823 = vld [vmem:[#allocation8 + $0x308] sm:$0xff]
    %v824 = vld [vmem:[#allocation8 + $0x310] sm:$0xff]
    %v825 = vld [vmem:[#allocation8 + $0x318] sm:$0xff]
    %v826 = vld [vmem:[#allocation8 + $0x320] sm:$0xff]
    %v827 = vld [vmem:[#allocation8 + $0x328] sm:$0xff]
    %v828 = vld [vmem:[#allocation8 + $0x330] sm:$0xff]
    %v829 = vld [vmem:[#allocation8 + $0x338] sm:$0xff]
    %v830 = vld [vmem:[#allocation8 + $0x340] sm:$0xff]
    %v831 = vld [vmem:[#allocation8 + $0x348] sm:$0xff]
    %v832 = vld [vmem:[#allocation8 + $0x350] sm:$0xff]
    %v833 = vld [vmem:[#allocation8 + $0x358] sm:$0xff]
    %v834 = vld [vmem:[#allocation8 + $0x360] sm:$0xff]
    %v835 = vld [vmem:[#allocation8 + $0x368] sm:$0xff]
    %v836 = vld [vmem:[#allocation8 + $0x370] sm:$0xff]
    %v837 = vld [vmem:[#allocation8 + $0x378] sm:$0xff]
    %v838 = vld [vmem:[#allocation8 + $0x380] sm:$0xff]
    %v839 = vld [vmem:[#allocation8 + $0x388] sm:$0xff]
    %v840 = vld [vmem:[#allocation8 + $0x390] sm:$0xff]
    %v841 = vld [vmem:[#allocation8 + $0x398] sm:$0xff]
    %v842 = vld [vmem:[#allocation8 + $0x3a0] sm:$0xff]
    %v843 = vld [vmem:[#allocation8 + $0x3a8] sm:$0xff]
    %v844 = vld [vmem:[#allocation8 + $0x3b0] sm:$0xff]
    %v845 = vld [vmem:[#allocation8 + $0x3b8] sm:$0xff]
    %v846 = vld [vmem:[#allocation8 + $0x3c0] sm:$0xff]
    %v847 = vld [vmem:[#allocation8 + $0x3c8] sm:$0xff]
    %v848 = vld [vmem:[#allocation8 + $0x3d0] sm:$0xff]
    %v849 = vld [vmem:[#allocation8 + $0x3d8] sm:$0xff]
    %v850 = vld [vmem:[#allocation8 + $0x3e0] sm:$0xff]
    %v851 = vld [vmem:[#allocation8 + $0x3e8] sm:$0xff]
    %v852 = vld [vmem:[#allocation8 + $0x3f0] sm:$0xff]
    %v853 = vld [vmem:[#allocation8 + $0x3f8] sm:$0xff]
    %v854 = vld [vmem:[#allocation8 + $0x400] sm:$0xff]
    %v855 = vld [vmem:[#allocation8 + $0x408] sm:$0xff]
    %v856 = vld [vmem:[#allocation8 + $0x410] sm:$0xff]
    %v857 = vld [vmem:[#allocation8 + $0x418] sm:$0xff]
    %v858 = vld [vmem:[#allocation8 + $0x420] sm:$0xff]
    %v859 = vld [vmem:[#allocation8 + $0x428] sm:$0xff]
    %v860 = vld [vmem:[#allocation8 + $0x430] sm:$0xff]
    %v861 = vld [vmem:[#allocation8 + $0x438] sm:$0xff]
    %v862 = vld [vmem:[#allocation8 + $0x440] sm:$0xff]
    %v863 = vld [vmem:[#allocation8 + $0x448] sm:$0xff]
    %v864 = vld [vmem:[#allocation8 + $0x450] sm:$0xff]
    %v865 = vld [vmem:[#allocation8 + $0x458] sm:$0xff]
    %v866 = vld [vmem:[#allocation8 + $0x460] sm:$0xff]
    %v867 = vld [vmem:[#allocation8 + $0x468] sm:$0xff]
    %v868 = vld [vmem:[#allocation8 + $0x470] sm:$0xff]
    %v869 = vld [vmem:[#allocation8 + $0x478] sm:$0xff]
    %v870 = vld [vmem:[#allocation8 + $0x480] sm:$0xff]
    %v871 = vld [vmem:[#allocation8 + $0x488] sm:$0xff]
    %v872 = vld [vmem:[#allocation8 + $0x490] sm:$0xff]
    %v873 = vld [vmem:[#allocation8 + $0x498] sm:$0xff]
    %v874 = vld [vmem:[#allocation8 + $0x4a0] sm:$0xff]
    %v875 = vld [vmem:[#allocation8 + $0x4a8] sm:$0xff]
    %v876 = vld [vmem:[#allocation8 + $0x4b0] sm:$0xff]
    %v877 = vld [vmem:[#allocation8 + $0x4b8] sm:$0xff]
    %v878 = vld [vmem:[#allocation8 + $0x4c0] sm:$0xff]
    %v879 = vld [vmem:[#allocation8 + $0x4c8] sm:$0xff]
    %v880 = vld [vmem:[#allocation8 + $0x4d0] sm:$0xff]
    %v881 = vld [vmem:[#allocation8 + $0x4d8] sm:$0xff]
    %v882 = vld [vmem:[#allocation8 + $0x4e0] sm:$0xff]
    %v883 = vld [vmem:[#allocation8 + $0x4e8] sm:$0xff]
    %v884 = vld [vmem:[#allocation8 + $0x4f0] sm:$0xff]
    %v885 = vld [vmem:[#allocation8 + $0x4f8] sm:$0xff]
    %v886 = vld [vmem:[#allocation8 + $0x500] sm:$0xff]
    %v887 = vld [vmem:[#allocation8 + $0x508] sm:$0xff]
    %v888 = vld [vmem:[#allocation8 + $0x510] sm:$0xff]
    %v889 = vld [vmem:[#allocation8 + $0x518] sm:$0xff]
    %v890 = vld [vmem:[#allocation8 + $0x520] sm:$0xff]
    %v891 = vld [vmem:[#allocation8 + $0x528] sm:$0xff]
    %v892 = vld [vmem:[#allocation8 + $0x530] sm:$0xff]
    %v893 = vld [vmem:[#allocation8 + $0x538] sm:$0xff]
    %v894 = vld [vmem:[#allocation8 + $0x540] sm:$0xff]
    %v895 = vld [vmem:[#allocation8 + $0x548] sm:$0xff]
    %v896 = vld [vmem:[#allocation8 + $0x550] sm:$0xff]
    %v897 = vld [vmem:[#allocation8 + $0x558] sm:$0xff]
    %v898 = vld [vmem:[#allocation8 + $0x560] sm:$0xff]
    %v899 = vld [vmem:[#allocation8 + $0x568] sm:$0xff]
    %v900 = vld [vmem:[#allocation8 + $0x570] sm:$0xff]
    %v901 = vld [vmem:[#allocation8 + $0x578] sm:$0xff]
    %v902 = vld [vmem:[#allocation8 + $0x580] sm:$0xff]
    %v903 = vld [vmem:[#allocation8 + $0x588] sm:$0xff]
    %v904 = vld [vmem:[#allocation8 + $0x590] sm:$0xff]
    %v905 = vld [vmem:[#allocation8 + $0x598] sm:$0xff]
    %v906 = vld [vmem:[#allocation8 + $0x5a0] sm:$0xff]
    %v907 = vld [vmem:[#allocation8 + $0x5a8] sm:$0xff]
    %v908 = vld [vmem:[#allocation8 + $0x5b0] sm:$0xff]
    %v909 = vld [vmem:[#allocation8 + $0x5b8] sm:$0xff]
    %v910 = vld [vmem:[#allocation8 + $0x5c0] sm:$0xff]
    %v911 = vld [vmem:[#allocation8 + $0x5c8] sm:$0xff]
    %v912 = vld [vmem:[#allocation8 + $0x5d0] sm:$0xff]
    %v913 = vld [vmem:[#allocation8 + $0x5d8] sm:$0xff]
    %v914 = vld [vmem:[#allocation8 + $0x5e0] sm:$0xff]
    %v915 = vld [vmem:[#allocation8 + $0x5e8] sm:$0xff]
    %v916 = vld [vmem:[#allocation8 + $0x5f0] sm:$0xff]
    %v917 = vld [vmem:[#allocation8 + $0x5f8] sm:$0xff]
    %v918 = vld [vmem:[#allocation8 + $0x600] sm:$0xff]
    %v919 = vld [vmem:[#allocation8 + $0x608] sm:$0xff]
    %v920 = vld [vmem:[#allocation8 + $0x610] sm:$0xff]
    %v921 = vld [vmem:[#allocation8 + $0x618] sm:$0xff]
    %v922 = vld [vmem:[#allocation8 + $0x620] sm:$0xff]
    %v923 = vld [vmem:[#allocation8 + $0x628] sm:$0xff]
    %v924 = vld [vmem:[#allocation8 + $0x630] sm:$0xff]
    %v925 = vld [vmem:[#allocation8 + $0x638] sm:$0xff]
    %v926 = vld [vmem:[#allocation8 + $0x640] sm:$0xff]
    %v927 = vld [vmem:[#allocation8 + $0x648] sm:$0xff]
    %v928 = vld [vmem:[#allocation8 + $0x650] sm:$0xff]
    %v929 = vld [vmem:[#allocation8 + $0x658] sm:$0xff]
    %v930 = vld [vmem:[#allocation8 + $0x660] sm:$0xff]
    %v931 = vld [vmem:[#allocation8 + $0x668] sm:$0xff]
    %v932 = vld [vmem:[#allocation8 + $0x670] sm:$0xff]
    %v933 = vld [vmem:[#allocation8 + $0x678] sm:$0xff]
    %v934 = vld [vmem:[#allocation8 + $0x680] sm:$0xff]
    %v935 = vld [vmem:[#allocation8 + $0x688] sm:$0xff]
    %v936 = vld [vmem:[#allocation8 + $0x690] sm:$0xff]
    %v937 = vld [vmem:[#allocation8 + $0x698] sm:$0xff]
    %v938 = vld [vmem:[#allocation8 + $0x6a0] sm:$0xff]
    %v939 = vld [vmem:[#allocation8 + $0x6a8] sm:$0xff]
    %v940 = vld [vmem:[#allocation8 + $0x6b0] sm:$0xff]
    %v941 = vld [vmem:[#allocation8 + $0x6b8] sm:$0xff]
    %v942 = vld [vmem:[#allocation8 + $0x6c0] sm:$0xff]
    %v943 = vld [vmem:[#allocation8 + $0x6c8] sm:$0xff]
    %v944 = vld [vmem:[#allocation8 + $0x6d0] sm:$0xff]
    %v945 = vld [vmem:[#allocation8 + $0x6d8] sm:$0xff]
    %v946 = vld [vmem:[#allocation8 + $0x6e0] sm:$0xff]
    %v947 = vld [vmem:[#allocation8 + $0x6e8] sm:$0xff]
    %v948 = vld [vmem:[#allocation8 + $0x6f0] sm:$0xff]
    %v949 = vld [vmem:[#allocation8 + $0x6f8] sm:$0xff]
    %v950 = vld [vmem:[#allocation8 + $0x700] sm:$0xff]
    %v951 = vld [vmem:[#allocation8 + $0x708] sm:$0xff]
    %v952 = vld [vmem:[#allocation8 + $0x710] sm:$0xff]
    %v953 = vld [vmem:[#allocation8 + $0x718] sm:$0xff]
    %v954 = vld [vmem:[#allocation8 + $0x720] sm:$0xff]
    %v955 = vld [vmem:[#allocation8 + $0x728] sm:$0xff]
    %v956 = vld [vmem:[#allocation8 + $0x730] sm:$0xff]
    %v957 = vld [vmem:[#allocation8 + $0x738] sm:$0xff]
    %v958 = vld [vmem:[#allocation8 + $0x740] sm:$0xff]
    %v959 = vld [vmem:[#allocation8 + $0x748] sm:$0xff]
    %v960 = vld [vmem:[#allocation8 + $0x750] sm:$0xff]
    %v961 = vld [vmem:[#allocation8 + $0x758] sm:$0xff]
    %v962 = vld [vmem:[#allocation8 + $0x760] sm:$0xff]
    %v963 = vld [vmem:[#allocation8 + $0x768] sm:$0xff]
    %v964 = vld [vmem:[#allocation8 + $0x770] sm:$0xff]
    %v965 = vld [vmem:[#allocation8 + $0x778] sm:$0xff]
    %v966 = vld [vmem:[#allocation8 + $0x780] sm:$0xff]
    %v967 = vld [vmem:[#allocation8 + $0x788] sm:$0xff]
    %v968 = vld [vmem:[#allocation8 + $0x790] sm:$0xff]
    %v969 = vld [vmem:[#allocation8 + $0x798] sm:$0xff]
    %v970 = vld [vmem:[#allocation8 + $0x7a0] sm:$0xff]
    %v971 = vld [vmem:[#allocation8 + $0x7a8] sm:$0xff]
    %v972 = vld [vmem:[#allocation8 + $0x7b0] sm:$0xff]
    %v973 = vld [vmem:[#allocation8 + $0x7b8] sm:$0xff]
    %v974 = vld [vmem:[#allocation8 + $0x7c0] sm:$0xff]
    %v975 = vld [vmem:[#allocation8 + $0x7c8] sm:$0xff]
    %v976 = vld [vmem:[#allocation8 + $0x7d0] sm:$0xff]
    %v977 = vld [vmem:[#allocation8 + $0x7d8] sm:$0xff]
    %v978 = vld [vmem:[#allocation8 + $0x7e0] sm:$0xff]
    %v979 = vld [vmem:[#allocation8 + $0x7e8] sm:$0xff]
    %v980 = vld [vmem:[#allocation8 + $0x7f0] sm:$0xff]
    %v981 = vld [vmem:[#allocation8 + $0x7f8] sm:$0xff]
    %v982 = vld [vmem:[%s5] sm:$0xf]
    %v984 = vperm.slane %v982, 0
    %v985 = vperm.slane %v982, 1
    %v986 = vperm.slane %v982, 2
    %v987 = vperm.slane %v982, 3
    %v1248 = vunpack.c.l.b16 %v726
    %v1249 = vunpack.c.h.b16 %v726
    %v1250 = vunpack.c.l.b16 %v727
    %v1251 = vunpack.c.h.b16 %v727
    %v1252 = vunpack.c.l.b16 %v728
    %v1253 = vunpack.c.h.b16 %v728
    %v1254 = vunpack.c.l.b16 %v729
    %v1255 = vunpack.c.h.b16 %v729
    %v1256 = vunpack.c.l.b16 %v730
    %v1257 = vunpack.c.h.b16 %v730
    %v1258 = vunpack.c.l.b16 %v731
    %v1259 = vunpack.c.h.b16 %v731
    %v1260 = vunpack.c.l.b16 %v732
    %v1261 = vunpack.c.h.b16 %v732
    %v1262 = vunpack.c.l.b16 %v733
    %v1263 = vunpack.c.h.b16 %v733
    %v1264 = vunpack.c.l.b16 %v734
    %v1265 = vunpack.c.h.b16 %v734
    %v1266 = vunpack.c.l.b16 %v735
    %v1267 = vunpack.c.h.b16 %v735
    %v1268 = vunpack.c.l.b16 %v736
    %v1269 = vunpack.c.h.b16 %v736
    %v1270 = vunpack.c.l.b16 %v737
    %v1271 = vunpack.c.h.b16 %v737
    %v1272 = vunpack.c.l.b16 %v738
    %v1273 = vunpack.c.h.b16 %v738
    %v1274 = vunpack.c.l.b16 %v739
    %v1275 = vunpack.c.h.b16 %v739
    %v1276 = vunpack.c.l.b16 %v740
    %v1277 = vunpack.c.h.b16 %v740
    %v1278 = vunpack.c.l.b16 %v741
    %v1279 = vunpack.c.h.b16 %v741
    %v1280 = vunpack.c.l.b16 %v742
    %v1281 = vunpack.c.h.b16 %v742
    %v1282 = vunpack.c.l.b16 %v743
    %v1283 = vunpack.c.h.b16 %v743
    %v1284 = vunpack.c.l.b16 %v744
    %v1285 = vunpack.c.h.b16 %v744
    %v1286 = vunpack.c.l.b16 %v745
    %v1287 = vunpack.c.h.b16 %v745
    %v1288 = vunpack.c.l.b16 %v746
    %v1289 = vunpack.c.h.b16 %v746
    %v1290 = vunpack.c.l.b16 %v747
    %v1291 = vunpack.c.h.b16 %v747
    %v1292 = vunpack.c.l.b16 %v748
    %v1293 = vunpack.c.h.b16 %v748
    %v1294 = vunpack.c.l.b16 %v749
    %v1295 = vunpack.c.h.b16 %v749
    %v1296 = vunpack.c.l.b16 %v750
    %v1297 = vunpack.c.h.b16 %v750
    %v1298 = vunpack.c.l.b16 %v751
    %v1299 = vunpack.c.h.b16 %v751
    %v1300 = vunpack.c.l.b16 %v752
    %v1301 = vunpack.c.h.b16 %v752
    %v1302 = vunpack.c.l.b16 %v753
    %v1303 = vunpack.c.h.b16 %v753
    %v1304 = vunpack.c.l.b16 %v754
    %v1305 = vunpack.c.h.b16 %v754
    %v1306 = vunpack.c.l.b16 %v755
    %v1307 = vunpack.c.h.b16 %v755
    %v1308 = vunpack.c.l.b16 %v756
    %v1309 = vunpack.c.h.b16 %v756
    %v1310 = vunpack.c.l.b16 %v757
    %v1311 = vunpack.c.h.b16 %v757
    %v1312 = vunpack.c.l.b16 %v758
    %v1313 = vunpack.c.h.b16 %v758
    %v1314 = vunpack.c.l.b16 %v759
    %v1315 = vunpack.c.h.b16 %v759
    %v1316 = vunpack.c.l.b16 %v760
    %v1317 = vunpack.c.h.b16 %v760
    %v1318 = vunpack.c.l.b16 %v761
    %v1319 = vunpack.c.h.b16 %v761
    %v1320 = vunpack.c.l.b16 %v762
    %v1321 = vunpack.c.h.b16 %v762
    %v1322 = vunpack.c.l.b16 %v763
    %v1323 = vunpack.c.h.b16 %v763
    %v1324 = vunpack.c.l.b16 %v764
    %v1325 = vunpack.c.h.b16 %v764
    %v1326 = vunpack.c.l.b16 %v765
    %v1327 = vunpack.c.h.b16 %v765
    %v1328 = vunpack.c.l.b16 %v766
    %v1329 = vunpack.c.h.b16 %v766
    %v1330 = vunpack.c.l.b16 %v767
    %v1331 = vunpack.c.h.b16 %v767
    %v1332 = vunpack.c.l.b16 %v768
    %v1333 = vunpack.c.h.b16 %v768
    %v1334 = vunpack.c.l.b16 %v769
    %v1335 = vunpack.c.h.b16 %v769
    %v1336 = vunpack.c.l.b16 %v770
    %v1337 = vunpack.c.h.b16 %v770
    %v1338 = vunpack.c.l.b16 %v771
    %v1339 = vunpack.c.h.b16 %v771
    %v1340 = vunpack.c.l.b16 %v772
    %v1341 = vunpack.c.h.b16 %v772
    %v1342 = vunpack.c.l.b16 %v773
    %v1343 = vunpack.c.h.b16 %v773
    %v1344 = vunpack.c.l.b16 %v774
    %v1345 = vunpack.c.h.b16 %v774
    %v1346 = vunpack.c.l.b16 %v775
    %v1347 = vunpack.c.h.b16 %v775
    %v1348 = vunpack.c.l.b16 %v776
    %v1349 = vunpack.c.h.b16 %v776
    %v1350 = vunpack.c.l.b16 %v777
    %v1351 = vunpack.c.h.b16 %v777
    %v1352 = vunpack.c.l.b16 %v778
    %v1353 = vunpack.c.h.b16 %v778
    %v1354 = vunpack.c.l.b16 %v779
    %v1355 = vunpack.c.h.b16 %v779
    %v1356 = vunpack.c.l.b16 %v780
    %v1357 = vunpack.c.h.b16 %v780
    %v1358 = vunpack.c.l.b16 %v781
    %v1359 = vunpack.c.h.b16 %v781
    %v1360 = vunpack.c.l.b16 %v782
    %v1361 = vunpack.c.h.b16 %v782
    %v1362 = vunpack.c.l.b16 %v783
    %v1363 = vunpack.c.h.b16 %v783
    %v1364 = vunpack.c.l.b16 %v784
    %v1365 = vunpack.c.h.b16 %v784
    %v1366 = vunpack.c.l.b16 %v785
    %v1367 = vunpack.c.h.b16 %v785
    %v1368 = vunpack.c.l.b16 %v786
    %v1369 = vunpack.c.h.b16 %v786
    %v1370 = vunpack.c.l.b16 %v787
    %v1371 = vunpack.c.h.b16 %v787
    %v1372 = vunpack.c.l.b16 %v788
    %v1373 = vunpack.c.h.b16 %v788
    %v1374 = vunpack.c.l.b16 %v789
    %v1375 = vunpack.c.h.b16 %v789
    %v1376 = vunpack.c.l.b16 %v790
    %v1377 = vunpack.c.h.b16 %v790
    %v1378 = vunpack.c.l.b16 %v791
    %v1379 = vunpack.c.h.b16 %v791
    %v1380 = vunpack.c.l.b16 %v792
    %v1381 = vunpack.c.h.b16 %v792
    %v1382 = vunpack.c.l.b16 %v793
    %v1383 = vunpack.c.h.b16 %v793
    %v1384 = vunpack.c.l.b16 %v794
    %v1385 = vunpack.c.h.b16 %v794
    %v1386 = vunpack.c.l.b16 %v795
    %v1387 = vunpack.c.h.b16 %v795
    %v1388 = vunpack.c.l.b16 %v796
    %v1389 = vunpack.c.h.b16 %v796
    %v1390 = vunpack.c.l.b16 %v797
    %v1391 = vunpack.c.h.b16 %v797
    %v1392 = vunpack.c.l.b16 %v798
    %v1393 = vunpack.c.h.b16 %v798
    %v1394 = vunpack.c.l.b16 %v799
    %v1395 = vunpack.c.h.b16 %v799
    %v1396 = vunpack.c.l.b16 %v800
    %v1397 = vunpack.c.h.b16 %v800
    %v1398 = vunpack.c.l.b16 %v801
    %v1399 = vunpack.c.h.b16 %v801
    %v1400 = vunpack.c.l.b16 %v802
    %v1401 = vunpack.c.h.b16 %v802
    %v1402 = vunpack.c.l.b16 %v803
    %v1403 = vunpack.c.h.b16 %v803
    %v1404 = vunpack.c.l.b16 %v804
    %v1405 = vunpack.c.h.b16 %v804
    %v1406 = vunpack.c.l.b16 %v805
    %v1407 = vunpack.c.h.b16 %v805
    %v1408 = vunpack.c.l.b16 %v806
    %v1409 = vunpack.c.h.b16 %v806
    %v1410 = vunpack.c.l.b16 %v807
    %v1411 = vunpack.c.h.b16 %v807
    %v1412 = vunpack.c.l.b16 %v808
    %v1413 = vunpack.c.h.b16 %v808
    %v1414 = vunpack.c.l.b16 %v809
    %v1415 = vunpack.c.h.b16 %v809
    %v1416 = vunpack.c.l.b16 %v810
    %v1417 = vunpack.c.h.b16 %v810
    %v1418 = vunpack.c.l.b16 %v811
    %v1419 = vunpack.c.h.b16 %v811
    %v1420 = vunpack.c.l.b16 %v812
    %v1421 = vunpack.c.h.b16 %v812
    %v1422 = vunpack.c.l.b16 %v813
    %v1423 = vunpack.c.h.b16 %v813
    %v1424 = vunpack.c.l.b16 %v814
    %v1425 = vunpack.c.h.b16 %v814
    %v1426 = vunpack.c.l.b16 %v815
    %v1427 = vunpack.c.h.b16 %v815
    %v1428 = vunpack.c.l.b16 %v816
    %v1429 = vunpack.c.h.b16 %v816
    %v1430 = vunpack.c.l.b16 %v817
    %v1431 = vunpack.c.h.b16 %v817
    %v1432 = vunpack.c.l.b16 %v818
    %v1433 = vunpack.c.h.b16 %v818
    %v1434 = vunpack.c.l.b16 %v819
    %v1435 = vunpack.c.h.b16 %v819
    %v1436 = vunpack.c.l.b16 %v820
    %v1437 = vunpack.c.h.b16 %v820
    %v1438 = vunpack.c.l.b16 %v821
    %v1439 = vunpack.c.h.b16 %v821
    %v1440 = vunpack.c.l.b16 %v822
    %v1441 = vunpack.c.h.b16 %v822
    %v1442 = vunpack.c.l.b16 %v823
    %v1443 = vunpack.c.h.b16 %v823
    %v1444 = vunpack.c.l.b16 %v824
    %v1445 = vunpack.c.h.b16 %v824
    %v1446 = vunpack.c.l.b16 %v825
    %v1447 = vunpack.c.h.b16 %v825
    %v1448 = vunpack.c.l.b16 %v826
    %v1449 = vunpack.c.h.b16 %v826
    %v1450 = vunpack.c.l.b16 %v827
    %v1451 = vunpack.c.h.b16 %v827
    %v1452 = vunpack.c.l.b16 %v828
    %v1453 = vunpack.c.h.b16 %v828
    %v1454 = vunpack.c.l.b16 %v829
    %v1455 = vunpack.c.h.b16 %v829
    %v1456 = vunpack.c.l.b16 %v830
    %v1457 = vunpack.c.h.b16 %v830
    %v1458 = vunpack.c.l.b16 %v831
    %v1459 = vunpack.c.h.b16 %v831
    %v1460 = vunpack.c.l.b16 %v832
    %v1461 = vunpack.c.h.b16 %v832
    %v1462 = vunpack.c.l.b16 %v833
    %v1463 = vunpack.c.h.b16 %v833
    %v1464 = vunpack.c.l.b16 %v834
    %v1465 = vunpack.c.h.b16 %v834
    %v1466 = vunpack.c.l.b16 %v835
    %v1467 = vunpack.c.h.b16 %v835
    %v1468 = vunpack.c.l.b16 %v836
    %v1469 = vunpack.c.h.b16 %v836
    %v1470 = vunpack.c.l.b16 %v837
    %v1471 = vunpack.c.h.b16 %v837
    %v1472 = vunpack.c.l.b16 %v838
    %v1473 = vunpack.c.h.b16 %v838
    %v1474 = vunpack.c.l.b16 %v839
    %v1475 = vunpack.c.h.b16 %v839
    %v1476 = vunpack.c.l.b16 %v840
    %v1477 = vunpack.c.h.b16 %v840
    %v1478 = vunpack.c.l.b16 %v841
    %v1479 = vunpack.c.h.b16 %v841
    %v1480 = vunpack.c.l.b16 %v842
    %v1481 = vunpack.c.h.b16 %v842
    %v1482 = vunpack.c.l.b16 %v843
    %v1483 = vunpack.c.h.b16 %v843
    %v1484 = vunpack.c.l.b16 %v844
    %v1485 = vunpack.c.h.b16 %v844
    %v1486 = vunpack.c.l.b16 %v845
    %v1487 = vunpack.c.h.b16 %v845
    %v1488 = vunpack.c.l.b16 %v846
    %v1489 = vunpack.c.h.b16 %v846
    %v1490 = vunpack.c.l.b16 %v847
    %v1491 = vunpack.c.h.b16 %v847
    %v1492 = vunpack.c.l.b16 %v848
    %v1493 = vunpack.c.h.b16 %v848
    %v1494 = vunpack.c.l.b16 %v849
    %v1495 = vunpack.c.h.b16 %v849
    %v1496 = vunpack.c.l.b16 %v850
    %v1497 = vunpack.c.h.b16 %v850
    %v1498 = vunpack.c.l.b16 %v851
    %v1499 = vunpack.c.h.b16 %v851
    %v1500 = vunpack.c.l.b16 %v852
    %v1501 = vunpack.c.h.b16 %v852
    %v1502 = vunpack.c.l.b16 %v853
    %v1503 = vunpack.c.h.b16 %v853
    %v1504 = vunpack.c.l.b16 %v854
    %v1505 = vunpack.c.h.b16 %v854
    %v1506 = vunpack.c.l.b16 %v855
    %v1507 = vunpack.c.h.b16 %v855
    %v1508 = vunpack.c.l.b16 %v856
    %v1509 = vunpack.c.h.b16 %v856
    %v1510 = vunpack.c.l.b16 %v857
    %v1511 = vunpack.c.h.b16 %v857
    %v1512 = vunpack.c.l.b16 %v858
    %v1513 = vunpack.c.h.b16 %v858
    %v1514 = vunpack.c.l.b16 %v859
    %v1515 = vunpack.c.h.b16 %v859
    %v1516 = vunpack.c.l.b16 %v860
    %v1517 = vunpack.c.h.b16 %v860
    %v1518 = vunpack.c.l.b16 %v861
    %v1519 = vunpack.c.h.b16 %v861
    %v1520 = vunpack.c.l.b16 %v862
    %v1521 = vunpack.c.h.b16 %v862
    %v1522 = vunpack.c.l.b16 %v863
    %v1523 = vunpack.c.h.b16 %v863
    %v1524 = vunpack.c.l.b16 %v864
    %v1525 = vunpack.c.h.b16 %v864
    %v1526 = vunpack.c.l.b16 %v865
    %v1527 = vunpack.c.h.b16 %v865
    %v1528 = vunpack.c.l.b16 %v866
    %v1529 = vunpack.c.h.b16 %v866
    %v1530 = vunpack.c.l.b16 %v867
    %v1531 = vunpack.c.h.b16 %v867
    %v1532 = vunpack.c.l.b16 %v868
    %v1533 = vunpack.c.h.b16 %v868
    %v1534 = vunpack.c.l.b16 %v869
    %v1535 = vunpack.c.h.b16 %v869
    %v1536 = vunpack.c.l.b16 %v870
    %v1537 = vunpack.c.h.b16 %v870
    %v1538 = vunpack.c.l.b16 %v871
    %v1539 = vunpack.c.h.b16 %v871
    %v1540 = vunpack.c.l.b16 %v872
    %v1541 = vunpack.c.h.b16 %v872
    %v1542 = vunpack.c.l.b16 %v873
    %v1543 = vunpack.c.h.b16 %v873
    %v1544 = vunpack.c.l.b16 %v874
    %v1545 = vunpack.c.h.b16 %v874
    %v1546 = vunpack.c.l.b16 %v875
    %v1547 = vunpack.c.h.b16 %v875
    %v1548 = vunpack.c.l.b16 %v876
    %v1549 = vunpack.c.h.b16 %v876
    %v1550 = vunpack.c.l.b16 %v877
    %v1551 = vunpack.c.h.b16 %v877
    %v1552 = vunpack.c.l.b16 %v878
    %v1553 = vunpack.c.h.b16 %v878
    %v1554 = vunpack.c.l.b16 %v879
    %v1555 = vunpack.c.h.b16 %v879
    %v1556 = vunpack.c.l.b16 %v880
    %v1557 = vunpack.c.h.b16 %v880
    %v1558 = vunpack.c.l.b16 %v881
    %v1559 = vunpack.c.h.b16 %v881
    %v1560 = vunpack.c.l.b16 %v882
    %v1561 = vunpack.c.h.b16 %v882
    %v1562 = vunpack.c.l.b16 %v883
    %v1563 = vunpack.c.h.b16 %v883
    %v1564 = vunpack.c.l.b16 %v884
    %v1565 = vunpack.c.h.b16 %v884
    %v1566 = vunpack.c.l.b16 %v885
    %v1567 = vunpack.c.h.b16 %v885
    %v1568 = vunpack.c.l.b16 %v886
    %v1569 = vunpack.c.h.b16 %v886
    %v1570 = vunpack.c.l.b16 %v887
    %v1571 = vunpack.c.h.b16 %v887
    %v1572 = vunpack.c.l.b16 %v888
    %v1573 = vunpack.c.h.b16 %v888
    %v1574 = vunpack.c.l.b16 %v889
    %v1575 = vunpack.c.h.b16 %v889
    %v1576 = vunpack.c.l.b16 %v890
    %v1577 = vunpack.c.h.b16 %v890
    %v1578 = vunpack.c.l.b16 %v891
    %v1579 = vunpack.c.h.b16 %v891
    %v1580 = vunpack.c.l.b16 %v892
    %v1581 = vunpack.c.h.b16 %v892
    %v1582 = vunpack.c.l.b16 %v893
    %v1583 = vunpack.c.h.b16 %v893
    %v1584 = vunpack.c.l.b16 %v894
    %v1585 = vunpack.c.h.b16 %v894
    %v1586 = vunpack.c.l.b16 %v895
    %v1587 = vunpack.c.h.b16 %v895
    %v1588 = vunpack.c.l.b16 %v896
    %v1589 = vunpack.c.h.b16 %v896
    %v1590 = vunpack.c.l.b16 %v897
    %v1591 = vunpack.c.h.b16 %v897
    %v1592 = vunpack.c.l.b16 %v898
    %v1593 = vunpack.c.h.b16 %v898
    %v1594 = vunpack.c.l.b16 %v899
    %v1595 = vunpack.c.h.b16 %v899
    %v1596 = vunpack.c.l.b16 %v900
    %v1597 = vunpack.c.h.b16 %v900
    %v1598 = vunpack.c.l.b16 %v901
    %v1599 = vunpack.c.h.b16 %v901
    %v1600 = vunpack.c.l.b16 %v902
    %v1601 = vunpack.c.h.b16 %v902
    %v1602 = vunpack.c.l.b16 %v903
    %v1603 = vunpack.c.h.b16 %v903
    %v1604 = vunpack.c.l.b16 %v904
    %v1605 = vunpack.c.h.b16 %v904
    %v1606 = vunpack.c.l.b16 %v905
    %v1607 = vunpack.c.h.b16 %v905
    %v1608 = vunpack.c.l.b16 %v906
    %v1609 = vunpack.c.h.b16 %v906
    %v1610 = vunpack.c.l.b16 %v907
    %v1611 = vunpack.c.h.b16 %v907
    %v1612 = vunpack.c.l.b16 %v908
    %v1613 = vunpack.c.h.b16 %v908
    %v1614 = vunpack.c.l.b16 %v909
    %v1615 = vunpack.c.h.b16 %v909
    %v1616 = vunpack.c.l.b16 %v910
    %v1617 = vunpack.c.h.b16 %v910
    %v1618 = vunpack.c.l.b16 %v911
    %v1619 = vunpack.c.h.b16 %v911
    %v1620 = vunpack.c.l.b16 %v912
    %v1621 = vunpack.c.h.b16 %v912
    %v1622 = vunpack.c.l.b16 %v913
    %v1623 = vunpack.c.h.b16 %v913
    %v1624 = vunpack.c.l.b16 %v914
    %v1625 = vunpack.c.h.b16 %v914
    %v1626 = vunpack.c.l.b16 %v915
    %v1627 = vunpack.c.h.b16 %v915
    %v1628 = vunpack.c.l.b16 %v916
    %v1629 = vunpack.c.h.b16 %v916
    %v1630 = vunpack.c.l.b16 %v917
    %v1631 = vunpack.c.h.b16 %v917
    %v1632 = vunpack.c.l.b16 %v918
    %v1633 = vunpack.c.h.b16 %v918
    %v1634 = vunpack.c.l.b16 %v919
    %v1635 = vunpack.c.h.b16 %v919
    %v1636 = vunpack.c.l.b16 %v920
    %v1637 = vunpack.c.h.b16 %v920
    %v1638 = vunpack.c.l.b16 %v921
    %v1639 = vunpack.c.h.b16 %v921
    %v1640 = vunpack.c.l.b16 %v922
    %v1641 = vunpack.c.h.b16 %v922
    %v1642 = vunpack.c.l.b16 %v923
    %v1643 = vunpack.c.h.b16 %v923
    %v1644 = vunpack.c.l.b16 %v924
    %v1645 = vunpack.c.h.b16 %v924
    %v1646 = vunpack.c.l.b16 %v925
    %v1647 = vunpack.c.h.b16 %v925
    %v1648 = vunpack.c.l.b16 %v926
    %v1649 = vunpack.c.h.b16 %v926
    %v1650 = vunpack.c.l.b16 %v927
    %v1651 = vunpack.c.h.b16 %v927
    %v1652 = vunpack.c.l.b16 %v928
    %v1653 = vunpack.c.h.b16 %v928
    %v1654 = vunpack.c.l.b16 %v929
    %v1655 = vunpack.c.h.b16 %v929
    %v1656 = vunpack.c.l.b16 %v930
    %v1657 = vunpack.c.h.b16 %v930
    %v1658 = vunpack.c.l.b16 %v931
    %v1659 = vunpack.c.h.b16 %v931
    %v1660 = vunpack.c.l.b16 %v932
    %v1661 = vunpack.c.h.b16 %v932
    %v1662 = vunpack.c.l.b16 %v933
    %v1663 = vunpack.c.h.b16 %v933
    %v1664 = vunpack.c.l.b16 %v934
    %v1665 = vunpack.c.h.b16 %v934
    %v1666 = vunpack.c.l.b16 %v935
    %v1667 = vunpack.c.h.b16 %v935
    %v1668 = vunpack.c.l.b16 %v936
    %v1669 = vunpack.c.h.b16 %v936
    %v1670 = vunpack.c.l.b16 %v937
    %v1671 = vunpack.c.h.b16 %v937
    %v1672 = vunpack.c.l.b16 %v938
    %v1673 = vunpack.c.h.b16 %v938
    %v1674 = vunpack.c.l.b16 %v939
    %v1675 = vunpack.c.h.b16 %v939
    %v1676 = vunpack.c.l.b16 %v940
    %v1677 = vunpack.c.h.b16 %v940
    %v1678 = vunpack.c.l.b16 %v941
    %v1679 = vunpack.c.h.b16 %v941
    %v1680 = vunpack.c.l.b16 %v942
    %v1681 = vunpack.c.h.b16 %v942
    %v1682 = vunpack.c.l.b16 %v943
    %v1683 = vunpack.c.h.b16 %v943
    %v1684 = vunpack.c.l.b16 %v944
    %v1685 = vunpack.c.h.b16 %v944
    %v1686 = vunpack.c.l.b16 %v945
    %v1687 = vunpack.c.h.b16 %v945
    %v1688 = vunpack.c.l.b16 %v946
    %v1689 = vunpack.c.h.b16 %v946
    %v1690 = vunpack.c.l.b16 %v947
    %v1691 = vunpack.c.h.b16 %v947
    %v1692 = vunpack.c.l.b16 %v948
    %v1693 = vunpack.c.h.b16 %v948
    %v1694 = vunpack.c.l.b16 %v949
    %v1695 = vunpack.c.h.b16 %v949
    %v1696 = vunpack.c.l.b16 %v950
    %v1697 = vunpack.c.h.b16 %v950
    %v1698 = vunpack.c.l.b16 %v951
    %v1699 = vunpack.c.h.b16 %v951
    %v1700 = vunpack.c.l.b16 %v952
    %v1701 = vunpack.c.h.b16 %v952
    %v1702 = vunpack.c.l.b16 %v953
    %v1703 = vunpack.c.h.b16 %v953
    %v1704 = vunpack.c.l.b16 %v954
    %v1705 = vunpack.c.h.b16 %v954
    %v1706 = vunpack.c.l.b16 %v955
    %v1707 = vunpack.c.h.b16 %v955
    %v1708 = vunpack.c.l.b16 %v956
    %v1709 = vunpack.c.h.b16 %v956
    %v1710 = vunpack.c.l.b16 %v957
    %v1711 = vunpack.c.h.b16 %v957
    %v1712 = vunpack.c.l.b16 %v958
    %v1713 = vunpack.c.h.b16 %v958
    %v1714 = vunpack.c.l.b16 %v959
    %v1715 = vunpack.c.h.b16 %v959
    %v1716 = vunpack.c.l.b16 %v960
    %v1717 = vunpack.c.h.b16 %v960
    %v1718 = vunpack.c.l.b16 %v961
    %v1719 = vunpack.c.h.b16 %v961
    %v1720 = vunpack.c.l.b16 %v962
    %v1721 = vunpack.c.h.b16 %v962
    %v1722 = vunpack.c.l.b16 %v963
    %v1723 = vunpack.c.h.b16 %v963
    %v1724 = vunpack.c.l.b16 %v964
    %v1725 = vunpack.c.h.b16 %v964
    %v1726 = vunpack.c.l.b16 %v965
    %v1727 = vunpack.c.h.b16 %v965
    %v1728 = vunpack.c.l.b16 %v966
    %v1729 = vunpack.c.h.b16 %v966
    %v1730 = vunpack.c.l.b16 %v967
    %v1731 = vunpack.c.h.b16 %v967
    %v1732 = vunpack.c.l.b16 %v968
    %v1733 = vunpack.c.h.b16 %v968
    %v1734 = vunpack.c.l.b16 %v969
    %v1735 = vunpack.c.h.b16 %v969
    %v1736 = vunpack.c.l.b16 %v970
    %v1737 = vunpack.c.h.b16 %v970
    %v1738 = vunpack.c.l.b16 %v971
    %v1739 = vunpack.c.h.b16 %v971
    %v1740 = vunpack.c.l.b16 %v972
    %v1741 = vunpack.c.h.b16 %v972
    %v1742 = vunpack.c.l.b16 %v973
    %v1743 = vunpack.c.h.b16 %v973
    %v1744 = vunpack.c.l.b16 %v974
    %v1745 = vunpack.c.h.b16 %v974
    %v1746 = vunpack.c.l.b16 %v975
    %v1747 = vunpack.c.h.b16 %v975
    %v1748 = vunpack.c.l.b16 %v976
    %v1749 = vunpack.c.h.b16 %v976
    %v1750 = vunpack.c.l.b16 %v977
    %v1751 = vunpack.c.h.b16 %v977
    %v1752 = vunpack.c.l.b16 %v978
    %v1753 = vunpack.c.h.b16 %v978
    %v1754 = vunpack.c.l.b16 %v979
    %v1755 = vunpack.c.h.b16 %v979
    %v1756 = vunpack.c.l.b16 %v980
    %v1757 = vunpack.c.h.b16 %v980
    %v1758 = vunpack.c.l.b16 %v981
    %v1759 = vunpack.c.h.b16 %v981
    %v1760 = vpack.c.b16 %v1252, %v1248
    %v1761 = vpack.c.b16 %v1253, %v1249
    %v1762 = vpack.c.b16 %v1254, %v1250
    %v1763 = vpack.c.b16 %v1255, %v1251
    %v1764 = vpack.c.b16 %v1260, %v1256
    %v1765 = vpack.c.b16 %v1261, %v1257
    %v1766 = vpack.c.b16 %v1262, %v1258
    %v1767 = vpack.c.b16 %v1263, %v1259
    %v1768 = vpack.c.b16 %v1268, %v1264
    %v1769 = vpack.c.b16 %v1269, %v1265
    %v1770 = vpack.c.b16 %v1270, %v1266
    %v1771 = vpack.c.b16 %v1271, %v1267
    %v1772 = vpack.c.b16 %v1276, %v1272
    %v1773 = vpack.c.b16 %v1277, %v1273
    %v1774 = vpack.c.b16 %v1278, %v1274
    %v1775 = vpack.c.b16 %v1279, %v1275
    %v1776 = vpack.c.b16 %v1284, %v1280
    %v1777 = vpack.c.b16 %v1285, %v1281
    %v1778 = vpack.c.b16 %v1286, %v1282
    %v1779 = vpack.c.b16 %v1287, %v1283
    %v1780 = vpack.c.b16 %v1292, %v1288
    %v1781 = vpack.c.b16 %v1293, %v1289
    %v1782 = vpack.c.b16 %v1294, %v1290
    %v1783 = vpack.c.b16 %v1295, %v1291
    %v1784 = vpack.c.b16 %v1300, %v1296
    %v1785 = vpack.c.b16 %v1301, %v1297
    %v1786 = vpack.c.b16 %v1302, %v1298
    %v1787 = vpack.c.b16 %v1303, %v1299
    %v1788 = vpack.c.b16 %v1308, %v1304
    %v1789 = vpack.c.b16 %v1309, %v1305
    %v1790 = vpack.c.b16 %v1310, %v1306
    %v1791 = vpack.c.b16 %v1311, %v1307
    %v1792 = vpack.c.b16 %v1316, %v1312
    %v1793 = vpack.c.b16 %v1317, %v1313
    %v1794 = vpack.c.b16 %v1318, %v1314
    %v1795 = vpack.c.b16 %v1319, %v1315
    %v1796 = vpack.c.b16 %v1324, %v1320
    %v1797 = vpack.c.b16 %v1325, %v1321
    %v1798 = vpack.c.b16 %v1326, %v1322
    %v1799 = vpack.c.b16 %v1327, %v1323
    %v1800 = vpack.c.b16 %v1332, %v1328
    %v1801 = vpack.c.b16 %v1333, %v1329
    %v1802 = vpack.c.b16 %v1334, %v1330
    %v1803 = vpack.c.b16 %v1335, %v1331
    %v1804 = vpack.c.b16 %v1340, %v1336
    %v1805 = vpack.c.b16 %v1341, %v1337
    %v1806 = vpack.c.b16 %v1342, %v1338
    %v1807 = vpack.c.b16 %v1343, %v1339
    %v1808 = vpack.c.b16 %v1348, %v1344
    %v1809 = vpack.c.b16 %v1349, %v1345
    %v1810 = vpack.c.b16 %v1350, %v1346
    %v1811 = vpack.c.b16 %v1351, %v1347
    %v1812 = vpack.c.b16 %v1356, %v1352
    %v1813 = vpack.c.b16 %v1357, %v1353
    %v1814 = vpack.c.b16 %v1358, %v1354
    %v1815 = vpack.c.b16 %v1359, %v1355
    %v1816 = vpack.c.b16 %v1364, %v1360
    %v1817 = vpack.c.b16 %v1365, %v1361
    %v1818 = vpack.c.b16 %v1366, %v1362
    %v1819 = vpack.c.b16 %v1367, %v1363
    %v1820 = vpack.c.b16 %v1372, %v1368
    %v1821 = vpack.c.b16 %v1373, %v1369
    %v1822 = vpack.c.b16 %v1374, %v1370
    %v1823 = vpack.c.b16 %v1375, %v1371
    %v1824 = vpack.c.b16 %v1380, %v1376
    %v1825 = vpack.c.b16 %v1381, %v1377
    %v1826 = vpack.c.b16 %v1382, %v1378
    %v1827 = vpack.c.b16 %v1383, %v1379
    %v1828 = vpack.c.b16 %v1388, %v1384
    %v1829 = vpack.c.b16 %v1389, %v1385
    %v1830 = vpack.c.b16 %v1390, %v1386
    %v1831 = vpack.c.b16 %v1391, %v1387
    %v1832 = vpack.c.b16 %v1396, %v1392
    %v1833 = vpack.c.b16 %v1397, %v1393
    %v1834 = vpack.c.b16 %v1398, %v1394
    %v1835 = vpack.c.b16 %v1399, %v1395
    %v1836 = vpack.c.b16 %v1404, %v1400
    %v1837 = vpack.c.b16 %v1405, %v1401
    %v1838 = vpack.c.b16 %v1406, %v1402
    %v1839 = vpack.c.b16 %v1407, %v1403
    %v1840 = vpack.c.b16 %v1412, %v1408
    %v1841 = vpack.c.b16 %v1413, %v1409
    %v1842 = vpack.c.b16 %v1414, %v1410
    %v1843 = vpack.c.b16 %v1415, %v1411
    %v1844 = vpack.c.b16 %v1420, %v1416
    %v1845 = vpack.c.b16 %v1421, %v1417
    %v1846 = vpack.c.b16 %v1422, %v1418
    %v1847 = vpack.c.b16 %v1423, %v1419
    %v1848 = vpack.c.b16 %v1428, %v1424
    %v1849 = vpack.c.b16 %v1429, %v1425
    %v1850 = vpack.c.b16 %v1430, %v1426
    %v1851 = vpack.c.b16 %v1431, %v1427
    %v1852 = vpack.c.b16 %v1436, %v1432
    %v1853 = vpack.c.b16 %v1437, %v1433
    %v1854 = vpack.c.b16 %v1438, %v1434
    %v1855 = vpack.c.b16 %v1439, %v1435
    %v1856 = vpack.c.b16 %v1444, %v1440
    %v1857 = vpack.c.b16 %v1445, %v1441
    %v1858 = vpack.c.b16 %v1446, %v1442
    %v1859 = vpack.c.b16 %v1447, %v1443
    %v1860 = vpack.c.b16 %v1452, %v1448
    %v1861 = vpack.c.b16 %v1453, %v1449
    %v1862 = vpack.c.b16 %v1454, %v1450
    %v1863 = vpack.c.b16 %v1455, %v1451
    %v1864 = vpack.c.b16 %v1460, %v1456
    %v1865 = vpack.c.b16 %v1461, %v1457
    %v1866 = vpack.c.b16 %v1462, %v1458
    %v1867 = vpack.c.b16 %v1463, %v1459
    %v1868 = vpack.c.b16 %v1468, %v1464
    %v1869 = vpack.c.b16 %v1469, %v1465
    %v1870 = vpack.c.b16 %v1470, %v1466
    %v1871 = vpack.c.b16 %v1471, %v1467
    %v1872 = vpack.c.b16 %v1476, %v1472
    %v1873 = vpack.c.b16 %v1477, %v1473
    %v1874 = vpack.c.b16 %v1478, %v1474
    %v1875 = vpack.c.b16 %v1479, %v1475
    %v1876 = vpack.c.b16 %v1484, %v1480
    %v1877 = vpack.c.b16 %v1485, %v1481
    %v1878 = vpack.c.b16 %v1486, %v1482
    %v1879 = vpack.c.b16 %v1487, %v1483
    %v1880 = vpack.c.b16 %v1492, %v1488
    %v1881 = vpack.c.b16 %v1493, %v1489
    %v1882 = vpack.c.b16 %v1494, %v1490
    %v1883 = vpack.c.b16 %v1495, %v1491
    %v1884 = vpack.c.b16 %v1500, %v1496
    %v1885 = vpack.c.b16 %v1501, %v1497
    %v1886 = vpack.c.b16 %v1502, %v1498
    %v1887 = vpack.c.b16 %v1503, %v1499
    %v1888 = vpack.c.b16 %v1508, %v1504
    %v1889 = vpack.c.b16 %v1509, %v1505
    %v1890 = vpack.c.b16 %v1510, %v1506
    %v1891 = vpack.c.b16 %v1511, %v1507
    %v1892 = vpack.c.b16 %v1516, %v1512
    %v1893 = vpack.c.b16 %v1517, %v1513
    %v1894 = vpack.c.b16 %v1518, %v1514
    %v1895 = vpack.c.b16 %v1519, %v1515
    %v1896 = vpack.c.b16 %v1524, %v1520
    %v1897 = vpack.c.b16 %v1525, %v1521
    %v1898 = vpack.c.b16 %v1526, %v1522
    %v1899 = vpack.c.b16 %v1527, %v1523
    %v1900 = vpack.c.b16 %v1532, %v1528
    %v1901 = vpack.c.b16 %v1533, %v1529
    %v1902 = vpack.c.b16 %v1534, %v1530
    %v1903 = vpack.c.b16 %v1535, %v1531
    %v1904 = vpack.c.b16 %v1540, %v1536
    %v1905 = vpack.c.b16 %v1541, %v1537
    %v1906 = vpack.c.b16 %v1542, %v1538
    %v1907 = vpack.c.b16 %v1543, %v1539
    %v1908 = vpack.c.b16 %v1548, %v1544
    %v1909 = vpack.c.b16 %v1549, %v1545
    %v1910 = vpack.c.b16 %v1550, %v1546
    %v1911 = vpack.c.b16 %v1551, %v1547
    %v1912 = vpack.c.b16 %v1556, %v1552
    %v1913 = vpack.c.b16 %v1557, %v1553
    %v1914 = vpack.c.b16 %v1558, %v1554
    %v1915 = vpack.c.b16 %v1559, %v1555
    %v1916 = vpack.c.b16 %v1564, %v1560
    %v1917 = vpack.c.b16 %v1565, %v1561
    %v1918 = vpack.c.b16 %v1566, %v1562
    %v1919 = vpack.c.b16 %v1567, %v1563
    %v1920 = vpack.c.b16 %v1572, %v1568
    %v1921 = vpack.c.b16 %v1573, %v1569
    %v1922 = vpack.c.b16 %v1574, %v1570
    %v1923 = vpack.c.b16 %v1575, %v1571
    %v1924 = vpack.c.b16 %v1580, %v1576
    %v1925 = vpack.c.b16 %v1581, %v1577
    %v1926 = vpack.c.b16 %v1582, %v1578
    %v1927 = vpack.c.b16 %v1583, %v1579
    %v1928 = vpack.c.b16 %v1588, %v1584
    %v1929 = vpack.c.b16 %v1589, %v1585
    %v1930 = vpack.c.b16 %v1590, %v1586
    %v1931 = vpack.c.b16 %v1591, %v1587
    %v1932 = vpack.c.b16 %v1596, %v1592
    %v1933 = vpack.c.b16 %v1597, %v1593
    %v1934 = vpack.c.b16 %v1598, %v1594
    %v1935 = vpack.c.b16 %v1599, %v1595
    %v1936 = vpack.c.b16 %v1604, %v1600
    %v1937 = vpack.c.b16 %v1605, %v1601
    %v1938 = vpack.c.b16 %v1606, %v1602
    %v1939 = vpack.c.b16 %v1607, %v1603
    %v1940 = vpack.c.b16 %v1612, %v1608
    %v1941 = vpack.c.b16 %v1613, %v1609
    %v1942 = vpack.c.b16 %v1614, %v1610
    %v1943 = vpack.c.b16 %v1615, %v1611
    %v1944 = vpack.c.b16 %v1620, %v1616
    %v1945 = vpack.c.b16 %v1621, %v1617
    %v1946 = vpack.c.b16 %v1622, %v1618
    %v1947 = vpack.c.b16 %v1623, %v1619
    %v1948 = vpack.c.b16 %v1628, %v1624
    %v1949 = vpack.c.b16 %v1629, %v1625
    %v1950 = vpack.c.b16 %v1630, %v1626
    %v1951 = vpack.c.b16 %v1631, %v1627
    %v1952 = vpack.c.b16 %v1636, %v1632
    %v1953 = vpack.c.b16 %v1637, %v1633
    %v1954 = vpack.c.b16 %v1638, %v1634
    %v1955 = vpack.c.b16 %v1639, %v1635
    %v1956 = vpack.c.b16 %v1644, %v1640
    %v1957 = vpack.c.b16 %v1645, %v1641
    %v1958 = vpack.c.b16 %v1646, %v1642
    %v1959 = vpack.c.b16 %v1647, %v1643
    %v1960 = vpack.c.b16 %v1652, %v1648
    %v1961 = vpack.c.b16 %v1653, %v1649
    %v1962 = vpack.c.b16 %v1654, %v1650
    %v1963 = vpack.c.b16 %v1655, %v1651
    %v1964 = vpack.c.b16 %v1660, %v1656
    %v1965 = vpack.c.b16 %v1661, %v1657
    %v1966 = vpack.c.b16 %v1662, %v1658
    %v1967 = vpack.c.b16 %v1663, %v1659
    %v1968 = vpack.c.b16 %v1668, %v1664
    %v1969 = vpack.c.b16 %v1669, %v1665
    %v1970 = vpack.c.b16 %v1670, %v1666
    %v1971 = vpack.c.b16 %v1671, %v1667
    %v1972 = vpack.c.b16 %v1676, %v1672
    %v1973 = vpack.c.b16 %v1677, %v1673
    %v1974 = vpack.c.b16 %v1678, %v1674
    %v1975 = vpack.c.b16 %v1679, %v1675
    %v1976 = vpack.c.b16 %v1684, %v1680
    %v1977 = vpack.c.b16 %v1685, %v1681
    %v1978 = vpack.c.b16 %v1686, %v1682
    %v1979 = vpack.c.b16 %v1687, %v1683
    %v1980 = vpack.c.b16 %v1692, %v1688
    %v1981 = vpack.c.b16 %v1693, %v1689
    %v1982 = vpack.c.b16 %v1694, %v1690
    %v1983 = vpack.c.b16 %v1695, %v1691
    %v1984 = vpack.c.b16 %v1700, %v1696
    %v1985 = vpack.c.b16 %v1701, %v1697
    %v1986 = vpack.c.b16 %v1702, %v1698
    %v1987 = vpack.c.b16 %v1703, %v1699
    %v1988 = vpack.c.b16 %v1708, %v1704
    %v1989 = vpack.c.b16 %v1709, %v1705
    %v1990 = vpack.c.b16 %v1710, %v1706
    %v1991 = vpack.c.b16 %v1711, %v1707
    %v1992 = vpack.c.b16 %v1716, %v1712
    %v1993 = vpack.c.b16 %v1717, %v1713
    %v1994 = vpack.c.b16 %v1718, %v1714
    %v1995 = vpack.c.b16 %v1719, %v1715
    %v1996 = vpack.c.b16 %v1724, %v1720
    %v1997 = vpack.c.b16 %v1725, %v1721
    %v1998 = vpack.c.b16 %v1726, %v1722
    %v1999 = vpack.c.b16 %v1727, %v1723
    %v2000 = vpack.c.b16 %v1732, %v1728
    %v2001 = vpack.c.b16 %v1733, %v1729
    %v2002 = vpack.c.b16 %v1734, %v1730
    %v2003 = vpack.c.b16 %v1735, %v1731
    %v2004 = vpack.c.b16 %v1740, %v1736
    %v2005 = vpack.c.b16 %v1741, %v1737
    %v2006 = vpack.c.b16 %v1742, %v1738
    %v2007 = vpack.c.b16 %v1743, %v1739
    %v2008 = vpack.c.b16 %v1748, %v1744
    %v2009 = vpack.c.b16 %v1749, %v1745
    %v2010 = vpack.c.b16 %v1750, %v1746
    %v2011 = vpack.c.b16 %v1751, %v1747
    %v2012 = vpack.c.b16 %v1756, %v1752
    %v2013 = vpack.c.b16 %v1757, %v1753
    %v2014 = vpack.c.b16 %v1758, %v1754
    %v2015 = vpack.c.b16 %v1759, %v1755
    %2272 = vmatpush.bf16.msra.mxu0 %v1788
    %2273 = vmatpush.bf16.msra.mxu0 %v1784
    %2274 = vmatpush.bf16.msra.mxu0 %v1780
    %2275 = vmatpush.bf16.msra.mxu0 %v1776
    %2276 = vmatpush.bf16.msra.mxu0 %v1772
    %2277 = vmatpush.bf16.msra.mxu0 %v1768
    %2278 = vmatpush.bf16.msra.mxu0 %v1764
    %2279 = vmatpush.bf16.msra.mxu0 %v1760
    %2280 = vmatmul.bf16.gmra.mxu0 %v718
    %v2281 = vpop.f32.mrf.mxu0
    %v2282 = vadd.f32 %v984, %v2281
    %v2283 = vpop.f32.mrf.mxu0
    %2284 = vdwg.mxu0
    %2285 = vmatpush.bf16.msra.mxu0 %v1820
    %2286 = vmatpush.bf16.msra.mxu0 %v1816
    %2287 = vmatpush.bf16.msra.mxu0 %v1812
    %2288 = vmatpush.bf16.msra.mxu0 %v1808
    %2289 = vmatpush.bf16.msra.mxu0 %v1804
    %2290 = vmatpush.bf16.msra.mxu0 %v1800
    %2291 = vmatpush.bf16.msra.mxu0 %v1796
    %2292 = vmatpush.bf16.msra.mxu0 %v1792
    %2293 = vmatmul.bf16.gmra.mxu0 %v719
    %v2294 = vpop.f32.mrf.mxu0
    %v2295 = vadd.f32 %v2282, %v2294
    %v2296 = vpop.f32.mrf.mxu0
    %2297 = vdwg.mxu0
    %2298 = vmatpush.bf16.msra.mxu0 %v1852
    %2299 = vmatpush.bf16.msra.mxu0 %v1848
    %2300 = vmatpush.bf16.msra.mxu0 %v1844
    %2301 = vmatpush.bf16.msra.mxu0 %v1840
    %2302 = vmatpush.bf16.msra.mxu0 %v1836
    %2303 = vmatpush.bf16.msra.mxu0 %v1832
    %2304 = vmatpush.bf16.msra.mxu0 %v1828
    %2305 = vmatpush.bf16.msra.mxu0 %v1824
    %2306 = vmatmul.bf16.gmra.mxu0 %v720
    %v2307 = vpop.f32.mrf.mxu0
    %v2308 = vadd.f32 %v2295, %v2307
    %v2309 = vpop.f32.mrf.mxu0
    %2310 = vdwg.mxu0
    %2311 = vmatpush.bf16.msra.mxu0 %v1884
    %2312 = vmatpush.bf16.msra.mxu0 %v1880
    %2313 = vmatpush.bf16.msra.mxu0 %v1876
    %2314 = vmatpush.bf16.msra.mxu0 %v1872
    %2315 = vmatpush.bf16.msra.mxu0 %v1868
    %2316 = vmatpush.bf16.msra.mxu0 %v1864
    %2317 = vmatpush.bf16.msra.mxu0 %v1860
    %2318 = vmatpush.bf16.msra.mxu0 %v1856
    %2319 = vmatmul.bf16.gmra.mxu0 %v721
    %v2320 = vpop.f32.mrf.mxu0
    %v2321 = vadd.f32 %v2308, %v2320
    %v2322 = vpop.f32.mrf.mxu0
    %2323 = vdwg.mxu0
    %2324 = vmatpush.bf16.msra.mxu0 %v1916
    %2325 = vmatpush.bf16.msra.mxu0 %v1912
    %2326 = vmatpush.bf16.msra.mxu0 %v1908
    %2327 = vmatpush.bf16.msra.mxu0 %v1904
    %2328 = vmatpush.bf16.msra.mxu0 %v1900
    %2329 = vmatpush.bf16.msra.mxu0 %v1896
    %2330 = vmatpush.bf16.msra.mxu0 %v1892
    %2331 = vmatpush.bf16.msra.mxu0 %v1888
    %2332 = vmatmul.bf16.gmra.mxu0 %v722
    %v2333 = vpop.f32.mrf.mxu0
    %v2334 = vadd.f32 %v2321, %v2333
    %v2335 = vpop.f32.mrf.mxu0
    %2336 = vdwg.mxu0
    %2337 = vmatpush.bf16.msra.mxu0 %v1948
    %2338 = vmatpush.bf16.msra.mxu0 %v1944
    %2339 = vmatpush.bf16.msra.mxu0 %v1940
    %2340 = vmatpush.bf16.msra.mxu0 %v1936
    %2341 = vmatpush.bf16.msra.mxu0 %v1932
    %2342 = vmatpush.bf16.msra.mxu0 %v1928
    %2343 = vmatpush.bf16.msra.mxu0 %v1924
    %2344 = vmatpush.bf16.msra.mxu0 %v1920
    %2345 = vmatmul.bf16.gmra.mxu0 %v723
    %v2346 = vpop.f32.mrf.mxu0
    %v2347 = vadd.f32 %v2334, %v2346
    %v2348 = vpop.f32.mrf.mxu0
    %2349 = vdwg.mxu0
    %2350 = vmatpush.bf16.msra.mxu0 %v1980
    %2351 = vmatpush.bf16.msra.mxu0 %v1976
    %2352 = vmatpush.bf16.msra.mxu0 %v1972
    %2353 = vmatpush.bf16.msra.mxu0 %v1968
    %2354 = vmatpush.bf16.msra.mxu0 %v1964
    %2355 = vmatpush.bf16.msra.mxu0 %v1960
    %2356 = vmatpush.bf16.msra.mxu0 %v1956
    %2357 = vmatpush.bf16.msra.mxu0 %v1952
    %2358 = vmatmul.bf16.gmra.mxu0 %v724
    %v2359 = vpop.f32.mrf.mxu0
    %v2360 = vadd.f32 %v2347, %v2359
    %v2361 = vpop.f32.mrf.mxu0
    %2362 = vdwg.mxu0
    %2363 = vmatpush.bf16.msra.mxu0 %v2012
    %2364 = vmatpush.bf16.msra.mxu0 %v2008
    %2365 = vmatpush.bf16.msra.mxu0 %v2004
    %2366 = vmatpush.bf16.msra.mxu0 %v2000
    %2367 = vmatpush.bf16.msra.mxu0 %v1996
    %2368 = vmatpush.bf16.msra.mxu0 %v1992
    %2369 = vmatpush.bf16.msra.mxu0 %v1988
    %2370 = vmatpush.bf16.msra.mxu0 %v1984
    %2371 = vmatmul.bf16.gmra.mxu0 %v725
    %v2372 = vpop.f32.mrf.mxu0
    %v2373 = vadd.f32 %v2360, %v2372
    %v2374 = vpop.f32.mrf.mxu0
    %2375 = vdwg.mxu0
    %2376 = vmatpush.bf16.msra.mxu0 %v1789
    %2377 = vmatpush.bf16.msra.mxu0 %v1785
    %2378 = vmatpush.bf16.msra.mxu0 %v1781
    %2379 = vmatpush.bf16.msra.mxu0 %v1777
    %2380 = vmatpush.bf16.msra.mxu0 %v1773
    %2381 = vmatpush.bf16.msra.mxu0 %v1769
    %2382 = vmatpush.bf16.msra.mxu0 %v1765
    %2383 = vmatpush.bf16.msra.mxu0 %v1761
    %2384 = vmatmul.bf16.gmra.mxu0 %v718
    %v2385 = vpop.f32.mrf.mxu0
    %v2386 = vadd.f32 %v985, %v2385
    %v2387 = vpop.f32.mrf.mxu0
    %2388 = vdwg.mxu0
    %2389 = vmatpush.bf16.msra.mxu0 %v1821
    %2390 = vmatpush.bf16.msra.mxu0 %v1817
    %2391 = vmatpush.bf16.msra.mxu0 %v1813
    %2392 = vmatpush.bf16.msra.mxu0 %v1809
    %2393 = vmatpush.bf16.msra.mxu0 %v1805
    %2394 = vmatpush.bf16.msra.mxu0 %v1801
    %2395 = vmatpush.bf16.msra.mxu0 %v1797
    %2396 = vmatpush.bf16.msra.mxu0 %v1793
    %2397 = vmatmul.bf16.gmra.mxu0 %v719
    %v2398 = vpop.f32.mrf.mxu0
    %v2399 = vadd.f32 %v2386, %v2398
    %v2400 = vpop.f32.mrf.mxu0
    %2401 = vdwg.mxu0
    %2402 = vmatpush.bf16.msra.mxu0 %v1853
    %2403 = vmatpush.bf16.msra.mxu0 %v1849
    %2404 = vmatpush.bf16.msra.mxu0 %v1845
    %2405 = vmatpush.bf16.msra.mxu0 %v1841
    %2406 = vmatpush.bf16.msra.mxu0 %v1837
    %2407 = vmatpush.bf16.msra.mxu0 %v1833
    %2408 = vmatpush.bf16.msra.mxu0 %v1829
    %2409 = vmatpush.bf16.msra.mxu0 %v1825
    %2410 = vmatmul.bf16.gmra.mxu0 %v720
    %v2411 = vpop.f32.mrf.mxu0
    %v2412 = vadd.f32 %v2399, %v2411
    %v2413 = vpop.f32.mrf.mxu0
    %2414 = vdwg.mxu0
    %2415 = vmatpush.bf16.msra.mxu0 %v1885
    %2416 = vmatpush.bf16.msra.mxu0 %v1881
    %2417 = vmatpush.bf16.msra.mxu0 %v1877
    %2418 = vmatpush.bf16.msra.mxu0 %v1873
    %2419 = vmatpush.bf16.msra.mxu0 %v1869
    %2420 = vmatpush.bf16.msra.mxu0 %v1865
    %2421 = vmatpush.bf16.msra.mxu0 %v1861
    %2422 = vmatpush.bf16.msra.mxu0 %v1857
    %2423 = vmatmul.bf16.gmra.mxu0 %v721
    %v2424 = vpop.f32.mrf.mxu0
    %v2425 = vadd.f32 %v2412, %v2424
    %v2426 = vpop.f32.mrf.mxu0
    %2427 = vdwg.mxu0
    %2428 = vmatpush.bf16.msra.mxu0 %v1917
    %2429 = vmatpush.bf16.msra.mxu0 %v1913
    %2430 = vmatpush.bf16.msra.mxu0 %v1909
    %2431 = vmatpush.bf16.msra.mxu0 %v1905
    %2432 = vmatpush.bf16.msra.mxu0 %v1901
    %2433 = vmatpush.bf16.msra.mxu0 %v1897
    %2434 = vmatpush.bf16.msra.mxu0 %v1893
    %2435 = vmatpush.bf16.msra.mxu0 %v1889
    %2436 = vmatmul.bf16.gmra.mxu0 %v722
    %v2437 = vpop.f32.mrf.mxu0
    %v2438 = vadd.f32 %v2425, %v2437
    %v2439 = vpop.f32.mrf.mxu0
    %2440 = vdwg.mxu0
    %2441 = vmatpush.bf16.msra.mxu0 %v1949
    %2442 = vmatpush.bf16.msra.mxu0 %v1945
    %2443 = vmatpush.bf16.msra.mxu0 %v1941
    %2444 = vmatpush.bf16.msra.mxu0 %v1937
    %2445 = vmatpush.bf16.msra.mxu0 %v1933
    %2446 = vmatpush.bf16.msra.mxu0 %v1929
    %2447 = vmatpush.bf16.msra.mxu0 %v1925
    %2448 = vmatpush.bf16.msra.mxu0 %v1921
    %2449 = vmatmul.bf16.gmra.mxu0 %v723
    %v2450 = vpop.f32.mrf.mxu0
    %v2451 = vadd.f32 %v2438, %v2450
    %v2452 = vpop.f32.mrf.mxu0
    %2453 = vdwg.mxu0
    %2454 = vmatpush.bf16.msra.mxu0 %v1981
    %2455 = vmatpush.bf16.msra.mxu0 %v1977
    %2456 = vmatpush.bf16.msra.mxu0 %v1973
    %2457 = vmatpush.bf16.msra.mxu0 %v1969
    %2458 = vmatpush.bf16.msra.mxu0 %v1965
    %2459 = vmatpush.bf16.msra.mxu0 %v1961
    %2460 = vmatpush.bf16.msra.mxu0 %v1957
    %2461 = vmatpush.bf16.msra.mxu0 %v1953
    %2462 = vmatmul.bf16.gmra.mxu0 %v724
    %v2463 = vpop.f32.mrf.mxu0
    %v2464 = vadd.f32 %v2451, %v2463
    %v2465 = vpop.f32.mrf.mxu0
    %2466 = vdwg.mxu0
    %2467 = vmatpush.bf16.msra.mxu0 %v2013
    %2468 = vmatpush.bf16.msra.mxu0 %v2009
    %2469 = vmatpush.bf16.msra.mxu0 %v2005
    %2470 = vmatpush.bf16.msra.mxu0 %v2001
    %2471 = vmatpush.bf16.msra.mxu0 %v1997
    %2472 = vmatpush.bf16.msra.mxu0 %v1993
    %2473 = vmatpush.bf16.msra.mxu0 %v1989
    %2474 = vmatpush.bf16.msra.mxu0 %v1985
    %2475 = vmatmul.bf16.gmra.mxu0 %v725
    %v2476 = vpop.f32.mrf.mxu0
    %v2477 = vadd.f32 %v2464, %v2476
    %v2478 = vpop.f32.mrf.mxu0
    %2479 = vdwg.mxu0
    %2480 = vmatpush.bf16.msra.mxu0 %v1790
    %2481 = vmatpush.bf16.msra.mxu0 %v1786
    %2482 = vmatpush.bf16.msra.mxu0 %v1782
    %2483 = vmatpush.bf16.msra.mxu0 %v1778
    %2484 = vmatpush.bf16.msra.mxu0 %v1774
    %2485 = vmatpush.bf16.msra.mxu0 %v1770
    %2486 = vmatpush.bf16.msra.mxu0 %v1766
    %2487 = vmatpush.bf16.msra.mxu0 %v1762
    %2488 = vmatmul.bf16.gmra.mxu0 %v718
    %v2489 = vpop.f32.mrf.mxu0
    %v2490 = vadd.f32 %v986, %v2489
    %v2491 = vpop.f32.mrf.mxu0
    %2492 = vdwg.mxu0
    %2493 = vmatpush.bf16.msra.mxu0 %v1822
    %2494 = vmatpush.bf16.msra.mxu0 %v1818
    %2495 = vmatpush.bf16.msra.mxu0 %v1814
    %2496 = vmatpush.bf16.msra.mxu0 %v1810
    %2497 = vmatpush.bf16.msra.mxu0 %v1806
    %2498 = vmatpush.bf16.msra.mxu0 %v1802
    %2499 = vmatpush.bf16.msra.mxu0 %v1798
    %2500 = vmatpush.bf16.msra.mxu0 %v1794
    %2501 = vmatmul.bf16.gmra.mxu0 %v719
    %v2502 = vpop.f32.mrf.mxu0
    %v2503 = vadd.f32 %v2490, %v2502
    %v2504 = vpop.f32.mrf.mxu0
    %2505 = vdwg.mxu0
    %2506 = vmatpush.bf16.msra.mxu0 %v1854
    %2507 = vmatpush.bf16.msra.mxu0 %v1850
    %2508 = vmatpush.bf16.msra.mxu0 %v1846
    %2509 = vmatpush.bf16.msra.mxu0 %v1842
    %2510 = vmatpush.bf16.msra.mxu0 %v1838
    %2511 = vmatpush.bf16.msra.mxu0 %v1834
    %2512 = vmatpush.bf16.msra.mxu0 %v1830
    %2513 = vmatpush.bf16.msra.mxu0 %v1826
    %2514 = vmatmul.bf16.gmra.mxu0 %v720
    %v2515 = vpop.f32.mrf.mxu0
    %v2516 = vadd.f32 %v2503, %v2515
    %v2517 = vpop.f32.mrf.mxu0
    %2518 = vdwg.mxu0
    %2519 = vmatpush.bf16.msra.mxu0 %v1886
    %2520 = vmatpush.bf16.msra.mxu0 %v1882
    %2521 = vmatpush.bf16.msra.mxu0 %v1878
    %2522 = vmatpush.bf16.msra.mxu0 %v1874
    %2523 = vmatpush.bf16.msra.mxu0 %v1870
    %2524 = vmatpush.bf16.msra.mxu0 %v1866
    %2525 = vmatpush.bf16.msra.mxu0 %v1862
    %2526 = vmatpush.bf16.msra.mxu0 %v1858
    %2527 = vmatmul.bf16.gmra.mxu0 %v721
    %v2528 = vpop.f32.mrf.mxu0
    %v2529 = vadd.f32 %v2516, %v2528
    %v2530 = vpop.f32.mrf.mxu0
    %2531 = vdwg.mxu0
    %2532 = vmatpush.bf16.msra.mxu0 %v1918
    %2533 = vmatpush.bf16.msra.mxu0 %v1914
    %2534 = vmatpush.bf16.msra.mxu0 %v1910
    %2535 = vmatpush.bf16.msra.mxu0 %v1906
    %2536 = vmatpush.bf16.msra.mxu0 %v1902
    %2537 = vmatpush.bf16.msra.mxu0 %v1898
    %2538 = vmatpush.bf16.msra.mxu0 %v1894
    %2539 = vmatpush.bf16.msra.mxu0 %v1890
    %2540 = vmatmul.bf16.gmra.mxu0 %v722
    %v2541 = vpop.f32.mrf.mxu0
    %v2542 = vadd.f32 %v2529, %v2541
    %v2543 = vpop.f32.mrf.mxu0
    %2544 = vdwg.mxu0
    %2545 = vmatpush.bf16.msra.mxu0 %v1950
    %2546 = vmatpush.bf16.msra.mxu0 %v1946
    %2547 = vmatpush.bf16.msra.mxu0 %v1942
    %2548 = vmatpush.bf16.msra.mxu0 %v1938
    %2549 = vmatpush.bf16.msra.mxu0 %v1934
    %2550 = vmatpush.bf16.msra.mxu0 %v1930
    %2551 = vmatpush.bf16.msra.mxu0 %v1926
    %2552 = vmatpush.bf16.msra.mxu0 %v1922
    %2553 = vmatmul.bf16.gmra.mxu0 %v723
    %v2554 = vpop.f32.mrf.mxu0
    %v2555 = vadd.f32 %v2542, %v2554
    %v2556 = vpop.f32.mrf.mxu0
    %2557 = vdwg.mxu0
    %2558 = vmatpush.bf16.msra.mxu0 %v1982
    %2559 = vmatpush.bf16.msra.mxu0 %v1978
    %2560 = vmatpush.bf16.msra.mxu0 %v1974
    %2561 = vmatpush.bf16.msra.mxu0 %v1970
    %2562 = vmatpush.bf16.msra.mxu0 %v1966
    %2563 = vmatpush.bf16.msra.mxu0 %v1962
    %2564 = vmatpush.bf16.msra.mxu0 %v1958
    %2565 = vmatpush.bf16.msra.mxu0 %v1954
    %2566 = vmatmul.bf16.gmra.mxu0 %v724
    %v2567 = vpop.f32.mrf.mxu0
    %v2568 = vadd.f32 %v2555, %v2567
    %v2569 = vpop.f32.mrf.mxu0
    %2570 = vdwg.mxu0
    %2571 = vmatpush.bf16.msra.mxu0 %v2014
    %2572 = vmatpush.bf16.msra.mxu0 %v2010
    %2573 = vmatpush.bf16.msra.mxu0 %v2006
    %2574 = vmatpush.bf16.msra.mxu0 %v2002
    %2575 = vmatpush.bf16.msra.mxu0 %v1998
    %2576 = vmatpush.bf16.msra.mxu0 %v1994
    %2577 = vmatpush.bf16.msra.mxu0 %v1990
    %2578 = vmatpush.bf16.msra.mxu0 %v1986
    %2579 = vmatmul.bf16.gmra.mxu0 %v725
    %v2580 = vpop.f32.mrf.mxu0
    %v2581 = vadd.f32 %v2568, %v2580
    %v2582 = vpop.f32.mrf.mxu0
    %2583 = vdwg.mxu0
    %2584 = vmatpush.bf16.msra.mxu0 %v1791
    %2585 = vmatpush.bf16.msra.mxu0 %v1787
    %2586 = vmatpush.bf16.msra.mxu0 %v1783
    %2587 = vmatpush.bf16.msra.mxu0 %v1779
    %2588 = vmatpush.bf16.msra.mxu0 %v1775
    %2589 = vmatpush.bf16.msra.mxu0 %v1771
    %2590 = vmatpush.bf16.msra.mxu0 %v1767
    %2591 = vmatpush.bf16.msra.mxu0 %v1763
    %2592 = vmatmul.bf16.gmra.mxu0 %v718
    %v2593 = vpop.f32.mrf.mxu0
    %v2594 = vadd.f32 %v987, %v2593
    %v2595 = vpop.f32.mrf.mxu0
    %2596 = vdwg.mxu0
    %2597 = vmatpush.bf16.msra.mxu0 %v1823
    %2598 = vmatpush.bf16.msra.mxu0 %v1819
    %2599 = vmatpush.bf16.msra.mxu0 %v1815
    %2600 = vmatpush.bf16.msra.mxu0 %v1811
    %2601 = vmatpush.bf16.msra.mxu0 %v1807
    %2602 = vmatpush.bf16.msra.mxu0 %v1803
    %2603 = vmatpush.bf16.msra.mxu0 %v1799
    %2604 = vmatpush.bf16.msra.mxu0 %v1795
    %2605 = vmatmul.bf16.gmra.mxu0 %v719
    %v2606 = vpop.f32.mrf.mxu0
    %v2607 = vadd.f32 %v2594, %v2606
    %v2608 = vpop.f32.mrf.mxu0
    %2609 = vdwg.mxu0
    %2610 = vmatpush.bf16.msra.mxu0 %v1855
    %2611 = vmatpush.bf16.msra.mxu0 %v1851
    %2612 = vmatpush.bf16.msra.mxu0 %v1847
    %2613 = vmatpush.bf16.msra.mxu0 %v1843
    %2614 = vmatpush.bf16.msra.mxu0 %v1839
    %2615 = vmatpush.bf16.msra.mxu0 %v1835
    %2616 = vmatpush.bf16.msra.mxu0 %v1831
    %2617 = vmatpush.bf16.msra.mxu0 %v1827
    %2618 = vmatmul.bf16.gmra.mxu0 %v720
    %v2619 = vpop.f32.mrf.mxu0
    %v2620 = vadd.f32 %v2607, %v2619
    %v2621 = vpop.f32.mrf.mxu0
    %2622 = vdwg.mxu0
    %2623 = vmatpush.bf16.msra.mxu0 %v1887
    %2624 = vmatpush.bf16.msra.mxu0 %v1883
    %2625 = vmatpush.bf16.msra.mxu0 %v1879
    %2626 = vmatpush.bf16.msra.mxu0 %v1875
    %2627 = vmatpush.bf16.msra.mxu0 %v1871
    %2628 = vmatpush.bf16.msra.mxu0 %v1867
    %2629 = vmatpush.bf16.msra.mxu0 %v1863
    %2630 = vmatpush.bf16.msra.mxu0 %v1859
    %2631 = vmatmul.bf16.gmra.mxu0 %v721
    %v2632 = vpop.f32.mrf.mxu0
    %v2633 = vadd.f32 %v2620, %v2632
    %v2634 = vpop.f32.mrf.mxu0
    %2635 = vdwg.mxu0
    %2636 = vmatpush.bf16.msra.mxu0 %v1919
    %2637 = vmatpush.bf16.msra.mxu0 %v1915
    %2638 = vmatpush.bf16.msra.mxu0 %v1911
    %2639 = vmatpush.bf16.msra.mxu0 %v1907
    %2640 = vmatpush.bf16.msra.mxu0 %v1903
    %2641 = vmatpush.bf16.msra.mxu0 %v1899
    %2642 = vmatpush.bf16.msra.mxu0 %v1895
    %2643 = vmatpush.bf16.msra.mxu0 %v1891
    %2644 = vmatmul.bf16.gmra.mxu0 %v722
    %v2645 = vpop.f32.mrf.mxu0
    %v2646 = vadd.f32 %v2633, %v2645
    %v2647 = vpop.f32.mrf.mxu0
    %2648 = vdwg.mxu0
    %2649 = vmatpush.bf16.msra.mxu0 %v1951
    %2650 = vmatpush.bf16.msra.mxu0 %v1947
    %2651 = vmatpush.bf16.msra.mxu0 %v1943
    %2652 = vmatpush.bf16.msra.mxu0 %v1939
    %2653 = vmatpush.bf16.msra.mxu0 %v1935
    %2654 = vmatpush.bf16.msra.mxu0 %v1931
    %2655 = vmatpush.bf16.msra.mxu0 %v1927
    %2656 = vmatpush.bf16.msra.mxu0 %v1923
    %2657 = vmatmul.bf16.gmra.mxu0 %v723
    %v2658 = vpop.f32.mrf.mxu0
    %v2659 = vadd.f32 %v2646, %v2658
    %v2660 = vpop.f32.mrf.mxu0
    %2661 = vdwg.mxu0
    %2662 = vmatpush.bf16.msra.mxu0 %v1983
    %2663 = vmatpush.bf16.msra.mxu0 %v1979
    %2664 = vmatpush.bf16.msra.mxu0 %v1975
    %2665 = vmatpush.bf16.msra.mxu0 %v1971
    %2666 = vmatpush.bf16.msra.mxu0 %v1967
    %2667 = vmatpush.bf16.msra.mxu0 %v1963
    %2668 = vmatpush.bf16.msra.mxu0 %v1959
    %2669 = vmatpush.bf16.msra.mxu0 %v1955
    %2670 = vmatmul.bf16.gmra.mxu0 %v724
    %v2671 = vpop.f32.mrf.mxu0
    %v2672 = vadd.f32 %v2659, %v2671
    %v2673 = vpop.f32.mrf.mxu0
    %2674 = vdwg.mxu0
    %2675 = vmatpush.bf16.msra.mxu0 %v2015
    %2676 = vmatpush.bf16.msra.mxu0 %v2011
    %2677 = vmatpush.bf16.msra.mxu0 %v2007
    %2678 = vmatpush.bf16.msra.mxu0 %v2003
    %2679 = vmatpush.bf16.msra.mxu0 %v1999
    %2680 = vmatpush.bf16.msra.mxu0 %v1995
    %2681 = vmatpush.bf16.msra.mxu0 %v1991
    %2682 = vmatpush.bf16.msra.mxu0 %v1987
    %2683 = vmatmul.bf16.gmra.mxu0 %v725
    %v2684 = vpop.f32.mrf.mxu0
    %v2685 = vadd.f32 %v2672, %v2684
    %v2686 = vpop.f32.mrf.mxu0
    %2687 = vdwg.mxu0
    %v2692 = vrot.slane %v2477, 4
    %v2693 = vrot.slane %v2685, 4
    %vm2694 = vcmask 1043456
    %v2695 = vsel %vm2694, %v2373, %v2692
    %v2696 = vsel %vm2694, %v2581, %v2693
    %2699 = vst [vmem:[#allocation18] sm:$0xff] %v2695
    %2700 = vst [vmem:[#allocation18 + $0x8] sm:$0xff] %v2696
    %v2701 = vlaneseq
    %v2702 = vand.u32 %v2701, 127
    %v2703 = vadd.s32 %v2702, 128
    %v2704 = vadd.s32 %v2702, 256
    %v2705 = vadd.s32 %v2702, 384
    %v2706 = vsel %vm2694, %v2373, -inf
    %v2707 = vsel %vm2694, %v2477, -inf
    %v2708 = vsel %vm2694, %v2581, -inf
    %v2709 = vsel %vm2694, %v2685, -inf
    %v2710 = vmax.f32 %v2706, %v2707
    %v2711 = vmax.f32 %v2708, %v2709
    %v2712 = vmax.f32 %v2710, %v2711
    %2713 = vmax.xlane.f32.xlu0 %v2712
    %v2714 = vpop.xlane.xlu0 %2713
    %vm2715 = vcmp.eq.f32.partialorder %v2373, %v2714
    %vm2716 = vcmp.eq.f32.partialorder %v2477, %v2714
    %vm2717 = vcmp.eq.f32.partialorder %v2581, %v2714
    %vm2718 = vcmp.eq.f32.partialorder %v2685, %v2714
    %v2719 = vsel %vm2715, %v2702, 512
    %v2720 = vsel %vm2716, %v2703, 512
    %v2721 = vsel %vm2717, %v2704, 512
    %v2722 = vsel %vm2718, %v2705, 512
    %v2723 = vsel %vm2694, %v2719, 2147483647
    %v2724 = vsel %vm2694, %v2720, 2147483647
    %v2725 = vsel %vm2694, %v2721, 2147483647
    %v2726 = vsel %vm2694, %v2722, 2147483647
    %vm2727 = vcmp.lt.s32.totalorder %v2723, %v2724
    %v2728 = vsel %vm2727, %v2723, %v2724
    %vm2729 = vcmp.lt.s32.totalorder %v2725, %v2726
    %v2730 = vsel %vm2729, %v2725, %v2726
    %vm2731 = vcmp.lt.s32.totalorder %v2728, %v2730
    %v2732 = vsel %vm2731, %v2728, %v2730
    %v2733 = vand.u32 %v2732, 65535
    %v2734 = vshra.s32 %v2732, 16
    %v2735 = vcvt.s32.f32 %v2733
    %v2736 = vcvt.s32.f32 %v2734
    %2737 = vmin.xlane.f32.xlu0 %v2736
    %v2738 = vpop.xlane.xlu0 %2737
    %vm2739 = vcmp.eq.f32.partialorder %v2736, %v2738
    %v2740 = vsel %vm2739, %v2735, inf
    %2741 = vmin.xlane.f32.xlu0 %v2740
    %v2742 = vpop.xlane.xlu0 %2741
    %v2743 = vcvt.f32.s32 %v2742
    %v2744 = vcvt.f32.s32 %v2738
    %v2745 = vshll.u32 %v2744, 16
    %v2746 = vadd.s32 %v2745, %v2743
    %vm2747 = vcmask 3072
    %2748 = vst.msk [vmem:[%s15] sm:$0xf] %vm2747, %v2746
    %v2749 = vld [vmem:[%s1] sm:$0x3]
    %2750 = vset.pattern.permute.xlu0 0
    %2751 = vperm.xlu0 %2750, %v2749
    %v2752 = vpop.permute.xlu0 %2751
    %vm2753 = vcmp.eq.s32.totalorder %v2702, %v2752
    %v2754 = vsel %vm2753, 1, 0
    %v2755 = vcvt.s32.f32 %v2754
    %v2756 = vpack.c.bf16 %v2755, %v2755
    %v2757 = vld [vmem:[#allocation10] sm:$0xff]
    %v2758 = vld [vmem:[#allocation10 + $0x8] sm:$0xff]
    %v2759 = vld [vmem:[#allocation10 + $0x10] sm:$0xff]
    %v2760 = vld [vmem:[#allocation10 + $0x18] sm:$0xff]
    %v2765 = vunpack.c.l.b16 %v2757
    %v2766 = vunpack.c.h.b16 %v2757
    %v2767 = vunpack.c.l.b16 %v2758
    %v2768 = vunpack.c.h.b16 %v2758
    %v2769 = vunpack.c.l.b16 %v2759
    %v2770 = vunpack.c.h.b16 %v2759
    %v2771 = vunpack.c.l.b16 %v2760
    %v2772 = vunpack.c.h.b16 %v2760
    %v2773 = vpack.c.b16 %v2769, %v2765
    %v2774 = vpack.c.b16 %v2770, %v2766
    %v2775 = vpack.c.b16 %v2771, %v2767
    %v2776 = vpack.c.b16 %v2772, %v2768
    %vm2781 = vcmask 130048
    %v2783 = vsel %vm2781, %v2756, 0
    %2785 = vmatpush.bf16.msra.mxu0 0
    %2786 = vmatpush.bf16.msra.mxu0 0
    %2787 = vmatpush.bf16.msra.mxu0 0
    %2788 = vmatpush.bf16.msra.mxu0 0
    %2789 = vmatpush.bf16.msra.mxu0 0
    %2790 = vmatpush.bf16.msra.mxu0 0
    %2791 = vmatpush.bf16.msra.mxu0 0
    %2792 = vmatpush.bf16.msra.mxu0 %v2773
    %2793 = vmatmul.bf16.gmra.mxu0 %v2783
    %v2794 = vpop.f32.mrf.mxu0
    %v2795 = vadd.f32 0.0, %v2794
    %v2796 = vpop.f32.mrf.mxu0
    %2797 = vdwg.mxu0
    %2798 = vmatpush.bf16.msra.mxu0 0
    %2799 = vmatpush.bf16.msra.mxu0 0
    %2800 = vmatpush.bf16.msra.mxu0 0
    %2801 = vmatpush.bf16.msra.mxu0 0
    %2802 = vmatpush.bf16.msra.mxu0 0
    %2803 = vmatpush.bf16.msra.mxu0 0
    %2804 = vmatpush.bf16.msra.mxu0 0
    %2805 = vmatpush.bf16.msra.mxu0 %v2774
    %2806 = vmatmul.bf16.gmra.mxu0 %v2783
    %v2807 = vpop.f32.mrf.mxu0
    %v2808 = vadd.f32 0.0, %v2807
    %v2809 = vpop.f32.mrf.mxu0
    %2810 = vdwg.mxu0
    %2811 = vmatpush.bf16.msra.mxu0 0
    %2812 = vmatpush.bf16.msra.mxu0 0
    %2813 = vmatpush.bf16.msra.mxu0 0
    %2814 = vmatpush.bf16.msra.mxu0 0
    %2815 = vmatpush.bf16.msra.mxu0 0
    %2816 = vmatpush.bf16.msra.mxu0 0
    %2817 = vmatpush.bf16.msra.mxu0 0
    %2818 = vmatpush.bf16.msra.mxu0 %v2775
    %2819 = vmatmul.bf16.gmra.mxu0 %v2783
    %v2820 = vpop.f32.mrf.mxu0
    %v2821 = vadd.f32 0.0, %v2820
    %v2822 = vpop.f32.mrf.mxu0
    %2823 = vdwg.mxu0
    %2824 = vmatpush.bf16.msra.mxu0 0
    %2825 = vmatpush.bf16.msra.mxu0 0
    %2826 = vmatpush.bf16.msra.mxu0 0
    %2827 = vmatpush.bf16.msra.mxu0 0
    %2828 = vmatpush.bf16.msra.mxu0 0
    %2829 = vmatpush.bf16.msra.mxu0 0
    %2830 = vmatpush.bf16.msra.mxu0 0
    %2831 = vmatpush.bf16.msra.mxu0 %v2776
    %2832 = vmatmul.bf16.gmra.mxu0 %v2783
    %v2833 = vpop.f32.mrf.mxu0
    %v2834 = vadd.f32 0.0, %v2833
    %v2835 = vpop.f32.mrf.mxu0
    %2836 = vdwg.mxu0
    %v2837 = vpack.c.bf16 %v2373, %v2373
    %v2838 = vpack.c.bf16 %v2477, %v2477
    %v2839 = vpack.c.bf16 %v2581, %v2581
    %v2840 = vpack.c.bf16 %v2685, %v2685
    %v2841 = vld [vmem:[#allocation11] sm:$0xff]
    %v2842 = vld [vmem:[#allocation11 + $0x8] sm:$0xff]
    %v2843 = vld [vmem:[#allocation11 + $0x10] sm:$0xff]
    %v2844 = vld [vmem:[#allocation11 + $0x18] sm:$0xff]
    %v2845 = vld [vmem:[#allocation11 + $0x20] sm:$0xff]
    %v2846 = vld [vmem:[#allocation11 + $0x28] sm:$0xff]
    %v2847 = vld [vmem:[#allocation11 + $0x30] sm:$0xff]
    %v2848 = vld [vmem:[#allocation11 + $0x38] sm:$0xff]
    %v2849 = vld [vmem:[#allocation11 + $0x40] sm:$0xff]
    %v2850 = vld [vmem:[#allocation11 + $0x48] sm:$0xff]
    %v2851 = vld [vmem:[#allocation11 + $0x50] sm:$0xff]
    %v2852 = vld [vmem:[#allocation11 + $0x58] sm:$0xff]
    %v2853 = vld [vmem:[#allocation11 + $0x60] sm:$0xff]
    %v2854 = vld [vmem:[#allocation11 + $0x68] sm:$0xff]
    %v2855 = vld [vmem:[#allocation11 + $0x70] sm:$0xff]
    %v2856 = vld [vmem:[#allocation11 + $0x78] sm:$0xff]
    %v2857 = vld [vmem:[#allocation11 + $0x80] sm:$0xff]
    %v2858 = vld [vmem:[#allocation11 + $0x88] sm:$0xff]
    %v2859 = vld [vmem:[#allocation11 + $0x90] sm:$0xff]
    %v2860 = vld [vmem:[#allocation11 + $0x98] sm:$0xff]
    %v2861 = vld [vmem:[#allocation11 + $0xa0] sm:$0xff]
    %v2862 = vld [vmem:[#allocation11 + $0xa8] sm:$0xff]
    %v2863 = vld [vmem:[#allocation11 + $0xb0] sm:$0xff]
    %v2864 = vld [vmem:[#allocation11 + $0xb8] sm:$0xff]
    %v2865 = vld [vmem:[#allocation11 + $0xc0] sm:$0xff]
    %v2866 = vld [vmem:[#allocation11 + $0xc8] sm:$0xff]
    %v2867 = vld [vmem:[#allocation11 + $0xd0] sm:$0xff]
    %v2868 = vld [vmem:[#allocation11 + $0xd8] sm:$0xff]
    %v2869 = vld [vmem:[#allocation11 + $0xe0] sm:$0xff]
    %v2870 = vld [vmem:[#allocation11 + $0xe8] sm:$0xff]
    %v2871 = vld [vmem:[#allocation11 + $0xf0] sm:$0xff]
    %v2872 = vld [vmem:[#allocation11 + $0xf8] sm:$0xff]
    %v2873 = vld [vmem:[#allocation11 + $0x100] sm:$0xff]
    %v2874 = vld [vmem:[#allocation11 + $0x108] sm:$0xff]
    %v2875 = vld [vmem:[#allocation11 + $0x110] sm:$0xff]
    %v2876 = vld [vmem:[#allocation11 + $0x118] sm:$0xff]
    %v2877 = vld [vmem:[#allocation11 + $0x120] sm:$0xff]
    %v2878 = vld [vmem:[#allocation11 + $0x128] sm:$0xff]
    %v2879 = vld [vmem:[#allocation11 + $0x130] sm:$0xff]
    %v2880 = vld [vmem:[#allocation11 + $0x138] sm:$0xff]
    %v2881 = vld [vmem:[#allocation11 + $0x140] sm:$0xff]
    %v2882 = vld [vmem:[#allocation11 + $0x148] sm:$0xff]
    %v2883 = vld [vmem:[#allocation11 + $0x150] sm:$0xff]
    %v2884 = vld [vmem:[#allocation11 + $0x158] sm:$0xff]
    %v2885 = vld [vmem:[#allocation11 + $0x160] sm:$0xff]
    %v2886 = vld [vmem:[#allocation11 + $0x168] sm:$0xff]
    %v2887 = vld [vmem:[#allocation11 + $0x170] sm:$0xff]
    %v2888 = vld [vmem:[#allocation11 + $0x178] sm:$0xff]
    %v2889 = vld [vmem:[#allocation11 + $0x180] sm:$0xff]
    %v2890 = vld [vmem:[#allocation11 + $0x188] sm:$0xff]
    %v2891 = vld [vmem:[#allocation11 + $0x190] sm:$0xff]
    %v2892 = vld [vmem:[#allocation11 + $0x198] sm:$0xff]
    %v2893 = vld [vmem:[#allocation11 + $0x1a0] sm:$0xff]
    %v2894 = vld [vmem:[#allocation11 + $0x1a8] sm:$0xff]
    %v2895 = vld [vmem:[#allocation11 + $0x1b0] sm:$0xff]
    %v2896 = vld [vmem:[#allocation11 + $0x1b8] sm:$0xff]
    %v2897 = vld [vmem:[#allocation11 + $0x1c0] sm:$0xff]
    %v2898 = vld [vmem:[#allocation11 + $0x1c8] sm:$0xff]
    %v2899 = vld [vmem:[#allocation11 + $0x1d0] sm:$0xff]
    %v2900 = vld [vmem:[#allocation11 + $0x1d8] sm:$0xff]
    %v2901 = vld [vmem:[#allocation11 + $0x1e0] sm:$0xff]
    %v2902 = vld [vmem:[#allocation11 + $0x1e8] sm:$0xff]
    %v2903 = vld [vmem:[#allocation11 + $0x1f0] sm:$0xff]
    %v2904 = vld [vmem:[#allocation11 + $0x1f8] sm:$0xff]
    %v2905 = vld [vmem:[#allocation11 + $0x200] sm:$0xff]
    %v2906 = vld [vmem:[#allocation11 + $0x208] sm:$0xff]
    %v2907 = vld [vmem:[#allocation11 + $0x210] sm:$0xff]
    %v2908 = vld [vmem:[#allocation11 + $0x218] sm:$0xff]
    %v2909 = vld [vmem:[#allocation11 + $0x220] sm:$0xff]
    %v2910 = vld [vmem:[#allocation11 + $0x228] sm:$0xff]
    %v2911 = vld [vmem:[#allocation11 + $0x230] sm:$0xff]
    %v2912 = vld [vmem:[#allocation11 + $0x238] sm:$0xff]
    %v2913 = vld [vmem:[#allocation11 + $0x240] sm:$0xff]
    %v2914 = vld [vmem:[#allocation11 + $0x248] sm:$0xff]
    %v2915 = vld [vmem:[#allocation11 + $0x250] sm:$0xff]
    %v2916 = vld [vmem:[#allocation11 + $0x258] sm:$0xff]
    %v2917 = vld [vmem:[#allocation11 + $0x260] sm:$0xff]
    %v2918 = vld [vmem:[#allocation11 + $0x268] sm:$0xff]
    %v2919 = vld [vmem:[#allocation11 + $0x270] sm:$0xff]
    %v2920 = vld [vmem:[#allocation11 + $0x278] sm:$0xff]
    %v2921 = vld [vmem:[#allocation11 + $0x280] sm:$0xff]
    %v2922 = vld [vmem:[#allocation11 + $0x288] sm:$0xff]
    %v2923 = vld [vmem:[#allocation11 + $0x290] sm:$0xff]
    %v2924 = vld [vmem:[#allocation11 + $0x298] sm:$0xff]
    %v2925 = vld [vmem:[#allocation11 + $0x2a0] sm:$0xff]
    %v2926 = vld [vmem:[#allocation11 + $0x2a8] sm:$0xff]
    %v2927 = vld [vmem:[#allocation11 + $0x2b0] sm:$0xff]
    %v2928 = vld [vmem:[#allocation11 + $0x2b8] sm:$0xff]
    %v2929 = vld [vmem:[#allocation11 + $0x2c0] sm:$0xff]
    %v2930 = vld [vmem:[#allocation11 + $0x2c8] sm:$0xff]
    %v2931 = vld [vmem:[#allocation11 + $0x2d0] sm:$0xff]
    %v2932 = vld [vmem:[#allocation11 + $0x2d8] sm:$0xff]
    %v2933 = vld [vmem:[#allocation11 + $0x2e0] sm:$0xff]
    %v2934 = vld [vmem:[#allocation11 + $0x2e8] sm:$0xff]
    %v2935 = vld [vmem:[#allocation11 + $0x2f0] sm:$0xff]
    %v2936 = vld [vmem:[#allocation11 + $0x2f8] sm:$0xff]
    %v2937 = vld [vmem:[#allocation11 + $0x300] sm:$0xff]
    %v2938 = vld [vmem:[#allocation11 + $0x308] sm:$0xff]
    %v2939 = vld [vmem:[#allocation11 + $0x310] sm:$0xff]
    %v2940 = vld [vmem:[#allocation11 + $0x318] sm:$0xff]
    %v2941 = vld [vmem:[#allocation11 + $0x320] sm:$0xff]
    %v2942 = vld [vmem:[#allocation11 + $0x328] sm:$0xff]
    %v2943 = vld [vmem:[#allocation11 + $0x330] sm:$0xff]
    %v2944 = vld [vmem:[#allocation11 + $0x338] sm:$0xff]
    %v2945 = vld [vmem:[#allocation11 + $0x340] sm:$0xff]
    %v2946 = vld [vmem:[#allocation11 + $0x348] sm:$0xff]
    %v2947 = vld [vmem:[#allocation11 + $0x350] sm:$0xff]
    %v2948 = vld [vmem:[#allocation11 + $0x358] sm:$0xff]
    %v2949 = vld [vmem:[#allocation11 + $0x360] sm:$0xff]
    %v2950 = vld [vmem:[#allocation11 + $0x368] sm:$0xff]
    %v2951 = vld [vmem:[#allocation11 + $0x370] sm:$0xff]
    %v2952 = vld [vmem:[#allocation11 + $0x378] sm:$0xff]
    %v2953 = vld [vmem:[#allocation11 + $0x380] sm:$0xff]
    %v2954 = vld [vmem:[#allocation11 + $0x388] sm:$0xff]
    %v2955 = vld [vmem:[#allocation11 + $0x390] sm:$0xff]
    %v2956 = vld [vmem:[#allocation11 + $0x398] sm:$0xff]
    %v2957 = vld [vmem:[#allocation11 + $0x3a0] sm:$0xff]
    %v2958 = vld [vmem:[#allocation11 + $0x3a8] sm:$0xff]
    %v2959 = vld [vmem:[#allocation11 + $0x3b0] sm:$0xff]
    %v2960 = vld [vmem:[#allocation11 + $0x3b8] sm:$0xff]
    %v2961 = vld [vmem:[#allocation11 + $0x3c0] sm:$0xff]
    %v2962 = vld [vmem:[#allocation11 + $0x3c8] sm:$0xff]
    %v2963 = vld [vmem:[#allocation11 + $0x3d0] sm:$0xff]
    %v2964 = vld [vmem:[#allocation11 + $0x3d8] sm:$0xff]
    %v2965 = vld [vmem:[#allocation11 + $0x3e0] sm:$0xff]
    %v2966 = vld [vmem:[#allocation11 + $0x3e8] sm:$0xff]
    %v2967 = vld [vmem:[#allocation11 + $0x3f0] sm:$0xff]
    %v2968 = vld [vmem:[#allocation11 + $0x3f8] sm:$0xff]
    %v2969 = vld [vmem:[#allocation11 + $0x400] sm:$0xff]
    %v2970 = vld [vmem:[#allocation11 + $0x408] sm:$0xff]
    %v2971 = vld [vmem:[#allocation11 + $0x410] sm:$0xff]
    %v2972 = vld [vmem:[#allocation11 + $0x418] sm:$0xff]
    %v2973 = vld [vmem:[#allocation11 + $0x420] sm:$0xff]
    %v2974 = vld [vmem:[#allocation11 + $0x428] sm:$0xff]
    %v2975 = vld [vmem:[#allocation11 + $0x430] sm:$0xff]
    %v2976 = vld [vmem:[#allocation11 + $0x438] sm:$0xff]
    %v2977 = vld [vmem:[#allocation11 + $0x440] sm:$0xff]
    %v2978 = vld [vmem:[#allocation11 + $0x448] sm:$0xff]
    %v2979 = vld [vmem:[#allocation11 + $0x450] sm:$0xff]
    %v2980 = vld [vmem:[#allocation11 + $0x458] sm:$0xff]
    %v2981 = vld [vmem:[#allocation11 + $0x460] sm:$0xff]
    %v2982 = vld [vmem:[#allocation11 + $0x468] sm:$0xff]
    %v2983 = vld [vmem:[#allocation11 + $0x470] sm:$0xff]
    %v2984 = vld [vmem:[#allocation11 + $0x478] sm:$0xff]
    %v2985 = vld [vmem:[#allocation11 + $0x480] sm:$0xff]
    %v2986 = vld [vmem:[#allocation11 + $0x488] sm:$0xff]
    %v2987 = vld [vmem:[#allocation11 + $0x490] sm:$0xff]
    %v2988 = vld [vmem:[#allocation11 + $0x498] sm:$0xff]
    %v2989 = vld [vmem:[#allocation11 + $0x4a0] sm:$0xff]
    %v2990 = vld [vmem:[#allocation11 + $0x4a8] sm:$0xff]
    %v2991 = vld [vmem:[#allocation11 + $0x4b0] sm:$0xff]
    %v2992 = vld [vmem:[#allocation11 + $0x4b8] sm:$0xff]
    %v2993 = vld [vmem:[#allocation11 + $0x4c0] sm:$0xff]
    %v2994 = vld [vmem:[#allocation11 + $0x4c8] sm:$0xff]
    %v2995 = vld [vmem:[#allocation11 + $0x4d0] sm:$0xff]
    %v2996 = vld [vmem:[#allocation11 + $0x4d8] sm:$0xff]
    %v2997 = vld [vmem:[#allocation11 + $0x4e0] sm:$0xff]
    %v2998 = vld [vmem:[#allocation11 + $0x4e8] sm:$0xff]
    %v2999 = vld [vmem:[#allocation11 + $0x4f0] sm:$0xff]
    %v3000 = vld [vmem:[#allocation11 + $0x4f8] sm:$0xff]
    %v3001 = vld [vmem:[#allocation11 + $0x500] sm:$0xff]
    %v3002 = vld [vmem:[#allocation11 + $0x508] sm:$0xff]
    %v3003 = vld [vmem:[#allocation11 + $0x510] sm:$0xff]
    %v3004 = vld [vmem:[#allocation11 + $0x518] sm:$0xff]
    %v3005 = vld [vmem:[#allocation11 + $0x520] sm:$0xff]
    %v3006 = vld [vmem:[#allocation11 + $0x528] sm:$0xff]
    %v3007 = vld [vmem:[#allocation11 + $0x530] sm:$0xff]
    %v3008 = vld [vmem:[#allocation11 + $0x538] sm:$0xff]
    %v3009 = vld [vmem:[#allocation11 + $0x540] sm:$0xff]
    %v3010 = vld [vmem:[#allocation11 + $0x548] sm:$0xff]
    %v3011 = vld [vmem:[#allocation11 + $0x550] sm:$0xff]
    %v3012 = vld [vmem:[#allocation11 + $0x558] sm:$0xff]
    %v3013 = vld [vmem:[#allocation11 + $0x560] sm:$0xff]
    %v3014 = vld [vmem:[#allocation11 + $0x568] sm:$0xff]
    %v3015 = vld [vmem:[#allocation11 + $0x570] sm:$0xff]
    %v3016 = vld [vmem:[#allocation11 + $0x578] sm:$0xff]
    %v3017 = vld [vmem:[#allocation11 + $0x580] sm:$0xff]
    %v3018 = vld [vmem:[#allocation11 + $0x588] sm:$0xff]
    %v3019 = vld [vmem:[#allocation11 + $0x590] sm:$0xff]
    %v3020 = vld [vmem:[#allocation11 + $0x598] sm:$0xff]
    %v3021 = vld [vmem:[#allocation11 + $0x5a0] sm:$0xff]
    %v3022 = vld [vmem:[#allocation11 + $0x5a8] sm:$0xff]
    %v3023 = vld [vmem:[#allocation11 + $0x5b0] sm:$0xff]
    %v3024 = vld [vmem:[#allocation11 + $0x5b8] sm:$0xff]
    %v3025 = vld [vmem:[#allocation11 + $0x5c0] sm:$0xff]
    %v3026 = vld [vmem:[#allocation11 + $0x5c8] sm:$0xff]
    %v3027 = vld [vmem:[#allocation11 + $0x5d0] sm:$0xff]
    %v3028 = vld [vmem:[#allocation11 + $0x5d8] sm:$0xff]
    %v3029 = vld [vmem:[#allocation11 + $0x5e0] sm:$0xff]
    %v3030 = vld [vmem:[#allocation11 + $0x5e8] sm:$0xff]
    %v3031 = vld [vmem:[#allocation11 + $0x5f0] sm:$0xff]
    %v3032 = vld [vmem:[#allocation11 + $0x5f8] sm:$0xff]
    %v3033 = vld [vmem:[#allocation11 + $0x600] sm:$0xff]
    %v3034 = vld [vmem:[#allocation11 + $0x608] sm:$0xff]
    %v3035 = vld [vmem:[#allocation11 + $0x610] sm:$0xff]
    %v3036 = vld [vmem:[#allocation11 + $0x618] sm:$0xff]
    %v3037 = vld [vmem:[#allocation11 + $0x620] sm:$0xff]
    %v3038 = vld [vmem:[#allocation11 + $0x628] sm:$0xff]
    %v3039 = vld [vmem:[#allocation11 + $0x630] sm:$0xff]
    %v3040 = vld [vmem:[#allocation11 + $0x638] sm:$0xff]
    %v3041 = vld [vmem:[#allocation11 + $0x640] sm:$0xff]
    %v3042 = vld [vmem:[#allocation11 + $0x648] sm:$0xff]
    %v3043 = vld [vmem:[#allocation11 + $0x650] sm:$0xff]
    %v3044 = vld [vmem:[#allocation11 + $0x658] sm:$0xff]
    %v3045 = vld [vmem:[#allocation11 + $0x660] sm:$0xff]
    %v3046 = vld [vmem:[#allocation11 + $0x668] sm:$0xff]
    %v3047 = vld [vmem:[#allocation11 + $0x670] sm:$0xff]
    %v3048 = vld [vmem:[#allocation11 + $0x678] sm:$0xff]
    %v3049 = vld [vmem:[#allocation11 + $0x680] sm:$0xff]
    %v3050 = vld [vmem:[#allocation11 + $0x688] sm:$0xff]
    %v3051 = vld [vmem:[#allocation11 + $0x690] sm:$0xff]
    %v3052 = vld [vmem:[#allocation11 + $0x698] sm:$0xff]
    %v3053 = vld [vmem:[#allocation11 + $0x6a0] sm:$0xff]
    %v3054 = vld [vmem:[#allocation11 + $0x6a8] sm:$0xff]
    %v3055 = vld [vmem:[#allocation11 + $0x6b0] sm:$0xff]
    %v3056 = vld [vmem:[#allocation11 + $0x6b8] sm:$0xff]
    %v3057 = vld [vmem:[#allocation11 + $0x6c0] sm:$0xff]
    %v3058 = vld [vmem:[#allocation11 + $0x6c8] sm:$0xff]
    %v3059 = vld [vmem:[#allocation11 + $0x6d0] sm:$0xff]
    %v3060 = vld [vmem:[#allocation11 + $0x6d8] sm:$0xff]
    %v3061 = vld [vmem:[#allocation11 + $0x6e0] sm:$0xff]
    %v3062 = vld [vmem:[#allocation11 + $0x6e8] sm:$0xff]
    %v3063 = vld [vmem:[#allocation11 + $0x6f0] sm:$0xff]
    %v3064 = vld [vmem:[#allocation11 + $0x6f8] sm:$0xff]
    %v3065 = vld [vmem:[#allocation11 + $0x700] sm:$0xff]
    %v3066 = vld [vmem:[#allocation11 + $0x708] sm:$0xff]
    %v3067 = vld [vmem:[#allocation11 + $0x710] sm:$0xff]
    %v3068 = vld [vmem:[#allocation11 + $0x718] sm:$0xff]
    %v3069 = vld [vmem:[#allocation11 + $0x720] sm:$0xff]
    %v3070 = vld [vmem:[#allocation11 + $0x728] sm:$0xff]
    %v3071 = vld [vmem:[#allocation11 + $0x730] sm:$0xff]
    %v3072 = vld [vmem:[#allocation11 + $0x738] sm:$0xff]
    %v3073 = vld [vmem:[#allocation11 + $0x740] sm:$0xff]
    %v3074 = vld [vmem:[#allocation11 + $0x748] sm:$0xff]
    %v3075 = vld [vmem:[#allocation11 + $0x750] sm:$0xff]
    %v3076 = vld [vmem:[#allocation11 + $0x758] sm:$0xff]
    %v3077 = vld [vmem:[#allocation11 + $0x760] sm:$0xff]
    %v3078 = vld [vmem:[#allocation11 + $0x768] sm:$0xff]
    %v3079 = vld [vmem:[#allocation11 + $0x770] sm:$0xff]
    %v3080 = vld [vmem:[#allocation11 + $0x778] sm:$0xff]
    %v3081 = vld [vmem:[#allocation11 + $0x780] sm:$0xff]
    %v3082 = vld [vmem:[#allocation11 + $0x788] sm:$0xff]
    %v3083 = vld [vmem:[#allocation11 + $0x790] sm:$0xff]
    %v3084 = vld [vmem:[#allocation11 + $0x798] sm:$0xff]
    %v3085 = vld [vmem:[#allocation11 + $0x7a0] sm:$0xff]
    %v3086 = vld [vmem:[#allocation11 + $0x7a8] sm:$0xff]
    %v3087 = vld [vmem:[#allocation11 + $0x7b0] sm:$0xff]
    %v3088 = vld [vmem:[#allocation11 + $0x7b8] sm:$0xff]
    %v3089 = vld [vmem:[#allocation11 + $0x7c0] sm:$0xff]
    %v3090 = vld [vmem:[#allocation11 + $0x7c8] sm:$0xff]
    %v3091 = vld [vmem:[#allocation11 + $0x7d0] sm:$0xff]
    %v3092 = vld [vmem:[#allocation11 + $0x7d8] sm:$0xff]
    %v3093 = vld [vmem:[#allocation11 + $0x7e0] sm:$0xff]
    %v3094 = vld [vmem:[#allocation11 + $0x7e8] sm:$0xff]
    %v3095 = vld [vmem:[#allocation11 + $0x7f0] sm:$0xff]
    %v3096 = vld [vmem:[#allocation11 + $0x7f8] sm:$0xff]
    %v3097 = vld [vmem:[#allocation13] sm:$0xff]
    %v3098 = vld [vmem:[#allocation13 + $0x8] sm:$0xff]
    %v3099 = vld [vmem:[#allocation13 + $0x10] sm:$0xff]
    %v3100 = vld [vmem:[#allocation13 + $0x18] sm:$0xff]
    %v3101 = vld [vmem:[#allocation13 + $0x20] sm:$0xff]
    %v3102 = vld [vmem:[#allocation13 + $0x28] sm:$0xff]
    %v3103 = vld [vmem:[#allocation13 + $0x30] sm:$0xff]
    %v3104 = vld [vmem:[#allocation13 + $0x38] sm:$0xff]
    %v3105 = vld [vmem:[#allocation13 + $0x40] sm:$0xff]
    %v3106 = vld [vmem:[#allocation13 + $0x48] sm:$0xff]
    %v3107 = vld [vmem:[#allocation13 + $0x50] sm:$0xff]
    %v3108 = vld [vmem:[#allocation13 + $0x58] sm:$0xff]
    %v3109 = vld [vmem:[#allocation13 + $0x60] sm:$0xff]
    %v3110 = vld [vmem:[#allocation13 + $0x68] sm:$0xff]
    %v3111 = vld [vmem:[#allocation13 + $0x70] sm:$0xff]
    %v3112 = vld [vmem:[#allocation13 + $0x78] sm:$0xff]
    %v3113 = vld [vmem:[#allocation13 + $0x80] sm:$0xff]
    %v3114 = vld [vmem:[#allocation13 + $0x88] sm:$0xff]
    %v3115 = vld [vmem:[#allocation13 + $0x90] sm:$0xff]
    %v3116 = vld [vmem:[#allocation13 + $0x98] sm:$0xff]
    %v3117 = vld [vmem:[#allocation13 + $0xa0] sm:$0xff]
    %v3118 = vld [vmem:[#allocation13 + $0xa8] sm:$0xff]
    %v3119 = vld [vmem:[#allocation13 + $0xb0] sm:$0xff]
    %v3120 = vld [vmem:[#allocation13 + $0xb8] sm:$0xff]
    %v3121 = vld [vmem:[#allocation13 + $0xc0] sm:$0xff]
    %v3122 = vld [vmem:[#allocation13 + $0xc8] sm:$0xff]
    %v3123 = vld [vmem:[#allocation13 + $0xd0] sm:$0xff]
    %v3124 = vld [vmem:[#allocation13 + $0xd8] sm:$0xff]
    %v3125 = vld [vmem:[#allocation13 + $0xe0] sm:$0xff]
    %v3126 = vld [vmem:[#allocation13 + $0xe8] sm:$0xff]
    %v3127 = vld [vmem:[#allocation13 + $0xf0] sm:$0xff]
    %v3128 = vld [vmem:[#allocation13 + $0xf8] sm:$0xff]
    %v3129 = vld [vmem:[#allocation13 + $0x100] sm:$0xff]
    %v3130 = vld [vmem:[#allocation13 + $0x108] sm:$0xff]
    %v3131 = vld [vmem:[#allocation13 + $0x110] sm:$0xff]
    %v3132 = vld [vmem:[#allocation13 + $0x118] sm:$0xff]
    %v3133 = vld [vmem:[#allocation13 + $0x120] sm:$0xff]
    %v3134 = vld [vmem:[#allocation13 + $0x128] sm:$0xff]
    %v3135 = vld [vmem:[#allocation13 + $0x130] sm:$0xff]
    %v3136 = vld [vmem:[#allocation13 + $0x138] sm:$0xff]
    %v3137 = vld [vmem:[#allocation13 + $0x140] sm:$0xff]
    %v3138 = vld [vmem:[#allocation13 + $0x148] sm:$0xff]
    %v3139 = vld [vmem:[#allocation13 + $0x150] sm:$0xff]
    %v3140 = vld [vmem:[#allocation13 + $0x158] sm:$0xff]
    %v3141 = vld [vmem:[#allocation13 + $0x160] sm:$0xff]
    %v3142 = vld [vmem:[#allocation13 + $0x168] sm:$0xff]
    %v3143 = vld [vmem:[#allocation13 + $0x170] sm:$0xff]
    %v3144 = vld [vmem:[#allocation13 + $0x178] sm:$0xff]
    %v3145 = vld [vmem:[#allocation13 + $0x180] sm:$0xff]
    %v3146 = vld [vmem:[#allocation13 + $0x188] sm:$0xff]
    %v3147 = vld [vmem:[#allocation13 + $0x190] sm:$0xff]
    %v3148 = vld [vmem:[#allocation13 + $0x198] sm:$0xff]
    %v3149 = vld [vmem:[#allocation13 + $0x1a0] sm:$0xff]
    %v3150 = vld [vmem:[#allocation13 + $0x1a8] sm:$0xff]
    %v3151 = vld [vmem:[#allocation13 + $0x1b0] sm:$0xff]
    %v3152 = vld [vmem:[#allocation13 + $0x1b8] sm:$0xff]
    %v3153 = vld [vmem:[#allocation13 + $0x1c0] sm:$0xff]
    %v3154 = vld [vmem:[#allocation13 + $0x1c8] sm:$0xff]
    %v3155 = vld [vmem:[#allocation13 + $0x1d0] sm:$0xff]
    %v3156 = vld [vmem:[#allocation13 + $0x1d8] sm:$0xff]
    %v3157 = vld [vmem:[#allocation13 + $0x1e0] sm:$0xff]
    %v3158 = vld [vmem:[#allocation13 + $0x1e8] sm:$0xff]
    %v3159 = vld [vmem:[#allocation13 + $0x1f0] sm:$0xff]
    %v3160 = vld [vmem:[#allocation13 + $0x1f8] sm:$0xff]
    %v3161 = vld [vmem:[#allocation13 + $0x200] sm:$0xff]
    %v3162 = vld [vmem:[#allocation13 + $0x208] sm:$0xff]
    %v3163 = vld [vmem:[#allocation13 + $0x210] sm:$0xff]
    %v3164 = vld [vmem:[#allocation13 + $0x218] sm:$0xff]
    %v3165 = vld [vmem:[#allocation13 + $0x220] sm:$0xff]
    %v3166 = vld [vmem:[#allocation13 + $0x228] sm:$0xff]
    %v3167 = vld [vmem:[#allocation13 + $0x230] sm:$0xff]
    %v3168 = vld [vmem:[#allocation13 + $0x238] sm:$0xff]
    %v3169 = vld [vmem:[#allocation13 + $0x240] sm:$0xff]
    %v3170 = vld [vmem:[#allocation13 + $0x248] sm:$0xff]
    %v3171 = vld [vmem:[#allocation13 + $0x250] sm:$0xff]
    %v3172 = vld [vmem:[#allocation13 + $0x258] sm:$0xff]
    %v3173 = vld [vmem:[#allocation13 + $0x260] sm:$0xff]
    %v3174 = vld [vmem:[#allocation13 + $0x268] sm:$0xff]
    %v3175 = vld [vmem:[#allocation13 + $0x270] sm:$0xff]
    %v3176 = vld [vmem:[#allocation13 + $0x278] sm:$0xff]
    %v3177 = vld [vmem:[#allocation13 + $0x280] sm:$0xff]
    %v3178 = vld [vmem:[#allocation13 + $0x288] sm:$0xff]
    %v3179 = vld [vmem:[#allocation13 + $0x290] sm:$0xff]
    %v3180 = vld [vmem:[#allocation13 + $0x298] sm:$0xff]
    %v3181 = vld [vmem:[#allocation13 + $0x2a0] sm:$0xff]
    %v3182 = vld [vmem:[#allocation13 + $0x2a8] sm:$0xff]
    %v3183 = vld [vmem:[#allocation13 + $0x2b0] sm:$0xff]
    %v3184 = vld [vmem:[#allocation13 + $0x2b8] sm:$0xff]
    %v3185 = vld [vmem:[#allocation13 + $0x2c0] sm:$0xff]
    %v3186 = vld [vmem:[#allocation13 + $0x2c8] sm:$0xff]
    %v3187 = vld [vmem:[#allocation13 + $0x2d0] sm:$0xff]
    %v3188 = vld [vmem:[#allocation13 + $0x2d8] sm:$0xff]
    %v3189 = vld [vmem:[#allocation13 + $0x2e0] sm:$0xff]
    %v3190 = vld [vmem:[#allocation13 + $0x2e8] sm:$0xff]
    %v3191 = vld [vmem:[#allocation13 + $0x2f0] sm:$0xff]
    %v3192 = vld [vmem:[#allocation13 + $0x2f8] sm:$0xff]
    %v3193 = vld [vmem:[#allocation13 + $0x300] sm:$0xff]
    %v3194 = vld [vmem:[#allocation13 + $0x308] sm:$0xff]
    %v3195 = vld [vmem:[#allocation13 + $0x310] sm:$0xff]
    %v3196 = vld [vmem:[#allocation13 + $0x318] sm:$0xff]
    %v3197 = vld [vmem:[#allocation13 + $0x320] sm:$0xff]
    %v3198 = vld [vmem:[#allocation13 + $0x328] sm:$0xff]
    %v3199 = vld [vmem:[#allocation13 + $0x330] sm:$0xff]
    %v3200 = vld [vmem:[#allocation13 + $0x338] sm:$0xff]
    %v3201 = vld [vmem:[#allocation13 + $0x340] sm:$0xff]
    %v3202 = vld [vmem:[#allocation13 + $0x348] sm:$0xff]
    %v3203 = vld [vmem:[#allocation13 + $0x350] sm:$0xff]
    %v3204 = vld [vmem:[#allocation13 + $0x358] sm:$0xff]
    %v3205 = vld [vmem:[#allocation13 + $0x360] sm:$0xff]
    %v3206 = vld [vmem:[#allocation13 + $0x368] sm:$0xff]
    %v3207 = vld [vmem:[#allocation13 + $0x370] sm:$0xff]
    %v3208 = vld [vmem:[#allocation13 + $0x378] sm:$0xff]
    %v3209 = vld [vmem:[#allocation13 + $0x380] sm:$0xff]
    %v3210 = vld [vmem:[#allocation13 + $0x388] sm:$0xff]
    %v3211 = vld [vmem:[#allocation13 + $0x390] sm:$0xff]
    %v3212 = vld [vmem:[#allocation13 + $0x398] sm:$0xff]
    %v3213 = vld [vmem:[#allocation13 + $0x3a0] sm:$0xff]
    %v3214 = vld [vmem:[#allocation13 + $0x3a8] sm:$0xff]
    %v3215 = vld [vmem:[#allocation13 + $0x3b0] sm:$0xff]
    %v3216 = vld [vmem:[#allocation13 + $0x3b8] sm:$0xff]
    %v3217 = vld [vmem:[#allocation13 + $0x3c0] sm:$0xff]
    %v3218 = vld [vmem:[#allocation13 + $0x3c8] sm:$0xff]
    %v3219 = vld [vmem:[#allocation13 + $0x3d0] sm:$0xff]
    %v3220 = vld [vmem:[#allocation13 + $0x3d8] sm:$0xff]
    %v3221 = vld [vmem:[#allocation13 + $0x3e0] sm:$0xff]
    %v3222 = vld [vmem:[#allocation13 + $0x3e8] sm:$0xff]
    %v3223 = vld [vmem:[#allocation13 + $0x3f0] sm:$0xff]
    %v3224 = vld [vmem:[#allocation13 + $0x3f8] sm:$0xff]
    %v3225 = vld [vmem:[#allocation13 + $0x400] sm:$0xff]
    %v3226 = vld [vmem:[#allocation13 + $0x408] sm:$0xff]
    %v3227 = vld [vmem:[#allocation13 + $0x410] sm:$0xff]
    %v3228 = vld [vmem:[#allocation13 + $0x418] sm:$0xff]
    %v3229 = vld [vmem:[#allocation13 + $0x420] sm:$0xff]
    %v3230 = vld [vmem:[#allocation13 + $0x428] sm:$0xff]
    %v3231 = vld [vmem:[#allocation13 + $0x430] sm:$0xff]
    %v3232 = vld [vmem:[#allocation13 + $0x438] sm:$0xff]
    %v3233 = vld [vmem:[#allocation13 + $0x440] sm:$0xff]
    %v3234 = vld [vmem:[#allocation13 + $0x448] sm:$0xff]
    %v3235 = vld [vmem:[#allocation13 + $0x450] sm:$0xff]
    %v3236 = vld [vmem:[#allocation13 + $0x458] sm:$0xff]
    %v3237 = vld [vmem:[#allocation13 + $0x460] sm:$0xff]
    %v3238 = vld [vmem:[#allocation13 + $0x468] sm:$0xff]
    %v3239 = vld [vmem:[#allocation13 + $0x470] sm:$0xff]
    %v3240 = vld [vmem:[#allocation13 + $0x478] sm:$0xff]
    %v3241 = vld [vmem:[#allocation13 + $0x480] sm:$0xff]
    %v3242 = vld [vmem:[#allocation13 + $0x488] sm:$0xff]
    %v3243 = vld [vmem:[#allocation13 + $0x490] sm:$0xff]
    %v3244 = vld [vmem:[#allocation13 + $0x498] sm:$0xff]
    %v3245 = vld [vmem:[#allocation13 + $0x4a0] sm:$0xff]
    %v3246 = vld [vmem:[#allocation13 + $0x4a8] sm:$0xff]
    %v3247 = vld [vmem:[#allocation13 + $0x4b0] sm:$0xff]
    %v3248 = vld [vmem:[#allocation13 + $0x4b8] sm:$0xff]
    %v3249 = vld [vmem:[#allocation13 + $0x4c0] sm:$0xff]
    %v3250 = vld [vmem:[#allocation13 + $0x4c8] sm:$0xff]
    %v3251 = vld [vmem:[#allocation13 + $0x4d0] sm:$0xff]
    %v3252 = vld [vmem:[#allocation13 + $0x4d8] sm:$0xff]
    %v3253 = vld [vmem:[#allocation13 + $0x4e0] sm:$0xff]
    %v3254 = vld [vmem:[#allocation13 + $0x4e8] sm:$0xff]
    %v3255 = vld [vmem:[#allocation13 + $0x4f0] sm:$0xff]
    %v3256 = vld [vmem:[#allocation13 + $0x4f8] sm:$0xff]
    %v3257 = vld [vmem:[#allocation13 + $0x500] sm:$0xff]
    %v3258 = vld [vmem:[#allocation13 + $0x508] sm:$0xff]
    %v3259 = vld [vmem:[#allocation13 + $0x510] sm:$0xff]
    %v3260 = vld [vmem:[#allocation13 + $0x518] sm:$0xff]
    %v3261 = vld [vmem:[#allocation13 + $0x520] sm:$0xff]
    %v3262 = vld [vmem:[#allocation13 + $0x528] sm:$0xff]
    %v3263 = vld [vmem:[#allocation13 + $0x530] sm:$0xff]
    %v3264 = vld [vmem:[#allocation13 + $0x538] sm:$0xff]
    %v3265 = vld [vmem:[#allocation13 + $0x540] sm:$0xff]
    %v3266 = vld [vmem:[#allocation13 + $0x548] sm:$0xff]
    %v3267 = vld [vmem:[#allocation13 + $0x550] sm:$0xff]
    %v3268 = vld [vmem:[#allocation13 + $0x558] sm:$0xff]
    %v3269 = vld [vmem:[#allocation13 + $0x560] sm:$0xff]
    %v3270 = vld [vmem:[#allocation13 + $0x568] sm:$0xff]
    %v3271 = vld [vmem:[#allocation13 + $0x570] sm:$0xff]
    %v3272 = vld [vmem:[#allocation13 + $0x578] sm:$0xff]
    %v3273 = vld [vmem:[#allocation13 + $0x580] sm:$0xff]
    %v3274 = vld [vmem:[#allocation13 + $0x588] sm:$0xff]
    %v3275 = vld [vmem:[#allocation13 + $0x590] sm:$0xff]
    %v3276 = vld [vmem:[#allocation13 + $0x598] sm:$0xff]
    %v3277 = vld [vmem:[#allocation13 + $0x5a0] sm:$0xff]
    %v3278 = vld [vmem:[#allocation13 + $0x5a8] sm:$0xff]
    %v3279 = vld [vmem:[#allocation13 + $0x5b0] sm:$0xff]
    %v3280 = vld [vmem:[#allocation13 + $0x5b8] sm:$0xff]
    %v3281 = vld [vmem:[#allocation13 + $0x5c0] sm:$0xff]
    %v3282 = vld [vmem:[#allocation13 + $0x5c8] sm:$0xff]
    %v3283 = vld [vmem:[#allocation13 + $0x5d0] sm:$0xff]
    %v3284 = vld [vmem:[#allocation13 + $0x5d8] sm:$0xff]
    %v3285 = vld [vmem:[#allocation13 + $0x5e0] sm:$0xff]
    %v3286 = vld [vmem:[#allocation13 + $0x5e8] sm:$0xff]
    %v3287 = vld [vmem:[#allocation13 + $0x5f0] sm:$0xff]
    %v3288 = vld [vmem:[#allocation13 + $0x5f8] sm:$0xff]
    %v3289 = vld [vmem:[#allocation13 + $0x600] sm:$0xff]
    %v3290 = vld [vmem:[#allocation13 + $0x608] sm:$0xff]
    %v3291 = vld [vmem:[#allocation13 + $0x610] sm:$0xff]
    %v3292 = vld [vmem:[#allocation13 + $0x618] sm:$0xff]
    %v3293 = vld [vmem:[#allocation13 + $0x620] sm:$0xff]
    %v3294 = vld [vmem:[#allocation13 + $0x628] sm:$0xff]
    %v3295 = vld [vmem:[#allocation13 + $0x630] sm:$0xff]
    %v3296 = vld [vmem:[#allocation13 + $0x638] sm:$0xff]
    %v3297 = vld [vmem:[#allocation13 + $0x640] sm:$0xff]
    %v3298 = vld [vmem:[#allocation13 + $0x648] sm:$0xff]
    %v3299 = vld [vmem:[#allocation13 + $0x650] sm:$0xff]
    %v3300 = vld [vmem:[#allocation13 + $0x658] sm:$0xff]
    %v3301 = vld [vmem:[#allocation13 + $0x660] sm:$0xff]
    %v3302 = vld [vmem:[#allocation13 + $0x668] sm:$0xff]
    %v3303 = vld [vmem:[#allocation13 + $0x670] sm:$0xff]
    %v3304 = vld [vmem:[#allocation13 + $0x678] sm:$0xff]
    %v3305 = vld [vmem:[#allocation13 + $0x680] sm:$0xff]
    %v3306 = vld [vmem:[#allocation13 + $0x688] sm:$0xff]
    %v3307 = vld [vmem:[#allocation13 + $0x690] sm:$0xff]
    %v3308 = vld [vmem:[#allocation13 + $0x698] sm:$0xff]
    %v3309 = vld [vmem:[#allocation13 + $0x6a0] sm:$0xff]
    %v3310 = vld [vmem:[#allocation13 + $0x6a8] sm:$0xff]
    %v3311 = vld [vmem:[#allocation13 + $0x6b0] sm:$0xff]
    %v3312 = vld [vmem:[#allocation13 + $0x6b8] sm:$0xff]
    %v3313 = vld [vmem:[#allocation13 + $0x6c0] sm:$0xff]
    %v3314 = vld [vmem:[#allocation13 + $0x6c8] sm:$0xff]
    %v3315 = vld [vmem:[#allocation13 + $0x6d0] sm:$0xff]
    %v3316 = vld [vmem:[#allocation13 + $0x6d8] sm:$0xff]
    %v3317 = vld [vmem:[#allocation13 + $0x6e0] sm:$0xff]
    %v3318 = vld [vmem:[#allocation13 + $0x6e8] sm:$0xff]
    %v3319 = vld [vmem:[#allocation13 + $0x6f0] sm:$0xff]
    %v3320 = vld [vmem:[#allocation13 + $0x6f8] sm:$0xff]
    %v3321 = vld [vmem:[#allocation13 + $0x700] sm:$0xff]
    %v3322 = vld [vmem:[#allocation13 + $0x708] sm:$0xff]
    %v3323 = vld [vmem:[#allocation13 + $0x710] sm:$0xff]
    %v3324 = vld [vmem:[#allocation13 + $0x718] sm:$0xff]
    %v3325 = vld [vmem:[#allocation13 + $0x720] sm:$0xff]
    %v3326 = vld [vmem:[#allocation13 + $0x728] sm:$0xff]
    %v3327 = vld [vmem:[#allocation13 + $0x730] sm:$0xff]
    %v3328 = vld [vmem:[#allocation13 + $0x738] sm:$0xff]
    %v3329 = vld [vmem:[#allocation13 + $0x740] sm:$0xff]
    %v3330 = vld [vmem:[#allocation13 + $0x748] sm:$0xff]
    %v3331 = vld [vmem:[#allocation13 + $0x750] sm:$0xff]
    %v3332 = vld [vmem:[#allocation13 + $0x758] sm:$0xff]
    %v3333 = vld [vmem:[#allocation13 + $0x760] sm:$0xff]
    %v3334 = vld [vmem:[#allocation13 + $0x768] sm:$0xff]
    %v3335 = vld [vmem:[#allocation13 + $0x770] sm:$0xff]
    %v3336 = vld [vmem:[#allocation13 + $0x778] sm:$0xff]
    %v3337 = vld [vmem:[#allocation13 + $0x780] sm:$0xff]
    %v3338 = vld [vmem:[#allocation13 + $0x788] sm:$0xff]
    %v3339 = vld [vmem:[#allocation13 + $0x790] sm:$0xff]
    %v3340 = vld [vmem:[#allocation13 + $0x798] sm:$0xff]
    %v3341 = vld [vmem:[#allocation13 + $0x7a0] sm:$0xff]
    %v3342 = vld [vmem:[#allocation13 + $0x7a8] sm:$0xff]
    %v3343 = vld [vmem:[#allocation13 + $0x7b0] sm:$0xff]
    %v3344 = vld [vmem:[#allocation13 + $0x7b8] sm:$0xff]
    %v3345 = vld [vmem:[#allocation13 + $0x7c0] sm:$0xff]
    %v3346 = vld [vmem:[#allocation13 + $0x7c8] sm:$0xff]
    %v3347 = vld [vmem:[#allocation13 + $0x7d0] sm:$0xff]
    %v3348 = vld [vmem:[#allocation13 + $0x7d8] sm:$0xff]
    %v3349 = vld [vmem:[#allocation13 + $0x7e0] sm:$0xff]
    %v3350 = vld [vmem:[#allocation13 + $0x7e8] sm:$0xff]
    %v3351 = vld [vmem:[#allocation13 + $0x7f0] sm:$0xff]
    %v3352 = vld [vmem:[#allocation13 + $0x7f8] sm:$0xff]
    %v3357 = vrot.slane %v2837, 1
    %v3358 = vrot.slane %v2838, 1
    %v3359 = vrot.slane %v2839, 1
    %v3360 = vrot.slane %v2840, 1
    %v3621 = vunpack.c.l.b16 %v3097
    %v3622 = vunpack.c.h.b16 %v3097
    %v3623 = vunpack.c.l.b16 %v3098
    %v3624 = vunpack.c.h.b16 %v3098
    %v3625 = vunpack.c.l.b16 %v3099
    %v3626 = vunpack.c.h.b16 %v3099
    %v3627 = vunpack.c.l.b16 %v3100
    %v3628 = vunpack.c.h.b16 %v3100
    %v3629 = vunpack.c.l.b16 %v3101
    %v3630 = vunpack.c.h.b16 %v3101
    %v3631 = vunpack.c.l.b16 %v3102
    %v3632 = vunpack.c.h.b16 %v3102
    %v3633 = vunpack.c.l.b16 %v3103
    %v3634 = vunpack.c.h.b16 %v3103
    %v3635 = vunpack.c.l.b16 %v3104
    %v3636 = vunpack.c.h.b16 %v3104
    %v3637 = vunpack.c.l.b16 %v3105
    %v3638 = vunpack.c.h.b16 %v3105
    %v3639 = vunpack.c.l.b16 %v3106
    %v3640 = vunpack.c.h.b16 %v3106
    %v3641 = vunpack.c.l.b16 %v3107
    %v3642 = vunpack.c.h.b16 %v3107
    %v3643 = vunpack.c.l.b16 %v3108
    %v3644 = vunpack.c.h.b16 %v3108
    %v3645 = vunpack.c.l.b16 %v3109
    %v3646 = vunpack.c.h.b16 %v3109
    %v3647 = vunpack.c.l.b16 %v3110
    %v3648 = vunpack.c.h.b16 %v3110
    %v3649 = vunpack.c.l.b16 %v3111
    %v3650 = vunpack.c.h.b16 %v3111
    %v3651 = vunpack.c.l.b16 %v3112
    %v3652 = vunpack.c.h.b16 %v3112
    %v3653 = vunpack.c.l.b16 %v3113
    %v3654 = vunpack.c.h.b16 %v3113
    %v3655 = vunpack.c.l.b16 %v3114
    %v3656 = vunpack.c.h.b16 %v3114
    %v3657 = vunpack.c.l.b16 %v3115
    %v3658 = vunpack.c.h.b16 %v3115
    %v3659 = vunpack.c.l.b16 %v3116
    %v3660 = vunpack.c.h.b16 %v3116
    %v3661 = vunpack.c.l.b16 %v3117
    %v3662 = vunpack.c.h.b16 %v3117
    %v3663 = vunpack.c.l.b16 %v3118
    %v3664 = vunpack.c.h.b16 %v3118
    %v3665 = vunpack.c.l.b16 %v3119
    %v3666 = vunpack.c.h.b16 %v3119
    %v3667 = vunpack.c.l.b16 %v3120
    %v3668 = vunpack.c.h.b16 %v3120
    %v3669 = vunpack.c.l.b16 %v3121
    %v3670 = vunpack.c.h.b16 %v3121
    %v3671 = vunpack.c.l.b16 %v3122
    %v3672 = vunpack.c.h.b16 %v3122
    %v3673 = vunpack.c.l.b16 %v3123
    %v3674 = vunpack.c.h.b16 %v3123
    %v3675 = vunpack.c.l.b16 %v3124
    %v3676 = vunpack.c.h.b16 %v3124
    %v3677 = vunpack.c.l.b16 %v3125
    %v3678 = vunpack.c.h.b16 %v3125
    %v3679 = vunpack.c.l.b16 %v3126
    %v3680 = vunpack.c.h.b16 %v3126
    %v3681 = vunpack.c.l.b16 %v3127
    %v3682 = vunpack.c.h.b16 %v3127
    %v3683 = vunpack.c.l.b16 %v3128
    %v3684 = vunpack.c.h.b16 %v3128
    %v3685 = vunpack.c.l.b16 %v3129
    %v3686 = vunpack.c.h.b16 %v3129
    %v3687 = vunpack.c.l.b16 %v3130
    %v3688 = vunpack.c.h.b16 %v3130
    %v3689 = vunpack.c.l.b16 %v3131
    %v3690 = vunpack.c.h.b16 %v3131
    %v3691 = vunpack.c.l.b16 %v3132
    %v3692 = vunpack.c.h.b16 %v3132
    %v3693 = vunpack.c.l.b16 %v3133
    %v3694 = vunpack.c.h.b16 %v3133
    %v3695 = vunpack.c.l.b16 %v3134
    %v3696 = vunpack.c.h.b16 %v3134
    %v3697 = vunpack.c.l.b16 %v3135
    %v3698 = vunpack.c.h.b16 %v3135
    %v3699 = vunpack.c.l.b16 %v3136
    %v3700 = vunpack.c.h.b16 %v3136
    %v3701 = vunpack.c.l.b16 %v3137
    %v3702 = vunpack.c.h.b16 %v3137
    %v3703 = vunpack.c.l.b16 %v3138
    %v3704 = vunpack.c.h.b16 %v3138
    %v3705 = vunpack.c.l.b16 %v3139
    %v3706 = vunpack.c.h.b16 %v3139
    %v3707 = vunpack.c.l.b16 %v3140
    %v3708 = vunpack.c.h.b16 %v3140
    %v3709 = vunpack.c.l.b16 %v3141
    %v3710 = vunpack.c.h.b16 %v3141
    %v3711 = vunpack.c.l.b16 %v3142
    %v3712 = vunpack.c.h.b16 %v3142
    %v3713 = vunpack.c.l.b16 %v3143
    %v3714 = vunpack.c.h.b16 %v3143
    %v3715 = vunpack.c.l.b16 %v3144
    %v3716 = vunpack.c.h.b16 %v3144
    %v3717 = vunpack.c.l.b16 %v3145
    %v3718 = vunpack.c.h.b16 %v3145
    %v3719 = vunpack.c.l.b16 %v3146
    %v3720 = vunpack.c.h.b16 %v3146
    %v3721 = vunpack.c.l.b16 %v3147
    %v3722 = vunpack.c.h.b16 %v3147
    %v3723 = vunpack.c.l.b16 %v3148
    %v3724 = vunpack.c.h.b16 %v3148
    %v3725 = vunpack.c.l.b16 %v3149
    %v3726 = vunpack.c.h.b16 %v3149
    %v3727 = vunpack.c.l.b16 %v3150
    %v3728 = vunpack.c.h.b16 %v3150
    %v3729 = vunpack.c.l.b16 %v3151
    %v3730 = vunpack.c.h.b16 %v3151
    %v3731 = vunpack.c.l.b16 %v3152
    %v3732 = vunpack.c.h.b16 %v3152
    %v3733 = vunpack.c.l.b16 %v3153
    %v3734 = vunpack.c.h.b16 %v3153
    %v3735 = vunpack.c.l.b16 %v3154
    %v3736 = vunpack.c.h.b16 %v3154
    %v3737 = vunpack.c.l.b16 %v3155
    %v3738 = vunpack.c.h.b16 %v3155
    %v3739 = vunpack.c.l.b16 %v3156
    %v3740 = vunpack.c.h.b16 %v3156
    %v3741 = vunpack.c.l.b16 %v3157
    %v3742 = vunpack.c.h.b16 %v3157
    %v3743 = vunpack.c.l.b16 %v3158
    %v3744 = vunpack.c.h.b16 %v3158
    %v3745 = vunpack.c.l.b16 %v3159
    %v3746 = vunpack.c.h.b16 %v3159
    %v3747 = vunpack.c.l.b16 %v3160
    %v3748 = vunpack.c.h.b16 %v3160
    %v3749 = vunpack.c.l.b16 %v3161
    %v3750 = vunpack.c.h.b16 %v3161
    %v3751 = vunpack.c.l.b16 %v3162
    %v3752 = vunpack.c.h.b16 %v3162
    %v3753 = vunpack.c.l.b16 %v3163
    %v3754 = vunpack.c.h.b16 %v3163
    %v3755 = vunpack.c.l.b16 %v3164
    %v3756 = vunpack.c.h.b16 %v3164
    %v3757 = vunpack.c.l.b16 %v3165
    %v3758 = vunpack.c.h.b16 %v3165
    %v3759 = vunpack.c.l.b16 %v3166
    %v3760 = vunpack.c.h.b16 %v3166
    %v3761 = vunpack.c.l.b16 %v3167
    %v3762 = vunpack.c.h.b16 %v3167
    %v3763 = vunpack.c.l.b16 %v3168
    %v3764 = vunpack.c.h.b16 %v3168
    %v3765 = vunpack.c.l.b16 %v3169
    %v3766 = vunpack.c.h.b16 %v3169
    %v3767 = vunpack.c.l.b16 %v3170
    %v3768 = vunpack.c.h.b16 %v3170
    %v3769 = vunpack.c.l.b16 %v3171
    %v3770 = vunpack.c.h.b16 %v3171
    %v3771 = vunpack.c.l.b16 %v3172
    %v3772 = vunpack.c.h.b16 %v3172
    %v3773 = vunpack.c.l.b16 %v3173
    %v3774 = vunpack.c.h.b16 %v3173
    %v3775 = vunpack.c.l.b16 %v3174
    %v3776 = vunpack.c.h.b16 %v3174
    %v3777 = vunpack.c.l.b16 %v3175
    %v3778 = vunpack.c.h.b16 %v3175
    %v3779 = vunpack.c.l.b16 %v3176
    %v3780 = vunpack.c.h.b16 %v3176
    %v3781 = vunpack.c.l.b16 %v3177
    %v3782 = vunpack.c.h.b16 %v3177
    %v3783 = vunpack.c.l.b16 %v3178
    %v3784 = vunpack.c.h.b16 %v3178
    %v3785 = vunpack.c.l.b16 %v3179
    %v3786 = vunpack.c.h.b16 %v3179
    %v3787 = vunpack.c.l.b16 %v3180
    %v3788 = vunpack.c.h.b16 %v3180
    %v3789 = vunpack.c.l.b16 %v3181
    %v3790 = vunpack.c.h.b16 %v3181
    %v3791 = vunpack.c.l.b16 %v3182
    %v3792 = vunpack.c.h.b16 %v3182
    %v3793 = vunpack.c.l.b16 %v3183
    %v3794 = vunpack.c.h.b16 %v3183
    %v3795 = vunpack.c.l.b16 %v3184
    %v3796 = vunpack.c.h.b16 %v3184
    %v3797 = vunpack.c.l.b16 %v3185
    %v3798 = vunpack.c.h.b16 %v3185
    %v3799 = vunpack.c.l.b16 %v3186
    %v3800 = vunpack.c.h.b16 %v3186
    %v3801 = vunpack.c.l.b16 %v3187
    %v3802 = vunpack.c.h.b16 %v3187
    %v3803 = vunpack.c.l.b16 %v3188
    %v3804 = vunpack.c.h.b16 %v3188
    %v3805 = vunpack.c.l.b16 %v3189
    %v3806 = vunpack.c.h.b16 %v3189
    %v3807 = vunpack.c.l.b16 %v3190
    %v3808 = vunpack.c.h.b16 %v3190
    %v3809 = vunpack.c.l.b16 %v3191
    %v3810 = vunpack.c.h.b16 %v3191
    %v3811 = vunpack.c.l.b16 %v3192
    %v3812 = vunpack.c.h.b16 %v3192
    %v3813 = vunpack.c.l.b16 %v3193
    %v3814 = vunpack.c.h.b16 %v3193
    %v3815 = vunpack.c.l.b16 %v3194
    %v3816 = vunpack.c.h.b16 %v3194
    %v3817 = vunpack.c.l.b16 %v3195
    %v3818 = vunpack.c.h.b16 %v3195
    %v3819 = vunpack.c.l.b16 %v3196
    %v3820 = vunpack.c.h.b16 %v3196
    %v3821 = vunpack.c.l.b16 %v3197
    %v3822 = vunpack.c.h.b16 %v3197
    %v3823 = vunpack.c.l.b16 %v3198
    %v3824 = vunpack.c.h.b16 %v3198
    %v3825 = vunpack.c.l.b16 %v3199
    %v3826 = vunpack.c.h.b16 %v3199
    %v3827 = vunpack.c.l.b16 %v3200
    %v3828 = vunpack.c.h.b16 %v3200
    %v3829 = vunpack.c.l.b16 %v3201
    %v3830 = vunpack.c.h.b16 %v3201
    %v3831 = vunpack.c.l.b16 %v3202
    %v3832 = vunpack.c.h.b16 %v3202
    %v3833 = vunpack.c.l.b16 %v3203
    %v3834 = vunpack.c.h.b16 %v3203
    %v3835 = vunpack.c.l.b16 %v3204
    %v3836 = vunpack.c.h.b16 %v3204
    %v3837 = vunpack.c.l.b16 %v3205
    %v3838 = vunpack.c.h.b16 %v3205
    %v3839 = vunpack.c.l.b16 %v3206
    %v3840 = vunpack.c.h.b16 %v3206
    %v3841 = vunpack.c.l.b16 %v3207
    %v3842 = vunpack.c.h.b16 %v3207
    %v3843 = vunpack.c.l.b16 %v3208
    %v3844 = vunpack.c.h.b16 %v3208
    %v3845 = vunpack.c.l.b16 %v3209
    %v3846 = vunpack.c.h.b16 %v3209
    %v3847 = vunpack.c.l.b16 %v3210
    %v3848 = vunpack.c.h.b16 %v3210
    %v3849 = vunpack.c.l.b16 %v3211
    %v3850 = vunpack.c.h.b16 %v3211
    %v3851 = vunpack.c.l.b16 %v3212
    %v3852 = vunpack.c.h.b16 %v3212
    %v3853 = vunpack.c.l.b16 %v3213
    %v3854 = vunpack.c.h.b16 %v3213
    %v3855 = vunpack.c.l.b16 %v3214
    %v3856 = vunpack.c.h.b16 %v3214
    %v3857 = vunpack.c.l.b16 %v3215
    %v3858 = vunpack.c.h.b16 %v3215
    %v3859 = vunpack.c.l.b16 %v3216
    %v3860 = vunpack.c.h.b16 %v3216
    %v3861 = vunpack.c.l.b16 %v3217
    %v3862 = vunpack.c.h.b16 %v3217
    %v3863 = vunpack.c.l.b16 %v3218
    %v3864 = vunpack.c.h.b16 %v3218
    %v3865 = vunpack.c.l.b16 %v3219
    %v3866 = vunpack.c.h.b16 %v3219
    %v3867 = vunpack.c.l.b16 %v3220
    %v3868 = vunpack.c.h.b16 %v3220
    %v3869 = vunpack.c.l.b16 %v3221
    %v3870 = vunpack.c.h.b16 %v3221
    %v3871 = vunpack.c.l.b16 %v3222
    %v3872 = vunpack.c.h.b16 %v3222
    %v3873 = vunpack.c.l.b16 %v3223
    %v3874 = vunpack.c.h.b16 %v3223
    %v3875 = vunpack.c.l.b16 %v3224
    %v3876 = vunpack.c.h.b16 %v3224
    %v3877 = vunpack.c.l.b16 %v3225
    %v3878 = vunpack.c.h.b16 %v3225
    %v3879 = vunpack.c.l.b16 %v3226
    %v3880 = vunpack.c.h.b16 %v3226
    %v3881 = vunpack.c.l.b16 %v3227
    %v3882 = vunpack.c.h.b16 %v3227
    %v3883 = vunpack.c.l.b16 %v3228
    %v3884 = vunpack.c.h.b16 %v3228
    %v3885 = vunpack.c.l.b16 %v3229
    %v3886 = vunpack.c.h.b16 %v3229
    %v3887 = vunpack.c.l.b16 %v3230
    %v3888 = vunpack.c.h.b16 %v3230
    %v3889 = vunpack.c.l.b16 %v3231
    %v3890 = vunpack.c.h.b16 %v3231
    %v3891 = vunpack.c.l.b16 %v3232
    %v3892 = vunpack.c.h.b16 %v3232
    %v3893 = vunpack.c.l.b16 %v3233
    %v3894 = vunpack.c.h.b16 %v3233
    %v3895 = vunpack.c.l.b16 %v3234
    %v3896 = vunpack.c.h.b16 %v3234
    %v3897 = vunpack.c.l.b16 %v3235
    %v3898 = vunpack.c.h.b16 %v3235
    %v3899 = vunpack.c.l.b16 %v3236
    %v3900 = vunpack.c.h.b16 %v3236
    %v3901 = vunpack.c.l.b16 %v3237
    %v3902 = vunpack.c.h.b16 %v3237
    %v3903 = vunpack.c.l.b16 %v3238
    %v3904 = vunpack.c.h.b16 %v3238
    %v3905 = vunpack.c.l.b16 %v3239
    %v3906 = vunpack.c.h.b16 %v3239
    %v3907 = vunpack.c.l.b16 %v3240
    %v3908 = vunpack.c.h.b16 %v3240
    %v3909 = vunpack.c.l.b16 %v3241
    %v3910 = vunpack.c.h.b16 %v3241
    %v3911 = vunpack.c.l.b16 %v3242
    %v3912 = vunpack.c.h.b16 %v3242
    %v3913 = vunpack.c.l.b16 %v3243
    %v3914 = vunpack.c.h.b16 %v3243
    %v3915 = vunpack.c.l.b16 %v3244
    %v3916 = vunpack.c.h.b16 %v3244
    %v3917 = vunpack.c.l.b16 %v3245
    %v3918 = vunpack.c.h.b16 %v3245
    %v3919 = vunpack.c.l.b16 %v3246
    %v3920 = vunpack.c.h.b16 %v3246
    %v3921 = vunpack.c.l.b16 %v3247
    %v3922 = vunpack.c.h.b16 %v3247
    %v3923 = vunpack.c.l.b16 %v3248
    %v3924 = vunpack.c.h.b16 %v3248
    %v3925 = vunpack.c.l.b16 %v3249
    %v3926 = vunpack.c.h.b16 %v3249
    %v3927 = vunpack.c.l.b16 %v3250
    %v3928 = vunpack.c.h.b16 %v3250
    %v3929 = vunpack.c.l.b16 %v3251
    %v3930 = vunpack.c.h.b16 %v3251
    %v3931 = vunpack.c.l.b16 %v3252
    %v3932 = vunpack.c.h.b16 %v3252
    %v3933 = vunpack.c.l.b16 %v3253
    %v3934 = vunpack.c.h.b16 %v3253
    %v3935 = vunpack.c.l.b16 %v3254
    %v3936 = vunpack.c.h.b16 %v3254
    %v3937 = vunpack.c.l.b16 %v3255
    %v3938 = vunpack.c.h.b16 %v3255
    %v3939 = vunpack.c.l.b16 %v3256
    %v3940 = vunpack.c.h.b16 %v3256
    %v3941 = vunpack.c.l.b16 %v3257
    %v3942 = vunpack.c.h.b16 %v3257
    %v3943 = vunpack.c.l.b16 %v3258
    %v3944 = vunpack.c.h.b16 %v3258
    %v3945 = vunpack.c.l.b16 %v3259
    %v3946 = vunpack.c.h.b16 %v3259
    %v3947 = vunpack.c.l.b16 %v3260
    %v3948 = vunpack.c.h.b16 %v3260
    %v3949 = vunpack.c.l.b16 %v3261
    %v3950 = vunpack.c.h.b16 %v3261
    %v3951 = vunpack.c.l.b16 %v3262
    %v3952 = vunpack.c.h.b16 %v3262
    %v3953 = vunpack.c.l.b16 %v3263
    %v3954 = vunpack.c.h.b16 %v3263
    %v3955 = vunpack.c.l.b16 %v3264
    %v3956 = vunpack.c.h.b16 %v3264
    %v3957 = vunpack.c.l.b16 %v3265
    %v3958 = vunpack.c.h.b16 %v3265
    %v3959 = vunpack.c.l.b16 %v3266
    %v3960 = vunpack.c.h.b16 %v3266
    %v3961 = vunpack.c.l.b16 %v3267
    %v3962 = vunpack.c.h.b16 %v3267
    %v3963 = vunpack.c.l.b16 %v3268
    %v3964 = vunpack.c.h.b16 %v3268
    %v3965 = vunpack.c.l.b16 %v3269
    %v3966 = vunpack.c.h.b16 %v3269
    %v3967 = vunpack.c.l.b16 %v3270
    %v3968 = vunpack.c.h.b16 %v3270
    %v3969 = vunpack.c.l.b16 %v3271
    %v3970 = vunpack.c.h.b16 %v3271
    %v3971 = vunpack.c.l.b16 %v3272
    %v3972 = vunpack.c.h.b16 %v3272
    %v3973 = vunpack.c.l.b16 %v3273
    %v3974 = vunpack.c.h.b16 %v3273
    %v3975 = vunpack.c.l.b16 %v3274
    %v3976 = vunpack.c.h.b16 %v3274
    %v3977 = vunpack.c.l.b16 %v3275
    %v3978 = vunpack.c.h.b16 %v3275
    %v3979 = vunpack.c.l.b16 %v3276
    %v3980 = vunpack.c.h.b16 %v3276
    %v3981 = vunpack.c.l.b16 %v3277
    %v3982 = vunpack.c.h.b16 %v3277
    %v3983 = vunpack.c.l.b16 %v3278
    %v3984 = vunpack.c.h.b16 %v3278
    %v3985 = vunpack.c.l.b16 %v3279
    %v3986 = vunpack.c.h.b16 %v3279
    %v3987 = vunpack.c.l.b16 %v3280
    %v3988 = vunpack.c.h.b16 %v3280
    %v3989 = vunpack.c.l.b16 %v3281
    %v3990 = vunpack.c.h.b16 %v3281
    %v3991 = vunpack.c.l.b16 %v3282
    %v3992 = vunpack.c.h.b16 %v3282
    %v3993 = vunpack.c.l.b16 %v3283
    %v3994 = vunpack.c.h.b16 %v3283
    %v3995 = vunpack.c.l.b16 %v3284
    %v3996 = vunpack.c.h.b16 %v3284
    %v3997 = vunpack.c.l.b16 %v3285
    %v3998 = vunpack.c.h.b16 %v3285
    %v3999 = vunpack.c.l.b16 %v3286
    %v4000 = vunpack.c.h.b16 %v3286
    %v4001 = vunpack.c.l.b16 %v3287
    %v4002 = vunpack.c.h.b16 %v3287
    %v4003 = vunpack.c.l.b16 %v3288
    %v4004 = vunpack.c.h.b16 %v3288
    %v4005 = vunpack.c.l.b16 %v3289
    %v4006 = vunpack.c.h.b16 %v3289
    %v4007 = vunpack.c.l.b16 %v3290
    %v4008 = vunpack.c.h.b16 %v3290
    %v4009 = vunpack.c.l.b16 %v3291
    %v4010 = vunpack.c.h.b16 %v3291
    %v4011 = vunpack.c.l.b16 %v3292
    %v4012 = vunpack.c.h.b16 %v3292
    %v4013 = vunpack.c.l.b16 %v3293
    %v4014 = vunpack.c.h.b16 %v3293
    %v4015 = vunpack.c.l.b16 %v3294
    %v4016 = vunpack.c.h.b16 %v3294
    %v4017 = vunpack.c.l.b16 %v3295
    %v4018 = vunpack.c.h.b16 %v3295
    %v4019 = vunpack.c.l.b16 %v3296
    %v4020 = vunpack.c.h.b16 %v3296
    %v4021 = vunpack.c.l.b16 %v3297
    %v4022 = vunpack.c.h.b16 %v3297
    %v4023 = vunpack.c.l.b16 %v3298
    %v4024 = vunpack.c.h.b16 %v3298
    %v4025 = vunpack.c.l.b16 %v3299
    %v4026 = vunpack.c.h.b16 %v3299
    %v4027 = vunpack.c.l.b16 %v3300
    %v4028 = vunpack.c.h.b16 %v3300
    %v4029 = vunpack.c.l.b16 %v3301
    %v4030 = vunpack.c.h.b16 %v3301
    %v4031 = vunpack.c.l.b16 %v3302
    %v4032 = vunpack.c.h.b16 %v3302
    %v4033 = vunpack.c.l.b16 %v3303
    %v4034 = vunpack.c.h.b16 %v3303
    %v4035 = vunpack.c.l.b16 %v3304
    %v4036 = vunpack.c.h.b16 %v3304
    %v4037 = vunpack.c.l.b16 %v3305
    %v4038 = vunpack.c.h.b16 %v3305
    %v4039 = vunpack.c.l.b16 %v3306
    %v4040 = vunpack.c.h.b16 %v3306
    %v4041 = vunpack.c.l.b16 %v3307
    %v4042 = vunpack.c.h.b16 %v3307
    %v4043 = vunpack.c.l.b16 %v3308
    %v4044 = vunpack.c.h.b16 %v3308
    %v4045 = vunpack.c.l.b16 %v3309
    %v4046 = vunpack.c.h.b16 %v3309
    %v4047 = vunpack.c.l.b16 %v3310
    %v4048 = vunpack.c.h.b16 %v3310
    %v4049 = vunpack.c.l.b16 %v3311
    %v4050 = vunpack.c.h.b16 %v3311
    %v4051 = vunpack.c.l.b16 %v3312
    %v4052 = vunpack.c.h.b16 %v3312
    %v4053 = vunpack.c.l.b16 %v3313
    %v4054 = vunpack.c.h.b16 %v3313
    %v4055 = vunpack.c.l.b16 %v3314
    %v4056 = vunpack.c.h.b16 %v3314
    %v4057 = vunpack.c.l.b16 %v3315
    %v4058 = vunpack.c.h.b16 %v3315
    %v4059 = vunpack.c.l.b16 %v3316
    %v4060 = vunpack.c.h.b16 %v3316
    %v4061 = vunpack.c.l.b16 %v3317
    %v4062 = vunpack.c.h.b16 %v3317
    %v4063 = vunpack.c.l.b16 %v3318
    %v4064 = vunpack.c.h.b16 %v3318
    %v4065 = vunpack.c.l.b16 %v3319
    %v4066 = vunpack.c.h.b16 %v3319
    %v4067 = vunpack.c.l.b16 %v3320
    %v4068 = vunpack.c.h.b16 %v3320
    %v4069 = vunpack.c.l.b16 %v3321
    %v4070 = vunpack.c.h.b16 %v3321
    %v4071 = vunpack.c.l.b16 %v3322
    %v4072 = vunpack.c.h.b16 %v3322
    %v4073 = vunpack.c.l.b16 %v3323
    %v4074 = vunpack.c.h.b16 %v3323
    %v4075 = vunpack.c.l.b16 %v3324
    %v4076 = vunpack.c.h.b16 %v3324
    %v4077 = vunpack.c.l.b16 %v3325
    %v4078 = vunpack.c.h.b16 %v3325
    %v4079 = vunpack.c.l.b16 %v3326
    %v4080 = vunpack.c.h.b16 %v3326
    %v4081 = vunpack.c.l.b16 %v3327
    %v4082 = vunpack.c.h.b16 %v3327
    %v4083 = vunpack.c.l.b16 %v3328
    %v4084 = vunpack.c.h.b16 %v3328
    %v4085 = vunpack.c.l.b16 %v3329
    %v4086 = vunpack.c.h.b16 %v3329
    %v4087 = vunpack.c.l.b16 %v3330
    %v4088 = vunpack.c.h.b16 %v3330
    %v4089 = vunpack.c.l.b16 %v3331
    %v4090 = vunpack.c.h.b16 %v3331
    %v4091 = vunpack.c.l.b16 %v3332
    %v4092 = vunpack.c.h.b16 %v3332
    %v4093 = vunpack.c.l.b16 %v3333
    %v4094 = vunpack.c.h.b16 %v3333
    %v4095 = vunpack.c.l.b16 %v3334
    %v4096 = vunpack.c.h.b16 %v3334
    %v4097 = vunpack.c.l.b16 %v3335
    %v4098 = vunpack.c.h.b16 %v3335
    %v4099 = vunpack.c.l.b16 %v3336
    %v4100 = vunpack.c.h.b16 %v3336
    %v4101 = vunpack.c.l.b16 %v3337
    %v4102 = vunpack.c.h.b16 %v3337
    %v4103 = vunpack.c.l.b16 %v3338
    %v4104 = vunpack.c.h.b16 %v3338
    %v4105 = vunpack.c.l.b16 %v3339
    %v4106 = vunpack.c.h.b16 %v3339
    %v4107 = vunpack.c.l.b16 %v3340
    %v4108 = vunpack.c.h.b16 %v3340
    %v4109 = vunpack.c.l.b16 %v3341
    %v4110 = vunpack.c.h.b16 %v3341
    %v4111 = vunpack.c.l.b16 %v3342
    %v4112 = vunpack.c.h.b16 %v3342
    %v4113 = vunpack.c.l.b16 %v3343
    %v4114 = vunpack.c.h.b16 %v3343
    %v4115 = vunpack.c.l.b16 %v3344
    %v4116 = vunpack.c.h.b16 %v3344
    %v4117 = vunpack.c.l.b16 %v3345
    %v4118 = vunpack.c.h.b16 %v3345
    %v4119 = vunpack.c.l.b16 %v3346
    %v4120 = vunpack.c.h.b16 %v3346
    %v4121 = vunpack.c.l.b16 %v3347
    %v4122 = vunpack.c.h.b16 %v3347
    %v4123 = vunpack.c.l.b16 %v3348
    %v4124 = vunpack.c.h.b16 %v3348
    %v4125 = vunpack.c.l.b16 %v3349
    %v4126 = vunpack.c.h.b16 %v3349
    %v4127 = vunpack.c.l.b16 %v3350
    %v4128 = vunpack.c.h.b16 %v3350
    %v4129 = vunpack.c.l.b16 %v3351
    %v4130 = vunpack.c.h.b16 %v3351
    %v4131 = vunpack.c.l.b16 %v3352
    %v4132 = vunpack.c.h.b16 %v3352
    %v4133 = vpack.c.b16 %v3629, %v3621
    %v4134 = vpack.c.b16 %v3630, %v3622
    %v4135 = vpack.c.b16 %v3631, %v3623
    %v4136 = vpack.c.b16 %v3632, %v3624
    %v4137 = vpack.c.b16 %v3633, %v3625
    %v4138 = vpack.c.b16 %v3634, %v3626
    %v4139 = vpack.c.b16 %v3635, %v3627
    %v4140 = vpack.c.b16 %v3636, %v3628
    %v4141 = vpack.c.b16 %v3645, %v3637
    %v4142 = vpack.c.b16 %v3646, %v3638
    %v4143 = vpack.c.b16 %v3647, %v3639
    %v4144 = vpack.c.b16 %v3648, %v3640
    %v4145 = vpack.c.b16 %v3649, %v3641
    %v4146 = vpack.c.b16 %v3650, %v3642
    %v4147 = vpack.c.b16 %v3651, %v3643
    %v4148 = vpack.c.b16 %v3652, %v3644
    %v4149 = vpack.c.b16 %v3661, %v3653
    %v4150 = vpack.c.b16 %v3662, %v3654
    %v4151 = vpack.c.b16 %v3663, %v3655
    %v4152 = vpack.c.b16 %v3664, %v3656
    %v4153 = vpack.c.b16 %v3665, %v3657
    %v4154 = vpack.c.b16 %v3666, %v3658
    %v4155 = vpack.c.b16 %v3667, %v3659
    %v4156 = vpack.c.b16 %v3668, %v3660
    %v4157 = vpack.c.b16 %v3677, %v3669
    %v4158 = vpack.c.b16 %v3678, %v3670
    %v4159 = vpack.c.b16 %v3679, %v3671
    %v4160 = vpack.c.b16 %v3680, %v3672
    %v4161 = vpack.c.b16 %v3681, %v3673
    %v4162 = vpack.c.b16 %v3682, %v3674
    %v4163 = vpack.c.b16 %v3683, %v3675
    %v4164 = vpack.c.b16 %v3684, %v3676
    %v4165 = vpack.c.b16 %v3693, %v3685
    %v4166 = vpack.c.b16 %v3694, %v3686
    %v4167 = vpack.c.b16 %v3695, %v3687
    %v4168 = vpack.c.b16 %v3696, %v3688
    %v4169 = vpack.c.b16 %v3697, %v3689
    %v4170 = vpack.c.b16 %v3698, %v3690
    %v4171 = vpack.c.b16 %v3699, %v3691
    %v4172 = vpack.c.b16 %v3700, %v3692
    %v4173 = vpack.c.b16 %v3709, %v3701
    %v4174 = vpack.c.b16 %v3710, %v3702
    %v4175 = vpack.c.b16 %v3711, %v3703
    %v4176 = vpack.c.b16 %v3712, %v3704
    %v4177 = vpack.c.b16 %v3713, %v3705
    %v4178 = vpack.c.b16 %v3714, %v3706
    %v4179 = vpack.c.b16 %v3715, %v3707
    %v4180 = vpack.c.b16 %v3716, %v3708
    %v4181 = vpack.c.b16 %v3725, %v3717
    %v4182 = vpack.c.b16 %v3726, %v3718
    %v4183 = vpack.c.b16 %v3727, %v3719
    %v4184 = vpack.c.b16 %v3728, %v3720
    %v4185 = vpack.c.b16 %v3729, %v3721
    %v4186 = vpack.c.b16 %v3730, %v3722
    %v4187 = vpack.c.b16 %v3731, %v3723
    %v4188 = vpack.c.b16 %v3732, %v3724
    %v4189 = vpack.c.b16 %v3741, %v3733
    %v4190 = vpack.c.b16 %v3742, %v3734
    %v4191 = vpack.c.b16 %v3743, %v3735
    %v4192 = vpack.c.b16 %v3744, %v3736
    %v4193 = vpack.c.b16 %v3745, %v3737
    %v4194 = vpack.c.b16 %v3746, %v3738
    %v4195 = vpack.c.b16 %v3747, %v3739
    %v4196 = vpack.c.b16 %v3748, %v3740
    %v4197 = vpack.c.b16 %v3757, %v3749
    %v4198 = vpack.c.b16 %v3758, %v3750
    %v4199 = vpack.c.b16 %v3759, %v3751
    %v4200 = vpack.c.b16 %v3760, %v3752
    %v4201 = vpack.c.b16 %v3761, %v3753
    %v4202 = vpack.c.b16 %v3762, %v3754
    %v4203 = vpack.c.b16 %v3763, %v3755
    %v4204 = vpack.c.b16 %v3764, %v3756
    %v4205 = vpack.c.b16 %v3773, %v3765
    %v4206 = vpack.c.b16 %v3774, %v3766
    %v4207 = vpack.c.b16 %v3775, %v3767
    %v4208 = vpack.c.b16 %v3776, %v3768
    %v4209 = vpack.c.b16 %v3777, %v3769
    %v4210 = vpack.c.b16 %v3778, %v3770
    %v4211 = vpack.c.b16 %v3779, %v3771
    %v4212 = vpack.c.b16 %v3780, %v3772
    %v4213 = vpack.c.b16 %v3789, %v3781
    %v4214 = vpack.c.b16 %v3790, %v3782
    %v4215 = vpack.c.b16 %v3791, %v3783
    %v4216 = vpack.c.b16 %v3792, %v3784
    %v4217 = vpack.c.b16 %v3793, %v3785
    %v4218 = vpack.c.b16 %v3794, %v3786
    %v4219 = vpack.c.b16 %v3795, %v3787
    %v4220 = vpack.c.b16 %v3796, %v3788
    %v4221 = vpack.c.b16 %v3805, %v3797
    %v4222 = vpack.c.b16 %v3806, %v3798
    %v4223 = vpack.c.b16 %v3807, %v3799
    %v4224 = vpack.c.b16 %v3808, %v3800
    %v4225 = vpack.c.b16 %v3809, %v3801
    %v4226 = vpack.c.b16 %v3810, %v3802
    %v4227 = vpack.c.b16 %v3811, %v3803
    %v4228 = vpack.c.b16 %v3812, %v3804
    %v4229 = vpack.c.b16 %v3821, %v3813
    %v4230 = vpack.c.b16 %v3822, %v3814
    %v4231 = vpack.c.b16 %v3823, %v3815
    %v4232 = vpack.c.b16 %v3824, %v3816
    %v4233 = vpack.c.b16 %v3825, %v3817
    %v4234 = vpack.c.b16 %v3826, %v3818
    %v4235 = vpack.c.b16 %v3827, %v3819
    %v4236 = vpack.c.b16 %v3828, %v3820
    %v4237 = vpack.c.b16 %v3837, %v3829
    %v4238 = vpack.c.b16 %v3838, %v3830
    %v4239 = vpack.c.b16 %v3839, %v3831
    %v4240 = vpack.c.b16 %v3840, %v3832
    %v4241 = vpack.c.b16 %v3841, %v3833
    %v4242 = vpack.c.b16 %v3842, %v3834
    %v4243 = vpack.c.b16 %v3843, %v3835
    %v4244 = vpack.c.b16 %v3844, %v3836
    %v4245 = vpack.c.b16 %v3853, %v3845
    %v4246 = vpack.c.b16 %v3854, %v3846
    %v4247 = vpack.c.b16 %v3855, %v3847
    %v4248 = vpack.c.b16 %v3856, %v3848
    %v4249 = vpack.c.b16 %v3857, %v3849
    %v4250 = vpack.c.b16 %v3858, %v3850
    %v4251 = vpack.c.b16 %v3859, %v3851
    %v4252 = vpack.c.b16 %v3860, %v3852
    %v4253 = vpack.c.b16 %v3869, %v3861
    %v4254 = vpack.c.b16 %v3870, %v3862
    %v4255 = vpack.c.b16 %v3871, %v3863
    %v4256 = vpack.c.b16 %v3872, %v3864
    %v4257 = vpack.c.b16 %v3873, %v3865
    %v4258 = vpack.c.b16 %v3874, %v3866
    %v4259 = vpack.c.b16 %v3875, %v3867
    %v4260 = vpack.c.b16 %v3876, %v3868
    %v4261 = vpack.c.b16 %v3885, %v3877
    %v4262 = vpack.c.b16 %v3886, %v3878
    %v4263 = vpack.c.b16 %v3887, %v3879
    %v4264 = vpack.c.b16 %v3888, %v3880
    %v4265 = vpack.c.b16 %v3889, %v3881
    %v4266 = vpack.c.b16 %v3890, %v3882
    %v4267 = vpack.c.b16 %v3891, %v3883
    %v4268 = vpack.c.b16 %v3892, %v3884
    %v4269 = vpack.c.b16 %v3901, %v3893
    %v4270 = vpack.c.b16 %v3902, %v3894
    %v4271 = vpack.c.b16 %v3903, %v3895
    %v4272 = vpack.c.b16 %v3904, %v3896
    %v4273 = vpack.c.b16 %v3905, %v3897
    %v4274 = vpack.c.b16 %v3906, %v3898
    %v4275 = vpack.c.b16 %v3907, %v3899
    %v4276 = vpack.c.b16 %v3908, %v3900
    %v4277 = vpack.c.b16 %v3917, %v3909
    %v4278 = vpack.c.b16 %v3918, %v3910
    %v4279 = vpack.c.b16 %v3919, %v3911
    %v4280 = vpack.c.b16 %v3920, %v3912
    %v4281 = vpack.c.b16 %v3921, %v3913
    %v4282 = vpack.c.b16 %v3922, %v3914
    %v4283 = vpack.c.b16 %v3923, %v3915
    %v4284 = vpack.c.b16 %v3924, %v3916
    %v4285 = vpack.c.b16 %v3933, %v3925
    %v4286 = vpack.c.b16 %v3934, %v3926
    %v4287 = vpack.c.b16 %v3935, %v3927
    %v4288 = vpack.c.b16 %v3936, %v3928
    %v4289 = vpack.c.b16 %v3937, %v3929
    %v4290 = vpack.c.b16 %v3938, %v3930
    %v4291 = vpack.c.b16 %v3939, %v3931
    %v4292 = vpack.c.b16 %v3940, %v3932
    %v4293 = vpack.c.b16 %v3949, %v3941
    %v4294 = vpack.c.b16 %v3950, %v3942
    %v4295 = vpack.c.b16 %v3951, %v3943
    %v4296 = vpack.c.b16 %v3952, %v3944
    %v4297 = vpack.c.b16 %v3953, %v3945
    %v4298 = vpack.c.b16 %v3954, %v3946
    %v4299 = vpack.c.b16 %v3955, %v3947
    %v4300 = vpack.c.b16 %v3956, %v3948
    %v4301 = vpack.c.b16 %v3965, %v3957
    %v4302 = vpack.c.b16 %v3966, %v3958
    %v4303 = vpack.c.b16 %v3967, %v3959
    %v4304 = vpack.c.b16 %v3968, %v3960
    %v4305 = vpack.c.b16 %v3969, %v3961
    %v4306 = vpack.c.b16 %v3970, %v3962
    %v4307 = vpack.c.b16 %v3971, %v3963
    %v4308 = vpack.c.b16 %v3972, %v3964
    %v4309 = vpack.c.b16 %v3981, %v3973
    %v4310 = vpack.c.b16 %v3982, %v3974
    %v4311 = vpack.c.b16 %v3983, %v3975
    %v4312 = vpack.c.b16 %v3984, %v3976
    %v4313 = vpack.c.b16 %v3985, %v3977
    %v4314 = vpack.c.b16 %v3986, %v3978
    %v4315 = vpack.c.b16 %v3987, %v3979
    %v4316 = vpack.c.b16 %v3988, %v3980
    %v4317 = vpack.c.b16 %v3997, %v3989
    %v4318 = vpack.c.b16 %v3998, %v3990
    %v4319 = vpack.c.b16 %v3999, %v3991
    %v4320 = vpack.c.b16 %v4000, %v3992
    %v4321 = vpack.c.b16 %v4001, %v3993
    %v4322 = vpack.c.b16 %v4002, %v3994
    %v4323 = vpack.c.b16 %v4003, %v3995
    %v4324 = vpack.c.b16 %v4004, %v3996
    %v4325 = vpack.c.b16 %v4013, %v4005
    %v4326 = vpack.c.b16 %v4014, %v4006
    %v4327 = vpack.c.b16 %v4015, %v4007
    %v4328 = vpack.c.b16 %v4016, %v4008
    %v4329 = vpack.c.b16 %v4017, %v4009
    %v4330 = vpack.c.b16 %v4018, %v4010
    %v4331 = vpack.c.b16 %v4019, %v4011
    %v4332 = vpack.c.b16 %v4020, %v4012
    %v4333 = vpack.c.b16 %v4029, %v4021
    %v4334 = vpack.c.b16 %v4030, %v4022
    %v4335 = vpack.c.b16 %v4031, %v4023
    %v4336 = vpack.c.b16 %v4032, %v4024
    %v4337 = vpack.c.b16 %v4033, %v4025
    %v4338 = vpack.c.b16 %v4034, %v4026
    %v4339 = vpack.c.b16 %v4035, %v4027
    %v4340 = vpack.c.b16 %v4036, %v4028
    %v4341 = vpack.c.b16 %v4045, %v4037
    %v4342 = vpack.c.b16 %v4046, %v4038
    %v4343 = vpack.c.b16 %v4047, %v4039
    %v4344 = vpack.c.b16 %v4048, %v4040
    %v4345 = vpack.c.b16 %v4049, %v4041
    %v4346 = vpack.c.b16 %v4050, %v4042
    %v4347 = vpack.c.b16 %v4051, %v4043
    %v4348 = vpack.c.b16 %v4052, %v4044
    %v4349 = vpack.c.b16 %v4061, %v4053
    %v4350 = vpack.c.b16 %v4062, %v4054
    %v4351 = vpack.c.b16 %v4063, %v4055
    %v4352 = vpack.c.b16 %v4064, %v4056
    %v4353 = vpack.c.b16 %v4065, %v4057
    %v4354 = vpack.c.b16 %v4066, %v4058
    %v4355 = vpack.c.b16 %v4067, %v4059
    %v4356 = vpack.c.b16 %v4068, %v4060
    %v4357 = vpack.c.b16 %v4077, %v4069
    %v4358 = vpack.c.b16 %v4078, %v4070
    %v4359 = vpack.c.b16 %v4079, %v4071
    %v4360 = vpack.c.b16 %v4080, %v4072
    %v4361 = vpack.c.b16 %v4081, %v4073
    %v4362 = vpack.c.b16 %v4082, %v4074
    %v4363 = vpack.c.b16 %v4083, %v4075
    %v4364 = vpack.c.b16 %v4084, %v4076
    %v4365 = vpack.c.b16 %v4093, %v4085
    %v4366 = vpack.c.b16 %v4094, %v4086
    %v4367 = vpack.c.b16 %v4095, %v4087
    %v4368 = vpack.c.b16 %v4096, %v4088
    %v4369 = vpack.c.b16 %v4097, %v4089
    %v4370 = vpack.c.b16 %v4098, %v4090
    %v4371 = vpack.c.b16 %v4099, %v4091
    %v4372 = vpack.c.b16 %v4100, %v4092
    %v4373 = vpack.c.b16 %v4109, %v4101
    %v4374 = vpack.c.b16 %v4110, %v4102
    %v4375 = vpack.c.b16 %v4111, %v4103
    %v4376 = vpack.c.b16 %v4112, %v4104
    %v4377 = vpack.c.b16 %v4113, %v4105
    %v4378 = vpack.c.b16 %v4114, %v4106
    %v4379 = vpack.c.b16 %v4115, %v4107
    %v4380 = vpack.c.b16 %v4116, %v4108
    %v4381 = vpack.c.b16 %v4125, %v4117
    %v4382 = vpack.c.b16 %v4126, %v4118
    %v4383 = vpack.c.b16 %v4127, %v4119
    %v4384 = vpack.c.b16 %v4128, %v4120
    %v4385 = vpack.c.b16 %v4129, %v4121
    %v4386 = vpack.c.b16 %v4130, %v4122
    %v4387 = vpack.c.b16 %v4131, %v4123
    %v4388 = vpack.c.b16 %v4132, %v4124
    %4645 = vmatpush.bf16.msra.mxu0 %v4189
    %4646 = vmatpush.bf16.msra.mxu0 %v4181
    %4647 = vmatpush.bf16.msra.mxu0 %v4173
    %4648 = vmatpush.bf16.msra.mxu0 %v4165
    %4649 = vmatpush.bf16.msra.mxu0 %v4157
    %4650 = vmatpush.bf16.msra.mxu0 %v4149
    %4651 = vmatpush.bf16.msra.mxu0 %v4141
    %4652 = vmatpush.bf16.msra.mxu0 %v4133
    %4653 = vmatmul.bf16.gmra.mxu0 %v3357
    %v4654 = vpop.f32.mrf.mxu0
    %v4655 = vadd.f32 0.0, %v4654
    %v4656 = vpop.f32.mrf.mxu0
    %4657 = vdwg.mxu0
    %4658 = vmatpush.bf16.msra.mxu0 %v4253
    %4659 = vmatpush.bf16.msra.mxu0 %v4245
    %4660 = vmatpush.bf16.msra.mxu0 %v4237
    %4661 = vmatpush.bf16.msra.mxu0 %v4229
    %4662 = vmatpush.bf16.msra.mxu0 %v4221
    %4663 = vmatpush.bf16.msra.mxu0 %v4213
    %4664 = vmatpush.bf16.msra.mxu0 %v4205
    %4665 = vmatpush.bf16.msra.mxu0 %v4197
    %4666 = vmatmul.bf16.gmra.mxu0 %v3358
    %v4667 = vpop.f32.mrf.mxu0
    %v4668 = vadd.f32 %v4655, %v4667
    %v4669 = vpop.f32.mrf.mxu0
    %4670 = vdwg.mxu0
    %4671 = vmatpush.bf16.msra.mxu0 %v4317
    %4672 = vmatpush.bf16.msra.mxu0 %v4309
    %4673 = vmatpush.bf16.msra.mxu0 %v4301
    %4674 = vmatpush.bf16.msra.mxu0 %v4293
    %4675 = vmatpush.bf16.msra.mxu0 %v4285
    %4676 = vmatpush.bf16.msra.mxu0 %v4277
    %4677 = vmatpush.bf16.msra.mxu0 %v4269
    %4678 = vmatpush.bf16.msra.mxu0 %v4261
    %4679 = vmatmul.bf16.gmra.mxu0 %v3359
    %v4680 = vpop.f32.mrf.mxu0
    %v4681 = vadd.f32 %v4668, %v4680
    %v4682 = vpop.f32.mrf.mxu0
    %4683 = vdwg.mxu0
    %4684 = vmatpush.bf16.msra.mxu0 %v4381
    %4685 = vmatpush.bf16.msra.mxu0 %v4373
    %4686 = vmatpush.bf16.msra.mxu0 %v4365
    %4687 = vmatpush.bf16.msra.mxu0 %v4357
    %4688 = vmatpush.bf16.msra.mxu0 %v4349
    %4689 = vmatpush.bf16.msra.mxu0 %v4341
    %4690 = vmatpush.bf16.msra.mxu0 %v4333
    %4691 = vmatpush.bf16.msra.mxu0 %v4325
    %4692 = vmatmul.bf16.gmra.mxu0 %v3360
    %v4693 = vpop.f32.mrf.mxu0
    %v4694 = vadd.f32 %v4681, %v4693
    %v4695 = vpop.f32.mrf.mxu0
    %4696 = vdwg.mxu0
    %4697 = vmatpush.bf16.msra.mxu0 %v4190
    %4698 = vmatpush.bf16.msra.mxu0 %v4182
    %4699 = vmatpush.bf16.msra.mxu0 %v4174
    %4700 = vmatpush.bf16.msra.mxu0 %v4166
    %4701 = vmatpush.bf16.msra.mxu0 %v4158
    %4702 = vmatpush.bf16.msra.mxu0 %v4150
    %4703 = vmatpush.bf16.msra.mxu0 %v4142
    %4704 = vmatpush.bf16.msra.mxu0 %v4134
    %4705 = vmatmul.bf16.gmra.mxu0 %v3357
    %v4706 = vpop.f32.mrf.mxu0
    %v4707 = vadd.f32 0.0, %v4706
    %v4708 = vpop.f32.mrf.mxu0
    %4709 = vdwg.mxu0
    %4710 = vmatpush.bf16.msra.mxu0 %v4254
    %4711 = vmatpush.bf16.msra.mxu0 %v4246
    %4712 = vmatpush.bf16.msra.mxu0 %v4238
    %4713 = vmatpush.bf16.msra.mxu0 %v4230
    %4714 = vmatpush.bf16.msra.mxu0 %v4222
    %4715 = vmatpush.bf16.msra.mxu0 %v4214
    %4716 = vmatpush.bf16.msra.mxu0 %v4206
    %4717 = vmatpush.bf16.msra.mxu0 %v4198
    %4718 = vmatmul.bf16.gmra.mxu0 %v3358
    %v4719 = vpop.f32.mrf.mxu0
    %v4720 = vadd.f32 %v4707, %v4719
    %v4721 = vpop.f32.mrf.mxu0
    %4722 = vdwg.mxu0
    %4723 = vmatpush.bf16.msra.mxu0 %v4318
    %4724 = vmatpush.bf16.msra.mxu0 %v4310
    %4725 = vmatpush.bf16.msra.mxu0 %v4302
    %4726 = vmatpush.bf16.msra.mxu0 %v4294
    %4727 = vmatpush.bf16.msra.mxu0 %v4286
    %4728 = vmatpush.bf16.msra.mxu0 %v4278
    %4729 = vmatpush.bf16.msra.mxu0 %v4270
    %4730 = vmatpush.bf16.msra.mxu0 %v4262
    %4731 = vmatmul.bf16.gmra.mxu0 %v3359
    %v4732 = vpop.f32.mrf.mxu0
    %v4733 = vadd.f32 %v4720, %v4732
    %v4734 = vpop.f32.mrf.mxu0
    %4735 = vdwg.mxu0
    %4736 = vmatpush.bf16.msra.mxu0 %v4382
    %4737 = vmatpush.bf16.msra.mxu0 %v4374
    %4738 = vmatpush.bf16.msra.mxu0 %v4366
    %4739 = vmatpush.bf16.msra.mxu0 %v4358
    %4740 = vmatpush.bf16.msra.mxu0 %v4350
    %4741 = vmatpush.bf16.msra.mxu0 %v4342
    %4742 = vmatpush.bf16.msra.mxu0 %v4334
    %4743 = vmatpush.bf16.msra.mxu0 %v4326
    %4744 = vmatmul.bf16.gmra.mxu0 %v3360
    %v4745 = vpop.f32.mrf.mxu0
    %v4746 = vadd.f32 %v4733, %v4745
    %v4747 = vpop.f32.mrf.mxu0
    %4748 = vdwg.mxu0
    %4749 = vmatpush.bf16.msra.mxu0 %v4191
    %4750 = vmatpush.bf16.msra.mxu0 %v4183
    %4751 = vmatpush.bf16.msra.mxu0 %v4175
    %4752 = vmatpush.bf16.msra.mxu0 %v4167
    %4753 = vmatpush.bf16.msra.mxu0 %v4159
    %4754 = vmatpush.bf16.msra.mxu0 %v4151
    %4755 = vmatpush.bf16.msra.mxu0 %v4143
    %4756 = vmatpush.bf16.msra.mxu0 %v4135
    %4757 = vmatmul.bf16.gmra.mxu0 %v3357
    %v4758 = vpop.f32.mrf.mxu0
    %v4759 = vadd.f32 0.0, %v4758
    %v4760 = vpop.f32.mrf.mxu0
    %4761 = vdwg.mxu0
    %4762 = vmatpush.bf16.msra.mxu0 %v4255
    %4763 = vmatpush.bf16.msra.mxu0 %v4247
    %4764 = vmatpush.bf16.msra.mxu0 %v4239
    %4765 = vmatpush.bf16.msra.mxu0 %v4231
    %4766 = vmatpush.bf16.msra.mxu0 %v4223
    %4767 = vmatpush.bf16.msra.mxu0 %v4215
    %4768 = vmatpush.bf16.msra.mxu0 %v4207
    %4769 = vmatpush.bf16.msra.mxu0 %v4199
    %4770 = vmatmul.bf16.gmra.mxu0 %v3358
    %v4771 = vpop.f32.mrf.mxu0
    %v4772 = vadd.f32 %v4759, %v4771
    %v4773 = vpop.f32.mrf.mxu0
    %4774 = vdwg.mxu0
    %4775 = vmatpush.bf16.msra.mxu0 %v4319
    %4776 = vmatpush.bf16.msra.mxu0 %v4311
    %4777 = vmatpush.bf16.msra.mxu0 %v4303
    %4778 = vmatpush.bf16.msra.mxu0 %v4295
    %4779 = vmatpush.bf16.msra.mxu0 %v4287
    %4780 = vmatpush.bf16.msra.mxu0 %v4279
    %4781 = vmatpush.bf16.msra.mxu0 %v4271
    %4782 = vmatpush.bf16.msra.mxu0 %v4263
    %4783 = vmatmul.bf16.gmra.mxu0 %v3359
    %v4784 = vpop.f32.mrf.mxu0
    %v4785 = vadd.f32 %v4772, %v4784
    %v4786 = vpop.f32.mrf.mxu0
    %4787 = vdwg.mxu0
    %4788 = vmatpush.bf16.msra.mxu0 %v4383
    %4789 = vmatpush.bf16.msra.mxu0 %v4375
    %4790 = vmatpush.bf16.msra.mxu0 %v4367
    %4791 = vmatpush.bf16.msra.mxu0 %v4359
    %4792 = vmatpush.bf16.msra.mxu0 %v4351
    %4793 = vmatpush.bf16.msra.mxu0 %v4343
    %4794 = vmatpush.bf16.msra.mxu0 %v4335
    %4795 = vmatpush.bf16.msra.mxu0 %v4327
    %4796 = vmatmul.bf16.gmra.mxu0 %v3360
    %v4797 = vpop.f32.mrf.mxu0
    %v4798 = vadd.f32 %v4785, %v4797
    %v4799 = vpop.f32.mrf.mxu0
    %4800 = vdwg.mxu0
    %4801 = vmatpush.bf16.msra.mxu0 %v4192
    %4802 = vmatpush.bf16.msra.mxu0 %v4184
    %4803 = vmatpush.bf16.msra.mxu0 %v4176
    %4804 = vmatpush.bf16.msra.mxu0 %v4168
    %4805 = vmatpush.bf16.msra.mxu0 %v4160
    %4806 = vmatpush.bf16.msra.mxu0 %v4152
    %4807 = vmatpush.bf16.msra.mxu0 %v4144
    %4808 = vmatpush.bf16.msra.mxu0 %v4136
    %4809 = vmatmul.bf16.gmra.mxu0 %v3357
    %v4810 = vpop.f32.mrf.mxu0
    %v4811 = vadd.f32 0.0, %v4810
    %v4812 = vpop.f32.mrf.mxu0
    %4813 = vdwg.mxu0
    %4814 = vmatpush.bf16.msra.mxu0 %v4256
    %4815 = vmatpush.bf16.msra.mxu0 %v4248
    %4816 = vmatpush.bf16.msra.mxu0 %v4240
    %4817 = vmatpush.bf16.msra.mxu0 %v4232
    %4818 = vmatpush.bf16.msra.mxu0 %v4224
    %4819 = vmatpush.bf16.msra.mxu0 %v4216
    %4820 = vmatpush.bf16.msra.mxu0 %v4208
    %4821 = vmatpush.bf16.msra.mxu0 %v4200
    %4822 = vmatmul.bf16.gmra.mxu0 %v3358
    %v4823 = vpop.f32.mrf.mxu0
    %v4824 = vadd.f32 %v4811, %v4823
    %v4825 = vpop.f32.mrf.mxu0
    %4826 = vdwg.mxu0
    %4827 = vmatpush.bf16.msra.mxu0 %v4320
    %4828 = vmatpush.bf16.msra.mxu0 %v4312
    %4829 = vmatpush.bf16.msra.mxu0 %v4304
    %4830 = vmatpush.bf16.msra.mxu0 %v4296
    %4831 = vmatpush.bf16.msra.mxu0 %v4288
    %4832 = vmatpush.bf16.msra.mxu0 %v4280
    %4833 = vmatpush.bf16.msra.mxu0 %v4272
    %4834 = vmatpush.bf16.msra.mxu0 %v4264
    %4835 = vmatmul.bf16.gmra.mxu0 %v3359
    %v4836 = vpop.f32.mrf.mxu0
    %v4837 = vadd.f32 %v4824, %v4836
    %v4838 = vpop.f32.mrf.mxu0
    %4839 = vdwg.mxu0
    %4840 = vmatpush.bf16.msra.mxu0 %v4384
    %4841 = vmatpush.bf16.msra.mxu0 %v4376
    %4842 = vmatpush.bf16.msra.mxu0 %v4368
    %4843 = vmatpush.bf16.msra.mxu0 %v4360
    %4844 = vmatpush.bf16.msra.mxu0 %v4352
    %4845 = vmatpush.bf16.msra.mxu0 %v4344
    %4846 = vmatpush.bf16.msra.mxu0 %v4336
    %4847 = vmatpush.bf16.msra.mxu0 %v4328
    %4848 = vmatmul.bf16.gmra.mxu0 %v3360
    %v4849 = vpop.f32.mrf.mxu0
    %v4850 = vadd.f32 %v4837, %v4849
    %v4851 = vpop.f32.mrf.mxu0
    %4852 = vdwg.mxu0
    %4853 = vmatpush.bf16.msra.mxu0 %v4193
    %4854 = vmatpush.bf16.msra.mxu0 %v4185
    %4855 = vmatpush.bf16.msra.mxu0 %v4177
    %4856 = vmatpush.bf16.msra.mxu0 %v4169
    %4857 = vmatpush.bf16.msra.mxu0 %v4161
    %4858 = vmatpush.bf16.msra.mxu0 %v4153
    %4859 = vmatpush.bf16.msra.mxu0 %v4145
    %4860 = vmatpush.bf16.msra.mxu0 %v4137
    %4861 = vmatmul.bf16.gmra.mxu0 %v3357
    %v4862 = vpop.f32.mrf.mxu0
    %v4863 = vadd.f32 0.0, %v4862
    %v4864 = vpop.f32.mrf.mxu0
    %4865 = vdwg.mxu0
    %4866 = vmatpush.bf16.msra.mxu0 %v4257
    %4867 = vmatpush.bf16.msra.mxu0 %v4249
    %4868 = vmatpush.bf16.msra.mxu0 %v4241
    %4869 = vmatpush.bf16.msra.mxu0 %v4233
    %4870 = vmatpush.bf16.msra.mxu0 %v4225
    %4871 = vmatpush.bf16.msra.mxu0 %v4217
    %4872 = vmatpush.bf16.msra.mxu0 %v4209
    %4873 = vmatpush.bf16.msra.mxu0 %v4201
    %4874 = vmatmul.bf16.gmra.mxu0 %v3358
    %v4875 = vpop.f32.mrf.mxu0
    %v4876 = vadd.f32 %v4863, %v4875
    %v4877 = vpop.f32.mrf.mxu0
    %4878 = vdwg.mxu0
    %4879 = vmatpush.bf16.msra.mxu0 %v4321
    %4880 = vmatpush.bf16.msra.mxu0 %v4313
    %4881 = vmatpush.bf16.msra.mxu0 %v4305
    %4882 = vmatpush.bf16.msra.mxu0 %v4297
    %4883 = vmatpush.bf16.msra.mxu0 %v4289
    %4884 = vmatpush.bf16.msra.mxu0 %v4281
    %4885 = vmatpush.bf16.msra.mxu0 %v4273
    %4886 = vmatpush.bf16.msra.mxu0 %v4265
    %4887 = vmatmul.bf16.gmra.mxu0 %v3359
    %v4888 = vpop.f32.mrf.mxu0
    %v4889 = vadd.f32 %v4876, %v4888
    %v4890 = vpop.f32.mrf.mxu0
    %4891 = vdwg.mxu0
    %4892 = vmatpush.bf16.msra.mxu0 %v4385
    %4893 = vmatpush.bf16.msra.mxu0 %v4377
    %4894 = vmatpush.bf16.msra.mxu0 %v4369
    %4895 = vmatpush.bf16.msra.mxu0 %v4361
    %4896 = vmatpush.bf16.msra.mxu0 %v4353
    %4897 = vmatpush.bf16.msra.mxu0 %v4345
    %4898 = vmatpush.bf16.msra.mxu0 %v4337
    %4899 = vmatpush.bf16.msra.mxu0 %v4329
    %4900 = vmatmul.bf16.gmra.mxu0 %v3360
    %v4901 = vpop.f32.mrf.mxu0
    %v4902 = vadd.f32 %v4889, %v4901
    %v4903 = vpop.f32.mrf.mxu0
    %4904 = vdwg.mxu0
    %4905 = vmatpush.bf16.msra.mxu0 %v4194
    %4906 = vmatpush.bf16.msra.mxu0 %v4186
    %4907 = vmatpush.bf16.msra.mxu0 %v4178
    %4908 = vmatpush.bf16.msra.mxu0 %v4170
    %4909 = vmatpush.bf16.msra.mxu0 %v4162
    %4910 = vmatpush.bf16.msra.mxu0 %v4154
    %4911 = vmatpush.bf16.msra.mxu0 %v4146
    %4912 = vmatpush.bf16.msra.mxu0 %v4138
    %4913 = vmatmul.bf16.gmra.mxu0 %v3357
    %v4914 = vpop.f32.mrf.mxu0
    %v4915 = vadd.f32 0.0, %v4914
    %v4916 = vpop.f32.mrf.mxu0
    %4917 = vdwg.mxu0
    %4918 = vmatpush.bf16.msra.mxu0 %v4258
    %4919 = vmatpush.bf16.msra.mxu0 %v4250
    %4920 = vmatpush.bf16.msra.mxu0 %v4242
    %4921 = vmatpush.bf16.msra.mxu0 %v4234
    %4922 = vmatpush.bf16.msra.mxu0 %v4226
    %4923 = vmatpush.bf16.msra.mxu0 %v4218
    %4924 = vmatpush.bf16.msra.mxu0 %v4210
    %4925 = vmatpush.bf16.msra.mxu0 %v4202
    %4926 = vmatmul.bf16.gmra.mxu0 %v3358
    %v4927 = vpop.f32.mrf.mxu0
    %v4928 = vadd.f32 %v4915, %v4927
    %v4929 = vpop.f32.mrf.mxu0
    %4930 = vdwg.mxu0
    %4931 = vmatpush.bf16.msra.mxu0 %v4322
    %4932 = vmatpush.bf16.msra.mxu0 %v4314
    %4933 = vmatpush.bf16.msra.mxu0 %v4306
    %4934 = vmatpush.bf16.msra.mxu0 %v4298
    %4935 = vmatpush.bf16.msra.mxu0 %v4290
    %4936 = vmatpush.bf16.msra.mxu0 %v4282
    %4937 = vmatpush.bf16.msra.mxu0 %v4274
    %4938 = vmatpush.bf16.msra.mxu0 %v4266
    %4939 = vmatmul.bf16.gmra.mxu0 %v3359
    %v4940 = vpop.f32.mrf.mxu0
    %v4941 = vadd.f32 %v4928, %v4940
    %v4942 = vpop.f32.mrf.mxu0
    %4943 = vdwg.mxu0
    %4944 = vmatpush.bf16.msra.mxu0 %v4386
    %4945 = vmatpush.bf16.msra.mxu0 %v4378
    %4946 = vmatpush.bf16.msra.mxu0 %v4370
    %4947 = vmatpush.bf16.msra.mxu0 %v4362
    %4948 = vmatpush.bf16.msra.mxu0 %v4354
    %4949 = vmatpush.bf16.msra.mxu0 %v4346
    %4950 = vmatpush.bf16.msra.mxu0 %v4338
    %4951 = vmatpush.bf16.msra.mxu0 %v4330
    %4952 = vmatmul.bf16.gmra.mxu0 %v3360
    %v4953 = vpop.f32.mrf.mxu0
    %v4954 = vadd.f32 %v4941, %v4953
    %v4955 = vpop.f32.mrf.mxu0
    %4956 = vdwg.mxu0
    %4957 = vmatpush.bf16.msra.mxu0 %v4195
    %4958 = vmatpush.bf16.msra.mxu0 %v4187
    %4959 = vmatpush.bf16.msra.mxu0 %v4179
    %4960 = vmatpush.bf16.msra.mxu0 %v4171
    %4961 = vmatpush.bf16.msra.mxu0 %v4163
    %4962 = vmatpush.bf16.msra.mxu0 %v4155
    %4963 = vmatpush.bf16.msra.mxu0 %v4147
    %4964 = vmatpush.bf16.msra.mxu0 %v4139
    %4965 = vmatmul.bf16.gmra.mxu0 %v3357
    %v4966 = vpop.f32.mrf.mxu0
    %v4967 = vadd.f32 0.0, %v4966
    %v4968 = vpop.f32.mrf.mxu0
    %4969 = vdwg.mxu0
    %4970 = vmatpush.bf16.msra.mxu0 %v4259
    %4971 = vmatpush.bf16.msra.mxu0 %v4251
    %4972 = vmatpush.bf16.msra.mxu0 %v4243
    %4973 = vmatpush.bf16.msra.mxu0 %v4235
    %4974 = vmatpush.bf16.msra.mxu0 %v4227
    %4975 = vmatpush.bf16.msra.mxu0 %v4219
    %4976 = vmatpush.bf16.msra.mxu0 %v4211
    %4977 = vmatpush.bf16.msra.mxu0 %v4203
    %4978 = vmatmul.bf16.gmra.mxu0 %v3358
    %v4979 = vpop.f32.mrf.mxu0
    %v4980 = vadd.f32 %v4967, %v4979
    %v4981 = vpop.f32.mrf.mxu0
    %4982 = vdwg.mxu0
    %4983 = vmatpush.bf16.msra.mxu0 %v4323
    %4984 = vmatpush.bf16.msra.mxu0 %v4315
    %4985 = vmatpush.bf16.msra.mxu0 %v4307
    %4986 = vmatpush.bf16.msra.mxu0 %v4299
    %4987 = vmatpush.bf16.msra.mxu0 %v4291
    %4988 = vmatpush.bf16.msra.mxu0 %v4283
    %4989 = vmatpush.bf16.msra.mxu0 %v4275
    %4990 = vmatpush.bf16.msra.mxu0 %v4267
    %4991 = vmatmul.bf16.gmra.mxu0 %v3359
    %v4992 = vpop.f32.mrf.mxu0
    %v4993 = vadd.f32 %v4980, %v4992
    %v4994 = vpop.f32.mrf.mxu0
    %4995 = vdwg.mxu0
    %4996 = vmatpush.bf16.msra.mxu0 %v4387
    %4997 = vmatpush.bf16.msra.mxu0 %v4379
    %4998 = vmatpush.bf16.msra.mxu0 %v4371
    %4999 = vmatpush.bf16.msra.mxu0 %v4363
    %5000 = vmatpush.bf16.msra.mxu0 %v4355
    %5001 = vmatpush.bf16.msra.mxu0 %v4347
    %5002 = vmatpush.bf16.msra.mxu0 %v4339
    %5003 = vmatpush.bf16.msra.mxu0 %v4331
    %5004 = vmatmul.bf16.gmra.mxu0 %v3360
    %v5005 = vpop.f32.mrf.mxu0
    %v5006 = vadd.f32 %v4993, %v5005
    %v5007 = vpop.f32.mrf.mxu0
    %5008 = vdwg.mxu0
    %5009 = vmatpush.bf16.msra.mxu0 %v4196
    %5010 = vmatpush.bf16.msra.mxu0 %v4188
    %5011 = vmatpush.bf16.msra.mxu0 %v4180
    %5012 = vmatpush.bf16.msra.mxu0 %v4172
    %5013 = vmatpush.bf16.msra.mxu0 %v4164
    %5014 = vmatpush.bf16.msra.mxu0 %v4156
    %5015 = vmatpush.bf16.msra.mxu0 %v4148
    %5016 = vmatpush.bf16.msra.mxu0 %v4140
    %5017 = vmatmul.bf16.gmra.mxu0 %v3357
    %v5018 = vpop.f32.mrf.mxu0
    %v5019 = vadd.f32 0.0, %v5018
    %v5020 = vpop.f32.mrf.mxu0
    %5021 = vdwg.mxu0
    %5022 = vmatpush.bf16.msra.mxu0 %v4260
    %5023 = vmatpush.bf16.msra.mxu0 %v4252
    %5024 = vmatpush.bf16.msra.mxu0 %v4244
    %5025 = vmatpush.bf16.msra.mxu0 %v4236
    %5026 = vmatpush.bf16.msra.mxu0 %v4228
    %5027 = vmatpush.bf16.msra.mxu0 %v4220
    %5028 = vmatpush.bf16.msra.mxu0 %v4212
    %5029 = vmatpush.bf16.msra.mxu0 %v4204
    %5030 = vmatmul.bf16.gmra.mxu0 %v3358
    %v5031 = vpop.f32.mrf.mxu0
    %v5032 = vadd.f32 %v5019, %v5031
    %v5033 = vpop.f32.mrf.mxu0
    %5034 = vdwg.mxu0
    %5035 = vmatpush.bf16.msra.mxu0 %v4324
    %5036 = vmatpush.bf16.msra.mxu0 %v4316
    %5037 = vmatpush.bf16.msra.mxu0 %v4308
    %5038 = vmatpush.bf16.msra.mxu0 %v4300
    %5039 = vmatpush.bf16.msra.mxu0 %v4292
    %5040 = vmatpush.bf16.msra.mxu0 %v4284
    %5041 = vmatpush.bf16.msra.mxu0 %v4276
    %5042 = vmatpush.bf16.msra.mxu0 %v4268
    %5043 = vmatmul.bf16.gmra.mxu0 %v3359
    %v5044 = vpop.f32.mrf.mxu0
    %v5045 = vadd.f32 %v5032, %v5044
    %v5046 = vpop.f32.mrf.mxu0
    %5047 = vdwg.mxu0
    %5048 = vmatpush.bf16.msra.mxu0 %v4388
    %5049 = vmatpush.bf16.msra.mxu0 %v4380
    %5050 = vmatpush.bf16.msra.mxu0 %v4372
    %5051 = vmatpush.bf16.msra.mxu0 %v4364
    %5052 = vmatpush.bf16.msra.mxu0 %v4356
    %5053 = vmatpush.bf16.msra.mxu0 %v4348
    %5054 = vmatpush.bf16.msra.mxu0 %v4340
    %5055 = vmatpush.bf16.msra.mxu0 %v4332
    %5056 = vmatmul.bf16.gmra.mxu0 %v3360
    %v5057 = vpop.f32.mrf.mxu0
    %v5058 = vadd.f32 %v5045, %v5057
    %v5059 = vpop.f32.mrf.mxu0
    %5060 = vdwg.mxu0
    %v5317 = vunpack.c.l.b16 %v2841
    %v5318 = vunpack.c.h.b16 %v2841
    %v5319 = vunpack.c.l.b16 %v2842
    %v5320 = vunpack.c.h.b16 %v2842
    %v5321 = vunpack.c.l.b16 %v2843
    %v5322 = vunpack.c.h.b16 %v2843
    %v5323 = vunpack.c.l.b16 %v2844
    %v5324 = vunpack.c.h.b16 %v2844
    %v5325 = vunpack.c.l.b16 %v2845
    %v5326 = vunpack.c.h.b16 %v2845
    %v5327 = vunpack.c.l.b16 %v2846
    %v5328 = vunpack.c.h.b16 %v2846
    %v5329 = vunpack.c.l.b16 %v2847
    %v5330 = vunpack.c.h.b16 %v2847
    %v5331 = vunpack.c.l.b16 %v2848
    %v5332 = vunpack.c.h.b16 %v2848
    %v5333 = vunpack.c.l.b16 %v2849
    %v5334 = vunpack.c.h.b16 %v2849
    %v5335 = vunpack.c.l.b16 %v2850
    %v5336 = vunpack.c.h.b16 %v2850
    %v5337 = vunpack.c.l.b16 %v2851
    %v5338 = vunpack.c.h.b16 %v2851
    %v5339 = vunpack.c.l.b16 %v2852
    %v5340 = vunpack.c.h.b16 %v2852
    %v5341 = vunpack.c.l.b16 %v2853
    %v5342 = vunpack.c.h.b16 %v2853
    %v5343 = vunpack.c.l.b16 %v2854
    %v5344 = vunpack.c.h.b16 %v2854
    %v5345 = vunpack.c.l.b16 %v2855
    %v5346 = vunpack.c.h.b16 %v2855
    %v5347 = vunpack.c.l.b16 %v2856
    %v5348 = vunpack.c.h.b16 %v2856
    %v5349 = vunpack.c.l.b16 %v2857
    %v5350 = vunpack.c.h.b16 %v2857
    %v5351 = vunpack.c.l.b16 %v2858
    %v5352 = vunpack.c.h.b16 %v2858
    %v5353 = vunpack.c.l.b16 %v2859
    %v5354 = vunpack.c.h.b16 %v2859
    %v5355 = vunpack.c.l.b16 %v2860
    %v5356 = vunpack.c.h.b16 %v2860
    %v5357 = vunpack.c.l.b16 %v2861
    %v5358 = vunpack.c.h.b16 %v2861
    %v5359 = vunpack.c.l.b16 %v2862
    %v5360 = vunpack.c.h.b16 %v2862
    %v5361 = vunpack.c.l.b16 %v2863
    %v5362 = vunpack.c.h.b16 %v2863
    %v5363 = vunpack.c.l.b16 %v2864
    %v5364 = vunpack.c.h.b16 %v2864
    %v5365 = vunpack.c.l.b16 %v2865
    %v5366 = vunpack.c.h.b16 %v2865
    %v5367 = vunpack.c.l.b16 %v2866
    %v5368 = vunpack.c.h.b16 %v2866
    %v5369 = vunpack.c.l.b16 %v2867
    %v5370 = vunpack.c.h.b16 %v2867
    %v5371 = vunpack.c.l.b16 %v2868
    %v5372 = vunpack.c.h.b16 %v2868
    %v5373 = vunpack.c.l.b16 %v2869
    %v5374 = vunpack.c.h.b16 %v2869
    %v5375 = vunpack.c.l.b16 %v2870
    %v5376 = vunpack.c.h.b16 %v2870
    %v5377 = vunpack.c.l.b16 %v2871
    %v5378 = vunpack.c.h.b16 %v2871
    %v5379 = vunpack.c.l.b16 %v2872
    %v5380 = vunpack.c.h.b16 %v2872
    %v5381 = vunpack.c.l.b16 %v2873
    %v5382 = vunpack.c.h.b16 %v2873
    %v5383 = vunpack.c.l.b16 %v2874
    %v5384 = vunpack.c.h.b16 %v2874
    %v5385 = vunpack.c.l.b16 %v2875
    %v5386 = vunpack.c.h.b16 %v2875
    %v5387 = vunpack.c.l.b16 %v2876
    %v5388 = vunpack.c.h.b16 %v2876
    %v5389 = vunpack.c.l.b16 %v2877
    %v5390 = vunpack.c.h.b16 %v2877
    %v5391 = vunpack.c.l.b16 %v2878
    %v5392 = vunpack.c.h.b16 %v2878
    %v5393 = vunpack.c.l.b16 %v2879
    %v5394 = vunpack.c.h.b16 %v2879
    %v5395 = vunpack.c.l.b16 %v2880
    %v5396 = vunpack.c.h.b16 %v2880
    %v5397 = vunpack.c.l.b16 %v2881
    %v5398 = vunpack.c.h.b16 %v2881
    %v5399 = vunpack.c.l.b16 %v2882
    %v5400 = vunpack.c.h.b16 %v2882
    %v5401 = vunpack.c.l.b16 %v2883
    %v5402 = vunpack.c.h.b16 %v2883
    %v5403 = vunpack.c.l.b16 %v2884
    %v5404 = vunpack.c.h.b16 %v2884
    %v5405 = vunpack.c.l.b16 %v2885
    %v5406 = vunpack.c.h.b16 %v2885
    %v5407 = vunpack.c.l.b16 %v2886
    %v5408 = vunpack.c.h.b16 %v2886
    %v5409 = vunpack.c.l.b16 %v2887
    %v5410 = vunpack.c.h.b16 %v2887
    %v5411 = vunpack.c.l.b16 %v2888
    %v5412 = vunpack.c.h.b16 %v2888
    %v5413 = vunpack.c.l.b16 %v2889
    %v5414 = vunpack.c.h.b16 %v2889
    %v5415 = vunpack.c.l.b16 %v2890
    %v5416 = vunpack.c.h.b16 %v2890
    %v5417 = vunpack.c.l.b16 %v2891
    %v5418 = vunpack.c.h.b16 %v2891
    %v5419 = vunpack.c.l.b16 %v2892
    %v5420 = vunpack.c.h.b16 %v2892
    %v5421 = vunpack.c.l.b16 %v2893
    %v5422 = vunpack.c.h.b16 %v2893
    %v5423 = vunpack.c.l.b16 %v2894
    %v5424 = vunpack.c.h.b16 %v2894
    %v5425 = vunpack.c.l.b16 %v2895
    %v5426 = vunpack.c.h.b16 %v2895
    %v5427 = vunpack.c.l.b16 %v2896
    %v5428 = vunpack.c.h.b16 %v2896
    %v5429 = vunpack.c.l.b16 %v2897
    %v5430 = vunpack.c.h.b16 %v2897
    %v5431 = vunpack.c.l.b16 %v2898
    %v5432 = vunpack.c.h.b16 %v2898
    %v5433 = vunpack.c.l.b16 %v2899
    %v5434 = vunpack.c.h.b16 %v2899
    %v5435 = vunpack.c.l.b16 %v2900
    %v5436 = vunpack.c.h.b16 %v2900
    %v5437 = vunpack.c.l.b16 %v2901
    %v5438 = vunpack.c.h.b16 %v2901
    %v5439 = vunpack.c.l.b16 %v2902
    %v5440 = vunpack.c.h.b16 %v2902
    %v5441 = vunpack.c.l.b16 %v2903
    %v5442 = vunpack.c.h.b16 %v2903
    %v5443 = vunpack.c.l.b16 %v2904
    %v5444 = vunpack.c.h.b16 %v2904
    %v5445 = vunpack.c.l.b16 %v2905
    %v5446 = vunpack.c.h.b16 %v2905
    %v5447 = vunpack.c.l.b16 %v2906
    %v5448 = vunpack.c.h.b16 %v2906
    %v5449 = vunpack.c.l.b16 %v2907
    %v5450 = vunpack.c.h.b16 %v2907
    %v5451 = vunpack.c.l.b16 %v2908
    %v5452 = vunpack.c.h.b16 %v2908
    %v5453 = vunpack.c.l.b16 %v2909
    %v5454 = vunpack.c.h.b16 %v2909
    %v5455 = vunpack.c.l.b16 %v2910
    %v5456 = vunpack.c.h.b16 %v2910
    %v5457 = vunpack.c.l.b16 %v2911
    %v5458 = vunpack.c.h.b16 %v2911
    %v5459 = vunpack.c.l.b16 %v2912
    %v5460 = vunpack.c.h.b16 %v2912
    %v5461 = vunpack.c.l.b16 %v2913
    %v5462 = vunpack.c.h.b16 %v2913
    %v5463 = vunpack.c.l.b16 %v2914
    %v5464 = vunpack.c.h.b16 %v2914
    %v5465 = vunpack.c.l.b16 %v2915
    %v5466 = vunpack.c.h.b16 %v2915
    %v5467 = vunpack.c.l.b16 %v2916
    %v5468 = vunpack.c.h.b16 %v2916
    %v5469 = vunpack.c.l.b16 %v2917
    %v5470 = vunpack.c.h.b16 %v2917
    %v5471 = vunpack.c.l.b16 %v2918
    %v5472 = vunpack.c.h.b16 %v2918
    %v5473 = vunpack.c.l.b16 %v2919
    %v5474 = vunpack.c.h.b16 %v2919
    %v5475 = vunpack.c.l.b16 %v2920
    %v5476 = vunpack.c.h.b16 %v2920
    %v5477 = vunpack.c.l.b16 %v2921
    %v5478 = vunpack.c.h.b16 %v2921
    %v5479 = vunpack.c.l.b16 %v2922
    %v5480 = vunpack.c.h.b16 %v2922
    %v5481 = vunpack.c.l.b16 %v2923
    %v5482 = vunpack.c.h.b16 %v2923
    %v5483 = vunpack.c.l.b16 %v2924
    %v5484 = vunpack.c.h.b16 %v2924
    %v5485 = vunpack.c.l.b16 %v2925
    %v5486 = vunpack.c.h.b16 %v2925
    %v5487 = vunpack.c.l.b16 %v2926
    %v5488 = vunpack.c.h.b16 %v2926
    %v5489 = vunpack.c.l.b16 %v2927
    %v5490 = vunpack.c.h.b16 %v2927
    %v5491 = vunpack.c.l.b16 %v2928
    %v5492 = vunpack.c.h.b16 %v2928
    %v5493 = vunpack.c.l.b16 %v2929
    %v5494 = vunpack.c.h.b16 %v2929
    %v5495 = vunpack.c.l.b16 %v2930
    %v5496 = vunpack.c.h.b16 %v2930
    %v5497 = vunpack.c.l.b16 %v2931
    %v5498 = vunpack.c.h.b16 %v2931
    %v5499 = vunpack.c.l.b16 %v2932
    %v5500 = vunpack.c.h.b16 %v2932
    %v5501 = vunpack.c.l.b16 %v2933
    %v5502 = vunpack.c.h.b16 %v2933
    %v5503 = vunpack.c.l.b16 %v2934
    %v5504 = vunpack.c.h.b16 %v2934
    %v5505 = vunpack.c.l.b16 %v2935
    %v5506 = vunpack.c.h.b16 %v2935
    %v5507 = vunpack.c.l.b16 %v2936
    %v5508 = vunpack.c.h.b16 %v2936
    %v5509 = vunpack.c.l.b16 %v2937
    %v5510 = vunpack.c.h.b16 %v2937
    %v5511 = vunpack.c.l.b16 %v2938
    %v5512 = vunpack.c.h.b16 %v2938
    %v5513 = vunpack.c.l.b16 %v2939
    %v5514 = vunpack.c.h.b16 %v2939
    %v5515 = vunpack.c.l.b16 %v2940
    %v5516 = vunpack.c.h.b16 %v2940
    %v5517 = vunpack.c.l.b16 %v2941
    %v5518 = vunpack.c.h.b16 %v2941
    %v5519 = vunpack.c.l.b16 %v2942
    %v5520 = vunpack.c.h.b16 %v2942
    %v5521 = vunpack.c.l.b16 %v2943
    %v5522 = vunpack.c.h.b16 %v2943
    %v5523 = vunpack.c.l.b16 %v2944
    %v5524 = vunpack.c.h.b16 %v2944
    %v5525 = vunpack.c.l.b16 %v2945
    %v5526 = vunpack.c.h.b16 %v2945
    %v5527 = vunpack.c.l.b16 %v2946
    %v5528 = vunpack.c.h.b16 %v2946
    %v5529 = vunpack.c.l.b16 %v2947
    %v5530 = vunpack.c.h.b16 %v2947
    %v5531 = vunpack.c.l.b16 %v2948
    %v5532 = vunpack.c.h.b16 %v2948
    %v5533 = vunpack.c.l.b16 %v2949
    %v5534 = vunpack.c.h.b16 %v2949
    %v5535 = vunpack.c.l.b16 %v2950
    %v5536 = vunpack.c.h.b16 %v2950
    %v5537 = vunpack.c.l.b16 %v2951
    %v5538 = vunpack.c.h.b16 %v2951
    %v5539 = vunpack.c.l.b16 %v2952
    %v5540 = vunpack.c.h.b16 %v2952
    %v5541 = vunpack.c.l.b16 %v2953
    %v5542 = vunpack.c.h.b16 %v2953
    %v5543 = vunpack.c.l.b16 %v2954
    %v5544 = vunpack.c.h.b16 %v2954
    %v5545 = vunpack.c.l.b16 %v2955
    %v5546 = vunpack.c.h.b16 %v2955
    %v5547 = vunpack.c.l.b16 %v2956
    %v5548 = vunpack.c.h.b16 %v2956
    %v5549 = vunpack.c.l.b16 %v2957
    %v5550 = vunpack.c.h.b16 %v2957
    %v5551 = vunpack.c.l.b16 %v2958
    %v5552 = vunpack.c.h.b16 %v2958
    %v5553 = vunpack.c.l.b16 %v2959
    %v5554 = vunpack.c.h.b16 %v2959
    %v5555 = vunpack.c.l.b16 %v2960
    %v5556 = vunpack.c.h.b16 %v2960
    %v5557 = vunpack.c.l.b16 %v2961
    %v5558 = vunpack.c.h.b16 %v2961
    %v5559 = vunpack.c.l.b16 %v2962
    %v5560 = vunpack.c.h.b16 %v2962
    %v5561 = vunpack.c.l.b16 %v2963
    %v5562 = vunpack.c.h.b16 %v2963
    %v5563 = vunpack.c.l.b16 %v2964
    %v5564 = vunpack.c.h.b16 %v2964
    %v5565 = vunpack.c.l.b16 %v2965
    %v5566 = vunpack.c.h.b16 %v2965
    %v5567 = vunpack.c.l.b16 %v2966
    %v5568 = vunpack.c.h.b16 %v2966
    %v5569 = vunpack.c.l.b16 %v2967
    %v5570 = vunpack.c.h.b16 %v2967
    %v5571 = vunpack.c.l.b16 %v2968
    %v5572 = vunpack.c.h.b16 %v2968
    %v5573 = vunpack.c.l.b16 %v2969
    %v5574 = vunpack.c.h.b16 %v2969
    %v5575 = vunpack.c.l.b16 %v2970
    %v5576 = vunpack.c.h.b16 %v2970
    %v5577 = vunpack.c.l.b16 %v2971
    %v5578 = vunpack.c.h.b16 %v2971
    %v5579 = vunpack.c.l.b16 %v2972
    %v5580 = vunpack.c.h.b16 %v2972
    %v5581 = vunpack.c.l.b16 %v2973
    %v5582 = vunpack.c.h.b16 %v2973
    %v5583 = vunpack.c.l.b16 %v2974
    %v5584 = vunpack.c.h.b16 %v2974
    %v5585 = vunpack.c.l.b16 %v2975
    %v5586 = vunpack.c.h.b16 %v2975
    %v5587 = vunpack.c.l.b16 %v2976
    %v5588 = vunpack.c.h.b16 %v2976
    %v5589 = vunpack.c.l.b16 %v2977
    %v5590 = vunpack.c.h.b16 %v2977
    %v5591 = vunpack.c.l.b16 %v2978
    %v5592 = vunpack.c.h.b16 %v2978
    %v5593 = vunpack.c.l.b16 %v2979
    %v5594 = vunpack.c.h.b16 %v2979
    %v5595 = vunpack.c.l.b16 %v2980
    %v5596 = vunpack.c.h.b16 %v2980
    %v5597 = vunpack.c.l.b16 %v2981
    %v5598 = vunpack.c.h.b16 %v2981
    %v5599 = vunpack.c.l.b16 %v2982
    %v5600 = vunpack.c.h.b16 %v2982
    %v5601 = vunpack.c.l.b16 %v2983
    %v5602 = vunpack.c.h.b16 %v2983
    %v5603 = vunpack.c.l.b16 %v2984
    %v5604 = vunpack.c.h.b16 %v2984
    %v5605 = vunpack.c.l.b16 %v2985
    %v5606 = vunpack.c.h.b16 %v2985
    %v5607 = vunpack.c.l.b16 %v2986
    %v5608 = vunpack.c.h.b16 %v2986
    %v5609 = vunpack.c.l.b16 %v2987
    %v5610 = vunpack.c.h.b16 %v2987
    %v5611 = vunpack.c.l.b16 %v2988
    %v5612 = vunpack.c.h.b16 %v2988
    %v5613 = vunpack.c.l.b16 %v2989
    %v5614 = vunpack.c.h.b16 %v2989
    %v5615 = vunpack.c.l.b16 %v2990
    %v5616 = vunpack.c.h.b16 %v2990
    %v5617 = vunpack.c.l.b16 %v2991
    %v5618 = vunpack.c.h.b16 %v2991
    %v5619 = vunpack.c.l.b16 %v2992
    %v5620 = vunpack.c.h.b16 %v2992
    %v5621 = vunpack.c.l.b16 %v2993
    %v5622 = vunpack.c.h.b16 %v2993
    %v5623 = vunpack.c.l.b16 %v2994
    %v5624 = vunpack.c.h.b16 %v2994
    %v5625 = vunpack.c.l.b16 %v2995
    %v5626 = vunpack.c.h.b16 %v2995
    %v5627 = vunpack.c.l.b16 %v2996
    %v5628 = vunpack.c.h.b16 %v2996
    %v5629 = vunpack.c.l.b16 %v2997
    %v5630 = vunpack.c.h.b16 %v2997
    %v5631 = vunpack.c.l.b16 %v2998
    %v5632 = vunpack.c.h.b16 %v2998
    %v5633 = vunpack.c.l.b16 %v2999
    %v5634 = vunpack.c.h.b16 %v2999
    %v5635 = vunpack.c.l.b16 %v3000
    %v5636 = vunpack.c.h.b16 %v3000
    %v5637 = vunpack.c.l.b16 %v3001
    %v5638 = vunpack.c.h.b16 %v3001
    %v5639 = vunpack.c.l.b16 %v3002
    %v5640 = vunpack.c.h.b16 %v3002
    %v5641 = vunpack.c.l.b16 %v3003
    %v5642 = vunpack.c.h.b16 %v3003
    %v5643 = vunpack.c.l.b16 %v3004
    %v5644 = vunpack.c.h.b16 %v3004
    %v5645 = vunpack.c.l.b16 %v3005
    %v5646 = vunpack.c.h.b16 %v3005
    %v5647 = vunpack.c.l.b16 %v3006
    %v5648 = vunpack.c.h.b16 %v3006
    %v5649 = vunpack.c.l.b16 %v3007
    %v5650 = vunpack.c.h.b16 %v3007
    %v5651 = vunpack.c.l.b16 %v3008
    %v5652 = vunpack.c.h.b16 %v3008
    %v5653 = vunpack.c.l.b16 %v3009
    %v5654 = vunpack.c.h.b16 %v3009
    %v5655 = vunpack.c.l.b16 %v3010
    %v5656 = vunpack.c.h.b16 %v3010
    %v5657 = vunpack.c.l.b16 %v3011
    %v5658 = vunpack.c.h.b16 %v3011
    %v5659 = vunpack.c.l.b16 %v3012
    %v5660 = vunpack.c.h.b16 %v3012
    %v5661 = vunpack.c.l.b16 %v3013
    %v5662 = vunpack.c.h.b16 %v3013
    %v5663 = vunpack.c.l.b16 %v3014
    %v5664 = vunpack.c.h.b16 %v3014
    %v5665 = vunpack.c.l.b16 %v3015
    %v5666 = vunpack.c.h.b16 %v3015
    %v5667 = vunpack.c.l.b16 %v3016
    %v5668 = vunpack.c.h.b16 %v3016
    %v5669 = vunpack.c.l.b16 %v3017
    %v5670 = vunpack.c.h.b16 %v3017
    %v5671 = vunpack.c.l.b16 %v3018
    %v5672 = vunpack.c.h.b16 %v3018
    %v5673 = vunpack.c.l.b16 %v3019
    %v5674 = vunpack.c.h.b16 %v3019
    %v5675 = vunpack.c.l.b16 %v3020
    %v5676 = vunpack.c.h.b16 %v3020
    %v5677 = vunpack.c.l.b16 %v3021
    %v5678 = vunpack.c.h.b16 %v3021
    %v5679 = vunpack.c.l.b16 %v3022
    %v5680 = vunpack.c.h.b16 %v3022
    %v5681 = vunpack.c.l.b16 %v3023
    %v5682 = vunpack.c.h.b16 %v3023
    %v5683 = vunpack.c.l.b16 %v3024
    %v5684 = vunpack.c.h.b16 %v3024
    %v5685 = vunpack.c.l.b16 %v3025
    %v5686 = vunpack.c.h.b16 %v3025
    %v5687 = vunpack.c.l.b16 %v3026
    %v5688 = vunpack.c.h.b16 %v3026
    %v5689 = vunpack.c.l.b16 %v3027
    %v5690 = vunpack.c.h.b16 %v3027
    %v5691 = vunpack.c.l.b16 %v3028
    %v5692 = vunpack.c.h.b16 %v3028
    %v5693 = vunpack.c.l.b16 %v3029
    %v5694 = vunpack.c.h.b16 %v3029
    %v5695 = vunpack.c.l.b16 %v3030
    %v5696 = vunpack.c.h.b16 %v3030
    %v5697 = vunpack.c.l.b16 %v3031
    %v5698 = vunpack.c.h.b16 %v3031
    %v5699 = vunpack.c.l.b16 %v3032
    %v5700 = vunpack.c.h.b16 %v3032
    %v5701 = vunpack.c.l.b16 %v3033
    %v5702 = vunpack.c.h.b16 %v3033
    %v5703 = vunpack.c.l.b16 %v3034
    %v5704 = vunpack.c.h.b16 %v3034
    %v5705 = vunpack.c.l.b16 %v3035
    %v5706 = vunpack.c.h.b16 %v3035
    %v5707 = vunpack.c.l.b16 %v3036
    %v5708 = vunpack.c.h.b16 %v3036
    %v5709 = vunpack.c.l.b16 %v3037
    %v5710 = vunpack.c.h.b16 %v3037
    %v5711 = vunpack.c.l.b16 %v3038
    %v5712 = vunpack.c.h.b16 %v3038
    %v5713 = vunpack.c.l.b16 %v3039
    %v5714 = vunpack.c.h.b16 %v3039
    %v5715 = vunpack.c.l.b16 %v3040
    %v5716 = vunpack.c.h.b16 %v3040
    %v5717 = vunpack.c.l.b16 %v3041
    %v5718 = vunpack.c.h.b16 %v3041
    %v5719 = vunpack.c.l.b16 %v3042
    %v5720 = vunpack.c.h.b16 %v3042
    %v5721 = vunpack.c.l.b16 %v3043
    %v5722 = vunpack.c.h.b16 %v3043
    %v5723 = vunpack.c.l.b16 %v3044
    %v5724 = vunpack.c.h.b16 %v3044
    %v5725 = vunpack.c.l.b16 %v3045
    %v5726 = vunpack.c.h.b16 %v3045
    %v5727 = vunpack.c.l.b16 %v3046
    %v5728 = vunpack.c.h.b16 %v3046
    %v5729 = vunpack.c.l.b16 %v3047
    %v5730 = vunpack.c.h.b16 %v3047
    %v5731 = vunpack.c.l.b16 %v3048
    %v5732 = vunpack.c.h.b16 %v3048
    %v5733 = vunpack.c.l.b16 %v3049
    %v5734 = vunpack.c.h.b16 %v3049
    %v5735 = vunpack.c.l.b16 %v3050
    %v5736 = vunpack.c.h.b16 %v3050
    %v5737 = vunpack.c.l.b16 %v3051
    %v5738 = vunpack.c.h.b16 %v3051
    %v5739 = vunpack.c.l.b16 %v3052
    %v5740 = vunpack.c.h.b16 %v3052
    %v5741 = vunpack.c.l.b16 %v3053
    %v5742 = vunpack.c.h.b16 %v3053
    %v5743 = vunpack.c.l.b16 %v3054
    %v5744 = vunpack.c.h.b16 %v3054
    %v5745 = vunpack.c.l.b16 %v3055
    %v5746 = vunpack.c.h.b16 %v3055
    %v5747 = vunpack.c.l.b16 %v3056
    %v5748 = vunpack.c.h.b16 %v3056
    %v5749 = vunpack.c.l.b16 %v3057
    %v5750 = vunpack.c.h.b16 %v3057
    %v5751 = vunpack.c.l.b16 %v3058
    %v5752 = vunpack.c.h.b16 %v3058
    %v5753 = vunpack.c.l.b16 %v3059
    %v5754 = vunpack.c.h.b16 %v3059
    %v5755 = vunpack.c.l.b16 %v3060
    %v5756 = vunpack.c.h.b16 %v3060
    %v5757 = vunpack.c.l.b16 %v3061
    %v5758 = vunpack.c.h.b16 %v3061
    %v5759 = vunpack.c.l.b16 %v3062
    %v5760 = vunpack.c.h.b16 %v3062
    %v5761 = vunpack.c.l.b16 %v3063
    %v5762 = vunpack.c.h.b16 %v3063
    %v5763 = vunpack.c.l.b16 %v3064
    %v5764 = vunpack.c.h.b16 %v3064
    %v5765 = vunpack.c.l.b16 %v3065
    %v5766 = vunpack.c.h.b16 %v3065
    %v5767 = vunpack.c.l.b16 %v3066
    %v5768 = vunpack.c.h.b16 %v3066
    %v5769 = vunpack.c.l.b16 %v3067
    %v5770 = vunpack.c.h.b16 %v3067
    %v5771 = vunpack.c.l.b16 %v3068
    %v5772 = vunpack.c.h.b16 %v3068
    %v5773 = vunpack.c.l.b16 %v3069
    %v5774 = vunpack.c.h.b16 %v3069
    %v5775 = vunpack.c.l.b16 %v3070
    %v5776 = vunpack.c.h.b16 %v3070
    %v5777 = vunpack.c.l.b16 %v3071
    %v5778 = vunpack.c.h.b16 %v3071
    %v5779 = vunpack.c.l.b16 %v3072
    %v5780 = vunpack.c.h.b16 %v3072
    %v5781 = vunpack.c.l.b16 %v3073
    %v5782 = vunpack.c.h.b16 %v3073
    %v5783 = vunpack.c.l.b16 %v3074
    %v5784 = vunpack.c.h.b16 %v3074
    %v5785 = vunpack.c.l.b16 %v3075
    %v5786 = vunpack.c.h.b16 %v3075
    %v5787 = vunpack.c.l.b16 %v3076
    %v5788 = vunpack.c.h.b16 %v3076
    %v5789 = vunpack.c.l.b16 %v3077
    %v5790 = vunpack.c.h.b16 %v3077
    %v5791 = vunpack.c.l.b16 %v3078
    %v5792 = vunpack.c.h.b16 %v3078
    %v5793 = vunpack.c.l.b16 %v3079
    %v5794 = vunpack.c.h.b16 %v3079
    %v5795 = vunpack.c.l.b16 %v3080
    %v5796 = vunpack.c.h.b16 %v3080
    %v5797 = vunpack.c.l.b16 %v3081
    %v5798 = vunpack.c.h.b16 %v3081
    %v5799 = vunpack.c.l.b16 %v3082
    %v5800 = vunpack.c.h.b16 %v3082
    %v5801 = vunpack.c.l.b16 %v3083
    %v5802 = vunpack.c.h.b16 %v3083
    %v5803 = vunpack.c.l.b16 %v3084
    %v5804 = vunpack.c.h.b16 %v3084
    %v5805 = vunpack.c.l.b16 %v3085
    %v5806 = vunpack.c.h.b16 %v3085
    %v5807 = vunpack.c.l.b16 %v3086
    %v5808 = vunpack.c.h.b16 %v3086
    %v5809 = vunpack.c.l.b16 %v3087
    %v5810 = vunpack.c.h.b16 %v3087
    %v5811 = vunpack.c.l.b16 %v3088
    %v5812 = vunpack.c.h.b16 %v3088
    %v5813 = vunpack.c.l.b16 %v3089
    %v5814 = vunpack.c.h.b16 %v3089
    %v5815 = vunpack.c.l.b16 %v3090
    %v5816 = vunpack.c.h.b16 %v3090
    %v5817 = vunpack.c.l.b16 %v3091
    %v5818 = vunpack.c.h.b16 %v3091
    %v5819 = vunpack.c.l.b16 %v3092
    %v5820 = vunpack.c.h.b16 %v3092
    %v5821 = vunpack.c.l.b16 %v3093
    %v5822 = vunpack.c.h.b16 %v3093
    %v5823 = vunpack.c.l.b16 %v3094
    %v5824 = vunpack.c.h.b16 %v3094
    %v5825 = vunpack.c.l.b16 %v3095
    %v5826 = vunpack.c.h.b16 %v3095
    %v5827 = vunpack.c.l.b16 %v3096
    %v5828 = vunpack.c.h.b16 %v3096
    %v5829 = vpack.c.b16 %v5325, %v5317
    %v5830 = vpack.c.b16 %v5326, %v5318
    %v5831 = vpack.c.b16 %v5327, %v5319
    %v5832 = vpack.c.b16 %v5328, %v5320
    %v5833 = vpack.c.b16 %v5329, %v5321
    %v5834 = vpack.c.b16 %v5330, %v5322
    %v5835 = vpack.c.b16 %v5331, %v5323
    %v5836 = vpack.c.b16 %v5332, %v5324
    %v5837 = vpack.c.b16 %v5341, %v5333
    %v5838 = vpack.c.b16 %v5342, %v5334
    %v5839 = vpack.c.b16 %v5343, %v5335
    %v5840 = vpack.c.b16 %v5344, %v5336
    %v5841 = vpack.c.b16 %v5345, %v5337
    %v5842 = vpack.c.b16 %v5346, %v5338
    %v5843 = vpack.c.b16 %v5347, %v5339
    %v5844 = vpack.c.b16 %v5348, %v5340
    %v5845 = vpack.c.b16 %v5357, %v5349
    %v5846 = vpack.c.b16 %v5358, %v5350
    %v5847 = vpack.c.b16 %v5359, %v5351
    %v5848 = vpack.c.b16 %v5360, %v5352
    %v5849 = vpack.c.b16 %v5361, %v5353
    %v5850 = vpack.c.b16 %v5362, %v5354
    %v5851 = vpack.c.b16 %v5363, %v5355
    %v5852 = vpack.c.b16 %v5364, %v5356
    %v5853 = vpack.c.b16 %v5373, %v5365
    %v5854 = vpack.c.b16 %v5374, %v5366
    %v5855 = vpack.c.b16 %v5375, %v5367
    %v5856 = vpack.c.b16 %v5376, %v5368
    %v5857 = vpack.c.b16 %v5377, %v5369
    %v5858 = vpack.c.b16 %v5378, %v5370
    %v5859 = vpack.c.b16 %v5379, %v5371
    %v5860 = vpack.c.b16 %v5380, %v5372
    %v5861 = vpack.c.b16 %v5389, %v5381
    %v5862 = vpack.c.b16 %v5390, %v5382
    %v5863 = vpack.c.b16 %v5391, %v5383
    %v5864 = vpack.c.b16 %v5392, %v5384
    %v5865 = vpack.c.b16 %v5393, %v5385
    %v5866 = vpack.c.b16 %v5394, %v5386
    %v5867 = vpack.c.b16 %v5395, %v5387
    %v5868 = vpack.c.b16 %v5396, %v5388
    %v5869 = vpack.c.b16 %v5405, %v5397
    %v5870 = vpack.c.b16 %v5406, %v5398
    %v5871 = vpack.c.b16 %v5407, %v5399
    %v5872 = vpack.c.b16 %v5408, %v5400
    %v5873 = vpack.c.b16 %v5409, %v5401
    %v5874 = vpack.c.b16 %v5410, %v5402
    %v5875 = vpack.c.b16 %v5411, %v5403
    %v5876 = vpack.c.b16 %v5412, %v5404
    %v5877 = vpack.c.b16 %v5421, %v5413
    %v5878 = vpack.c.b16 %v5422, %v5414
    %v5879 = vpack.c.b16 %v5423, %v5415
    %v5880 = vpack.c.b16 %v5424, %v5416
    %v5881 = vpack.c.b16 %v5425, %v5417
    %v5882 = vpack.c.b16 %v5426, %v5418
    %v5883 = vpack.c.b16 %v5427, %v5419
    %v5884 = vpack.c.b16 %v5428, %v5420
    %v5885 = vpack.c.b16 %v5437, %v5429
    %v5886 = vpack.c.b16 %v5438, %v5430
    %v5887 = vpack.c.b16 %v5439, %v5431
    %v5888 = vpack.c.b16 %v5440, %v5432
    %v5889 = vpack.c.b16 %v5441, %v5433
    %v5890 = vpack.c.b16 %v5442, %v5434
    %v5891 = vpack.c.b16 %v5443, %v5435
    %v5892 = vpack.c.b16 %v5444, %v5436
    %v5893 = vpack.c.b16 %v5453, %v5445
    %v5894 = vpack.c.b16 %v5454, %v5446
    %v5895 = vpack.c.b16 %v5455, %v5447
    %v5896 = vpack.c.b16 %v5456, %v5448
    %v5897 = vpack.c.b16 %v5457, %v5449
    %v5898 = vpack.c.b16 %v5458, %v5450
    %v5899 = vpack.c.b16 %v5459, %v5451
    %v5900 = vpack.c.b16 %v5460, %v5452
    %v5901 = vpack.c.b16 %v5469, %v5461
    %v5902 = vpack.c.b16 %v5470, %v5462
    %v5903 = vpack.c.b16 %v5471, %v5463
    %v5904 = vpack.c.b16 %v5472, %v5464
    %v5905 = vpack.c.b16 %v5473, %v5465
    %v5906 = vpack.c.b16 %v5474, %v5466
    %v5907 = vpack.c.b16 %v5475, %v5467
    %v5908 = vpack.c.b16 %v5476, %v5468
    %v5909 = vpack.c.b16 %v5485, %v5477
    %v5910 = vpack.c.b16 %v5486, %v5478
    %v5911 = vpack.c.b16 %v5487, %v5479
    %v5912 = vpack.c.b16 %v5488, %v5480
    %v5913 = vpack.c.b16 %v5489, %v5481
    %v5914 = vpack.c.b16 %v5490, %v5482
    %v5915 = vpack.c.b16 %v5491, %v5483
    %v5916 = vpack.c.b16 %v5492, %v5484
    %v5917 = vpack.c.b16 %v5501, %v5493
    %v5918 = vpack.c.b16 %v5502, %v5494
    %v5919 = vpack.c.b16 %v5503, %v5495
    %v5920 = vpack.c.b16 %v5504, %v5496
    %v5921 = vpack.c.b16 %v5505, %v5497
    %v5922 = vpack.c.b16 %v5506, %v5498
    %v5923 = vpack.c.b16 %v5507, %v5499
    %v5924 = vpack.c.b16 %v5508, %v5500
    %v5925 = vpack.c.b16 %v5517, %v5509
    %v5926 = vpack.c.b16 %v5518, %v5510
    %v5927 = vpack.c.b16 %v5519, %v5511
    %v5928 = vpack.c.b16 %v5520, %v5512
    %v5929 = vpack.c.b16 %v5521, %v5513
    %v5930 = vpack.c.b16 %v5522, %v5514
    %v5931 = vpack.c.b16 %v5523, %v5515
    %v5932 = vpack.c.b16 %v5524, %v5516
    %v5933 = vpack.c.b16 %v5533, %v5525
    %v5934 = vpack.c.b16 %v5534, %v5526
    %v5935 = vpack.c.b16 %v5535, %v5527
    %v5936 = vpack.c.b16 %v5536, %v5528
    %v5937 = vpack.c.b16 %v5537, %v5529
    %v5938 = vpack.c.b16 %v5538, %v5530
    %v5939 = vpack.c.b16 %v5539, %v5531
    %v5940 = vpack.c.b16 %v5540, %v5532
    %v5941 = vpack.c.b16 %v5549, %v5541
    %v5942 = vpack.c.b16 %v5550, %v5542
    %v5943 = vpack.c.b16 %v5551, %v5543
    %v5944 = vpack.c.b16 %v5552, %v5544
    %v5945 = vpack.c.b16 %v5553, %v5545
    %v5946 = vpack.c.b16 %v5554, %v5546
    %v5947 = vpack.c.b16 %v5555, %v5547
    %v5948 = vpack.c.b16 %v5556, %v5548
    %v5949 = vpack.c.b16 %v5565, %v5557
    %v5950 = vpack.c.b16 %v5566, %v5558
    %v5951 = vpack.c.b16 %v5567, %v5559
    %v5952 = vpack.c.b16 %v5568, %v5560
    %v5953 = vpack.c.b16 %v5569, %v5561
    %v5954 = vpack.c.b16 %v5570, %v5562
    %v5955 = vpack.c.b16 %v5571, %v5563
    %v5956 = vpack.c.b16 %v5572, %v5564
    %v5957 = vpack.c.b16 %v5581, %v5573
    %v5958 = vpack.c.b16 %v5582, %v5574
    %v5959 = vpack.c.b16 %v5583, %v5575
    %v5960 = vpack.c.b16 %v5584, %v5576
    %v5961 = vpack.c.b16 %v5585, %v5577
    %v5962 = vpack.c.b16 %v5586, %v5578
    %v5963 = vpack.c.b16 %v5587, %v5579
    %v5964 = vpack.c.b16 %v5588, %v5580
    %v5965 = vpack.c.b16 %v5597, %v5589
    %v5966 = vpack.c.b16 %v5598, %v5590
    %v5967 = vpack.c.b16 %v5599, %v5591
    %v5968 = vpack.c.b16 %v5600, %v5592
    %v5969 = vpack.c.b16 %v5601, %v5593
    %v5970 = vpack.c.b16 %v5602, %v5594
    %v5971 = vpack.c.b16 %v5603, %v5595
    %v5972 = vpack.c.b16 %v5604, %v5596
    %v5973 = vpack.c.b16 %v5613, %v5605
    %v5974 = vpack.c.b16 %v5614, %v5606
    %v5975 = vpack.c.b16 %v5615, %v5607
    %v5976 = vpack.c.b16 %v5616, %v5608
    %v5977 = vpack.c.b16 %v5617, %v5609
    %v5978 = vpack.c.b16 %v5618, %v5610
    %v5979 = vpack.c.b16 %v5619, %v5611
    %v5980 = vpack.c.b16 %v5620, %v5612
    %v5981 = vpack.c.b16 %v5629, %v5621
    %v5982 = vpack.c.b16 %v5630, %v5622
    %v5983 = vpack.c.b16 %v5631, %v5623
    %v5984 = vpack.c.b16 %v5632, %v5624
    %v5985 = vpack.c.b16 %v5633, %v5625
    %v5986 = vpack.c.b16 %v5634, %v5626
    %v5987 = vpack.c.b16 %v5635, %v5627
    %v5988 = vpack.c.b16 %v5636, %v5628
    %v5989 = vpack.c.b16 %v5645, %v5637
    %v5990 = vpack.c.b16 %v5646, %v5638
    %v5991 = vpack.c.b16 %v5647, %v5639
    %v5992 = vpack.c.b16 %v5648, %v5640
    %v5993 = vpack.c.b16 %v5649, %v5641
    %v5994 = vpack.c.b16 %v5650, %v5642
    %v5995 = vpack.c.b16 %v5651, %v5643
    %v5996 = vpack.c.b16 %v5652, %v5644
    %v5997 = vpack.c.b16 %v5661, %v5653
    %v5998 = vpack.c.b16 %v5662, %v5654
    %v5999 = vpack.c.b16 %v5663, %v5655
    %v6000 = vpack.c.b16 %v5664, %v5656
    %v6001 = vpack.c.b16 %v5665, %v5657
    %v6002 = vpack.c.b16 %v5666, %v5658
    %v6003 = vpack.c.b16 %v5667, %v5659
    %v6004 = vpack.c.b16 %v5668, %v5660
    %v6005 = vpack.c.b16 %v5677, %v5669
    %v6006 = vpack.c.b16 %v5678, %v5670
    %v6007 = vpack.c.b16 %v5679, %v5671
    %v6008 = vpack.c.b16 %v5680, %v5672
    %v6009 = vpack.c.b16 %v5681, %v5673
    %v6010 = vpack.c.b16 %v5682, %v5674
    %v6011 = vpack.c.b16 %v5683, %v5675
    %v6012 = vpack.c.b16 %v5684, %v5676
    %v6013 = vpack.c.b16 %v5693, %v5685
    %v6014 = vpack.c.b16 %v5694, %v5686
    %v6015 = vpack.c.b16 %v5695, %v5687
    %v6016 = vpack.c.b16 %v5696, %v5688
    %v6017 = vpack.c.b16 %v5697, %v5689
    %v6018 = vpack.c.b16 %v5698, %v5690
    %v6019 = vpack.c.b16 %v5699, %v5691
    %v6020 = vpack.c.b16 %v5700, %v5692
    %v6021 = vpack.c.b16 %v5709, %v5701
    %v6022 = vpack.c.b16 %v5710, %v5702
    %v6023 = vpack.c.b16 %v5711, %v5703
    %v6024 = vpack.c.b16 %v5712, %v5704
    %v6025 = vpack.c.b16 %v5713, %v5705
    %v6026 = vpack.c.b16 %v5714, %v5706
    %v6027 = vpack.c.b16 %v5715, %v5707
    %v6028 = vpack.c.b16 %v5716, %v5708
    %v6029 = vpack.c.b16 %v5725, %v5717
    %v6030 = vpack.c.b16 %v5726, %v5718
    %v6031 = vpack.c.b16 %v5727, %v5719
    %v6032 = vpack.c.b16 %v5728, %v5720
    %v6033 = vpack.c.b16 %v5729, %v5721
    %v6034 = vpack.c.b16 %v5730, %v5722
    %v6035 = vpack.c.b16 %v5731, %v5723
    %v6036 = vpack.c.b16 %v5732, %v5724
    %v6037 = vpack.c.b16 %v5741, %v5733
    %v6038 = vpack.c.b16 %v5742, %v5734
    %v6039 = vpack.c.b16 %v5743, %v5735
    %v6040 = vpack.c.b16 %v5744, %v5736
    %v6041 = vpack.c.b16 %v5745, %v5737
    %v6042 = vpack.c.b16 %v5746, %v5738
    %v6043 = vpack.c.b16 %v5747, %v5739
    %v6044 = vpack.c.b16 %v5748, %v5740
    %v6045 = vpack.c.b16 %v5757, %v5749
    %v6046 = vpack.c.b16 %v5758, %v5750
    %v6047 = vpack.c.b16 %v5759, %v5751
    %v6048 = vpack.c.b16 %v5760, %v5752
    %v6049 = vpack.c.b16 %v5761, %v5753
    %v6050 = vpack.c.b16 %v5762, %v5754
    %v6051 = vpack.c.b16 %v5763, %v5755
    %v6052 = vpack.c.b16 %v5764, %v5756
    %v6053 = vpack.c.b16 %v5773, %v5765
    %v6054 = vpack.c.b16 %v5774, %v5766
    %v6055 = vpack.c.b16 %v5775, %v5767
    %v6056 = vpack.c.b16 %v5776, %v5768
    %v6057 = vpack.c.b16 %v5777, %v5769
    %v6058 = vpack.c.b16 %v5778, %v5770
    %v6059 = vpack.c.b16 %v5779, %v5771
    %v6060 = vpack.c.b16 %v5780, %v5772
    %v6061 = vpack.c.b16 %v5789, %v5781
    %v6062 = vpack.c.b16 %v5790, %v5782
    %v6063 = vpack.c.b16 %v5791, %v5783
    %v6064 = vpack.c.b16 %v5792, %v5784
    %v6065 = vpack.c.b16 %v5793, %v5785
    %v6066 = vpack.c.b16 %v5794, %v5786
    %v6067 = vpack.c.b16 %v5795, %v5787
    %v6068 = vpack.c.b16 %v5796, %v5788
    %v6069 = vpack.c.b16 %v5805, %v5797
    %v6070 = vpack.c.b16 %v5806, %v5798
    %v6071 = vpack.c.b16 %v5807, %v5799
    %v6072 = vpack.c.b16 %v5808, %v5800
    %v6073 = vpack.c.b16 %v5809, %v5801
    %v6074 = vpack.c.b16 %v5810, %v5802
    %v6075 = vpack.c.b16 %v5811, %v5803
    %v6076 = vpack.c.b16 %v5812, %v5804
    %v6077 = vpack.c.b16 %v5821, %v5813
    %v6078 = vpack.c.b16 %v5822, %v5814
    %v6079 = vpack.c.b16 %v5823, %v5815
    %v6080 = vpack.c.b16 %v5824, %v5816
    %v6081 = vpack.c.b16 %v5825, %v5817
    %v6082 = vpack.c.b16 %v5826, %v5818
    %v6083 = vpack.c.b16 %v5827, %v5819
    %v6084 = vpack.c.b16 %v5828, %v5820
    %6341 = vmatpush.bf16.msra.mxu0 %v5885
    %6342 = vmatpush.bf16.msra.mxu0 %v5877
    %6343 = vmatpush.bf16.msra.mxu0 %v5869
    %6344 = vmatpush.bf16.msra.mxu0 %v5861
    %6345 = vmatpush.bf16.msra.mxu0 %v5853
    %6346 = vmatpush.bf16.msra.mxu0 %v5845
    %6347 = vmatpush.bf16.msra.mxu0 %v5837
    %6348 = vmatpush.bf16.msra.mxu0 %v5829
    %6349 = vmatmul.bf16.gmra.mxu0 %v2837
    %v6350 = vpop.f32.mrf.mxu0
    %v6351 = vadd.f32 %v4694, %v6350
    %v6352 = vpop.f32.mrf.mxu0
    %6353 = vdwg.mxu0
    %6354 = vmatpush.bf16.msra.mxu0 %v5949
    %6355 = vmatpush.bf16.msra.mxu0 %v5941
    %6356 = vmatpush.bf16.msra.mxu0 %v5933
    %6357 = vmatpush.bf16.msra.mxu0 %v5925
    %6358 = vmatpush.bf16.msra.mxu0 %v5917
    %6359 = vmatpush.bf16.msra.mxu0 %v5909
    %6360 = vmatpush.bf16.msra.mxu0 %v5901
    %6361 = vmatpush.bf16.msra.mxu0 %v5893
    %6362 = vmatmul.bf16.gmra.mxu0 %v2838
    %v6363 = vpop.f32.mrf.mxu0
    %v6364 = vadd.f32 %v6351, %v6363
    %v6365 = vpop.f32.mrf.mxu0
    %6366 = vdwg.mxu0
    %6367 = vmatpush.bf16.msra.mxu0 %v6013
    %6368 = vmatpush.bf16.msra.mxu0 %v6005
    %6369 = vmatpush.bf16.msra.mxu0 %v5997
    %6370 = vmatpush.bf16.msra.mxu0 %v5989
    %6371 = vmatpush.bf16.msra.mxu0 %v5981
    %6372 = vmatpush.bf16.msra.mxu0 %v5973
    %6373 = vmatpush.bf16.msra.mxu0 %v5965
    %6374 = vmatpush.bf16.msra.mxu0 %v5957
    %6375 = vmatmul.bf16.gmra.mxu0 %v2839
    %v6376 = vpop.f32.mrf.mxu0
    %v6377 = vadd.f32 %v6364, %v6376
    %v6378 = vpop.f32.mrf.mxu0
    %6379 = vdwg.mxu0
    %6380 = vmatpush.bf16.msra.mxu0 %v6077
    %6381 = vmatpush.bf16.msra.mxu0 %v6069
    %6382 = vmatpush.bf16.msra.mxu0 %v6061
    %6383 = vmatpush.bf16.msra.mxu0 %v6053
    %6384 = vmatpush.bf16.msra.mxu0 %v6045
    %6385 = vmatpush.bf16.msra.mxu0 %v6037
    %6386 = vmatpush.bf16.msra.mxu0 %v6029
    %6387 = vmatpush.bf16.msra.mxu0 %v6021
    %6388 = vmatmul.bf16.gmra.mxu0 %v2840
    %v6389 = vpop.f32.mrf.mxu0
    %v6390 = vadd.f32 %v6377, %v6389
    %v6391 = vpop.f32.mrf.mxu0
    %6392 = vdwg.mxu0
    %6393 = vmatpush.bf16.msra.mxu0 %v5886
    %6394 = vmatpush.bf16.msra.mxu0 %v5878
    %6395 = vmatpush.bf16.msra.mxu0 %v5870
    %6396 = vmatpush.bf16.msra.mxu0 %v5862
    %6397 = vmatpush.bf16.msra.mxu0 %v5854
    %6398 = vmatpush.bf16.msra.mxu0 %v5846
    %6399 = vmatpush.bf16.msra.mxu0 %v5838
    %6400 = vmatpush.bf16.msra.mxu0 %v5830
    %6401 = vmatmul.bf16.gmra.mxu0 %v2837
    %v6402 = vpop.f32.mrf.mxu0
    %v6403 = vadd.f32 %v4746, %v6402
    %v6404 = vpop.f32.mrf.mxu0
    %6405 = vdwg.mxu0
    %6406 = vmatpush.bf16.msra.mxu0 %v5950
    %6407 = vmatpush.bf16.msra.mxu0 %v5942
    %6408 = vmatpush.bf16.msra.mxu0 %v5934
    %6409 = vmatpush.bf16.msra.mxu0 %v5926
    %6410 = vmatpush.bf16.msra.mxu0 %v5918
    %6411 = vmatpush.bf16.msra.mxu0 %v5910
    %6412 = vmatpush.bf16.msra.mxu0 %v5902
    %6413 = vmatpush.bf16.msra.mxu0 %v5894
    %6414 = vmatmul.bf16.gmra.mxu0 %v2838
    %v6415 = vpop.f32.mrf.mxu0
    %v6416 = vadd.f32 %v6403, %v6415
    %v6417 = vpop.f32.mrf.mxu0
    %6418 = vdwg.mxu0
    %6419 = vmatpush.bf16.msra.mxu0 %v6014
    %6420 = vmatpush.bf16.msra.mxu0 %v6006
    %6421 = vmatpush.bf16.msra.mxu0 %v5998
    %6422 = vmatpush.bf16.msra.mxu0 %v5990
    %6423 = vmatpush.bf16.msra.mxu0 %v5982
    %6424 = vmatpush.bf16.msra.mxu0 %v5974
    %6425 = vmatpush.bf16.msra.mxu0 %v5966
    %6426 = vmatpush.bf16.msra.mxu0 %v5958
    %6427 = vmatmul.bf16.gmra.mxu0 %v2839
    %v6428 = vpop.f32.mrf.mxu0
    %v6429 = vadd.f32 %v6416, %v6428
    %v6430 = vpop.f32.mrf.mxu0
    %6431 = vdwg.mxu0
    %6432 = vmatpush.bf16.msra.mxu0 %v6078
    %6433 = vmatpush.bf16.msra.mxu0 %v6070
    %6434 = vmatpush.bf16.msra.mxu0 %v6062
    %6435 = vmatpush.bf16.msra.mxu0 %v6054
    %6436 = vmatpush.bf16.msra.mxu0 %v6046
    %6437 = vmatpush.bf16.msra.mxu0 %v6038
    %6438 = vmatpush.bf16.msra.mxu0 %v6030
    %6439 = vmatpush.bf16.msra.mxu0 %v6022
    %6440 = vmatmul.bf16.gmra.mxu0 %v2840
    %v6441 = vpop.f32.mrf.mxu0
    %v6442 = vadd.f32 %v6429, %v6441
    %v6443 = vpop.f32.mrf.mxu0
    %6444 = vdwg.mxu0
    %6445 = vmatpush.bf16.msra.mxu0 %v5887
    %6446 = vmatpush.bf16.msra.mxu0 %v5879
    %6447 = vmatpush.bf16.msra.mxu0 %v5871
    %6448 = vmatpush.bf16.msra.mxu0 %v5863
    %6449 = vmatpush.bf16.msra.mxu0 %v5855
    %6450 = vmatpush.bf16.msra.mxu0 %v5847
    %6451 = vmatpush.bf16.msra.mxu0 %v5839
    %6452 = vmatpush.bf16.msra.mxu0 %v5831
    %6453 = vmatmul.bf16.gmra.mxu0 %v2837
    %v6454 = vpop.f32.mrf.mxu0
    %v6455 = vadd.f32 %v4798, %v6454
    %v6456 = vpop.f32.mrf.mxu0
    %6457 = vdwg.mxu0
    %6458 = vmatpush.bf16.msra.mxu0 %v5951
    %6459 = vmatpush.bf16.msra.mxu0 %v5943
    %6460 = vmatpush.bf16.msra.mxu0 %v5935
    %6461 = vmatpush.bf16.msra.mxu0 %v5927
    %6462 = vmatpush.bf16.msra.mxu0 %v5919
    %6463 = vmatpush.bf16.msra.mxu0 %v5911
    %6464 = vmatpush.bf16.msra.mxu0 %v5903
    %6465 = vmatpush.bf16.msra.mxu0 %v5895
    %6466 = vmatmul.bf16.gmra.mxu0 %v2838
    %v6467 = vpop.f32.mrf.mxu0
    %v6468 = vadd.f32 %v6455, %v6467
    %v6469 = vpop.f32.mrf.mxu0
    %6470 = vdwg.mxu0
    %6471 = vmatpush.bf16.msra.mxu0 %v6015
    %6472 = vmatpush.bf16.msra.mxu0 %v6007
    %6473 = vmatpush.bf16.msra.mxu0 %v5999
    %6474 = vmatpush.bf16.msra.mxu0 %v5991
    %6475 = vmatpush.bf16.msra.mxu0 %v5983
    %6476 = vmatpush.bf16.msra.mxu0 %v5975
    %6477 = vmatpush.bf16.msra.mxu0 %v5967
    %6478 = vmatpush.bf16.msra.mxu0 %v5959
    %6479 = vmatmul.bf16.gmra.mxu0 %v2839
    %v6480 = vpop.f32.mrf.mxu0
    %v6481 = vadd.f32 %v6468, %v6480
    %v6482 = vpop.f32.mrf.mxu0
    %6483 = vdwg.mxu0
    %6484 = vmatpush.bf16.msra.mxu0 %v6079
    %6485 = vmatpush.bf16.msra.mxu0 %v6071
    %6486 = vmatpush.bf16.msra.mxu0 %v6063
    %6487 = vmatpush.bf16.msra.mxu0 %v6055
    %6488 = vmatpush.bf16.msra.mxu0 %v6047
    %6489 = vmatpush.bf16.msra.mxu0 %v6039
    %6490 = vmatpush.bf16.msra.mxu0 %v6031
    %6491 = vmatpush.bf16.msra.mxu0 %v6023
    %6492 = vmatmul.bf16.gmra.mxu0 %v2840
    %v6493 = vpop.f32.mrf.mxu0
    %v6494 = vadd.f32 %v6481, %v6493
    %v6495 = vpop.f32.mrf.mxu0
    %6496 = vdwg.mxu0
    %6497 = vmatpush.bf16.msra.mxu0 %v5888
    %6498 = vmatpush.bf16.msra.mxu0 %v5880
    %6499 = vmatpush.bf16.msra.mxu0 %v5872
    %6500 = vmatpush.bf16.msra.mxu0 %v5864
    %6501 = vmatpush.bf16.msra.mxu0 %v5856
    %6502 = vmatpush.bf16.msra.mxu0 %v5848
    %6503 = vmatpush.bf16.msra.mxu0 %v5840
    %6504 = vmatpush.bf16.msra.mxu0 %v5832
    %6505 = vmatmul.bf16.gmra.mxu0 %v2837
    %v6506 = vpop.f32.mrf.mxu0
    %v6507 = vadd.f32 %v4850, %v6506
    %v6508 = vpop.f32.mrf.mxu0
    %6509 = vdwg.mxu0
    %6510 = vmatpush.bf16.msra.mxu0 %v5952
    %6511 = vmatpush.bf16.msra.mxu0 %v5944
    %6512 = vmatpush.bf16.msra.mxu0 %v5936
    %6513 = vmatpush.bf16.msra.mxu0 %v5928
    %6514 = vmatpush.bf16.msra.mxu0 %v5920
    %6515 = vmatpush.bf16.msra.mxu0 %v5912
    %6516 = vmatpush.bf16.msra.mxu0 %v5904
    %6517 = vmatpush.bf16.msra.mxu0 %v5896
    %6518 = vmatmul.bf16.gmra.mxu0 %v2838
    %v6519 = vpop.f32.mrf.mxu0
    %v6520 = vadd.f32 %v6507, %v6519
    %v6521 = vpop.f32.mrf.mxu0
    %6522 = vdwg.mxu0
    %6523 = vmatpush.bf16.msra.mxu0 %v6016
    %6524 = vmatpush.bf16.msra.mxu0 %v6008
    %6525 = vmatpush.bf16.msra.mxu0 %v6000
    %6526 = vmatpush.bf16.msra.mxu0 %v5992
    %6527 = vmatpush.bf16.msra.mxu0 %v5984
    %6528 = vmatpush.bf16.msra.mxu0 %v5976
    %6529 = vmatpush.bf16.msra.mxu0 %v5968
    %6530 = vmatpush.bf16.msra.mxu0 %v5960
    %6531 = vmatmul.bf16.gmra.mxu0 %v2839
    %v6532 = vpop.f32.mrf.mxu0
    %v6533 = vadd.f32 %v6520, %v6532
    %v6534 = vpop.f32.mrf.mxu0
    %6535 = vdwg.mxu0
    %6536 = vmatpush.bf16.msra.mxu0 %v6080
    %6537 = vmatpush.bf16.msra.mxu0 %v6072
    %6538 = vmatpush.bf16.msra.mxu0 %v6064
    %6539 = vmatpush.bf16.msra.mxu0 %v6056
    %6540 = vmatpush.bf16.msra.mxu0 %v6048
    %6541 = vmatpush.bf16.msra.mxu0 %v6040
    %6542 = vmatpush.bf16.msra.mxu0 %v6032
    %6543 = vmatpush.bf16.msra.mxu0 %v6024
    %6544 = vmatmul.bf16.gmra.mxu0 %v2840
    %v6545 = vpop.f32.mrf.mxu0
    %v6546 = vadd.f32 %v6533, %v6545
    %v6547 = vpop.f32.mrf.mxu0
    %6548 = vdwg.mxu0
    %6549 = vmatpush.bf16.msra.mxu0 %v5889
    %6550 = vmatpush.bf16.msra.mxu0 %v5881
    %6551 = vmatpush.bf16.msra.mxu0 %v5873
    %6552 = vmatpush.bf16.msra.mxu0 %v5865
    %6553 = vmatpush.bf16.msra.mxu0 %v5857
    %6554 = vmatpush.bf16.msra.mxu0 %v5849
    %6555 = vmatpush.bf16.msra.mxu0 %v5841
    %6556 = vmatpush.bf16.msra.mxu0 %v5833
    %6557 = vmatmul.bf16.gmra.mxu0 %v2837
    %v6558 = vpop.f32.mrf.mxu0
    %v6559 = vadd.f32 %v4902, %v6558
    %v6560 = vpop.f32.mrf.mxu0
    %6561 = vdwg.mxu0
    %6562 = vmatpush.bf16.msra.mxu0 %v5953
    %6563 = vmatpush.bf16.msra.mxu0 %v5945
    %6564 = vmatpush.bf16.msra.mxu0 %v5937
    %6565 = vmatpush.bf16.msra.mxu0 %v5929
    %6566 = vmatpush.bf16.msra.mxu0 %v5921
    %6567 = vmatpush.bf16.msra.mxu0 %v5913
    %6568 = vmatpush.bf16.msra.mxu0 %v5905
    %6569 = vmatpush.bf16.msra.mxu0 %v5897
    %6570 = vmatmul.bf16.gmra.mxu0 %v2838
    %v6571 = vpop.f32.mrf.mxu0
    %v6572 = vadd.f32 %v6559, %v6571
    %v6573 = vpop.f32.mrf.mxu0
    %6574 = vdwg.mxu0
    %6575 = vmatpush.bf16.msra.mxu0 %v6017
    %6576 = vmatpush.bf16.msra.mxu0 %v6009
    %6577 = vmatpush.bf16.msra.mxu0 %v6001
    %6578 = vmatpush.bf16.msra.mxu0 %v5993
    %6579 = vmatpush.bf16.msra.mxu0 %v5985
    %6580 = vmatpush.bf16.msra.mxu0 %v5977
    %6581 = vmatpush.bf16.msra.mxu0 %v5969
    %6582 = vmatpush.bf16.msra.mxu0 %v5961
    %6583 = vmatmul.bf16.gmra.mxu0 %v2839
    %v6584 = vpop.f32.mrf.mxu0
    %v6585 = vadd.f32 %v6572, %v6584
    %v6586 = vpop.f32.mrf.mxu0
    %6587 = vdwg.mxu0
    %6588 = vmatpush.bf16.msra.mxu0 %v6081
    %6589 = vmatpush.bf16.msra.mxu0 %v6073
    %6590 = vmatpush.bf16.msra.mxu0 %v6065
    %6591 = vmatpush.bf16.msra.mxu0 %v6057
    %6592 = vmatpush.bf16.msra.mxu0 %v6049
    %6593 = vmatpush.bf16.msra.mxu0 %v6041
    %6594 = vmatpush.bf16.msra.mxu0 %v6033
    %6595 = vmatpush.bf16.msra.mxu0 %v6025
    %6596 = vmatmul.bf16.gmra.mxu0 %v2840
    %v6597 = vpop.f32.mrf.mxu0
    %v6598 = vadd.f32 %v6585, %v6597
    %v6599 = vpop.f32.mrf.mxu0
    %6600 = vdwg.mxu0
    %6601 = vmatpush.bf16.msra.mxu0 %v5890
    %6602 = vmatpush.bf16.msra.mxu0 %v5882
    %6603 = vmatpush.bf16.msra.mxu0 %v5874
    %6604 = vmatpush.bf16.msra.mxu0 %v5866
    %6605 = vmatpush.bf16.msra.mxu0 %v5858
    %6606 = vmatpush.bf16.msra.mxu0 %v5850
    %6607 = vmatpush.bf16.msra.mxu0 %v5842
    %6608 = vmatpush.bf16.msra.mxu0 %v5834
    %6609 = vmatmul.bf16.gmra.mxu0 %v2837
    %v6610 = vpop.f32.mrf.mxu0
    %v6611 = vadd.f32 %v4954, %v6610
    %v6612 = vpop.f32.mrf.mxu0
    %6613 = vdwg.mxu0
    %6614 = vmatpush.bf16.msra.mxu0 %v5954
    %6615 = vmatpush.bf16.msra.mxu0 %v5946
    %6616 = vmatpush.bf16.msra.mxu0 %v5938
    %6617 = vmatpush.bf16.msra.mxu0 %v5930
    %6618 = vmatpush.bf16.msra.mxu0 %v5922
    %6619 = vmatpush.bf16.msra.mxu0 %v5914
    %6620 = vmatpush.bf16.msra.mxu0 %v5906
    %6621 = vmatpush.bf16.msra.mxu0 %v5898
    %6622 = vmatmul.bf16.gmra.mxu0 %v2838
    %v6623 = vpop.f32.mrf.mxu0
    %v6624 = vadd.f32 %v6611, %v6623
    %v6625 = vpop.f32.mrf.mxu0
    %6626 = vdwg.mxu0
    %6627 = vmatpush.bf16.msra.mxu0 %v6018
    %6628 = vmatpush.bf16.msra.mxu0 %v6010
    %6629 = vmatpush.bf16.msra.mxu0 %v6002
    %6630 = vmatpush.bf16.msra.mxu0 %v5994
    %6631 = vmatpush.bf16.msra.mxu0 %v5986
    %6632 = vmatpush.bf16.msra.mxu0 %v5978
    %6633 = vmatpush.bf16.msra.mxu0 %v5970
    %6634 = vmatpush.bf16.msra.mxu0 %v5962
    %6635 = vmatmul.bf16.gmra.mxu0 %v2839
    %v6636 = vpop.f32.mrf.mxu0
    %v6637 = vadd.f32 %v6624, %v6636
    %v6638 = vpop.f32.mrf.mxu0
    %6639 = vdwg.mxu0
    %6640 = vmatpush.bf16.msra.mxu0 %v6082
    %6641 = vmatpush.bf16.msra.mxu0 %v6074
    %6642 = vmatpush.bf16.msra.mxu0 %v6066
    %6643 = vmatpush.bf16.msra.mxu0 %v6058
    %6644 = vmatpush.bf16.msra.mxu0 %v6050
    %6645 = vmatpush.bf16.msra.mxu0 %v6042
    %6646 = vmatpush.bf16.msra.mxu0 %v6034
    %6647 = vmatpush.bf16.msra.mxu0 %v6026
    %6648 = vmatmul.bf16.gmra.mxu0 %v2840
    %v6649 = vpop.f32.mrf.mxu0
    %v6650 = vadd.f32 %v6637, %v6649
    %v6651 = vpop.f32.mrf.mxu0
    %6652 = vdwg.mxu0
    %6653 = vmatpush.bf16.msra.mxu0 %v5891
    %6654 = vmatpush.bf16.msra.mxu0 %v5883
    %6655 = vmatpush.bf16.msra.mxu0 %v5875
    %6656 = vmatpush.bf16.msra.mxu0 %v5867
    %6657 = vmatpush.bf16.msra.mxu0 %v5859
    %6658 = vmatpush.bf16.msra.mxu0 %v5851
    %6659 = vmatpush.bf16.msra.mxu0 %v5843
    %6660 = vmatpush.bf16.msra.mxu0 %v5835
    %6661 = vmatmul.bf16.gmra.mxu0 %v2837
    %v6662 = vpop.f32.mrf.mxu0
    %v6663 = vadd.f32 %v5006, %v6662
    %v6664 = vpop.f32.mrf.mxu0
    %6665 = vdwg.mxu0
    %6666 = vmatpush.bf16.msra.mxu0 %v5955
    %6667 = vmatpush.bf16.msra.mxu0 %v5947
    %6668 = vmatpush.bf16.msra.mxu0 %v5939
    %6669 = vmatpush.bf16.msra.mxu0 %v5931
    %6670 = vmatpush.bf16.msra.mxu0 %v5923
    %6671 = vmatpush.bf16.msra.mxu0 %v5915
    %6672 = vmatpush.bf16.msra.mxu0 %v5907
    %6673 = vmatpush.bf16.msra.mxu0 %v5899
    %6674 = vmatmul.bf16.gmra.mxu0 %v2838
    %v6675 = vpop.f32.mrf.mxu0
    %v6676 = vadd.f32 %v6663, %v6675
    %v6677 = vpop.f32.mrf.mxu0
    %6678 = vdwg.mxu0
    %6679 = vmatpush.bf16.msra.mxu0 %v6019
    %6680 = vmatpush.bf16.msra.mxu0 %v6011
    %6681 = vmatpush.bf16.msra.mxu0 %v6003
    %6682 = vmatpush.bf16.msra.mxu0 %v5995
    %6683 = vmatpush.bf16.msra.mxu0 %v5987
    %6684 = vmatpush.bf16.msra.mxu0 %v5979
    %6685 = vmatpush.bf16.msra.mxu0 %v5971
    %6686 = vmatpush.bf16.msra.mxu0 %v5963
    %6687 = vmatmul.bf16.gmra.mxu0 %v2839
    %v6688 = vpop.f32.mrf.mxu0
    %v6689 = vadd.f32 %v6676, %v6688
    %v6690 = vpop.f32.mrf.mxu0
    %6691 = vdwg.mxu0
    %6692 = vmatpush.bf16.msra.mxu0 %v6083
    %6693 = vmatpush.bf16.msra.mxu0 %v6075
    %6694 = vmatpush.bf16.msra.mxu0 %v6067
    %6695 = vmatpush.bf16.msra.mxu0 %v6059
    %6696 = vmatpush.bf16.msra.mxu0 %v6051
    %6697 = vmatpush.bf16.msra.mxu0 %v6043
    %6698 = vmatpush.bf16.msra.mxu0 %v6035
    %6699 = vmatpush.bf16.msra.mxu0 %v6027
    %6700 = vmatmul.bf16.gmra.mxu0 %v2840
    %v6701 = vpop.f32.mrf.mxu0
    %v6702 = vadd.f32 %v6689, %v6701
    %v6703 = vpop.f32.mrf.mxu0
    %6704 = vdwg.mxu0
    %6705 = vmatpush.bf16.msra.mxu0 %v5892
    %6706 = vmatpush.bf16.msra.mxu0 %v5884
    %6707 = vmatpush.bf16.msra.mxu0 %v5876
    %6708 = vmatpush.bf16.msra.mxu0 %v5868
    %6709 = vmatpush.bf16.msra.mxu0 %v5860
    %6710 = vmatpush.bf16.msra.mxu0 %v5852
    %6711 = vmatpush.bf16.msra.mxu0 %v5844
    %6712 = vmatpush.bf16.msra.mxu0 %v5836
    %6713 = vmatmul.bf16.gmra.mxu0 %v2837
    %v6714 = vpop.f32.mrf.mxu0
    %v6715 = vadd.f32 %v5058, %v6714
    %v6716 = vpop.f32.mrf.mxu0
    %6717 = vdwg.mxu0
    %6718 = vmatpush.bf16.msra.mxu0 %v5956
    %6719 = vmatpush.bf16.msra.mxu0 %v5948
    %6720 = vmatpush.bf16.msra.mxu0 %v5940
    %6721 = vmatpush.bf16.msra.mxu0 %v5932
    %6722 = vmatpush.bf16.msra.mxu0 %v5924
    %6723 = vmatpush.bf16.msra.mxu0 %v5916
    %6724 = vmatpush.bf16.msra.mxu0 %v5908
    %6725 = vmatpush.bf16.msra.mxu0 %v5900
    %6726 = vmatmul.bf16.gmra.mxu0 %v2838
    %v6727 = vpop.f32.mrf.mxu0
    %v6728 = vadd.f32 %v6715, %v6727
    %v6729 = vpop.f32.mrf.mxu0
    %6730 = vdwg.mxu0
    %6731 = vmatpush.bf16.msra.mxu0 %v6020
    %6732 = vmatpush.bf16.msra.mxu0 %v6012
    %6733 = vmatpush.bf16.msra.mxu0 %v6004
    %6734 = vmatpush.bf16.msra.mxu0 %v5996
    %6735 = vmatpush.bf16.msra.mxu0 %v5988
    %6736 = vmatpush.bf16.msra.mxu0 %v5980
    %6737 = vmatpush.bf16.msra.mxu0 %v5972
    %6738 = vmatpush.bf16.msra.mxu0 %v5964
    %6739 = vmatmul.bf16.gmra.mxu0 %v2839
    %v6740 = vpop.f32.mrf.mxu0
    %v6741 = vadd.f32 %v6728, %v6740
    %v6742 = vpop.f32.mrf.mxu0
    %6743 = vdwg.mxu0
    %6744 = vmatpush.bf16.msra.mxu0 %v6084
    %6745 = vmatpush.bf16.msra.mxu0 %v6076
    %6746 = vmatpush.bf16.msra.mxu0 %v6068
    %6747 = vmatpush.bf16.msra.mxu0 %v6060
    %6748 = vmatpush.bf16.msra.mxu0 %v6052
    %6749 = vmatpush.bf16.msra.mxu0 %v6044
    %6750 = vmatpush.bf16.msra.mxu0 %v6036
    %6751 = vmatpush.bf16.msra.mxu0 %v6028
    %6752 = vmatmul.bf16.gmra.mxu0 %v2840
    %v6753 = vpop.f32.mrf.mxu0
    %v6754 = vadd.f32 %v6741, %v6753
    %v6755 = vpop.f32.mrf.mxu0
    %6756 = vdwg.mxu0
    %v6757 = vpack.c.bf16 %v2795, %v2795
    %v6758 = vpack.c.bf16 %v2808, %v2808
    %v6759 = vpack.c.bf16 %v2821, %v2821
    %v6760 = vpack.c.bf16 %v2834, %v2834
    %v6761 = vld [vmem:[#allocation14] sm:$0xff]
    %v6762 = vld [vmem:[#allocation14 + $0x8] sm:$0xff]
    %v6763 = vld [vmem:[#allocation14 + $0x10] sm:$0xff]
    %v6764 = vld [vmem:[#allocation14 + $0x18] sm:$0xff]
    %v6765 = vld [vmem:[#allocation14 + $0x20] sm:$0xff]
    %v6766 = vld [vmem:[#allocation14 + $0x28] sm:$0xff]
    %v6767 = vld [vmem:[#allocation14 + $0x30] sm:$0xff]
    %v6768 = vld [vmem:[#allocation14 + $0x38] sm:$0xff]
    %v6769 = vld [vmem:[#allocation14 + $0x40] sm:$0xff]
    %v6770 = vld [vmem:[#allocation14 + $0x48] sm:$0xff]
    %v6771 = vld [vmem:[#allocation14 + $0x50] sm:$0xff]
    %v6772 = vld [vmem:[#allocation14 + $0x58] sm:$0xff]
    %v6773 = vld [vmem:[#allocation14 + $0x60] sm:$0xff]
    %v6774 = vld [vmem:[#allocation14 + $0x68] sm:$0xff]
    %v6775 = vld [vmem:[#allocation14 + $0x70] sm:$0xff]
    %v6776 = vld [vmem:[#allocation14 + $0x78] sm:$0xff]
    %v6777 = vld [vmem:[#allocation14 + $0x80] sm:$0xff]
    %v6778 = vld [vmem:[#allocation14 + $0x88] sm:$0xff]
    %v6779 = vld [vmem:[#allocation14 + $0x90] sm:$0xff]
    %v6780 = vld [vmem:[#allocation14 + $0x98] sm:$0xff]
    %v6781 = vld [vmem:[#allocation14 + $0xa0] sm:$0xff]
    %v6782 = vld [vmem:[#allocation14 + $0xa8] sm:$0xff]
    %v6783 = vld [vmem:[#allocation14 + $0xb0] sm:$0xff]
    %v6784 = vld [vmem:[#allocation14 + $0xb8] sm:$0xff]
    %v6785 = vld [vmem:[#allocation14 + $0xc0] sm:$0xff]
    %v6786 = vld [vmem:[#allocation14 + $0xc8] sm:$0xff]
    %v6787 = vld [vmem:[#allocation14 + $0xd0] sm:$0xff]
    %v6788 = vld [vmem:[#allocation14 + $0xd8] sm:$0xff]
    %v6789 = vld [vmem:[#allocation14 + $0xe0] sm:$0xff]
    %v6790 = vld [vmem:[#allocation14 + $0xe8] sm:$0xff]
    %v6791 = vld [vmem:[#allocation14 + $0xf0] sm:$0xff]
    %v6792 = vld [vmem:[#allocation14 + $0xf8] sm:$0xff]
    %v6793 = vld [vmem:[#allocation14 + $0x100] sm:$0xff]
    %v6794 = vld [vmem:[#allocation14 + $0x108] sm:$0xff]
    %v6795 = vld [vmem:[#allocation14 + $0x110] sm:$0xff]
    %v6796 = vld [vmem:[#allocation14 + $0x118] sm:$0xff]
    %v6797 = vld [vmem:[#allocation14 + $0x120] sm:$0xff]
    %v6798 = vld [vmem:[#allocation14 + $0x128] sm:$0xff]
    %v6799 = vld [vmem:[#allocation14 + $0x130] sm:$0xff]
    %v6800 = vld [vmem:[#allocation14 + $0x138] sm:$0xff]
    %v6801 = vld [vmem:[#allocation14 + $0x140] sm:$0xff]
    %v6802 = vld [vmem:[#allocation14 + $0x148] sm:$0xff]
    %v6803 = vld [vmem:[#allocation14 + $0x150] sm:$0xff]
    %v6804 = vld [vmem:[#allocation14 + $0x158] sm:$0xff]
    %v6805 = vld [vmem:[#allocation14 + $0x160] sm:$0xff]
    %v6806 = vld [vmem:[#allocation14 + $0x168] sm:$0xff]
    %v6807 = vld [vmem:[#allocation14 + $0x170] sm:$0xff]
    %v6808 = vld [vmem:[#allocation14 + $0x178] sm:$0xff]
    %v6809 = vld [vmem:[#allocation14 + $0x180] sm:$0xff]
    %v6810 = vld [vmem:[#allocation14 + $0x188] sm:$0xff]
    %v6811 = vld [vmem:[#allocation14 + $0x190] sm:$0xff]
    %v6812 = vld [vmem:[#allocation14 + $0x198] sm:$0xff]
    %v6813 = vld [vmem:[#allocation14 + $0x1a0] sm:$0xff]
    %v6814 = vld [vmem:[#allocation14 + $0x1a8] sm:$0xff]
    %v6815 = vld [vmem:[#allocation14 + $0x1b0] sm:$0xff]
    %v6816 = vld [vmem:[#allocation14 + $0x1b8] sm:$0xff]
    %v6817 = vld [vmem:[#allocation14 + $0x1c0] sm:$0xff]
    %v6818 = vld [vmem:[#allocation14 + $0x1c8] sm:$0xff]
    %v6819 = vld [vmem:[#allocation14 + $0x1d0] sm:$0xff]
    %v6820 = vld [vmem:[#allocation14 + $0x1d8] sm:$0xff]
    %v6821 = vld [vmem:[#allocation14 + $0x1e0] sm:$0xff]
    %v6822 = vld [vmem:[#allocation14 + $0x1e8] sm:$0xff]
    %v6823 = vld [vmem:[#allocation14 + $0x1f0] sm:$0xff]
    %v6824 = vld [vmem:[#allocation14 + $0x1f8] sm:$0xff]
    %v6825 = vld [vmem:[#allocation14 + $0x200] sm:$0xff]
    %v6826 = vld [vmem:[#allocation14 + $0x208] sm:$0xff]
    %v6827 = vld [vmem:[#allocation14 + $0x210] sm:$0xff]
    %v6828 = vld [vmem:[#allocation14 + $0x218] sm:$0xff]
    %v6829 = vld [vmem:[#allocation14 + $0x220] sm:$0xff]
    %v6830 = vld [vmem:[#allocation14 + $0x228] sm:$0xff]
    %v6831 = vld [vmem:[#allocation14 + $0x230] sm:$0xff]
    %v6832 = vld [vmem:[#allocation14 + $0x238] sm:$0xff]
    %v6833 = vld [vmem:[#allocation14 + $0x240] sm:$0xff]
    %v6834 = vld [vmem:[#allocation14 + $0x248] sm:$0xff]
    %v6835 = vld [vmem:[#allocation14 + $0x250] sm:$0xff]
    %v6836 = vld [vmem:[#allocation14 + $0x258] sm:$0xff]
    %v6837 = vld [vmem:[#allocation14 + $0x260] sm:$0xff]
    %v6838 = vld [vmem:[#allocation14 + $0x268] sm:$0xff]
    %v6839 = vld [vmem:[#allocation14 + $0x270] sm:$0xff]
    %v6840 = vld [vmem:[#allocation14 + $0x278] sm:$0xff]
    %v6841 = vld [vmem:[#allocation14 + $0x280] sm:$0xff]
    %v6842 = vld [vmem:[#allocation14 + $0x288] sm:$0xff]
    %v6843 = vld [vmem:[#allocation14 + $0x290] sm:$0xff]
    %v6844 = vld [vmem:[#allocation14 + $0x298] sm:$0xff]
    %v6845 = vld [vmem:[#allocation14 + $0x2a0] sm:$0xff]
    %v6846 = vld [vmem:[#allocation14 + $0x2a8] sm:$0xff]
    %v6847 = vld [vmem:[#allocation14 + $0x2b0] sm:$0xff]
    %v6848 = vld [vmem:[#allocation14 + $0x2b8] sm:$0xff]
    %v6849 = vld [vmem:[#allocation14 + $0x2c0] sm:$0xff]
    %v6850 = vld [vmem:[#allocation14 + $0x2c8] sm:$0xff]
    %v6851 = vld [vmem:[#allocation14 + $0x2d0] sm:$0xff]
    %v6852 = vld [vmem:[#allocation14 + $0x2d8] sm:$0xff]
    %v6853 = vld [vmem:[#allocation14 + $0x2e0] sm:$0xff]
    %v6854 = vld [vmem:[#allocation14 + $0x2e8] sm:$0xff]
    %v6855 = vld [vmem:[#allocation14 + $0x2f0] sm:$0xff]
    %v6856 = vld [vmem:[#allocation14 + $0x2f8] sm:$0xff]
    %v6857 = vld [vmem:[#allocation14 + $0x300] sm:$0xff]
    %v6858 = vld [vmem:[#allocation14 + $0x308] sm:$0xff]
    %v6859 = vld [vmem:[#allocation14 + $0x310] sm:$0xff]
    %v6860 = vld [vmem:[#allocation14 + $0x318] sm:$0xff]
    %v6861 = vld [vmem:[#allocation14 + $0x320] sm:$0xff]
    %v6862 = vld [vmem:[#allocation14 + $0x328] sm:$0xff]
    %v6863 = vld [vmem:[#allocation14 + $0x330] sm:$0xff]
    %v6864 = vld [vmem:[#allocation14 + $0x338] sm:$0xff]
    %v6865 = vld [vmem:[#allocation14 + $0x340] sm:$0xff]
    %v6866 = vld [vmem:[#allocation14 + $0x348] sm:$0xff]
    %v6867 = vld [vmem:[#allocation14 + $0x350] sm:$0xff]
    %v6868 = vld [vmem:[#allocation14 + $0x358] sm:$0xff]
    %v6869 = vld [vmem:[#allocation14 + $0x360] sm:$0xff]
    %v6870 = vld [vmem:[#allocation14 + $0x368] sm:$0xff]
    %v6871 = vld [vmem:[#allocation14 + $0x370] sm:$0xff]
    %v6872 = vld [vmem:[#allocation14 + $0x378] sm:$0xff]
    %v6873 = vld [vmem:[#allocation14 + $0x380] sm:$0xff]
    %v6874 = vld [vmem:[#allocation14 + $0x388] sm:$0xff]
    %v6875 = vld [vmem:[#allocation14 + $0x390] sm:$0xff]
    %v6876 = vld [vmem:[#allocation14 + $0x398] sm:$0xff]
    %v6877 = vld [vmem:[#allocation14 + $0x3a0] sm:$0xff]
    %v6878 = vld [vmem:[#allocation14 + $0x3a8] sm:$0xff]
    %v6879 = vld [vmem:[#allocation14 + $0x3b0] sm:$0xff]
    %v6880 = vld [vmem:[#allocation14 + $0x3b8] sm:$0xff]
    %v6881 = vld [vmem:[#allocation14 + $0x3c0] sm:$0xff]
    %v6882 = vld [vmem:[#allocation14 + $0x3c8] sm:$0xff]
    %v6883 = vld [vmem:[#allocation14 + $0x3d0] sm:$0xff]
    %v6884 = vld [vmem:[#allocation14 + $0x3d8] sm:$0xff]
    %v6885 = vld [vmem:[#allocation14 + $0x3e0] sm:$0xff]
    %v6886 = vld [vmem:[#allocation14 + $0x3e8] sm:$0xff]
    %v6887 = vld [vmem:[#allocation14 + $0x3f0] sm:$0xff]
    %v6888 = vld [vmem:[#allocation14 + $0x3f8] sm:$0xff]
    %v6889 = vld [vmem:[#allocation14 + $0x400] sm:$0xff]
    %v6890 = vld [vmem:[#allocation14 + $0x408] sm:$0xff]
    %v6891 = vld [vmem:[#allocation14 + $0x410] sm:$0xff]
    %v6892 = vld [vmem:[#allocation14 + $0x418] sm:$0xff]
    %v6893 = vld [vmem:[#allocation14 + $0x420] sm:$0xff]
    %v6894 = vld [vmem:[#allocation14 + $0x428] sm:$0xff]
    %v6895 = vld [vmem:[#allocation14 + $0x430] sm:$0xff]
    %v6896 = vld [vmem:[#allocation14 + $0x438] sm:$0xff]
    %v6897 = vld [vmem:[#allocation14 + $0x440] sm:$0xff]
    %v6898 = vld [vmem:[#allocation14 + $0x448] sm:$0xff]
    %v6899 = vld [vmem:[#allocation14 + $0x450] sm:$0xff]
    %v6900 = vld [vmem:[#allocation14 + $0x458] sm:$0xff]
    %v6901 = vld [vmem:[#allocation14 + $0x460] sm:$0xff]
    %v6902 = vld [vmem:[#allocation14 + $0x468] sm:$0xff]
    %v6903 = vld [vmem:[#allocation14 + $0x470] sm:$0xff]
    %v6904 = vld [vmem:[#allocation14 + $0x478] sm:$0xff]
    %v6905 = vld [vmem:[#allocation14 + $0x480] sm:$0xff]
    %v6906 = vld [vmem:[#allocation14 + $0x488] sm:$0xff]
    %v6907 = vld [vmem:[#allocation14 + $0x490] sm:$0xff]
    %v6908 = vld [vmem:[#allocation14 + $0x498] sm:$0xff]
    %v6909 = vld [vmem:[#allocation14 + $0x4a0] sm:$0xff]
    %v6910 = vld [vmem:[#allocation14 + $0x4a8] sm:$0xff]
    %v6911 = vld [vmem:[#allocation14 + $0x4b0] sm:$0xff]
    %v6912 = vld [vmem:[#allocation14 + $0x4b8] sm:$0xff]
    %v6913 = vld [vmem:[#allocation14 + $0x4c0] sm:$0xff]
    %v6914 = vld [vmem:[#allocation14 + $0x4c8] sm:$0xff]
    %v6915 = vld [vmem:[#allocation14 + $0x4d0] sm:$0xff]
    %v6916 = vld [vmem:[#allocation14 + $0x4d8] sm:$0xff]
    %v6917 = vld [vmem:[#allocation14 + $0x4e0] sm:$0xff]
    %v6918 = vld [vmem:[#allocation14 + $0x4e8] sm:$0xff]
    %v6919 = vld [vmem:[#allocation14 + $0x4f0] sm:$0xff]
    %v6920 = vld [vmem:[#allocation14 + $0x4f8] sm:$0xff]
    %v6921 = vld [vmem:[#allocation14 + $0x500] sm:$0xff]
    %v6922 = vld [vmem:[#allocation14 + $0x508] sm:$0xff]
    %v6923 = vld [vmem:[#allocation14 + $0x510] sm:$0xff]
    %v6924 = vld [vmem:[#allocation14 + $0x518] sm:$0xff]
    %v6925 = vld [vmem:[#allocation14 + $0x520] sm:$0xff]
    %v6926 = vld [vmem:[#allocation14 + $0x528] sm:$0xff]
    %v6927 = vld [vmem:[#allocation14 + $0x530] sm:$0xff]
    %v6928 = vld [vmem:[#allocation14 + $0x538] sm:$0xff]
    %v6929 = vld [vmem:[#allocation14 + $0x540] sm:$0xff]
    %v6930 = vld [vmem:[#allocation14 + $0x548] sm:$0xff]
    %v6931 = vld [vmem:[#allocation14 + $0x550] sm:$0xff]
    %v6932 = vld [vmem:[#allocation14 + $0x558] sm:$0xff]
    %v6933 = vld [vmem:[#allocation14 + $0x560] sm:$0xff]
    %v6934 = vld [vmem:[#allocation14 + $0x568] sm:$0xff]
    %v6935 = vld [vmem:[#allocation14 + $0x570] sm:$0xff]
    %v6936 = vld [vmem:[#allocation14 + $0x578] sm:$0xff]
    %v6937 = vld [vmem:[#allocation14 + $0x580] sm:$0xff]
    %v6938 = vld [vmem:[#allocation14 + $0x588] sm:$0xff]
    %v6939 = vld [vmem:[#allocation14 + $0x590] sm:$0xff]
    %v6940 = vld [vmem:[#allocation14 + $0x598] sm:$0xff]
    %v6941 = vld [vmem:[#allocation14 + $0x5a0] sm:$0xff]
    %v6942 = vld [vmem:[#allocation14 + $0x5a8] sm:$0xff]
    %v6943 = vld [vmem:[#allocation14 + $0x5b0] sm:$0xff]
    %v6944 = vld [vmem:[#allocation14 + $0x5b8] sm:$0xff]
    %v6945 = vld [vmem:[#allocation14 + $0x5c0] sm:$0xff]
    %v6946 = vld [vmem:[#allocation14 + $0x5c8] sm:$0xff]
    %v6947 = vld [vmem:[#allocation14 + $0x5d0] sm:$0xff]
    %v6948 = vld [vmem:[#allocation14 + $0x5d8] sm:$0xff]
    %v6949 = vld [vmem:[#allocation14 + $0x5e0] sm:$0xff]
    %v6950 = vld [vmem:[#allocation14 + $0x5e8] sm:$0xff]
    %v6951 = vld [vmem:[#allocation14 + $0x5f0] sm:$0xff]
    %v6952 = vld [vmem:[#allocation14 + $0x5f8] sm:$0xff]
    %v6953 = vld [vmem:[#allocation14 + $0x600] sm:$0xff]
    %v6954 = vld [vmem:[#allocation14 + $0x608] sm:$0xff]
    %v6955 = vld [vmem:[#allocation14 + $0x610] sm:$0xff]
    %v6956 = vld [vmem:[#allocation14 + $0x618] sm:$0xff]
    %v6957 = vld [vmem:[#allocation14 + $0x620] sm:$0xff]
    %v6958 = vld [vmem:[#allocation14 + $0x628] sm:$0xff]
    %v6959 = vld [vmem:[#allocation14 + $0x630] sm:$0xff]
    %v6960 = vld [vmem:[#allocation14 + $0x638] sm:$0xff]
    %v6961 = vld [vmem:[#allocation14 + $0x640] sm:$0xff]
    %v6962 = vld [vmem:[#allocation14 + $0x648] sm:$0xff]
    %v6963 = vld [vmem:[#allocation14 + $0x650] sm:$0xff]
    %v6964 = vld [vmem:[#allocation14 + $0x658] sm:$0xff]
    %v6965 = vld [vmem:[#allocation14 + $0x660] sm:$0xff]
    %v6966 = vld [vmem:[#allocation14 + $0x668] sm:$0xff]
    %v6967 = vld [vmem:[#allocation14 + $0x670] sm:$0xff]
    %v6968 = vld [vmem:[#allocation14 + $0x678] sm:$0xff]
    %v6969 = vld [vmem:[#allocation14 + $0x680] sm:$0xff]
    %v6970 = vld [vmem:[#allocation14 + $0x688] sm:$0xff]
    %v6971 = vld [vmem:[#allocation14 + $0x690] sm:$0xff]
    %v6972 = vld [vmem:[#allocation14 + $0x698] sm:$0xff]
    %v6973 = vld [vmem:[#allocation14 + $0x6a0] sm:$0xff]
    %v6974 = vld [vmem:[#allocation14 + $0x6a8] sm:$0xff]
    %v6975 = vld [vmem:[#allocation14 + $0x6b0] sm:$0xff]
    %v6976 = vld [vmem:[#allocation14 + $0x6b8] sm:$0xff]
    %v6977 = vld [vmem:[#allocation14 + $0x6c0] sm:$0xff]
    %v6978 = vld [vmem:[#allocation14 + $0x6c8] sm:$0xff]
    %v6979 = vld [vmem:[#allocation14 + $0x6d0] sm:$0xff]
    %v6980 = vld [vmem:[#allocation14 + $0x6d8] sm:$0xff]
    %v6981 = vld [vmem:[#allocation14 + $0x6e0] sm:$0xff]
    %v6982 = vld [vmem:[#allocation14 + $0x6e8] sm:$0xff]
    %v6983 = vld [vmem:[#allocation14 + $0x6f0] sm:$0xff]
    %v6984 = vld [vmem:[#allocation14 + $0x6f8] sm:$0xff]
    %v6985 = vld [vmem:[#allocation14 + $0x700] sm:$0xff]
    %v6986 = vld [vmem:[#allocation14 + $0x708] sm:$0xff]
    %v6987 = vld [vmem:[#allocation14 + $0x710] sm:$0xff]
    %v6988 = vld [vmem:[#allocation14 + $0x718] sm:$0xff]
    %v6989 = vld [vmem:[#allocation14 + $0x720] sm:$0xff]
    %v6990 = vld [vmem:[#allocation14 + $0x728] sm:$0xff]
    %v6991 = vld [vmem:[#allocation14 + $0x730] sm:$0xff]
    %v6992 = vld [vmem:[#allocation14 + $0x738] sm:$0xff]
    %v6993 = vld [vmem:[#allocation14 + $0x740] sm:$0xff]
    %v6994 = vld [vmem:[#allocation14 + $0x748] sm:$0xff]
    %v6995 = vld [vmem:[#allocation14 + $0x750] sm:$0xff]
    %v6996 = vld [vmem:[#allocation14 + $0x758] sm:$0xff]
    %v6997 = vld [vmem:[#allocation14 + $0x760] sm:$0xff]
    %v6998 = vld [vmem:[#allocation14 + $0x768] sm:$0xff]
    %v6999 = vld [vmem:[#allocation14 + $0x770] sm:$0xff]
    %v7000 = vld [vmem:[#allocation14 + $0x778] sm:$0xff]
    %v7001 = vld [vmem:[#allocation14 + $0x780] sm:$0xff]
    %v7002 = vld [vmem:[#allocation14 + $0x788] sm:$0xff]
    %v7003 = vld [vmem:[#allocation14 + $0x790] sm:$0xff]
    %v7004 = vld [vmem:[#allocation14 + $0x798] sm:$0xff]
    %v7005 = vld [vmem:[#allocation14 + $0x7a0] sm:$0xff]
    %v7006 = vld [vmem:[#allocation14 + $0x7a8] sm:$0xff]
    %v7007 = vld [vmem:[#allocation14 + $0x7b0] sm:$0xff]
    %v7008 = vld [vmem:[#allocation14 + $0x7b8] sm:$0xff]
    %v7009 = vld [vmem:[#allocation14 + $0x7c0] sm:$0xff]
    %v7010 = vld [vmem:[#allocation14 + $0x7c8] sm:$0xff]
    %v7011 = vld [vmem:[#allocation14 + $0x7d0] sm:$0xff]
    %v7012 = vld [vmem:[#allocation14 + $0x7d8] sm:$0xff]
    %v7013 = vld [vmem:[#allocation14 + $0x7e0] sm:$0xff]
    %v7014 = vld [vmem:[#allocation14 + $0x7e8] sm:$0xff]
    %v7015 = vld [vmem:[#allocation14 + $0x7f0] sm:$0xff]
    %v7016 = vld [vmem:[#allocation14 + $0x7f8] sm:$0xff]
    %v7273 = vunpack.c.l.b16 %v6761
    %v7274 = vunpack.c.h.b16 %v6761
    %v7275 = vunpack.c.l.b16 %v6762
    %v7276 = vunpack.c.h.b16 %v6762
    %v7277 = vunpack.c.l.b16 %v6763
    %v7278 = vunpack.c.h.b16 %v6763
    %v7279 = vunpack.c.l.b16 %v6764
    %v7280 = vunpack.c.h.b16 %v6764
    %v7281 = vunpack.c.l.b16 %v6765
    %v7282 = vunpack.c.h.b16 %v6765
    %v7283 = vunpack.c.l.b16 %v6766
    %v7284 = vunpack.c.h.b16 %v6766
    %v7285 = vunpack.c.l.b16 %v6767
    %v7286 = vunpack.c.h.b16 %v6767
    %v7287 = vunpack.c.l.b16 %v6768
    %v7288 = vunpack.c.h.b16 %v6768
    %v7289 = vunpack.c.l.b16 %v6769
    %v7290 = vunpack.c.h.b16 %v6769
    %v7291 = vunpack.c.l.b16 %v6770
    %v7292 = vunpack.c.h.b16 %v6770
    %v7293 = vunpack.c.l.b16 %v6771
    %v7294 = vunpack.c.h.b16 %v6771
    %v7295 = vunpack.c.l.b16 %v6772
    %v7296 = vunpack.c.h.b16 %v6772
    %v7297 = vunpack.c.l.b16 %v6773
    %v7298 = vunpack.c.h.b16 %v6773
    %v7299 = vunpack.c.l.b16 %v6774
    %v7300 = vunpack.c.h.b16 %v6774
    %v7301 = vunpack.c.l.b16 %v6775
    %v7302 = vunpack.c.h.b16 %v6775
    %v7303 = vunpack.c.l.b16 %v6776
    %v7304 = vunpack.c.h.b16 %v6776
    %v7305 = vunpack.c.l.b16 %v6777
    %v7306 = vunpack.c.h.b16 %v6777
    %v7307 = vunpack.c.l.b16 %v6778
    %v7308 = vunpack.c.h.b16 %v6778
    %v7309 = vunpack.c.l.b16 %v6779
    %v7310 = vunpack.c.h.b16 %v6779
    %v7311 = vunpack.c.l.b16 %v6780
    %v7312 = vunpack.c.h.b16 %v6780
    %v7313 = vunpack.c.l.b16 %v6781
    %v7314 = vunpack.c.h.b16 %v6781
    %v7315 = vunpack.c.l.b16 %v6782
    %v7316 = vunpack.c.h.b16 %v6782
    %v7317 = vunpack.c.l.b16 %v6783
    %v7318 = vunpack.c.h.b16 %v6783
    %v7319 = vunpack.c.l.b16 %v6784
    %v7320 = vunpack.c.h.b16 %v6784
    %v7321 = vunpack.c.l.b16 %v6785
    %v7322 = vunpack.c.h.b16 %v6785
    %v7323 = vunpack.c.l.b16 %v6786
    %v7324 = vunpack.c.h.b16 %v6786
    %v7325 = vunpack.c.l.b16 %v6787
    %v7326 = vunpack.c.h.b16 %v6787
    %v7327 = vunpack.c.l.b16 %v6788
    %v7328 = vunpack.c.h.b16 %v6788
    %v7329 = vunpack.c.l.b16 %v6789
    %v7330 = vunpack.c.h.b16 %v6789
    %v7331 = vunpack.c.l.b16 %v6790
    %v7332 = vunpack.c.h.b16 %v6790
    %v7333 = vunpack.c.l.b16 %v6791
    %v7334 = vunpack.c.h.b16 %v6791
    %v7335 = vunpack.c.l.b16 %v6792
    %v7336 = vunpack.c.h.b16 %v6792
    %v7337 = vunpack.c.l.b16 %v6793
    %v7338 = vunpack.c.h.b16 %v6793
    %v7339 = vunpack.c.l.b16 %v6794
    %v7340 = vunpack.c.h.b16 %v6794
    %v7341 = vunpack.c.l.b16 %v6795
    %v7342 = vunpack.c.h.b16 %v6795
    %v7343 = vunpack.c.l.b16 %v6796
    %v7344 = vunpack.c.h.b16 %v6796
    %v7345 = vunpack.c.l.b16 %v6797
    %v7346 = vunpack.c.h.b16 %v6797
    %v7347 = vunpack.c.l.b16 %v6798
    %v7348 = vunpack.c.h.b16 %v6798
    %v7349 = vunpack.c.l.b16 %v6799
    %v7350 = vunpack.c.h.b16 %v6799
    %v7351 = vunpack.c.l.b16 %v6800
    %v7352 = vunpack.c.h.b16 %v6800
    %v7353 = vunpack.c.l.b16 %v6801
    %v7354 = vunpack.c.h.b16 %v6801
    %v7355 = vunpack.c.l.b16 %v6802
    %v7356 = vunpack.c.h.b16 %v6802
    %v7357 = vunpack.c.l.b16 %v6803
    %v7358 = vunpack.c.h.b16 %v6803
    %v7359 = vunpack.c.l.b16 %v6804
    %v7360 = vunpack.c.h.b16 %v6804
    %v7361 = vunpack.c.l.b16 %v6805
    %v7362 = vunpack.c.h.b16 %v6805
    %v7363 = vunpack.c.l.b16 %v6806
    %v7364 = vunpack.c.h.b16 %v6806
    %v7365 = vunpack.c.l.b16 %v6807
    %v7366 = vunpack.c.h.b16 %v6807
    %v7367 = vunpack.c.l.b16 %v6808
    %v7368 = vunpack.c.h.b16 %v6808
    %v7369 = vunpack.c.l.b16 %v6809
    %v7370 = vunpack.c.h.b16 %v6809
    %v7371 = vunpack.c.l.b16 %v6810
    %v7372 = vunpack.c.h.b16 %v6810
    %v7373 = vunpack.c.l.b16 %v6811
    %v7374 = vunpack.c.h.b16 %v6811
    %v7375 = vunpack.c.l.b16 %v6812
    %v7376 = vunpack.c.h.b16 %v6812
    %v7377 = vunpack.c.l.b16 %v6813
    %v7378 = vunpack.c.h.b16 %v6813
    %v7379 = vunpack.c.l.b16 %v6814
    %v7380 = vunpack.c.h.b16 %v6814
    %v7381 = vunpack.c.l.b16 %v6815
    %v7382 = vunpack.c.h.b16 %v6815
    %v7383 = vunpack.c.l.b16 %v6816
    %v7384 = vunpack.c.h.b16 %v6816
    %v7385 = vunpack.c.l.b16 %v6817
    %v7386 = vunpack.c.h.b16 %v6817
    %v7387 = vunpack.c.l.b16 %v6818
    %v7388 = vunpack.c.h.b16 %v6818
    %v7389 = vunpack.c.l.b16 %v6819
    %v7390 = vunpack.c.h.b16 %v6819
    %v7391 = vunpack.c.l.b16 %v6820
    %v7392 = vunpack.c.h.b16 %v6820
    %v7393 = vunpack.c.l.b16 %v6821
    %v7394 = vunpack.c.h.b16 %v6821
    %v7395 = vunpack.c.l.b16 %v6822
    %v7396 = vunpack.c.h.b16 %v6822
    %v7397 = vunpack.c.l.b16 %v6823
    %v7398 = vunpack.c.h.b16 %v6823
    %v7399 = vunpack.c.l.b16 %v6824
    %v7400 = vunpack.c.h.b16 %v6824
    %v7401 = vunpack.c.l.b16 %v6825
    %v7402 = vunpack.c.h.b16 %v6825
    %v7403 = vunpack.c.l.b16 %v6826
    %v7404 = vunpack.c.h.b16 %v6826
    %v7405 = vunpack.c.l.b16 %v6827
    %v7406 = vunpack.c.h.b16 %v6827
    %v7407 = vunpack.c.l.b16 %v6828
    %v7408 = vunpack.c.h.b16 %v6828
    %v7409 = vunpack.c.l.b16 %v6829
    %v7410 = vunpack.c.h.b16 %v6829
    %v7411 = vunpack.c.l.b16 %v6830
    %v7412 = vunpack.c.h.b16 %v6830
    %v7413 = vunpack.c.l.b16 %v6831
    %v7414 = vunpack.c.h.b16 %v6831
    %v7415 = vunpack.c.l.b16 %v6832
    %v7416 = vunpack.c.h.b16 %v6832
    %v7417 = vunpack.c.l.b16 %v6833
    %v7418 = vunpack.c.h.b16 %v6833
    %v7419 = vunpack.c.l.b16 %v6834
    %v7420 = vunpack.c.h.b16 %v6834
    %v7421 = vunpack.c.l.b16 %v6835
    %v7422 = vunpack.c.h.b16 %v6835
    %v7423 = vunpack.c.l.b16 %v6836
    %v7424 = vunpack.c.h.b16 %v6836
    %v7425 = vunpack.c.l.b16 %v6837
    %v7426 = vunpack.c.h.b16 %v6837
    %v7427 = vunpack.c.l.b16 %v6838
    %v7428 = vunpack.c.h.b16 %v6838
    %v7429 = vunpack.c.l.b16 %v6839
    %v7430 = vunpack.c.h.b16 %v6839
    %v7431 = vunpack.c.l.b16 %v6840
    %v7432 = vunpack.c.h.b16 %v6840
    %v7433 = vunpack.c.l.b16 %v6841
    %v7434 = vunpack.c.h.b16 %v6841
    %v7435 = vunpack.c.l.b16 %v6842
    %v7436 = vunpack.c.h.b16 %v6842
    %v7437 = vunpack.c.l.b16 %v6843
    %v7438 = vunpack.c.h.b16 %v6843
    %v7439 = vunpack.c.l.b16 %v6844
    %v7440 = vunpack.c.h.b16 %v6844
    %v7441 = vunpack.c.l.b16 %v6845
    %v7442 = vunpack.c.h.b16 %v6845
    %v7443 = vunpack.c.l.b16 %v6846
    %v7444 = vunpack.c.h.b16 %v6846
    %v7445 = vunpack.c.l.b16 %v6847
    %v7446 = vunpack.c.h.b16 %v6847
    %v7447 = vunpack.c.l.b16 %v6848
    %v7448 = vunpack.c.h.b16 %v6848
    %v7449 = vunpack.c.l.b16 %v6849
    %v7450 = vunpack.c.h.b16 %v6849
    %v7451 = vunpack.c.l.b16 %v6850
    %v7452 = vunpack.c.h.b16 %v6850
    %v7453 = vunpack.c.l.b16 %v6851
    %v7454 = vunpack.c.h.b16 %v6851
    %v7455 = vunpack.c.l.b16 %v6852
    %v7456 = vunpack.c.h.b16 %v6852
    %v7457 = vunpack.c.l.b16 %v6853
    %v7458 = vunpack.c.h.b16 %v6853
    %v7459 = vunpack.c.l.b16 %v6854
    %v7460 = vunpack.c.h.b16 %v6854
    %v7461 = vunpack.c.l.b16 %v6855
    %v7462 = vunpack.c.h.b16 %v6855
    %v7463 = vunpack.c.l.b16 %v6856
    %v7464 = vunpack.c.h.b16 %v6856
    %v7465 = vunpack.c.l.b16 %v6857
    %v7466 = vunpack.c.h.b16 %v6857
    %v7467 = vunpack.c.l.b16 %v6858
    %v7468 = vunpack.c.h.b16 %v6858
    %v7469 = vunpack.c.l.b16 %v6859
    %v7470 = vunpack.c.h.b16 %v6859
    %v7471 = vunpack.c.l.b16 %v6860
    %v7472 = vunpack.c.h.b16 %v6860
    %v7473 = vunpack.c.l.b16 %v6861
    %v7474 = vunpack.c.h.b16 %v6861
    %v7475 = vunpack.c.l.b16 %v6862
    %v7476 = vunpack.c.h.b16 %v6862
    %v7477 = vunpack.c.l.b16 %v6863
    %v7478 = vunpack.c.h.b16 %v6863
    %v7479 = vunpack.c.l.b16 %v6864
    %v7480 = vunpack.c.h.b16 %v6864
    %v7481 = vunpack.c.l.b16 %v6865
    %v7482 = vunpack.c.h.b16 %v6865
    %v7483 = vunpack.c.l.b16 %v6866
    %v7484 = vunpack.c.h.b16 %v6866
    %v7485 = vunpack.c.l.b16 %v6867
    %v7486 = vunpack.c.h.b16 %v6867
    %v7487 = vunpack.c.l.b16 %v6868
    %v7488 = vunpack.c.h.b16 %v6868
    %v7489 = vunpack.c.l.b16 %v6869
    %v7490 = vunpack.c.h.b16 %v6869
    %v7491 = vunpack.c.l.b16 %v6870
    %v7492 = vunpack.c.h.b16 %v6870
    %v7493 = vunpack.c.l.b16 %v6871
    %v7494 = vunpack.c.h.b16 %v6871
    %v7495 = vunpack.c.l.b16 %v6872
    %v7496 = vunpack.c.h.b16 %v6872
    %v7497 = vunpack.c.l.b16 %v6873
    %v7498 = vunpack.c.h.b16 %v6873
    %v7499 = vunpack.c.l.b16 %v6874
    %v7500 = vunpack.c.h.b16 %v6874
    %v7501 = vunpack.c.l.b16 %v6875
    %v7502 = vunpack.c.h.b16 %v6875
    %v7503 = vunpack.c.l.b16 %v6876
    %v7504 = vunpack.c.h.b16 %v6876
    %v7505 = vunpack.c.l.b16 %v6877
    %v7506 = vunpack.c.h.b16 %v6877
    %v7507 = vunpack.c.l.b16 %v6878
    %v7508 = vunpack.c.h.b16 %v6878
    %v7509 = vunpack.c.l.b16 %v6879
    %v7510 = vunpack.c.h.b16 %v6879
    %v7511 = vunpack.c.l.b16 %v6880
    %v7512 = vunpack.c.h.b16 %v6880
    %v7513 = vunpack.c.l.b16 %v6881
    %v7514 = vunpack.c.h.b16 %v6881
    %v7515 = vunpack.c.l.b16 %v6882
    %v7516 = vunpack.c.h.b16 %v6882
    %v7517 = vunpack.c.l.b16 %v6883
    %v7518 = vunpack.c.h.b16 %v6883
    %v7519 = vunpack.c.l.b16 %v6884
    %v7520 = vunpack.c.h.b16 %v6884
    %v7521 = vunpack.c.l.b16 %v6885
    %v7522 = vunpack.c.h.b16 %v6885
    %v7523 = vunpack.c.l.b16 %v6886
    %v7524 = vunpack.c.h.b16 %v6886
    %v7525 = vunpack.c.l.b16 %v6887
    %v7526 = vunpack.c.h.b16 %v6887
    %v7527 = vunpack.c.l.b16 %v6888
    %v7528 = vunpack.c.h.b16 %v6888
    %v7529 = vunpack.c.l.b16 %v6889
    %v7530 = vunpack.c.h.b16 %v6889
    %v7531 = vunpack.c.l.b16 %v6890
    %v7532 = vunpack.c.h.b16 %v6890
    %v7533 = vunpack.c.l.b16 %v6891
    %v7534 = vunpack.c.h.b16 %v6891
    %v7535 = vunpack.c.l.b16 %v6892
    %v7536 = vunpack.c.h.b16 %v6892
    %v7537 = vunpack.c.l.b16 %v6893
    %v7538 = vunpack.c.h.b16 %v6893
    %v7539 = vunpack.c.l.b16 %v6894
    %v7540 = vunpack.c.h.b16 %v6894
    %v7541 = vunpack.c.l.b16 %v6895
    %v7542 = vunpack.c.h.b16 %v6895
    %v7543 = vunpack.c.l.b16 %v6896
    %v7544 = vunpack.c.h.b16 %v6896
    %v7545 = vunpack.c.l.b16 %v6897
    %v7546 = vunpack.c.h.b16 %v6897
    %v7547 = vunpack.c.l.b16 %v6898
    %v7548 = vunpack.c.h.b16 %v6898
    %v7549 = vunpack.c.l.b16 %v6899
    %v7550 = vunpack.c.h.b16 %v6899
    %v7551 = vunpack.c.l.b16 %v6900
    %v7552 = vunpack.c.h.b16 %v6900
    %v7553 = vunpack.c.l.b16 %v6901
    %v7554 = vunpack.c.h.b16 %v6901
    %v7555 = vunpack.c.l.b16 %v6902
    %v7556 = vunpack.c.h.b16 %v6902
    %v7557 = vunpack.c.l.b16 %v6903
    %v7558 = vunpack.c.h.b16 %v6903
    %v7559 = vunpack.c.l.b16 %v6904
    %v7560 = vunpack.c.h.b16 %v6904
    %v7561 = vunpack.c.l.b16 %v6905
    %v7562 = vunpack.c.h.b16 %v6905
    %v7563 = vunpack.c.l.b16 %v6906
    %v7564 = vunpack.c.h.b16 %v6906
    %v7565 = vunpack.c.l.b16 %v6907
    %v7566 = vunpack.c.h.b16 %v6907
    %v7567 = vunpack.c.l.b16 %v6908
    %v7568 = vunpack.c.h.b16 %v6908
    %v7569 = vunpack.c.l.b16 %v6909
    %v7570 = vunpack.c.h.b16 %v6909
    %v7571 = vunpack.c.l.b16 %v6910
    %v7572 = vunpack.c.h.b16 %v6910
    %v7573 = vunpack.c.l.b16 %v6911
    %v7574 = vunpack.c.h.b16 %v6911
    %v7575 = vunpack.c.l.b16 %v6912
    %v7576 = vunpack.c.h.b16 %v6912
    %v7577 = vunpack.c.l.b16 %v6913
    %v7578 = vunpack.c.h.b16 %v6913
    %v7579 = vunpack.c.l.b16 %v6914
    %v7580 = vunpack.c.h.b16 %v6914
    %v7581 = vunpack.c.l.b16 %v6915
    %v7582 = vunpack.c.h.b16 %v6915
    %v7583 = vunpack.c.l.b16 %v6916
    %v7584 = vunpack.c.h.b16 %v6916
    %v7585 = vunpack.c.l.b16 %v6917
    %v7586 = vunpack.c.h.b16 %v6917
    %v7587 = vunpack.c.l.b16 %v6918
    %v7588 = vunpack.c.h.b16 %v6918
    %v7589 = vunpack.c.l.b16 %v6919
    %v7590 = vunpack.c.h.b16 %v6919
    %v7591 = vunpack.c.l.b16 %v6920
    %v7592 = vunpack.c.h.b16 %v6920
    %v7593 = vunpack.c.l.b16 %v6921
    %v7594 = vunpack.c.h.b16 %v6921
    %v7595 = vunpack.c.l.b16 %v6922
    %v7596 = vunpack.c.h.b16 %v6922
    %v7597 = vunpack.c.l.b16 %v6923
    %v7598 = vunpack.c.h.b16 %v6923
    %v7599 = vunpack.c.l.b16 %v6924
    %v7600 = vunpack.c.h.b16 %v6924
    %v7601 = vunpack.c.l.b16 %v6925
    %v7602 = vunpack.c.h.b16 %v6925
    %v7603 = vunpack.c.l.b16 %v6926
    %v7604 = vunpack.c.h.b16 %v6926
    %v7605 = vunpack.c.l.b16 %v6927
    %v7606 = vunpack.c.h.b16 %v6927
    %v7607 = vunpack.c.l.b16 %v6928
    %v7608 = vunpack.c.h.b16 %v6928
    %v7609 = vunpack.c.l.b16 %v6929
    %v7610 = vunpack.c.h.b16 %v6929
    %v7611 = vunpack.c.l.b16 %v6930
    %v7612 = vunpack.c.h.b16 %v6930
    %v7613 = vunpack.c.l.b16 %v6931
    %v7614 = vunpack.c.h.b16 %v6931
    %v7615 = vunpack.c.l.b16 %v6932
    %v7616 = vunpack.c.h.b16 %v6932
    %v7617 = vunpack.c.l.b16 %v6933
    %v7618 = vunpack.c.h.b16 %v6933
    %v7619 = vunpack.c.l.b16 %v6934
    %v7620 = vunpack.c.h.b16 %v6934
    %v7621 = vunpack.c.l.b16 %v6935
    %v7622 = vunpack.c.h.b16 %v6935
    %v7623 = vunpack.c.l.b16 %v6936
    %v7624 = vunpack.c.h.b16 %v6936
    %v7625 = vunpack.c.l.b16 %v6937
    %v7626 = vunpack.c.h.b16 %v6937
    %v7627 = vunpack.c.l.b16 %v6938
    %v7628 = vunpack.c.h.b16 %v6938
    %v7629 = vunpack.c.l.b16 %v6939
    %v7630 = vunpack.c.h.b16 %v6939
    %v7631 = vunpack.c.l.b16 %v6940
    %v7632 = vunpack.c.h.b16 %v6940
    %v7633 = vunpack.c.l.b16 %v6941
    %v7634 = vunpack.c.h.b16 %v6941
    %v7635 = vunpack.c.l.b16 %v6942
    %v7636 = vunpack.c.h.b16 %v6942
    %v7637 = vunpack.c.l.b16 %v6943
    %v7638 = vunpack.c.h.b16 %v6943
    %v7639 = vunpack.c.l.b16 %v6944
    %v7640 = vunpack.c.h.b16 %v6944
    %v7641 = vunpack.c.l.b16 %v6945
    %v7642 = vunpack.c.h.b16 %v6945
    %v7643 = vunpack.c.l.b16 %v6946
    %v7644 = vunpack.c.h.b16 %v6946
    %v7645 = vunpack.c.l.b16 %v6947
    %v7646 = vunpack.c.h.b16 %v6947
    %v7647 = vunpack.c.l.b16 %v6948
    %v7648 = vunpack.c.h.b16 %v6948
    %v7649 = vunpack.c.l.b16 %v6949
    %v7650 = vunpack.c.h.b16 %v6949
    %v7651 = vunpack.c.l.b16 %v6950
    %v7652 = vunpack.c.h.b16 %v6950
    %v7653 = vunpack.c.l.b16 %v6951
    %v7654 = vunpack.c.h.b16 %v6951
    %v7655 = vunpack.c.l.b16 %v6952
    %v7656 = vunpack.c.h.b16 %v6952
    %v7657 = vunpack.c.l.b16 %v6953
    %v7658 = vunpack.c.h.b16 %v6953
    %v7659 = vunpack.c.l.b16 %v6954
    %v7660 = vunpack.c.h.b16 %v6954
    %v7661 = vunpack.c.l.b16 %v6955
    %v7662 = vunpack.c.h.b16 %v6955
    %v7663 = vunpack.c.l.b16 %v6956
    %v7664 = vunpack.c.h.b16 %v6956
    %v7665 = vunpack.c.l.b16 %v6957
    %v7666 = vunpack.c.h.b16 %v6957
    %v7667 = vunpack.c.l.b16 %v6958
    %v7668 = vunpack.c.h.b16 %v6958
    %v7669 = vunpack.c.l.b16 %v6959
    %v7670 = vunpack.c.h.b16 %v6959
    %v7671 = vunpack.c.l.b16 %v6960
    %v7672 = vunpack.c.h.b16 %v6960
    %v7673 = vunpack.c.l.b16 %v6961
    %v7674 = vunpack.c.h.b16 %v6961
    %v7675 = vunpack.c.l.b16 %v6962
    %v7676 = vunpack.c.h.b16 %v6962
    %v7677 = vunpack.c.l.b16 %v6963
    %v7678 = vunpack.c.h.b16 %v6963
    %v7679 = vunpack.c.l.b16 %v6964
    %v7680 = vunpack.c.h.b16 %v6964
    %v7681 = vunpack.c.l.b16 %v6965
    %v7682 = vunpack.c.h.b16 %v6965
    %v7683 = vunpack.c.l.b16 %v6966
    %v7684 = vunpack.c.h.b16 %v6966
    %v7685 = vunpack.c.l.b16 %v6967
    %v7686 = vunpack.c.h.b16 %v6967
    %v7687 = vunpack.c.l.b16 %v6968
    %v7688 = vunpack.c.h.b16 %v6968
    %v7689 = vunpack.c.l.b16 %v6969
    %v7690 = vunpack.c.h.b16 %v6969
    %v7691 = vunpack.c.l.b16 %v6970
    %v7692 = vunpack.c.h.b16 %v6970
    %v7693 = vunpack.c.l.b16 %v6971
    %v7694 = vunpack.c.h.b16 %v6971
    %v7695 = vunpack.c.l.b16 %v6972
    %v7696 = vunpack.c.h.b16 %v6972
    %v7697 = vunpack.c.l.b16 %v6973
    %v7698 = vunpack.c.h.b16 %v6973
    %v7699 = vunpack.c.l.b16 %v6974
    %v7700 = vunpack.c.h.b16 %v6974
    %v7701 = vunpack.c.l.b16 %v6975
    %v7702 = vunpack.c.h.b16 %v6975
    %v7703 = vunpack.c.l.b16 %v6976
    %v7704 = vunpack.c.h.b16 %v6976
    %v7705 = vunpack.c.l.b16 %v6977
    %v7706 = vunpack.c.h.b16 %v6977
    %v7707 = vunpack.c.l.b16 %v6978
    %v7708 = vunpack.c.h.b16 %v6978
    %v7709 = vunpack.c.l.b16 %v6979
    %v7710 = vunpack.c.h.b16 %v6979
    %v7711 = vunpack.c.l.b16 %v6980
    %v7712 = vunpack.c.h.b16 %v6980
    %v7713 = vunpack.c.l.b16 %v6981
    %v7714 = vunpack.c.h.b16 %v6981
    %v7715 = vunpack.c.l.b16 %v6982
    %v7716 = vunpack.c.h.b16 %v6982
    %v7717 = vunpack.c.l.b16 %v6983
    %v7718 = vunpack.c.h.b16 %v6983
    %v7719 = vunpack.c.l.b16 %v6984
    %v7720 = vunpack.c.h.b16 %v6984
    %v7721 = vunpack.c.l.b16 %v6985
    %v7722 = vunpack.c.h.b16 %v6985
    %v7723 = vunpack.c.l.b16 %v6986
    %v7724 = vunpack.c.h.b16 %v6986
    %v7725 = vunpack.c.l.b16 %v6987
    %v7726 = vunpack.c.h.b16 %v6987
    %v7727 = vunpack.c.l.b16 %v6988
    %v7728 = vunpack.c.h.b16 %v6988
    %v7729 = vunpack.c.l.b16 %v6989
    %v7730 = vunpack.c.h.b16 %v6989
    %v7731 = vunpack.c.l.b16 %v6990
    %v7732 = vunpack.c.h.b16 %v6990
    %v7733 = vunpack.c.l.b16 %v6991
    %v7734 = vunpack.c.h.b16 %v6991
    %v7735 = vunpack.c.l.b16 %v6992
    %v7736 = vunpack.c.h.b16 %v6992
    %v7737 = vunpack.c.l.b16 %v6993
    %v7738 = vunpack.c.h.b16 %v6993
    %v7739 = vunpack.c.l.b16 %v6994
    %v7740 = vunpack.c.h.b16 %v6994
    %v7741 = vunpack.c.l.b16 %v6995
    %v7742 = vunpack.c.h.b16 %v6995
    %v7743 = vunpack.c.l.b16 %v6996
    %v7744 = vunpack.c.h.b16 %v6996
    %v7745 = vunpack.c.l.b16 %v6997
    %v7746 = vunpack.c.h.b16 %v6997
    %v7747 = vunpack.c.l.b16 %v6998
    %v7748 = vunpack.c.h.b16 %v6998
    %v7749 = vunpack.c.l.b16 %v6999
    %v7750 = vunpack.c.h.b16 %v6999
    %v7751 = vunpack.c.l.b16 %v7000
    %v7752 = vunpack.c.h.b16 %v7000
    %v7753 = vunpack.c.l.b16 %v7001
    %v7754 = vunpack.c.h.b16 %v7001
    %v7755 = vunpack.c.l.b16 %v7002
    %v7756 = vunpack.c.h.b16 %v7002
    %v7757 = vunpack.c.l.b16 %v7003
    %v7758 = vunpack.c.h.b16 %v7003
    %v7759 = vunpack.c.l.b16 %v7004
    %v7760 = vunpack.c.h.b16 %v7004
    %v7761 = vunpack.c.l.b16 %v7005
    %v7762 = vunpack.c.h.b16 %v7005
    %v7763 = vunpack.c.l.b16 %v7006
    %v7764 = vunpack.c.h.b16 %v7006
    %v7765 = vunpack.c.l.b16 %v7007
    %v7766 = vunpack.c.h.b16 %v7007
    %v7767 = vunpack.c.l.b16 %v7008
    %v7768 = vunpack.c.h.b16 %v7008
    %v7769 = vunpack.c.l.b16 %v7009
    %v7770 = vunpack.c.h.b16 %v7009
    %v7771 = vunpack.c.l.b16 %v7010
    %v7772 = vunpack.c.h.b16 %v7010
    %v7773 = vunpack.c.l.b16 %v7011
    %v7774 = vunpack.c.h.b16 %v7011
    %v7775 = vunpack.c.l.b16 %v7012
    %v7776 = vunpack.c.h.b16 %v7012
    %v7777 = vunpack.c.l.b16 %v7013
    %v7778 = vunpack.c.h.b16 %v7013
    %v7779 = vunpack.c.l.b16 %v7014
    %v7780 = vunpack.c.h.b16 %v7014
    %v7781 = vunpack.c.l.b16 %v7015
    %v7782 = vunpack.c.h.b16 %v7015
    %v7783 = vunpack.c.l.b16 %v7016
    %v7784 = vunpack.c.h.b16 %v7016
    %v7785 = vpack.c.b16 %v7281, %v7273
    %v7786 = vpack.c.b16 %v7282, %v7274
    %v7787 = vpack.c.b16 %v7283, %v7275
    %v7788 = vpack.c.b16 %v7284, %v7276
    %v7789 = vpack.c.b16 %v7285, %v7277
    %v7790 = vpack.c.b16 %v7286, %v7278
    %v7791 = vpack.c.b16 %v7287, %v7279
    %v7792 = vpack.c.b16 %v7288, %v7280
    %v7793 = vpack.c.b16 %v7297, %v7289
    %v7794 = vpack.c.b16 %v7298, %v7290
    %v7795 = vpack.c.b16 %v7299, %v7291
    %v7796 = vpack.c.b16 %v7300, %v7292
    %v7797 = vpack.c.b16 %v7301, %v7293
    %v7798 = vpack.c.b16 %v7302, %v7294
    %v7799 = vpack.c.b16 %v7303, %v7295
    %v7800 = vpack.c.b16 %v7304, %v7296
    %v7801 = vpack.c.b16 %v7313, %v7305
    %v7802 = vpack.c.b16 %v7314, %v7306
    %v7803 = vpack.c.b16 %v7315, %v7307
    %v7804 = vpack.c.b16 %v7316, %v7308
    %v7805 = vpack.c.b16 %v7317, %v7309
    %v7806 = vpack.c.b16 %v7318, %v7310
    %v7807 = vpack.c.b16 %v7319, %v7311
    %v7808 = vpack.c.b16 %v7320, %v7312
    %v7809 = vpack.c.b16 %v7329, %v7321
    %v7810 = vpack.c.b16 %v7330, %v7322
    %v7811 = vpack.c.b16 %v7331, %v7323
    %v7812 = vpack.c.b16 %v7332, %v7324
    %v7813 = vpack.c.b16 %v7333, %v7325
    %v7814 = vpack.c.b16 %v7334, %v7326
    %v7815 = vpack.c.b16 %v7335, %v7327
    %v7816 = vpack.c.b16 %v7336, %v7328
    %v7817 = vpack.c.b16 %v7345, %v7337
    %v7818 = vpack.c.b16 %v7346, %v7338
    %v7819 = vpack.c.b16 %v7347, %v7339
    %v7820 = vpack.c.b16 %v7348, %v7340
    %v7821 = vpack.c.b16 %v7349, %v7341
    %v7822 = vpack.c.b16 %v7350, %v7342
    %v7823 = vpack.c.b16 %v7351, %v7343
    %v7824 = vpack.c.b16 %v7352, %v7344
    %v7825 = vpack.c.b16 %v7361, %v7353
    %v7826 = vpack.c.b16 %v7362, %v7354
    %v7827 = vpack.c.b16 %v7363, %v7355
    %v7828 = vpack.c.b16 %v7364, %v7356
    %v7829 = vpack.c.b16 %v7365, %v7357
    %v7830 = vpack.c.b16 %v7366, %v7358
    %v7831 = vpack.c.b16 %v7367, %v7359
    %v7832 = vpack.c.b16 %v7368, %v7360
    %v7833 = vpack.c.b16 %v7377, %v7369
    %v7834 = vpack.c.b16 %v7378, %v7370
    %v7835 = vpack.c.b16 %v7379, %v7371
    %v7836 = vpack.c.b16 %v7380, %v7372
    %v7837 = vpack.c.b16 %v7381, %v7373
    %v7838 = vpack.c.b16 %v7382, %v7374
    %v7839 = vpack.c.b16 %v7383, %v7375
    %v7840 = vpack.c.b16 %v7384, %v7376
    %v7841 = vpack.c.b16 %v7393, %v7385
    %v7842 = vpack.c.b16 %v7394, %v7386
    %v7843 = vpack.c.b16 %v7395, %v7387
    %v7844 = vpack.c.b16 %v7396, %v7388
    %v7845 = vpack.c.b16 %v7397, %v7389
    %v7846 = vpack.c.b16 %v7398, %v7390
    %v7847 = vpack.c.b16 %v7399, %v7391
    %v7848 = vpack.c.b16 %v7400, %v7392
    %v7849 = vpack.c.b16 %v7409, %v7401
    %v7850 = vpack.c.b16 %v7410, %v7402
    %v7851 = vpack.c.b16 %v7411, %v7403
    %v7852 = vpack.c.b16 %v7412, %v7404
    %v7853 = vpack.c.b16 %v7413, %v7405
    %v7854 = vpack.c.b16 %v7414, %v7406
    %v7855 = vpack.c.b16 %v7415, %v7407
    %v7856 = vpack.c.b16 %v7416, %v7408
    %v7857 = vpack.c.b16 %v7425, %v7417
    %v7858 = vpack.c.b16 %v7426, %v7418
    %v7859 = vpack.c.b16 %v7427, %v7419
    %v7860 = vpack.c.b16 %v7428, %v7420
    %v7861 = vpack.c.b16 %v7429, %v7421
    %v7862 = vpack.c.b16 %v7430, %v7422
    %v7863 = vpack.c.b16 %v7431, %v7423
    %v7864 = vpack.c.b16 %v7432, %v7424
    %v7865 = vpack.c.b16 %v7441, %v7433
    %v7866 = vpack.c.b16 %v7442, %v7434
    %v7867 = vpack.c.b16 %v7443, %v7435
    %v7868 = vpack.c.b16 %v7444, %v7436
    %v7869 = vpack.c.b16 %v7445, %v7437
    %v7870 = vpack.c.b16 %v7446, %v7438
    %v7871 = vpack.c.b16 %v7447, %v7439
    %v7872 = vpack.c.b16 %v7448, %v7440
    %v7873 = vpack.c.b16 %v7457, %v7449
    %v7874 = vpack.c.b16 %v7458, %v7450
    %v7875 = vpack.c.b16 %v7459, %v7451
    %v7876 = vpack.c.b16 %v7460, %v7452
    %v7877 = vpack.c.b16 %v7461, %v7453
    %v7878 = vpack.c.b16 %v7462, %v7454
    %v7879 = vpack.c.b16 %v7463, %v7455
    %v7880 = vpack.c.b16 %v7464, %v7456
    %v7881 = vpack.c.b16 %v7473, %v7465
    %v7882 = vpack.c.b16 %v7474, %v7466
    %v7883 = vpack.c.b16 %v7475, %v7467
    %v7884 = vpack.c.b16 %v7476, %v7468
    %v7885 = vpack.c.b16 %v7477, %v7469
    %v7886 = vpack.c.b16 %v7478, %v7470
    %v7887 = vpack.c.b16 %v7479, %v7471
    %v7888 = vpack.c.b16 %v7480, %v7472
    %v7889 = vpack.c.b16 %v7489, %v7481
    %v7890 = vpack.c.b16 %v7490, %v7482
    %v7891 = vpack.c.b16 %v7491, %v7483
    %v7892 = vpack.c.b16 %v7492, %v7484
    %v7893 = vpack.c.b16 %v7493, %v7485
    %v7894 = vpack.c.b16 %v7494, %v7486
    %v7895 = vpack.c.b16 %v7495, %v7487
    %v7896 = vpack.c.b16 %v7496, %v7488
    %v7897 = vpack.c.b16 %v7505, %v7497
    %v7898 = vpack.c.b16 %v7506, %v7498
    %v7899 = vpack.c.b16 %v7507, %v7499
    %v7900 = vpack.c.b16 %v7508, %v7500
    %v7901 = vpack.c.b16 %v7509, %v7501
    %v7902 = vpack.c.b16 %v7510, %v7502
    %v7903 = vpack.c.b16 %v7511, %v7503
    %v7904 = vpack.c.b16 %v7512, %v7504
    %v7905 = vpack.c.b16 %v7521, %v7513
    %v7906 = vpack.c.b16 %v7522, %v7514
    %v7907 = vpack.c.b16 %v7523, %v7515
    %v7908 = vpack.c.b16 %v7524, %v7516
    %v7909 = vpack.c.b16 %v7525, %v7517
    %v7910 = vpack.c.b16 %v7526, %v7518
    %v7911 = vpack.c.b16 %v7527, %v7519
    %v7912 = vpack.c.b16 %v7528, %v7520
    %v7913 = vpack.c.b16 %v7537, %v7529
    %v7914 = vpack.c.b16 %v7538, %v7530
    %v7915 = vpack.c.b16 %v7539, %v7531
    %v7916 = vpack.c.b16 %v7540, %v7532
    %v7917 = vpack.c.b16 %v7541, %v7533
    %v7918 = vpack.c.b16 %v7542, %v7534
    %v7919 = vpack.c.b16 %v7543, %v7535
    %v7920 = vpack.c.b16 %v7544, %v7536
    %v7921 = vpack.c.b16 %v7553, %v7545
    %v7922 = vpack.c.b16 %v7554, %v7546
    %v7923 = vpack.c.b16 %v7555, %v7547
    %v7924 = vpack.c.b16 %v7556, %v7548
    %v7925 = vpack.c.b16 %v7557, %v7549
    %v7926 = vpack.c.b16 %v7558, %v7550
    %v7927 = vpack.c.b16 %v7559, %v7551
    %v7928 = vpack.c.b16 %v7560, %v7552
    %v7929 = vpack.c.b16 %v7569, %v7561
    %v7930 = vpack.c.b16 %v7570, %v7562
    %v7931 = vpack.c.b16 %v7571, %v7563
    %v7932 = vpack.c.b16 %v7572, %v7564
    %v7933 = vpack.c.b16 %v7573, %v7565
    %v7934 = vpack.c.b16 %v7574, %v7566
    %v7935 = vpack.c.b16 %v7575, %v7567
    %v7936 = vpack.c.b16 %v7576, %v7568
    %v7937 = vpack.c.b16 %v7585, %v7577
    %v7938 = vpack.c.b16 %v7586, %v7578
    %v7939 = vpack.c.b16 %v7587, %v7579
    %v7940 = vpack.c.b16 %v7588, %v7580
    %v7941 = vpack.c.b16 %v7589, %v7581
    %v7942 = vpack.c.b16 %v7590, %v7582
    %v7943 = vpack.c.b16 %v7591, %v7583
    %v7944 = vpack.c.b16 %v7592, %v7584
    %v7945 = vpack.c.b16 %v7601, %v7593
    %v7946 = vpack.c.b16 %v7602, %v7594
    %v7947 = vpack.c.b16 %v7603, %v7595
    %v7948 = vpack.c.b16 %v7604, %v7596
    %v7949 = vpack.c.b16 %v7605, %v7597
    %v7950 = vpack.c.b16 %v7606, %v7598
    %v7951 = vpack.c.b16 %v7607, %v7599
    %v7952 = vpack.c.b16 %v7608, %v7600
    %v7953 = vpack.c.b16 %v7617, %v7609
    %v7954 = vpack.c.b16 %v7618, %v7610
    %v7955 = vpack.c.b16 %v7619, %v7611
    %v7956 = vpack.c.b16 %v7620, %v7612
    %v7957 = vpack.c.b16 %v7621, %v7613
    %v7958 = vpack.c.b16 %v7622, %v7614
    %v7959 = vpack.c.b16 %v7623, %v7615
    %v7960 = vpack.c.b16 %v7624, %v7616
    %v7961 = vpack.c.b16 %v7633, %v7625
    %v7962 = vpack.c.b16 %v7634, %v7626
    %v7963 = vpack.c.b16 %v7635, %v7627
    %v7964 = vpack.c.b16 %v7636, %v7628
    %v7965 = vpack.c.b16 %v7637, %v7629
    %v7966 = vpack.c.b16 %v7638, %v7630
    %v7967 = vpack.c.b16 %v7639, %v7631
    %v7968 = vpack.c.b16 %v7640, %v7632
    %v7969 = vpack.c.b16 %v7649, %v7641
    %v7970 = vpack.c.b16 %v7650, %v7642
    %v7971 = vpack.c.b16 %v7651, %v7643
    %v7972 = vpack.c.b16 %v7652, %v7644
    %v7973 = vpack.c.b16 %v7653, %v7645
    %v7974 = vpack.c.b16 %v7654, %v7646
    %v7975 = vpack.c.b16 %v7655, %v7647
    %v7976 = vpack.c.b16 %v7656, %v7648
    %v7977 = vpack.c.b16 %v7665, %v7657
    %v7978 = vpack.c.b16 %v7666, %v7658
    %v7979 = vpack.c.b16 %v7667, %v7659
    %v7980 = vpack.c.b16 %v7668, %v7660
    %v7981 = vpack.c.b16 %v7669, %v7661
    %v7982 = vpack.c.b16 %v7670, %v7662
    %v7983 = vpack.c.b16 %v7671, %v7663
    %v7984 = vpack.c.b16 %v7672, %v7664
    %v7985 = vpack.c.b16 %v7681, %v7673
    %v7986 = vpack.c.b16 %v7682, %v7674
    %v7987 = vpack.c.b16 %v7683, %v7675
    %v7988 = vpack.c.b16 %v7684, %v7676
    %v7989 = vpack.c.b16 %v7685, %v7677
    %v7990 = vpack.c.b16 %v7686, %v7678
    %v7991 = vpack.c.b16 %v7687, %v7679
    %v7992 = vpack.c.b16 %v7688, %v7680
    %v7993 = vpack.c.b16 %v7697, %v7689
    %v7994 = vpack.c.b16 %v7698, %v7690
    %v7995 = vpack.c.b16 %v7699, %v7691
    %v7996 = vpack.c.b16 %v7700, %v7692
    %v7997 = vpack.c.b16 %v7701, %v7693
    %v7998 = vpack.c.b16 %v7702, %v7694
    %v7999 = vpack.c.b16 %v7703, %v7695
    %v8000 = vpack.c.b16 %v7704, %v7696
    %v8001 = vpack.c.b16 %v7713, %v7705
    %v8002 = vpack.c.b16 %v7714, %v7706
    %v8003 = vpack.c.b16 %v7715, %v7707
    %v8004 = vpack.c.b16 %v7716, %v7708
    %v8005 = vpack.c.b16 %v7717, %v7709
    %v8006 = vpack.c.b16 %v7718, %v7710
    %v8007 = vpack.c.b16 %v7719, %v7711
    %v8008 = vpack.c.b16 %v7720, %v7712
    %v8009 = vpack.c.b16 %v7729, %v7721
    %v8010 = vpack.c.b16 %v7730, %v7722
    %v8011 = vpack.c.b16 %v7731, %v7723
    %v8012 = vpack.c.b16 %v7732, %v7724
    %v8013 = vpack.c.b16 %v7733, %v7725
    %v8014 = vpack.c.b16 %v7734, %v7726
    %v8015 = vpack.c.b16 %v7735, %v7727
    %v8016 = vpack.c.b16 %v7736, %v7728
    %v8017 = vpack.c.b16 %v7745, %v7737
    %v8018 = vpack.c.b16 %v7746, %v7738
    %v8019 = vpack.c.b16 %v7747, %v7739
    %v8020 = vpack.c.b16 %v7748, %v7740
    %v8021 = vpack.c.b16 %v7749, %v7741
    %v8022 = vpack.c.b16 %v7750, %v7742
    %v8023 = vpack.c.b16 %v7751, %v7743
    %v8024 = vpack.c.b16 %v7752, %v7744
    %v8025 = vpack.c.b16 %v7761, %v7753
    %v8026 = vpack.c.b16 %v7762, %v7754
    %v8027 = vpack.c.b16 %v7763, %v7755
    %v8028 = vpack.c.b16 %v7764, %v7756
    %v8029 = vpack.c.b16 %v7765, %v7757
    %v8030 = vpack.c.b16 %v7766, %v7758
    %v8031 = vpack.c.b16 %v7767, %v7759
    %v8032 = vpack.c.b16 %v7768, %v7760
    %v8033 = vpack.c.b16 %v7777, %v7769
    %v8034 = vpack.c.b16 %v7778, %v7770
    %v8035 = vpack.c.b16 %v7779, %v7771
    %v8036 = vpack.c.b16 %v7780, %v7772
    %v8037 = vpack.c.b16 %v7781, %v7773
    %v8038 = vpack.c.b16 %v7782, %v7774
    %v8039 = vpack.c.b16 %v7783, %v7775
    %v8040 = vpack.c.b16 %v7784, %v7776
    %8297 = vmatpush.bf16.msra.mxu0 %v7841
    %8298 = vmatpush.bf16.msra.mxu0 %v7833
    %8299 = vmatpush.bf16.msra.mxu0 %v7825
    %8300 = vmatpush.bf16.msra.mxu0 %v7817
    %8301 = vmatpush.bf16.msra.mxu0 %v7809
    %8302 = vmatpush.bf16.msra.mxu0 %v7801
    %8303 = vmatpush.bf16.msra.mxu0 %v7793
    %8304 = vmatpush.bf16.msra.mxu0 %v7785
    %8305 = vmatmul.bf16.gmra.mxu0 %v6757
    %v8306 = vpop.f32.mrf.mxu0
    %v8307 = vadd.f32 0.0, %v8306
    %v8308 = vpop.f32.mrf.mxu0
    %8309 = vdwg.mxu0
    %8310 = vmatpush.bf16.msra.mxu0 %v7905
    %8311 = vmatpush.bf16.msra.mxu0 %v7897
    %8312 = vmatpush.bf16.msra.mxu0 %v7889
    %8313 = vmatpush.bf16.msra.mxu0 %v7881
    %8314 = vmatpush.bf16.msra.mxu0 %v7873
    %8315 = vmatpush.bf16.msra.mxu0 %v7865
    %8316 = vmatpush.bf16.msra.mxu0 %v7857
    %8317 = vmatpush.bf16.msra.mxu0 %v7849
    %8318 = vmatmul.bf16.gmra.mxu0 %v6758
    %v8319 = vpop.f32.mrf.mxu0
    %v8320 = vadd.f32 %v8307, %v8319
    %v8321 = vpop.f32.mrf.mxu0
    %8322 = vdwg.mxu0
    %8323 = vmatpush.bf16.msra.mxu0 %v7969
    %8324 = vmatpush.bf16.msra.mxu0 %v7961
    %8325 = vmatpush.bf16.msra.mxu0 %v7953
    %8326 = vmatpush.bf16.msra.mxu0 %v7945
    %8327 = vmatpush.bf16.msra.mxu0 %v7937
    %8328 = vmatpush.bf16.msra.mxu0 %v7929
    %8329 = vmatpush.bf16.msra.mxu0 %v7921
    %8330 = vmatpush.bf16.msra.mxu0 %v7913
    %8331 = vmatmul.bf16.gmra.mxu0 %v6759
    %v8332 = vpop.f32.mrf.mxu0
    %v8333 = vadd.f32 %v8320, %v8332
    %v8334 = vpop.f32.mrf.mxu0
    %8335 = vdwg.mxu0
    %8336 = vmatpush.bf16.msra.mxu0 %v8033
    %8337 = vmatpush.bf16.msra.mxu0 %v8025
    %8338 = vmatpush.bf16.msra.mxu0 %v8017
    %8339 = vmatpush.bf16.msra.mxu0 %v8009
    %8340 = vmatpush.bf16.msra.mxu0 %v8001
    %8341 = vmatpush.bf16.msra.mxu0 %v7993
    %8342 = vmatpush.bf16.msra.mxu0 %v7985
    %8343 = vmatpush.bf16.msra.mxu0 %v7977
    %8344 = vmatmul.bf16.gmra.mxu0 %v6760
    %v8345 = vpop.f32.mrf.mxu0
    %v8346 = vadd.f32 %v8333, %v8345
    %v8347 = vpop.f32.mrf.mxu0
    %8348 = vdwg.mxu0
    %8349 = vmatpush.bf16.msra.mxu0 %v7842
    %8350 = vmatpush.bf16.msra.mxu0 %v7834
    %8351 = vmatpush.bf16.msra.mxu0 %v7826
    %8352 = vmatpush.bf16.msra.mxu0 %v7818
    %8353 = vmatpush.bf16.msra.mxu0 %v7810
    %8354 = vmatpush.bf16.msra.mxu0 %v7802
    %8355 = vmatpush.bf16.msra.mxu0 %v7794
    %8356 = vmatpush.bf16.msra.mxu0 %v7786
    %8357 = vmatmul.bf16.gmra.mxu0 %v6757
    %v8358 = vpop.f32.mrf.mxu0
    %v8359 = vadd.f32 0.0, %v8358
    %v8360 = vpop.f32.mrf.mxu0
    %8361 = vdwg.mxu0
    %8362 = vmatpush.bf16.msra.mxu0 %v7906
    %8363 = vmatpush.bf16.msra.mxu0 %v7898
    %8364 = vmatpush.bf16.msra.mxu0 %v7890
    %8365 = vmatpush.bf16.msra.mxu0 %v7882
    %8366 = vmatpush.bf16.msra.mxu0 %v7874
    %8367 = vmatpush.bf16.msra.mxu0 %v7866
    %8368 = vmatpush.bf16.msra.mxu0 %v7858
    %8369 = vmatpush.bf16.msra.mxu0 %v7850
    %8370 = vmatmul.bf16.gmra.mxu0 %v6758
    %v8371 = vpop.f32.mrf.mxu0
    %v8372 = vadd.f32 %v8359, %v8371
    %v8373 = vpop.f32.mrf.mxu0
    %8374 = vdwg.mxu0
    %8375 = vmatpush.bf16.msra.mxu0 %v7970
    %8376 = vmatpush.bf16.msra.mxu0 %v7962
    %8377 = vmatpush.bf16.msra.mxu0 %v7954
    %8378 = vmatpush.bf16.msra.mxu0 %v7946
    %8379 = vmatpush.bf16.msra.mxu0 %v7938
    %8380 = vmatpush.bf16.msra.mxu0 %v7930
    %8381 = vmatpush.bf16.msra.mxu0 %v7922
    %8382 = vmatpush.bf16.msra.mxu0 %v7914
    %8383 = vmatmul.bf16.gmra.mxu0 %v6759
    %v8384 = vpop.f32.mrf.mxu0
    %v8385 = vadd.f32 %v8372, %v8384
    %v8386 = vpop.f32.mrf.mxu0
    %8387 = vdwg.mxu0
    %8388 = vmatpush.bf16.msra.mxu0 %v8034
    %8389 = vmatpush.bf16.msra.mxu0 %v8026
    %8390 = vmatpush.bf16.msra.mxu0 %v8018
    %8391 = vmatpush.bf16.msra.mxu0 %v8010
    %8392 = vmatpush.bf16.msra.mxu0 %v8002
    %8393 = vmatpush.bf16.msra.mxu0 %v7994
    %8394 = vmatpush.bf16.msra.mxu0 %v7986
    %8395 = vmatpush.bf16.msra.mxu0 %v7978
    %8396 = vmatmul.bf16.gmra.mxu0 %v6760
    %v8397 = vpop.f32.mrf.mxu0
    %v8398 = vadd.f32 %v8385, %v8397
    %v8399 = vpop.f32.mrf.mxu0
    %8400 = vdwg.mxu0
    %8401 = vmatpush.bf16.msra.mxu0 %v7843
    %8402 = vmatpush.bf16.msra.mxu0 %v7835
    %8403 = vmatpush.bf16.msra.mxu0 %v7827
    %8404 = vmatpush.bf16.msra.mxu0 %v7819
    %8405 = vmatpush.bf16.msra.mxu0 %v7811
    %8406 = vmatpush.bf16.msra.mxu0 %v7803
    %8407 = vmatpush.bf16.msra.mxu0 %v7795
    %8408 = vmatpush.bf16.msra.mxu0 %v7787
    %8409 = vmatmul.bf16.gmra.mxu0 %v6757
    %v8410 = vpop.f32.mrf.mxu0
    %v8411 = vadd.f32 0.0, %v8410
    %v8412 = vpop.f32.mrf.mxu0
    %8413 = vdwg.mxu0
    %8414 = vmatpush.bf16.msra.mxu0 %v7907
    %8415 = vmatpush.bf16.msra.mxu0 %v7899
    %8416 = vmatpush.bf16.msra.mxu0 %v7891
    %8417 = vmatpush.bf16.msra.mxu0 %v7883
    %8418 = vmatpush.bf16.msra.mxu0 %v7875
    %8419 = vmatpush.bf16.msra.mxu0 %v7867
    %8420 = vmatpush.bf16.msra.mxu0 %v7859
    %8421 = vmatpush.bf16.msra.mxu0 %v7851
    %8422 = vmatmul.bf16.gmra.mxu0 %v6758
    %v8423 = vpop.f32.mrf.mxu0
    %v8424 = vadd.f32 %v8411, %v8423
    %v8425 = vpop.f32.mrf.mxu0
    %8426 = vdwg.mxu0
    %8427 = vmatpush.bf16.msra.mxu0 %v7971
    %8428 = vmatpush.bf16.msra.mxu0 %v7963
    %8429 = vmatpush.bf16.msra.mxu0 %v7955
    %8430 = vmatpush.bf16.msra.mxu0 %v7947
    %8431 = vmatpush.bf16.msra.mxu0 %v7939
    %8432 = vmatpush.bf16.msra.mxu0 %v7931
    %8433 = vmatpush.bf16.msra.mxu0 %v7923
    %8434 = vmatpush.bf16.msra.mxu0 %v7915
    %8435 = vmatmul.bf16.gmra.mxu0 %v6759
    %v8436 = vpop.f32.mrf.mxu0
    %v8437 = vadd.f32 %v8424, %v8436
    %v8438 = vpop.f32.mrf.mxu0
    %8439 = vdwg.mxu0
    %8440 = vmatpush.bf16.msra.mxu0 %v8035
    %8441 = vmatpush.bf16.msra.mxu0 %v8027
    %8442 = vmatpush.bf16.msra.mxu0 %v8019
    %8443 = vmatpush.bf16.msra.mxu0 %v8011
    %8444 = vmatpush.bf16.msra.mxu0 %v8003
    %8445 = vmatpush.bf16.msra.mxu0 %v7995
    %8446 = vmatpush.bf16.msra.mxu0 %v7987
    %8447 = vmatpush.bf16.msra.mxu0 %v7979
    %8448 = vmatmul.bf16.gmra.mxu0 %v6760
    %v8449 = vpop.f32.mrf.mxu0
    %v8450 = vadd.f32 %v8437, %v8449
    %v8451 = vpop.f32.mrf.mxu0
    %8452 = vdwg.mxu0
    %8453 = vmatpush.bf16.msra.mxu0 %v7844
    %8454 = vmatpush.bf16.msra.mxu0 %v7836
    %8455 = vmatpush.bf16.msra.mxu0 %v7828
    %8456 = vmatpush.bf16.msra.mxu0 %v7820
    %8457 = vmatpush.bf16.msra.mxu0 %v7812
    %8458 = vmatpush.bf16.msra.mxu0 %v7804
    %8459 = vmatpush.bf16.msra.mxu0 %v7796
    %8460 = vmatpush.bf16.msra.mxu0 %v7788
    %8461 = vmatmul.bf16.gmra.mxu0 %v6757
    %v8462 = vpop.f32.mrf.mxu0
    %v8463 = vadd.f32 0.0, %v8462
    %v8464 = vpop.f32.mrf.mxu0
    %8465 = vdwg.mxu0
    %8466 = vmatpush.bf16.msra.mxu0 %v7908
    %8467 = vmatpush.bf16.msra.mxu0 %v7900
    %8468 = vmatpush.bf16.msra.mxu0 %v7892
    %8469 = vmatpush.bf16.msra.mxu0 %v7884
    %8470 = vmatpush.bf16.msra.mxu0 %v7876
    %8471 = vmatpush.bf16.msra.mxu0 %v7868
    %8472 = vmatpush.bf16.msra.mxu0 %v7860
    %8473 = vmatpush.bf16.msra.mxu0 %v7852
    %8474 = vmatmul.bf16.gmra.mxu0 %v6758
    %v8475 = vpop.f32.mrf.mxu0
    %v8476 = vadd.f32 %v8463, %v8475
    %v8477 = vpop.f32.mrf.mxu0
    %8478 = vdwg.mxu0
    %8479 = vmatpush.bf16.msra.mxu0 %v7972
    %8480 = vmatpush.bf16.msra.mxu0 %v7964
    %8481 = vmatpush.bf16.msra.mxu0 %v7956
    %8482 = vmatpush.bf16.msra.mxu0 %v7948
    %8483 = vmatpush.bf16.msra.mxu0 %v7940
    %8484 = vmatpush.bf16.msra.mxu0 %v7932
    %8485 = vmatpush.bf16.msra.mxu0 %v7924
    %8486 = vmatpush.bf16.msra.mxu0 %v7916
    %8487 = vmatmul.bf16.gmra.mxu0 %v6759
    %v8488 = vpop.f32.mrf.mxu0
    %v8489 = vadd.f32 %v8476, %v8488
    %v8490 = vpop.f32.mrf.mxu0
    %8491 = vdwg.mxu0
    %8492 = vmatpush.bf16.msra.mxu0 %v8036
    %8493 = vmatpush.bf16.msra.mxu0 %v8028
    %8494 = vmatpush.bf16.msra.mxu0 %v8020
    %8495 = vmatpush.bf16.msra.mxu0 %v8012
    %8496 = vmatpush.bf16.msra.mxu0 %v8004
    %8497 = vmatpush.bf16.msra.mxu0 %v7996
    %8498 = vmatpush.bf16.msra.mxu0 %v7988
    %8499 = vmatpush.bf16.msra.mxu0 %v7980
    %8500 = vmatmul.bf16.gmra.mxu0 %v6760
    %v8501 = vpop.f32.mrf.mxu0
    %v8502 = vadd.f32 %v8489, %v8501
    %v8503 = vpop.f32.mrf.mxu0
    %8504 = vdwg.mxu0
    %8505 = vmatpush.bf16.msra.mxu0 %v7845
    %8506 = vmatpush.bf16.msra.mxu0 %v7837
    %8507 = vmatpush.bf16.msra.mxu0 %v7829
    %8508 = vmatpush.bf16.msra.mxu0 %v7821
    %8509 = vmatpush.bf16.msra.mxu0 %v7813
    %8510 = vmatpush.bf16.msra.mxu0 %v7805
    %8511 = vmatpush.bf16.msra.mxu0 %v7797
    %8512 = vmatpush.bf16.msra.mxu0 %v7789
    %8513 = vmatmul.bf16.gmra.mxu0 %v6757
    %v8514 = vpop.f32.mrf.mxu0
    %v8515 = vadd.f32 0.0, %v8514
    %v8516 = vpop.f32.mrf.mxu0
    %8517 = vdwg.mxu0
    %8518 = vmatpush.bf16.msra.mxu0 %v7909
    %8519 = vmatpush.bf16.msra.mxu0 %v7901
    %8520 = vmatpush.bf16.msra.mxu0 %v7893
    %8521 = vmatpush.bf16.msra.mxu0 %v7885
    %8522 = vmatpush.bf16.msra.mxu0 %v7877
    %8523 = vmatpush.bf16.msra.mxu0 %v7869
    %8524 = vmatpush.bf16.msra.mxu0 %v7861
    %8525 = vmatpush.bf16.msra.mxu0 %v7853
    %8526 = vmatmul.bf16.gmra.mxu0 %v6758
    %v8527 = vpop.f32.mrf.mxu0
    %v8528 = vadd.f32 %v8515, %v8527
    %v8529 = vpop.f32.mrf.mxu0
    %8530 = vdwg.mxu0
    %8531 = vmatpush.bf16.msra.mxu0 %v7973
    %8532 = vmatpush.bf16.msra.mxu0 %v7965
    %8533 = vmatpush.bf16.msra.mxu0 %v7957
    %8534 = vmatpush.bf16.msra.mxu0 %v7949
    %8535 = vmatpush.bf16.msra.mxu0 %v7941
    %8536 = vmatpush.bf16.msra.mxu0 %v7933
    %8537 = vmatpush.bf16.msra.mxu0 %v7925
    %8538 = vmatpush.bf16.msra.mxu0 %v7917
    %8539 = vmatmul.bf16.gmra.mxu0 %v6759
    %v8540 = vpop.f32.mrf.mxu0
    %v8541 = vadd.f32 %v8528, %v8540
    %v8542 = vpop.f32.mrf.mxu0
    %8543 = vdwg.mxu0
    %8544 = vmatpush.bf16.msra.mxu0 %v8037
    %8545 = vmatpush.bf16.msra.mxu0 %v8029
    %8546 = vmatpush.bf16.msra.mxu0 %v8021
    %8547 = vmatpush.bf16.msra.mxu0 %v8013
    %8548 = vmatpush.bf16.msra.mxu0 %v8005
    %8549 = vmatpush.bf16.msra.mxu0 %v7997
    %8550 = vmatpush.bf16.msra.mxu0 %v7989
    %8551 = vmatpush.bf16.msra.mxu0 %v7981
    %8552 = vmatmul.bf16.gmra.mxu0 %v6760
    %v8553 = vpop.f32.mrf.mxu0
    %v8554 = vadd.f32 %v8541, %v8553
    %v8555 = vpop.f32.mrf.mxu0
    %8556 = vdwg.mxu0
    %8557 = vmatpush.bf16.msra.mxu0 %v7846
    %8558 = vmatpush.bf16.msra.mxu0 %v7838
    %8559 = vmatpush.bf16.msra.mxu0 %v7830
    %8560 = vmatpush.bf16.msra.mxu0 %v7822
    %8561 = vmatpush.bf16.msra.mxu0 %v7814
    %8562 = vmatpush.bf16.msra.mxu0 %v7806
    %8563 = vmatpush.bf16.msra.mxu0 %v7798
    %8564 = vmatpush.bf16.msra.mxu0 %v7790
    %8565 = vmatmul.bf16.gmra.mxu0 %v6757
    %v8566 = vpop.f32.mrf.mxu0
    %v8567 = vadd.f32 0.0, %v8566
    %v8568 = vpop.f32.mrf.mxu0
    %8569 = vdwg.mxu0
    %8570 = vmatpush.bf16.msra.mxu0 %v7910
    %8571 = vmatpush.bf16.msra.mxu0 %v7902
    %8572 = vmatpush.bf16.msra.mxu0 %v7894
    %8573 = vmatpush.bf16.msra.mxu0 %v7886
    %8574 = vmatpush.bf16.msra.mxu0 %v7878
    %8575 = vmatpush.bf16.msra.mxu0 %v7870
    %8576 = vmatpush.bf16.msra.mxu0 %v7862
    %8577 = vmatpush.bf16.msra.mxu0 %v7854
    %8578 = vmatmul.bf16.gmra.mxu0 %v6758
    %v8579 = vpop.f32.mrf.mxu0
    %v8580 = vadd.f32 %v8567, %v8579
    %v8581 = vpop.f32.mrf.mxu0
    %8582 = vdwg.mxu0
    %8583 = vmatpush.bf16.msra.mxu0 %v7974
    %8584 = vmatpush.bf16.msra.mxu0 %v7966
    %8585 = vmatpush.bf16.msra.mxu0 %v7958
    %8586 = vmatpush.bf16.msra.mxu0 %v7950
    %8587 = vmatpush.bf16.msra.mxu0 %v7942
    %8588 = vmatpush.bf16.msra.mxu0 %v7934
    %8589 = vmatpush.bf16.msra.mxu0 %v7926
    %8590 = vmatpush.bf16.msra.mxu0 %v7918
    %8591 = vmatmul.bf16.gmra.mxu0 %v6759
    %v8592 = vpop.f32.mrf.mxu0
    %v8593 = vadd.f32 %v8580, %v8592
    %v8594 = vpop.f32.mrf.mxu0
    %8595 = vdwg.mxu0
    %8596 = vmatpush.bf16.msra.mxu0 %v8038
    %8597 = vmatpush.bf16.msra.mxu0 %v8030
    %8598 = vmatpush.bf16.msra.mxu0 %v8022
    %8599 = vmatpush.bf16.msra.mxu0 %v8014
    %8600 = vmatpush.bf16.msra.mxu0 %v8006
    %8601 = vmatpush.bf16.msra.mxu0 %v7998
    %8602 = vmatpush.bf16.msra.mxu0 %v7990
    %8603 = vmatpush.bf16.msra.mxu0 %v7982
    %8604 = vmatmul.bf16.gmra.mxu0 %v6760
    %v8605 = vpop.f32.mrf.mxu0
    %v8606 = vadd.f32 %v8593, %v8605
    %v8607 = vpop.f32.mrf.mxu0
    %8608 = vdwg.mxu0
    %8609 = vmatpush.bf16.msra.mxu0 %v7847
    %8610 = vmatpush.bf16.msra.mxu0 %v7839
    %8611 = vmatpush.bf16.msra.mxu0 %v7831
    %8612 = vmatpush.bf16.msra.mxu0 %v7823
    %8613 = vmatpush.bf16.msra.mxu0 %v7815
    %8614 = vmatpush.bf16.msra.mxu0 %v7807
    %8615 = vmatpush.bf16.msra.mxu0 %v7799
    %8616 = vmatpush.bf16.msra.mxu0 %v7791
    %8617 = vmatmul.bf16.gmra.mxu0 %v6757
    %v8618 = vpop.f32.mrf.mxu0
    %v8619 = vadd.f32 0.0, %v8618
    %v8620 = vpop.f32.mrf.mxu0
    %8621 = vdwg.mxu0
    %8622 = vmatpush.bf16.msra.mxu0 %v7911
    %8623 = vmatpush.bf16.msra.mxu0 %v7903
    %8624 = vmatpush.bf16.msra.mxu0 %v7895
    %8625 = vmatpush.bf16.msra.mxu0 %v7887
    %8626 = vmatpush.bf16.msra.mxu0 %v7879
    %8627 = vmatpush.bf16.msra.mxu0 %v7871
    %8628 = vmatpush.bf16.msra.mxu0 %v7863
    %8629 = vmatpush.bf16.msra.mxu0 %v7855
    %8630 = vmatmul.bf16.gmra.mxu0 %v6758
    %v8631 = vpop.f32.mrf.mxu0
    %v8632 = vadd.f32 %v8619, %v8631
    %v8633 = vpop.f32.mrf.mxu0
    %8634 = vdwg.mxu0
    %8635 = vmatpush.bf16.msra.mxu0 %v7975
    %8636 = vmatpush.bf16.msra.mxu0 %v7967
    %8637 = vmatpush.bf16.msra.mxu0 %v7959
    %8638 = vmatpush.bf16.msra.mxu0 %v7951
    %8639 = vmatpush.bf16.msra.mxu0 %v7943
    %8640 = vmatpush.bf16.msra.mxu0 %v7935
    %8641 = vmatpush.bf16.msra.mxu0 %v7927
    %8642 = vmatpush.bf16.msra.mxu0 %v7919
    %8643 = vmatmul.bf16.gmra.mxu0 %v6759
    %v8644 = vpop.f32.mrf.mxu0
    %v8645 = vadd.f32 %v8632, %v8644
    %v8646 = vpop.f32.mrf.mxu0
    %8647 = vdwg.mxu0
    %8648 = vmatpush.bf16.msra.mxu0 %v8039
    %8649 = vmatpush.bf16.msra.mxu0 %v8031
    %8650 = vmatpush.bf16.msra.mxu0 %v8023
    %8651 = vmatpush.bf16.msra.mxu0 %v8015
    %8652 = vmatpush.bf16.msra.mxu0 %v8007
    %8653 = vmatpush.bf16.msra.mxu0 %v7999
    %8654 = vmatpush.bf16.msra.mxu0 %v7991
    %8655 = vmatpush.bf16.msra.mxu0 %v7983
    %8656 = vmatmul.bf16.gmra.mxu0 %v6760
    %v8657 = vpop.f32.mrf.mxu0
    %v8658 = vadd.f32 %v8645, %v8657
    %v8659 = vpop.f32.mrf.mxu0
    %8660 = vdwg.mxu0
    %8661 = vmatpush.bf16.msra.mxu0 %v7848
    %8662 = vmatpush.bf16.msra.mxu0 %v7840
    %8663 = vmatpush.bf16.msra.mxu0 %v7832
    %8664 = vmatpush.bf16.msra.mxu0 %v7824
    %8665 = vmatpush.bf16.msra.mxu0 %v7816
    %8666 = vmatpush.bf16.msra.mxu0 %v7808
    %8667 = vmatpush.bf16.msra.mxu0 %v7800
    %8668 = vmatpush.bf16.msra.mxu0 %v7792
    %8669 = vmatmul.bf16.gmra.mxu0 %v6757
    %v8670 = vpop.f32.mrf.mxu0
    %v8671 = vadd.f32 0.0, %v8670
    %v8672 = vpop.f32.mrf.mxu0
    %8673 = vdwg.mxu0
    %8674 = vmatpush.bf16.msra.mxu0 %v7912
    %8675 = vmatpush.bf16.msra.mxu0 %v7904
    %8676 = vmatpush.bf16.msra.mxu0 %v7896
    %8677 = vmatpush.bf16.msra.mxu0 %v7888
    %8678 = vmatpush.bf16.msra.mxu0 %v7880
    %8679 = vmatpush.bf16.msra.mxu0 %v7872
    %8680 = vmatpush.bf16.msra.mxu0 %v7864
    %8681 = vmatpush.bf16.msra.mxu0 %v7856
    %8682 = vmatmul.bf16.gmra.mxu0 %v6758
    %v8683 = vpop.f32.mrf.mxu0
    %v8684 = vadd.f32 %v8671, %v8683
    %v8685 = vpop.f32.mrf.mxu0
    %8686 = vdwg.mxu0
    %8687 = vmatpush.bf16.msra.mxu0 %v7976
    %8688 = vmatpush.bf16.msra.mxu0 %v7968
    %8689 = vmatpush.bf16.msra.mxu0 %v7960
    %8690 = vmatpush.bf16.msra.mxu0 %v7952
    %8691 = vmatpush.bf16.msra.mxu0 %v7944
    %8692 = vmatpush.bf16.msra.mxu0 %v7936
    %8693 = vmatpush.bf16.msra.mxu0 %v7928
    %8694 = vmatpush.bf16.msra.mxu0 %v7920
    %8695 = vmatmul.bf16.gmra.mxu0 %v6759
    %v8696 = vpop.f32.mrf.mxu0
    %v8697 = vadd.f32 %v8684, %v8696
    %v8698 = vpop.f32.mrf.mxu0
    %8699 = vdwg.mxu0
    %8700 = vmatpush.bf16.msra.mxu0 %v8040
    %8701 = vmatpush.bf16.msra.mxu0 %v8032
    %8702 = vmatpush.bf16.msra.mxu0 %v8024
    %8703 = vmatpush.bf16.msra.mxu0 %v8016
    %8704 = vmatpush.bf16.msra.mxu0 %v8008
    %8705 = vmatpush.bf16.msra.mxu0 %v8000
    %8706 = vmatpush.bf16.msra.mxu0 %v7992
    %8707 = vmatpush.bf16.msra.mxu0 %v7984
    %8708 = vmatmul.bf16.gmra.mxu0 %v6760
    %v8709 = vpop.f32.mrf.mxu0
    %v8710 = vadd.f32 %v8697, %v8709
    %v8711 = vpop.f32.mrf.mxu0
    %8712 = vdwg.mxu0
    %v8713 = vadd.f32 %v6390, %v8346
    %v8714 = vadd.f32 %v6442, %v8398
    %v8715 = vadd.f32 %v6494, %v8450
    %v8716 = vadd.f32 %v6546, %v8502
    %v8717 = vadd.f32 %v6598, %v8554
    %v8718 = vadd.f32 %v6650, %v8606
    %v8719 = vadd.f32 %v6702, %v8658
    %v8720 = vadd.f32 %v6754, %v8710
    %v8721 = vld [vmem:[%s10] sm:$0xff]
    %v8723 = vperm.slane %v8721, 0
    %v8724 = vperm.slane %v8721, 1
    %v8725 = vperm.slane %v8721, 2
    %v8726 = vperm.slane %v8721, 3
    %v8727 = vperm.slane %v8721, 4
    %v8728 = vperm.slane %v8721, 5
    %v8729 = vperm.slane %v8721, 6
    %v8730 = vperm.slane %v8721, 7
    %v8739 = vadd.f32 %v8713, %v8723
    %v8740 = vadd.f32 %v8714, %v8724
    %v8741 = vadd.f32 %v8715, %v8725
    %v8742 = vadd.f32 %v8716, %v8726
    %v8743 = vadd.f32 %v8717, %v8727
    %v8744 = vadd.f32 %v8718, %v8728
    %v8745 = vadd.f32 %v8719, %v8729
    %v8746 = vadd.f32 %v8720, %v8730
    %vm8747 = vcmp.gt.f32.partialorder %v8739, 0.0
    %vm8748 = vcmp.gt.f32.partialorder %v8740, 0.0
    %vm8749 = vcmp.gt.f32.partialorder %v8741, 0.0
    %vm8750 = vcmp.gt.f32.partialorder %v8742, 0.0
    %vm8751 = vcmp.gt.f32.partialorder %v8743, 0.0
    %vm8752 = vcmp.gt.f32.partialorder %v8744, 0.0
    %vm8753 = vcmp.gt.f32.partialorder %v8745, 0.0
    %vm8754 = vcmp.gt.f32.partialorder %v8746, 0.0
    %v8755 = vmul.f32 %v8739, 0.01
    %v8756 = vmul.f32 %v8740, 0.01
    %v8757 = vmul.f32 %v8741, 0.01
    %v8758 = vmul.f32 %v8742, 0.01
    %v8759 = vmul.f32 %v8743, 0.01
    %v8760 = vmul.f32 %v8744, 0.01
    %v8761 = vmul.f32 %v8745, 0.01
    %v8762 = vmul.f32 %v8746, 0.01
    %v8763 = vsel %vm8747, %v8739, %v8755
    %v8764 = vsel %vm8748, %v8740, %v8756
    %v8765 = vsel %vm8749, %v8741, %v8757
    %v8766 = vsel %vm8750, %v8742, %v8758
    %v8767 = vsel %vm8751, %v8743, %v8759
    %v8768 = vsel %vm8752, %v8744, %v8760
    %v8769 = vsel %vm8753, %v8745, %v8761
    %v8770 = vsel %vm8754, %v8746, %v8762
    %v8771 = vpack.c.bf16 %v8763, %v8763
    %v8772 = vpack.c.bf16 %v8764, %v8764
    %v8773 = vpack.c.bf16 %v8765, %v8765
    %v8774 = vpack.c.bf16 %v8766, %v8766
    %v8775 = vpack.c.bf16 %v8767, %v8767
    %v8776 = vpack.c.bf16 %v8768, %v8768
    %v8777 = vpack.c.bf16 %v8769, %v8769
    %v8778 = vpack.c.bf16 %v8770, %v8770
    %v8779 = vld [vmem:[#allocation16] sm:$0xf]
    %v8780 = vld [vmem:[#allocation16 + $0x4] sm:$0xf]
    %v8781 = vld [vmem:[#allocation16 + $0x8] sm:$0xf]
    %v8782 = vld [vmem:[#allocation16 + $0xc] sm:$0xf]
    %v8783 = vld [vmem:[#allocation16 + $0x10] sm:$0xf]
    %v8784 = vld [vmem:[#allocation16 + $0x14] sm:$0xf]
    %v8785 = vld [vmem:[#allocation16 + $0x18] sm:$0xf]
    %v8786 = vld [vmem:[#allocation16 + $0x1c] sm:$0xf]
    %v8787 = vld [vmem:[#allocation16 + $0x20] sm:$0xf]
    %v8788 = vld [vmem:[#allocation16 + $0x24] sm:$0xf]
    %v8789 = vld [vmem:[#allocation16 + $0x28] sm:$0xf]
    %v8790 = vld [vmem:[#allocation16 + $0x2c] sm:$0xf]
    %v8791 = vld [vmem:[#allocation16 + $0x30] sm:$0xf]
    %v8792 = vld [vmem:[#allocation16 + $0x34] sm:$0xf]
    %v8793 = vld [vmem:[#allocation16 + $0x38] sm:$0xf]
    %v8794 = vld [vmem:[#allocation16 + $0x3c] sm:$0xf]
    %v8795 = vld [vmem:[#allocation16 + $0x40] sm:$0xf]
    %v8796 = vld [vmem:[#allocation16 + $0x44] sm:$0xf]
    %v8797 = vld [vmem:[#allocation16 + $0x48] sm:$0xf]
    %v8798 = vld [vmem:[#allocation16 + $0x4c] sm:$0xf]
    %v8799 = vld [vmem:[#allocation16 + $0x50] sm:$0xf]
    %v8800 = vld [vmem:[#allocation16 + $0x54] sm:$0xf]
    %v8801 = vld [vmem:[#allocation16 + $0x58] sm:$0xf]
    %v8802 = vld [vmem:[#allocation16 + $0x5c] sm:$0xf]
    %v8803 = vld [vmem:[#allocation16 + $0x60] sm:$0xf]
    %v8804 = vld [vmem:[#allocation16 + $0x64] sm:$0xf]
    %v8805 = vld [vmem:[#allocation16 + $0x68] sm:$0xf]
    %v8806 = vld [vmem:[#allocation16 + $0x6c] sm:$0xf]
    %v8807 = vld [vmem:[#allocation16 + $0x70] sm:$0xf]
    %v8808 = vld [vmem:[#allocation16 + $0x74] sm:$0xf]
    %v8809 = vld [vmem:[#allocation16 + $0x78] sm:$0xf]
    %v8810 = vld [vmem:[#allocation16 + $0x7c] sm:$0xf]
    %v8811 = vld [vmem:[#allocation16 + $0x80] sm:$0xf]
    %v8812 = vld [vmem:[#allocation16 + $0x84] sm:$0xf]
    %v8813 = vld [vmem:[#allocation16 + $0x88] sm:$0xf]
    %v8814 = vld [vmem:[#allocation16 + $0x8c] sm:$0xf]
    %v8815 = vld [vmem:[#allocation16 + $0x90] sm:$0xf]
    %v8816 = vld [vmem:[#allocation16 + $0x94] sm:$0xf]
    %v8817 = vld [vmem:[#allocation16 + $0x98] sm:$0xf]
    %v8818 = vld [vmem:[#allocation16 + $0x9c] sm:$0xf]
    %v8819 = vld [vmem:[#allocation16 + $0xa0] sm:$0xf]
    %v8820 = vld [vmem:[#allocation16 + $0xa4] sm:$0xf]
    %v8821 = vld [vmem:[#allocation16 + $0xa8] sm:$0xf]
    %v8822 = vld [vmem:[#allocation16 + $0xac] sm:$0xf]
    %v8823 = vld [vmem:[#allocation16 + $0xb0] sm:$0xf]
    %v8824 = vld [vmem:[#allocation16 + $0xb4] sm:$0xf]
    %v8825 = vld [vmem:[#allocation16 + $0xb8] sm:$0xf]
    %v8826 = vld [vmem:[#allocation16 + $0xbc] sm:$0xf]
    %v8827 = vld [vmem:[#allocation16 + $0xc0] sm:$0xf]
    %v8828 = vld [vmem:[#allocation16 + $0xc4] sm:$0xf]
    %v8829 = vld [vmem:[#allocation16 + $0xc8] sm:$0xf]
    %v8830 = vld [vmem:[#allocation16 + $0xcc] sm:$0xf]
    %v8831 = vld [vmem:[#allocation16 + $0xd0] sm:$0xf]
    %v8832 = vld [vmem:[#allocation16 + $0xd4] sm:$0xf]
    %v8833 = vld [vmem:[#allocation16 + $0xd8] sm:$0xf]
    %v8834 = vld [vmem:[#allocation16 + $0xdc] sm:$0xf]
    %v8835 = vld [vmem:[#allocation16 + $0xe0] sm:$0xf]
    %v8836 = vld [vmem:[#allocation16 + $0xe4] sm:$0xf]
    %v8837 = vld [vmem:[#allocation16 + $0xe8] sm:$0xf]
    %v8838 = vld [vmem:[#allocation16 + $0xec] sm:$0xf]
    %v8839 = vld [vmem:[#allocation16 + $0xf0] sm:$0xf]
    %v8840 = vld [vmem:[#allocation16 + $0xf4] sm:$0xf]
    %v8841 = vld [vmem:[#allocation16 + $0xf8] sm:$0xf]
    %v8842 = vld [vmem:[#allocation16 + $0xfc] sm:$0xf]
    %v8843 = vld [vmem:[#allocation16 + $0x100] sm:$0xf]
    %v8844 = vld [vmem:[#allocation16 + $0x104] sm:$0xf]
    %v8845 = vld [vmem:[#allocation16 + $0x108] sm:$0xf]
    %v8846 = vld [vmem:[#allocation16 + $0x10c] sm:$0xf]
    %v8847 = vld [vmem:[#allocation16 + $0x110] sm:$0xf]
    %v8848 = vld [vmem:[#allocation16 + $0x114] sm:$0xf]
    %v8849 = vld [vmem:[#allocation16 + $0x118] sm:$0xf]
    %v8850 = vld [vmem:[#allocation16 + $0x11c] sm:$0xf]
    %v8851 = vld [vmem:[#allocation16 + $0x120] sm:$0xf]
    %v8852 = vld [vmem:[#allocation16 + $0x124] sm:$0xf]
    %v8853 = vld [vmem:[#allocation16 + $0x128] sm:$0xf]
    %v8854 = vld [vmem:[#allocation16 + $0x12c] sm:$0xf]
    %v8855 = vld [vmem:[#allocation16 + $0x130] sm:$0xf]
    %v8856 = vld [vmem:[#allocation16 + $0x134] sm:$0xf]
    %v8857 = vld [vmem:[#allocation16 + $0x138] sm:$0xf]
    %v8858 = vld [vmem:[#allocation16 + $0x13c] sm:$0xf]
    %v8859 = vld [vmem:[#allocation16 + $0x140] sm:$0xf]
    %v8860 = vld [vmem:[#allocation16 + $0x144] sm:$0xf]
    %v8861 = vld [vmem:[#allocation16 + $0x148] sm:$0xf]
    %v8862 = vld [vmem:[#allocation16 + $0x14c] sm:$0xf]
    %v8863 = vld [vmem:[#allocation16 + $0x150] sm:$0xf]
    %v8864 = vld [vmem:[#allocation16 + $0x154] sm:$0xf]
    %v8865 = vld [vmem:[#allocation16 + $0x158] sm:$0xf]
    %v8866 = vld [vmem:[#allocation16 + $0x15c] sm:$0xf]
    %v8867 = vld [vmem:[#allocation16 + $0x160] sm:$0xf]
    %v8868 = vld [vmem:[#allocation16 + $0x164] sm:$0xf]
    %v8869 = vld [vmem:[#allocation16 + $0x168] sm:$0xf]
    %v8870 = vld [vmem:[#allocation16 + $0x16c] sm:$0xf]
    %v8871 = vld [vmem:[#allocation16 + $0x170] sm:$0xf]
    %v8872 = vld [vmem:[#allocation16 + $0x174] sm:$0xf]
    %v8873 = vld [vmem:[#allocation16 + $0x178] sm:$0xf]
    %v8874 = vld [vmem:[#allocation16 + $0x17c] sm:$0xf]
    %v8875 = vld [vmem:[#allocation16 + $0x180] sm:$0xf]
    %v8876 = vld [vmem:[#allocation16 + $0x184] sm:$0xf]
    %v8877 = vld [vmem:[#allocation16 + $0x188] sm:$0xf]
    %v8878 = vld [vmem:[#allocation16 + $0x18c] sm:$0xf]
    %v8879 = vld [vmem:[#allocation16 + $0x190] sm:$0xf]
    %v8880 = vld [vmem:[#allocation16 + $0x194] sm:$0xf]
    %v8881 = vld [vmem:[#allocation16 + $0x198] sm:$0xf]
    %v8882 = vld [vmem:[#allocation16 + $0x19c] sm:$0xf]
    %v8883 = vld [vmem:[#allocation16 + $0x1a0] sm:$0xf]
    %v8884 = vld [vmem:[#allocation16 + $0x1a4] sm:$0xf]
    %v8885 = vld [vmem:[#allocation16 + $0x1a8] sm:$0xf]
    %v8886 = vld [vmem:[#allocation16 + $0x1ac] sm:$0xf]
    %v8887 = vld [vmem:[#allocation16 + $0x1b0] sm:$0xf]
    %v8888 = vld [vmem:[#allocation16 + $0x1b4] sm:$0xf]
    %v8889 = vld [vmem:[#allocation16 + $0x1b8] sm:$0xf]
    %v8890 = vld [vmem:[#allocation16 + $0x1bc] sm:$0xf]
    %v8891 = vld [vmem:[#allocation16 + $0x1c0] sm:$0xf]
    %v8892 = vld [vmem:[#allocation16 + $0x1c4] sm:$0xf]
    %v8893 = vld [vmem:[#allocation16 + $0x1c8] sm:$0xf]
    %v8894 = vld [vmem:[#allocation16 + $0x1cc] sm:$0xf]
    %v8895 = vld [vmem:[#allocation16 + $0x1d0] sm:$0xf]
    %v8896 = vld [vmem:[#allocation16 + $0x1d4] sm:$0xf]
    %v8897 = vld [vmem:[#allocation16 + $0x1d8] sm:$0xf]
    %v8898 = vld [vmem:[#allocation16 + $0x1dc] sm:$0xf]
    %v8899 = vld [vmem:[#allocation16 + $0x1e0] sm:$0xf]
    %v8900 = vld [vmem:[#allocation16 + $0x1e4] sm:$0xf]
    %v8901 = vld [vmem:[#allocation16 + $0x1e8] sm:$0xf]
    %v8902 = vld [vmem:[#allocation16 + $0x1ec] sm:$0xf]
    %v8903 = vld [vmem:[#allocation16 + $0x1f0] sm:$0xf]
    %v8904 = vld [vmem:[#allocation16 + $0x1f4] sm:$0xf]
    %v8905 = vld [vmem:[#allocation16 + $0x1f8] sm:$0xf]
    %v8906 = vld [vmem:[#allocation16 + $0x1fc] sm:$0xf]
    %v8907 = vld [vmem:[%s12] sm:$0x1]
    %v8909 = vperm.slane %v8907, 0
    %v9039 = vunpack.c.l.b16 %v8779
    %v9040 = vunpack.c.l.b16 %v8780
    %v9041 = vunpack.c.l.b16 %v8781
    %v9042 = vunpack.c.l.b16 %v8782
    %v9043 = vunpack.c.l.b16 %v8783
    %v9044 = vunpack.c.l.b16 %v8784
    %v9045 = vunpack.c.l.b16 %v8785
    %v9046 = vunpack.c.l.b16 %v8786
    %v9047 = vunpack.c.l.b16 %v8787
    %v9048 = vunpack.c.l.b16 %v8788
    %v9049 = vunpack.c.l.b16 %v8789
    %v9050 = vunpack.c.l.b16 %v8790
    %v9051 = vunpack.c.l.b16 %v8791
    %v9052 = vunpack.c.l.b16 %v8792
    %v9053 = vunpack.c.l.b16 %v8793
    %v9054 = vunpack.c.l.b16 %v8794
    %v9055 = vunpack.c.l.b16 %v8795
    %v9056 = vunpack.c.l.b16 %v8796
    %v9057 = vunpack.c.l.b16 %v8797
    %v9058 = vunpack.c.l.b16 %v8798
    %v9059 = vunpack.c.l.b16 %v8799
    %v9060 = vunpack.c.l.b16 %v8800
    %v9061 = vunpack.c.l.b16 %v8801
    %v9062 = vunpack.c.l.b16 %v8802
    %v9063 = vunpack.c.l.b16 %v8803
    %v9064 = vunpack.c.l.b16 %v8804
    %v9065 = vunpack.c.l.b16 %v8805
    %v9066 = vunpack.c.l.b16 %v8806
    %v9067 = vunpack.c.l.b16 %v8807
    %v9068 = vunpack.c.l.b16 %v8808
    %v9069 = vunpack.c.l.b16 %v8809
    %v9070 = vunpack.c.l.b16 %v8810
    %v9071 = vunpack.c.l.b16 %v8811
    %v9072 = vunpack.c.l.b16 %v8812
    %v9073 = vunpack.c.l.b16 %v8813
    %v9074 = vunpack.c.l.b16 %v8814
    %v9075 = vunpack.c.l.b16 %v8815
    %v9076 = vunpack.c.l.b16 %v8816
    %v9077 = vunpack.c.l.b16 %v8817
    %v9078 = vunpack.c.l.b16 %v8818
    %v9079 = vunpack.c.l.b16 %v8819
    %v9080 = vunpack.c.l.b16 %v8820
    %v9081 = vunpack.c.l.b16 %v8821
    %v9082 = vunpack.c.l.b16 %v8822
    %v9083 = vunpack.c.l.b16 %v8823
    %v9084 = vunpack.c.l.b16 %v8824
    %v9085 = vunpack.c.l.b16 %v8825
    %v9086 = vunpack.c.l.b16 %v8826
    %v9087 = vunpack.c.l.b16 %v8827
    %v9088 = vunpack.c.l.b16 %v8828
    %v9089 = vunpack.c.l.b16 %v8829
    %v9090 = vunpack.c.l.b16 %v8830
    %v9091 = vunpack.c.l.b16 %v8831
    %v9092 = vunpack.c.l.b16 %v8832
    %v9093 = vunpack.c.l.b16 %v8833
    %v9094 = vunpack.c.l.b16 %v8834
    %v9095 = vunpack.c.l.b16 %v8835
    %v9096 = vunpack.c.l.b16 %v8836
    %v9097 = vunpack.c.l.b16 %v8837
    %v9098 = vunpack.c.l.b16 %v8838
    %v9099 = vunpack.c.l.b16 %v8839
    %v9100 = vunpack.c.l.b16 %v8840
    %v9101 = vunpack.c.l.b16 %v8841
    %v9102 = vunpack.c.l.b16 %v8842
    %v9103 = vunpack.c.l.b16 %v8843
    %v9104 = vunpack.c.l.b16 %v8844
    %v9105 = vunpack.c.l.b16 %v8845
    %v9106 = vunpack.c.l.b16 %v8846
    %v9107 = vunpack.c.l.b16 %v8847
    %v9108 = vunpack.c.l.b16 %v8848
    %v9109 = vunpack.c.l.b16 %v8849
    %v9110 = vunpack.c.l.b16 %v8850
    %v9111 = vunpack.c.l.b16 %v8851
    %v9112 = vunpack.c.l.b16 %v8852
    %v9113 = vunpack.c.l.b16 %v8853
    %v9114 = vunpack.c.l.b16 %v8854
    %v9115 = vunpack.c.l.b16 %v8855
    %v9116 = vunpack.c.l.b16 %v8856
    %v9117 = vunpack.c.l.b16 %v8857
    %v9118 = vunpack.c.l.b16 %v8858
    %v9119 = vunpack.c.l.b16 %v8859
    %v9120 = vunpack.c.l.b16 %v8860
    %v9121 = vunpack.c.l.b16 %v8861
    %v9122 = vunpack.c.l.b16 %v8862
    %v9123 = vunpack.c.l.b16 %v8863
    %v9124 = vunpack.c.l.b16 %v8864
    %v9125 = vunpack.c.l.b16 %v8865
    %v9126 = vunpack.c.l.b16 %v8866
    %v9127 = vunpack.c.l.b16 %v8867
    %v9128 = vunpack.c.l.b16 %v8868
    %v9129 = vunpack.c.l.b16 %v8869
    %v9130 = vunpack.c.l.b16 %v8870
    %v9131 = vunpack.c.l.b16 %v8871
    %v9132 = vunpack.c.l.b16 %v8872
    %v9133 = vunpack.c.l.b16 %v8873
    %v9134 = vunpack.c.l.b16 %v8874
    %v9135 = vunpack.c.l.b16 %v8875
    %v9136 = vunpack.c.l.b16 %v8876
    %v9137 = vunpack.c.l.b16 %v8877
    %v9138 = vunpack.c.l.b16 %v8878
    %v9139 = vunpack.c.l.b16 %v8879
    %v9140 = vunpack.c.l.b16 %v8880
    %v9141 = vunpack.c.l.b16 %v8881
    %v9142 = vunpack.c.l.b16 %v8882
    %v9143 = vunpack.c.l.b16 %v8883
    %v9144 = vunpack.c.l.b16 %v8884
    %v9145 = vunpack.c.l.b16 %v8885
    %v9146 = vunpack.c.l.b16 %v8886
    %v9147 = vunpack.c.l.b16 %v8887
    %v9148 = vunpack.c.l.b16 %v8888
    %v9149 = vunpack.c.l.b16 %v8889
    %v9150 = vunpack.c.l.b16 %v8890
    %v9151 = vunpack.c.l.b16 %v8891
    %v9152 = vunpack.c.l.b16 %v8892
    %v9153 = vunpack.c.l.b16 %v8893
    %v9154 = vunpack.c.l.b16 %v8894
    %v9155 = vunpack.c.l.b16 %v8895
    %v9156 = vunpack.c.l.b16 %v8896
    %v9157 = vunpack.c.l.b16 %v8897
    %v9158 = vunpack.c.l.b16 %v8898
    %v9159 = vunpack.c.l.b16 %v8899
    %v9160 = vunpack.c.l.b16 %v8900
    %v9161 = vunpack.c.l.b16 %v8901
    %v9162 = vunpack.c.l.b16 %v8902
    %v9163 = vunpack.c.l.b16 %v8903
    %v9164 = vunpack.c.l.b16 %v8904
    %v9165 = vunpack.c.l.b16 %v8905
    %v9166 = vunpack.c.l.b16 %v8906
    %v9167 = vpack.c.b16 %v9040, %v9039
    %v9168 = vpack.c.b16 %v9042, %v9041
    %v9169 = vpack.c.b16 %v9044, %v9043
    %v9170 = vpack.c.b16 %v9046, %v9045
    %v9171 = vpack.c.b16 %v9048, %v9047
    %v9172 = vpack.c.b16 %v9050, %v9049
    %v9173 = vpack.c.b16 %v9052, %v9051
    %v9174 = vpack.c.b16 %v9054, %v9053
    %v9175 = vpack.c.b16 %v9056, %v9055
    %v9176 = vpack.c.b16 %v9058, %v9057
    %v9177 = vpack.c.b16 %v9060, %v9059
    %v9178 = vpack.c.b16 %v9062, %v9061
    %v9179 = vpack.c.b16 %v9064, %v9063
    %v9180 = vpack.c.b16 %v9066, %v9065
    %v9181 = vpack.c.b16 %v9068, %v9067
    %v9182 = vpack.c.b16 %v9070, %v9069
    %v9183 = vpack.c.b16 %v9072, %v9071
    %v9184 = vpack.c.b16 %v9074, %v9073
    %v9185 = vpack.c.b16 %v9076, %v9075
    %v9186 = vpack.c.b16 %v9078, %v9077
    %v9187 = vpack.c.b16 %v9080, %v9079
    %v9188 = vpack.c.b16 %v9082, %v9081
    %v9189 = vpack.c.b16 %v9084, %v9083
    %v9190 = vpack.c.b16 %v9086, %v9085
    %v9191 = vpack.c.b16 %v9088, %v9087
    %v9192 = vpack.c.b16 %v9090, %v9089
    %v9193 = vpack.c.b16 %v9092, %v9091
    %v9194 = vpack.c.b16 %v9094, %v9093
    %v9195 = vpack.c.b16 %v9096, %v9095
    %v9196 = vpack.c.b16 %v9098, %v9097
    %v9197 = vpack.c.b16 %v9100, %v9099
    %v9198 = vpack.c.b16 %v9102, %v9101
    %v9199 = vpack.c.b16 %v9104, %v9103
    %v9200 = vpack.c.b16 %v9106, %v9105
    %v9201 = vpack.c.b16 %v9108, %v9107
    %v9202 = vpack.c.b16 %v9110, %v9109
    %v9203 = vpack.c.b16 %v9112, %v9111
    %v9204 = vpack.c.b16 %v9114, %v9113
    %v9205 = vpack.c.b16 %v9116, %v9115
    %v9206 = vpack.c.b16 %v9118, %v9117
    %v9207 = vpack.c.b16 %v9120, %v9119
    %v9208 = vpack.c.b16 %v9122, %v9121
    %v9209 = vpack.c.b16 %v9124, %v9123
    %v9210 = vpack.c.b16 %v9126, %v9125
    %v9211 = vpack.c.b16 %v9128, %v9127
    %v9212 = vpack.c.b16 %v9130, %v9129
    %v9213 = vpack.c.b16 %v9132, %v9131
    %v9214 = vpack.c.b16 %v9134, %v9133
    %v9215 = vpack.c.b16 %v9136, %v9135
    %v9216 = vpack.c.b16 %v9138, %v9137
    %v9217 = vpack.c.b16 %v9140, %v9139
    %v9218 = vpack.c.b16 %v9142, %v9141
    %v9219 = vpack.c.b16 %v9144, %v9143
    %v9220 = vpack.c.b16 %v9146, %v9145
    %v9221 = vpack.c.b16 %v9148, %v9147
    %v9222 = vpack.c.b16 %v9150, %v9149
    %v9223 = vpack.c.b16 %v9152, %v9151
    %v9224 = vpack.c.b16 %v9154, %v9153
    %v9225 = vpack.c.b16 %v9156, %v9155
    %v9226 = vpack.c.b16 %v9158, %v9157
    %v9227 = vpack.c.b16 %v9160, %v9159
    %v9228 = vpack.c.b16 %v9162, %v9161
    %v9229 = vpack.c.b16 %v9164, %v9163
    %v9230 = vpack.c.b16 %v9166, %v9165
    %9295 = vmatpush.bf16.msra.mxu0 %v9174
    %9296 = vmatpush.bf16.msra.mxu0 %v9173
    %9297 = vmatpush.bf16.msra.mxu0 %v9172
    %9298 = vmatpush.bf16.msra.mxu0 %v9171
    %9299 = vmatpush.bf16.msra.mxu0 %v9170
    %9300 = vmatpush.bf16.msra.mxu0 %v9169
    %9301 = vmatpush.bf16.msra.mxu0 %v9168
    %9302 = vmatpush.bf16.msra.mxu0 %v9167
    %9303 = vmatmul.bf16.gmra.mxu0 %v8771
    %v9304 = vpop.f32.mrf.mxu0
    %v9305 = vadd.f32 %v8909, %v9304
    %v9306 = vpop.f32.mrf.mxu0
    %9307 = vdwg.mxu0
    %9308 = vmatpush.bf16.msra.mxu0 %v9182
    %9309 = vmatpush.bf16.msra.mxu0 %v9181
    %9310 = vmatpush.bf16.msra.mxu0 %v9180
    %9311 = vmatpush.bf16.msra.mxu0 %v9179
    %9312 = vmatpush.bf16.msra.mxu0 %v9178
    %9313 = vmatpush.bf16.msra.mxu0 %v9177
    %9314 = vmatpush.bf16.msra.mxu0 %v9176
    %9315 = vmatpush.bf16.msra.mxu0 %v9175
    %9316 = vmatmul.bf16.gmra.mxu0 %v8772
    %v9317 = vpop.f32.mrf.mxu0
    %v9318 = vadd.f32 %v9305, %v9317
    %v9319 = vpop.f32.mrf.mxu0
    %9320 = vdwg.mxu0
    %9321 = vmatpush.bf16.msra.mxu0 %v9190
    %9322 = vmatpush.bf16.msra.mxu0 %v9189
    %9323 = vmatpush.bf16.msra.mxu0 %v9188
    %9324 = vmatpush.bf16.msra.mxu0 %v9187
    %9325 = vmatpush.bf16.msra.mxu0 %v9186
    %9326 = vmatpush.bf16.msra.mxu0 %v9185
    %9327 = vmatpush.bf16.msra.mxu0 %v9184
    %9328 = vmatpush.bf16.msra.mxu0 %v9183
    %9329 = vmatmul.bf16.gmra.mxu0 %v8773
    %v9330 = vpop.f32.mrf.mxu0
    %v9331 = vadd.f32 %v9318, %v9330
    %v9332 = vpop.f32.mrf.mxu0
    %9333 = vdwg.mxu0
    %9334 = vmatpush.bf16.msra.mxu0 %v9198
    %9335 = vmatpush.bf16.msra.mxu0 %v9197
    %9336 = vmatpush.bf16.msra.mxu0 %v9196
    %9337 = vmatpush.bf16.msra.mxu0 %v9195
    %9338 = vmatpush.bf16.msra.mxu0 %v9194
    %9339 = vmatpush.bf16.msra.mxu0 %v9193
    %9340 = vmatpush.bf16.msra.mxu0 %v9192
    %9341 = vmatpush.bf16.msra.mxu0 %v9191
    %9342 = vmatmul.bf16.gmra.mxu0 %v8774
    %v9343 = vpop.f32.mrf.mxu0
    %v9344 = vadd.f32 %v9331, %v9343
    %v9345 = vpop.f32.mrf.mxu0
    %9346 = vdwg.mxu0
    %9347 = vmatpush.bf16.msra.mxu0 %v9206
    %9348 = vmatpush.bf16.msra.mxu0 %v9205
    %9349 = vmatpush.bf16.msra.mxu0 %v9204
    %9350 = vmatpush.bf16.msra.mxu0 %v9203
    %9351 = vmatpush.bf16.msra.mxu0 %v9202
    %9352 = vmatpush.bf16.msra.mxu0 %v9201
    %9353 = vmatpush.bf16.msra.mxu0 %v9200
    %9354 = vmatpush.bf16.msra.mxu0 %v9199
    %9355 = vmatmul.bf16.gmra.mxu0 %v8775
    %v9356 = vpop.f32.mrf.mxu0
    %v9357 = vadd.f32 %v9344, %v9356
    %v9358 = vpop.f32.mrf.mxu0
    %9359 = vdwg.mxu0
    %9360 = vmatpush.bf16.msra.mxu0 %v9214
    %9361 = vmatpush.bf16.msra.mxu0 %v9213
    %9362 = vmatpush.bf16.msra.mxu0 %v9212
    %9363 = vmatpush.bf16.msra.mxu0 %v9211
    %9364 = vmatpush.bf16.msra.mxu0 %v9210
    %9365 = vmatpush.bf16.msra.mxu0 %v9209
    %9366 = vmatpush.bf16.msra.mxu0 %v9208
    %9367 = vmatpush.bf16.msra.mxu0 %v9207
    %9368 = vmatmul.bf16.gmra.mxu0 %v8776
    %v9369 = vpop.f32.mrf.mxu0
    %v9370 = vadd.f32 %v9357, %v9369
    %v9371 = vpop.f32.mrf.mxu0
    %9372 = vdwg.mxu0
    %9373 = vmatpush.bf16.msra.mxu0 %v9222
    %9374 = vmatpush.bf16.msra.mxu0 %v9221
    %9375 = vmatpush.bf16.msra.mxu0 %v9220
    %9376 = vmatpush.bf16.msra.mxu0 %v9219
    %9377 = vmatpush.bf16.msra.mxu0 %v9218
    %9378 = vmatpush.bf16.msra.mxu0 %v9217
    %9379 = vmatpush.bf16.msra.mxu0 %v9216
    %9380 = vmatpush.bf16.msra.mxu0 %v9215
    %9381 = vmatmul.bf16.gmra.mxu0 %v8777
    %v9382 = vpop.f32.mrf.mxu0
    %v9383 = vadd.f32 %v9370, %v9382
    %v9384 = vpop.f32.mrf.mxu0
    %9385 = vdwg.mxu0
    %9386 = vmatpush.bf16.msra.mxu0 %v9230
    %9387 = vmatpush.bf16.msra.mxu0 %v9229
    %9388 = vmatpush.bf16.msra.mxu0 %v9228
    %9389 = vmatpush.bf16.msra.mxu0 %v9227
    %9390 = vmatpush.bf16.msra.mxu0 %v9226
    %9391 = vmatpush.bf16.msra.mxu0 %v9225
    %9392 = vmatpush.bf16.msra.mxu0 %v9224
    %9393 = vmatpush.bf16.msra.mxu0 %v9223
    %9394 = vmatmul.bf16.gmra.mxu0 %v8778
    %v9395 = vpop.f32.mrf.mxu0
    %v9396 = vadd.f32 %v9383, %v9395
    %v9397 = vpop.f32.mrf.mxu0
    %9398 = vdwg.mxu0
    %9399 = vst [vmem:[#allocation17] sm:$0x3] %v9396
    // Predicated region
    $region90: #{tpu_custom_call.1} parent=1 // pred_check
      _
    $region91: #{tpu_custom_call.1} parent=1 // pred_check_branch
      %9401 = sbr.rel (0) target = $region93
    $region92: #{tpu_custom_call.1} parent=1 // pred_region
      %9403 = vsyncadd [#allocation4], 0
      %s9405 = sshll.u32 [#allocation17], 4
      %s9406 = int_to_ptr.vmem [resolvable:$true] %s9405
      %s9407 = sshll.u32 %s13, 4
      %s9408 = int_to_ptr.hbm [resolvable:$true] %s9407
      %9410 = dma.vmem_to_hbm [thread:$0]  %s9406, 32, %s9408, [#allocation4]
    $region93: #{tpu_custom_call.1} parent=1 // pred_fallthru
      _
    // Predicated region
    $region94: #{tpu_custom_call.1} parent=1 // pred_check
      _
    $region95: #{tpu_custom_call.1} parent=1 // pred_check_branch
      %9412 = sbr.rel (0) target = $region97
    $region96: #{tpu_custom_call.1} parent=1 // pred_region
      %9414 = vsyncadd [#allocation19], 0
      %s9416 = sshll.u32 [#allocation18], 4
      %s9417 = int_to_ptr.vmem [resolvable:$true] %s9416
      %s9418 = sshll.u32 %s14, 4
      %s9419 = int_to_ptr.hbm [resolvable:$true] %s9418
      %9421 = dma.vmem_to_hbm [thread:$0]  %s9417, 256, %s9419, [#allocation19]
    $region97: #{tpu_custom_call.1} parent=1 // pred_fallthru
      _
    // Predicated region
    $region98: #{tpu_custom_call.1} parent=1 // pred_check
      _
    $region99: #{tpu_custom_call.1} parent=1 // pred_check_branch
      %9423 = sbr.rel (0) target = $region101
    $region100: #{tpu_custom_call.1} parent=1 // pred_region
      _
    $region101: #{tpu_custom_call.1} parent=1 // pred_fallthru
      _
    // Predicated region
    $region102: #{tpu_custom_call.1} parent=1 // pred_check
      _
    $region103: #{tpu_custom_call.1} parent=1 // pred_check_branch
      %9425 = sbr.rel (0) target = $region105
    $region104: #{tpu_custom_call.1} parent=1 // pred_region
      %9427 = dma.done [#allocation4], 32
    $region105: #{tpu_custom_call.1} parent=1 // pred_fallthru
      _
    // Predicated region
    $region106: #{tpu_custom_call.1} parent=1 // pred_check
      _
    $region107: #{tpu_custom_call.1} parent=1 // pred_check_branch
      %9429 = sbr.rel (0) target = $region109
    $region108: #{tpu_custom_call.1} parent=1 // pred_region
      %9431 = dma.done [#allocation19], 256
    $region109: #{tpu_custom_call.1} parent=1 // pred_fallthru
      _
    // Predicated region
    $region110: #{tpu_custom_call.1} parent=1 // pred_check
      _
    $region111: #{tpu_custom_call.1} parent=1 // pred_check_branch
      %9433 = sbr.rel (0) target = $region113
    $region112: #{tpu_custom_call.1} parent=1 // pred_region
      _
    $region113: #{tpu_custom_call.1} parent=1 // pred_fallthru
      _
    %9434 = vsyncpa [#allocation3], 1
    %9435 = vsyncpa [#allocation6], 1
    %9436 = vsyncpa [#allocation9], 1
    %9437 = vsyncpa [#allocation12], 1
    %9438 = vsyncpa [#allocation15], 1
    %9439 = vsyncpa [#allocation4], 1
    %9440 = vsyncpa [#allocation19], 1

</llo_original>
